<compile_context>
chip_gen: v6e
topology: v6e:2x2x1
jax: 0.10.0
libtpu: 0.0.40
codegen_flags: <defaults>
</compile_context>

<pallas_src>
import functools

import jax
import jax.numpy as jnp
from jax.experimental import pallas as pl
from jax.experimental.pallas import tpu as pltpu

EPS = 1e-5
LANE = 128            # channel dims padded to multiples of the TPU lane width
STATS_ROW_TILE = 256  # row tile for the batch-stats reduction (raise to 512-2048 for prod)


def _round_up(x, m):
    return (x + m - 1) // m * m


def _pad_to(x, shape):
    pads = [(0, t - s) for s, t in zip(x.shape, shape)]
    return jnp.pad(x, pads)


# ---------------------------------------------------------------------------
# Kernel 1: per-channel batch statistics (sum, sum-of-squares), row-tiled with
# cross-tile accumulation into the output (init via pl.when on step 0).
# ---------------------------------------------------------------------------
def _channel_stats_kernel(x_ref, sum_ref, sq_ref):
    @pl.when(pl.program_id(0) == 0)
    def _():
        sum_ref[...] = jnp.zeros_like(sum_ref)
        sq_ref[...] = jnp.zeros_like(sq_ref)

    x = x_ref[...]                                   # (row_tile, Cpad) f32
    sum_ref[...] += jnp.sum(x, axis=0, keepdims=True)
    sq_ref[...] += jnp.sum(x * x, axis=0, keepdims=True)


def channel_stats(x2d, row_tile=STATS_ROW_TILE):
    m, c = x2d.shape
    m_pad = _round_up(m, row_tile)
    if m_pad != m:
        x2d = jnp.pad(x2d, ((0, m_pad - m), (0, 0)))  # zero rows do not change the sums
    return pl.pallas_call(
        _channel_stats_kernel,
        out_shape=(jax.ShapeDtypeStruct((1, c), jnp.float32),
                   jax.ShapeDtypeStruct((1, c), jnp.float32)),
        grid=(m_pad // row_tile,),
        in_specs=[pl.BlockSpec((row_tile, c), lambda i: (i, 0))],
        out_specs=(pl.BlockSpec((1, c), lambda i: (0, 0)),
                   pl.BlockSpec((1, c), lambda i: (0, 0))),
        compiler_params=pltpu.CompilerParams(
            dimension_semantics=("arbitrary",)),     # reduction axis: accumulate across tiles
    )(x2d)


# ---------------------------------------------------------------------------
# In-kernel 3x3 "same" conv: 9 shifted MXU matmuls against a zero-padded VMEM
# scratch. The scratch provides the vertical zero padding; per-tap column masks
# kill the horizontal wrap-around.
# ---------------------------------------------------------------------------
def _stage_padded(xpad_ref, xn, hw, pad_top, scratch_rows):
    c = xn.shape[-1]
    # Re-zero only the halo rows (aligned slices); the central block is overwritten below.
    xpad_ref[0:pad_top, :] = jnp.zeros((pad_top, c), xpad_ref.dtype)
    xpad_ref[pad_top + hw:scratch_rows, :] = jnp.zeros(
        (scratch_rows - pad_top - hw, c), xpad_ref.dtype)
    xpad_ref[pad_top:pad_top + hw, :] = xn           # aligned store (pad_top % 8 == 0)


def _conv3x3_taps(xpad_ref, w_ref, hw, w_img, pad_top, left_ok, right_ok):
    acc = None
    for ky in range(3):
        for kx in range(3):
            off = pad_top + (ky - 1) * w_img + (kx - 1)
            xt = xpad_ref[off:off + hw, :]           # out[r] <- xn[r + dy*W + dx] (zeros OOB)
            if kx == 0:
                xt = jnp.where(left_ok, xt, 0.0)
            elif kx == 2:
                xt = jnp.where(right_ok, xt, 0.0)
            c = jnp.dot(xt.astype(w_ref.dtype), w_ref[ky * 3 + kx],
                        preferred_element_type=jnp.float32)
            acc = c if acc is None else acc + c
    return acc


def _edge_masks(hw, w_img, c):
    col = jax.lax.broadcasted_iota(jnp.int32, (hw, c), 0) % w_img   # output pixel column
    return col >= 1, col <= (w_img - 2)


# ---------------------------------------------------------------------------
# Kernel 2: fused bn1 (precomputed scale/shift) + ReLU + 3x3 conv1, plus per-image
# partial stats of the conv output (so bn2 needs no extra HBM pass over h1).
# ---------------------------------------------------------------------------
def _bn_relu_conv1_kernel(x_ref, scale_ref, shift_ref, w_ref, bias_ref,
                          h_ref, sum_ref, sq_ref, xpad_ref,
                          *, h_img, w_img, pad_top, scratch_rows):
    hw = h_img * w_img
    cin = x_ref.shape[-1]

    # BN normalize + ReLU, all f32 on the VPU.
    xn = jnp.maximum(x_ref[0] * scale_ref[...] + shift_ref[...], 0.0)
    _stage_padded(xpad_ref, xn, hw, pad_top, scratch_rows)

    left_ok, right_ok = _edge_masks(hw, w_img, cin)
    h = _conv3x3_taps(xpad_ref, w_ref, hw, w_img, pad_top, left_ok, right_ok) + bias_ref[...]
    h_ref[0] = h.astype(h_ref.dtype)

    # Per-image partial batch stats of the conv1 output (finalized in the wrapper).
    sum_ref[0] = jnp.sum(h, axis=0, keepdims=True)
    sq_ref[0] = jnp.sum(h * h, axis=0, keepdims=True)


def _fused_conv1(x3d, scale1, shift1, w1, b1, cout_p, h_img, w_img):
    n, hw, cin_p = x3d.shape
    pad_top = _round_up(w_img + 1, 8)
    scratch_rows = _round_up(pad_top + hw + w_img + 1, 8)
    kern = functools.partial(_bn_relu_conv1_kernel, h_img=h_img, w_img=w_img,
                             pad_top=pad_top, scratch_rows=scratch_rows)
    return pl.pallas_call(
        kern,
        out_shape=(jax.ShapeDtypeStruct((n, hw, cout_p), jnp.float32),
                   jax.ShapeDtypeStruct((n, 1, cout_p), jnp.float32),
                   jax.ShapeDtypeStruct((n, 1, cout_p), jnp.float32)),
        grid=(n,),
        in_specs=[
            pl.BlockSpec((1, hw, cin_p), lambda i: (i, 0, 0)),      # x image
            pl.BlockSpec((1, cin_p), lambda i: (0, 0)),             # bn1 scale
            pl.BlockSpec((1, cin_p), lambda i: (0, 0)),             # bn1 shift
            pl.BlockSpec((9, cin_p, cout_p), lambda i: (0, 0, 0)),  # conv1 taps
            pl.BlockSpec((1, cout_p), lambda i: (0, 0)),            # conv1 bias
        ],
        out_specs=(
            pl.BlockSpec((1, hw, cout_p), lambda i: (i, 0, 0)),
            pl.BlockSpec((1, 1, cout_p), lambda i: (i, 0, 0)),
            pl.BlockSpec((1, 1, cout_p), lambda i: (i, 0, 0)),
        ),
        scratch_shapes=[pltpu.VMEM((scratch_rows, cin_p), jnp.float32)],
        compiler_params=pltpu.CompilerParams(dimension_semantics=("parallel",)),
    )(x3d, scale1, shift1, w1, b1)


# ---------------------------------------------------------------------------
# Kernel 3: fused bn2 + ReLU + 3x3 conv2 + 1x1 shortcut + residual add +
# per-sample standardization + voxelwise modulation.
# ---------------------------------------------------------------------------
def _bn_relu_conv2_res_kernel(h1_ref, x_ref, scale_ref, shift_ref, w2_ref, b2_ref,
                              wsc_ref, bsc_ref, a_ref, bmod_ref,
                              o_ref, hpad_ref,
                              *, h_img, w_img, pad_top, scratch_rows, c_real):
    hw = h_img * w_img
    c = h1_ref.shape[-1]

    hn = jnp.maximum(h1_ref[0] * scale_ref[...] + shift_ref[...], 0.0)
    _stage_padded(hpad_ref, hn, hw, pad_top, scratch_rows)

    left_ok, right_ok = _edge_masks(hw, w_img, c)
    h2 = _conv3x3_taps(hpad_ref, w2_ref, hw, w_img, pad_top, left_ok, right_ok) + b2_ref[...]

    # 1x1 learnable shortcut, fused here (hides under the conv2 pipeline).
    sc = jnp.dot(x_ref[0].astype(wsc_ref.dtype), wsc_ref[...],
                 preferred_element_type=jnp.float32) + bsc_ref[...]
    s = h2 + sc                                       # (HW, Cout_p) f32

    # Per-sample standardization over the *real* C*H*W elements. Padded channels are
    # exactly zero (weights/biases zero-padded), so the plain sum == the real sum.
    n_real = float(c_real * hw)
    total = jnp.sum(jnp.sum(s, axis=1, keepdims=True), axis=0, keepdims=True)
    mean = total / n_real
    lane = jax.lax.broadcasted_iota(jnp.int32, (hw, c), 1)
    d = jnp.where(lane < c_real, s - mean, 0.0)
    var = jnp.sum(jnp.sum(d * d, axis=1, keepdims=True), axis=0, keepdims=True) \
        / (n_real - 1.0)                              # unbiased, matches torch.std
    # NOTE: the PyTorch reference divides by torch.std() with no epsilon; match it.
    out = d * jax.lax.rsqrt(var) * (1.0 + a_ref[0]) + bmod_ref[0]
    o_ref[0] = out.astype(o_ref.dtype)


def _fused_conv2_residual(h1, x3d, scale2, shift2, w2, b2, wsc, bsc, a3d, b3d,
                          c_real, h_img, w_img):
    n, hw, cout_p = h1.shape
    cin_p = x3d.shape[-1]
    pad_top = _round_up(w_img + 1, 8)
    scratch_rows = _round_up(pad_top + hw + w_img + 1, 8)
    kern = functools.partial(_bn_relu_conv2_res_kernel, h_img=h_img, w_img=w_img,
                             pad_top=pad_top, scratch_rows=scratch_rows, c_real=c_real)
    return pl.pallas_call(
        kern,
        out_shape=jax.ShapeDtypeStruct((n, hw, cout_p), jnp.float32),
        grid=(n,),
        in_specs=[
            pl.BlockSpec((1, hw, cout_p), lambda i: (i, 0, 0)),       # h1
            pl.BlockSpec((1, hw, cin_p), lambda i: (i, 0, 0)),        # x (shortcut input)
            pl.BlockSpec((1, cout_p), lambda i: (0, 0)),              # bn2 scale
            pl.BlockSpec((1, cout_p), lambda i: (0, 0)),              # bn2 shift
            pl.BlockSpec((9, cout_p, cout_p), lambda i: (0, 0, 0)),   # conv2 taps
            pl.BlockSpec((1, cout_p), lambda i: (0, 0)),              # conv2 bias
            pl.BlockSpec((cin_p, cout_p), lambda i: (0, 0)),          # conv_sc weight
            pl.BlockSpec((1, cout_p), lambda i: (0, 0)),              # conv_sc bias
            pl.BlockSpec((1, hw, cout_p), lambda i: (i, 0, 0)),       # voxelwise a_mod
            pl.BlockSpec((1, hw, cout_p), lambda i: (i, 0, 0)),       # voxelwise b_mod
        ],
        out_specs=pl.BlockSpec((1, hw, cout_p), lambda i: (i, 0, 0)),
        scratch_shapes=[pltpu.VMEM((scratch_rows, cout_p), jnp.float32)],
        compiler_params=pltpu.CompilerParams(dimension_semantics=("parallel",)),
    )(h1, x3d, scale2, shift2, w2, b2, wsc, bsc, a3d, b3d)


# ------------------------------- parameter packing --------------------------------

def _pack_conv3x3_weight(w, cin_p, cout_p, dtype):
    # PyTorch (Cout, Cin, 3, 3) -> (9, Cin_p, Cout_p); tap t = ky*3+kx holds w[:,:,ky,kx]^T.
    cout, cin = w.shape[:2]
    wt = jnp.transpose(w, (2, 3, 1, 0)).reshape(9, cin, cout)
    return _pad_to(wt, (9, cin_p, cout_p)).astype(dtype)


def _bn_scale_shift(sum_, sumsq, count, gain_row, bias_row):
    # F.batch_norm(training=True): normalize with batch mean and *biased* variance.
    mean = sum_ / count
    var = sumsq / count - mean * mean
    scale = gain_row * jax.lax.rsqrt(var + EPS)
    shift = bias_row - mean * scale
    return scale, shift


def init_gblock_params(key, in_channels, out_channels):
    ks = jax.random.split(key, 6)
    return {
        "conv1_w": 0.1 * jax.random.normal(ks[0], (out_channels, in_channels, 3, 3), jnp.float32),
        "conv1_b": 0.1 * jax.random.normal(ks[1], (out_channels,), jnp.float32),
        "conv2_w": 0.1 * jax.random.normal(ks[2], (out_channels, out_channels, 3, 3), jnp.float32),
        "conv2_b": 0.1 * jax.random.normal(ks[3], (out_channels,), jnp.float32),
        "conv_sc_w": 0.1 * jax.random.normal(ks[4], (out_channels, in_channels, 1, 1), jnp.float32),
        "conv_sc_b": 0.1 * jax.random.normal(ks[5], (out_channels,), jnp.float32),
        "bn1_gain": jnp.ones((in_channels,), jnp.float32),
        "bn1_bias": jnp.zeros((in_channels,), jnp.float32),
        "bn2_gain": jnp.ones((out_channels,), jnp.float32),
        "bn2_bias": jnp.zeros((out_channels,), jnp.float32),
    }


# --------------------------------- GBlock forward ----------------------------------

def gblock_forward(params, x_nchw, y, voxelwise_a_mod, voxelwise_b_mod,
                   voxelwise_a1_mod, voxelwise_b1_mod, *, mxu_dtype=jnp.bfloat16):
    # y is unused by the plain (non-conditional) `bn`; a1/b1 are never used by the
    # reference forward. They are accepted only to match the PyTorch signature.
    del y, voxelwise_a1_mod, voxelwise_b1_mod
    n, cin, h_img, w_img = x_nchw.shape
    cout = params["conv1_w"].shape[0]
    hw = h_img * w_img
    assert hw % 8 == 0, "H*W must be a multiple of 8 (TPU sublane constraint)"
    cin_p = _round_up(cin, LANE)
    cout_p = _round_up(cout, LANE)
    f32 = jnp.float32

    # ---------------- layout plumbing (XLA): NCHW -> (N, H*W, C_pad), lane-dense ----
    def to_rows(t_nchw, c, c_pad):
        t = jnp.transpose(t_nchw, (0, 2, 3, 1)).reshape(n, hw, c)
        return _pad_to(t.astype(f32), (n, hw, c_pad))

    x3d = to_rows(x_nchw, cin, cin_p)
    a3d = to_rows(voxelwise_a_mod, cout, cout_p)
    b3d = to_rows(voxelwise_b_mod, cout, cout_p)

    # ---------------- parameter packing (zero-padded to lane multiples) --------------
    w1 = _pack_conv3x3_weight(params["conv1_w"], cin_p, cout_p, mxu_dtype)
    w2 = _pack_conv3x3_weight(params["conv2_w"], cout_p, cout_p, mxu_dtype)
    wsc = _pad_to(params["conv_sc_w"].reshape(cout, cin).T, (cin_p, cout_p)).astype(mxu_dtype)
    b1 = _pad_to(params["conv1_b"].reshape(1, cout).astype(f32), (1, cout_p))
    b2 = _pad_to(params["conv2_b"].reshape(1, cout).astype(f32), (1, cout_p))
    bsc = _pad_to(params["conv_sc_b"].reshape(1, cout).astype(f32), (1, cout_p))
    g1 = _pad_to(params["bn1_gain"].reshape(1, cin).astype(f32), (1, cin_p))
    be1 = _pad_to(params["bn1_bias"].reshape(1, cin).astype(f32), (1, cin_p))
    g2 = _pad_to(params["bn2_gain"].reshape(1, cout).astype(f32), (1, cout_p))
    be2 = _pad_to(params["bn2_bias"].reshape(1, cout).astype(f32), (1, cout_p))

    count = float(n * hw)

    # ---------------- bn1 batch stats (Pallas row-tiled reduction) -------------------
    s1, q1 = channel_stats(x3d.reshape(n * hw, cin_p))
    scale1, shift1 = _bn_scale_shift(s1, q1, count, g1, be1)

    # ---------------- fused bn1 + ReLU + conv1 (+ per-image bn2 partial stats) -------
    h1, s2_part, q2_part = _fused_conv1(x3d, scale1, shift1, w1, b1, cout_p, h_img, w_img)
    scale2, shift2 = _bn_scale_shift(jnp.sum(s2_part, axis=0), jnp.sum(q2_part, axis=0),
                                     count, g2, be2)

    # -------- fused bn2 + ReLU + conv2 + shortcut + residual + standardize + mod -----
    out3d = _fused_conv2_residual(h1, x3d, scale2, shift2, w2, b2, wsc, bsc,
                                  a3d, b3d, cout, h_img, w_img)

    # TODO(synk): attentive branch (torch.multinomial-sampled fast filters) and the
    # running-stat buffer updates are not exercised (attentive=False, functional fwd)
    # and have no deterministic Pallas equivalent.
    out = out3d[:, :, :cout].reshape(n, h_img, w_img, cout).transpose(0, 3, 1, 2)
    return out


# --------------------------- pure-JAX reference (f32) ------------------------------

def gblock_reference(params, x, a_mod, b_mod):
    def bn_train(t, gain, bias):
        m = jnp.mean(t, axis=(0, 2, 3), keepdims=True)
        v = jnp.mean(t * t, axis=(0, 2, 3), keepdims=True) - m * m
        return (t - m) * jax.lax.rsqrt(v + EPS) * gain.reshape(1, -1, 1, 1) \
            + bias.reshape(1, -1, 1, 1)

    def conv(t, w, b, pad):
        o = jax.lax.conv_general_dilated(
            t, w, window_strides=(1, 1), padding=((pad, pad), (pad, pad)),
            dimension_numbers=("NCHW", "OIHW", "NCHW"),
            precision=jax.lax.Precision.HIGHEST)
        return o + b.reshape(1, -1, 1, 1)

    h = jax.nn.relu(bn_train(x, params["bn1_gain"], params["bn1_bias"]))
    h = conv(h, params["conv1_w"], params["conv1_b"], 1)
    h = jax.nn.relu(bn_train(h, params["bn2_gain"], params["bn2_bias"]))
    h = conv(h, params["conv2_w"], params["conv2_b"], 1)
    sc = conv(x, params["conv_sc_w"], params["conv_sc_b"], 0)
    h = h + sc
    m = jnp.mean(h, axis=(1, 2, 3), keepdims=True)
    sd = jnp.std(h, axis=(1, 2, 3), keepdims=True, ddof=1)
    h = (h - m) / sd
    return h * (1.0 + a_mod) + b_mod


# ----------------------------------------- main -------------------------------------

if __name__ == "__main__":
    N, Cin, Cout, H, W = 2, 4, 8, 16, 16

    key = jax.random.PRNGKey(0)
    k_param, k_x, k_a, k_b, k_a1, k_b1 = jax.random.split(key, 6)

    params = init_gblock_params(k_param, Cin, Cout)
    x = jax.random.normal(k_x, (N, Cin, H, W), jnp.float32)
    voxelwise_a_mod = 0.1 * jax.random.normal(k_a, (N, Cout, H, W), jnp.float32)
    voxelwise_b_mod = 0.1 * jax.random.normal(k_b, (N, Cout, H, W), jnp.float32)
    voxelwise_a1_mod = 0.1 * jax.random.normal(k_a1, (N, Cout, H, W), jnp.float32)
    voxelwise_b1_mod = 0.1 * jax.random.normal(k_b1, (N, Cout, H, W), jnp.float32)

    fwd = jax.jit(functools.partial(gblock_forward, mxu_dtype=jnp.bfloat16))
    out = fwd(params, x, None, voxelwise_a_mod, voxelwise_b_mod,
              voxelwise_a1_mod, voxelwise_b1_mod)
    out = jax.block_until_ready(out)

    assert out.shape == (N, Cout, H, W), out.shape
    assert bool(jnp.all(jnp.isfinite(out)))

    # Numerical sanity check vs a pure-JAX f32 reference (loose tol: bf16 MXU operands).
    ref = gblock_reference(params, x, voxelwise_a_mod, voxelwise_b_mod)
    max_err = float(jnp.max(jnp.abs(out - ref)))
    assert max_err < 0.2, f"max abs error vs reference: {max_err}"

    print("KERNEL_OK")
</pallas_src>

<mosaic_0001>
module attributes {stable_mosaic.version = 11 : i64} {
  func.func @_channel_stats_kernel(%arg0: i32, %arg1: memref<256x128xf32, #tpu.memory_space<vmem>>, %arg2: memref<1x128xf32, #tpu.memory_space<vmem>>, %arg3: memref<1x128xf32, #tpu.memory_space<vmem>>) attributes {dimension_semantics = [#tpu.dimension_semantics<arbitrary>], iteration_bounds = array<i64: 2>, scalar_prefetch = 0 : i64, scratch_operands = 0 : i64, tpu.core_type = #tpu.core_type<tc>, window_params = [{transform_indices = @transform_0, window_bounds = array<i64: 256, 128>}, {pipeline_mode = #tpu.pipeline_mode<synchronous>, transform_indices = @transform_1, window_bounds = array<i64: 1, 128>}, {pipeline_mode = #tpu.pipeline_mode<synchronous>, transform_indices = @transform_2, window_bounds = array<i64: 1, 128>}]} {
    %c0_i32 = arith.constant 0 : i32
    %0 = arith.cmpi eq, %arg0, %c0_i32 : i32
    %1 = arith.extui %0 : i1 to i32
    %c0_i32_0 = arith.constant 0 : i32
    %2 = arith.cmpi ne, %1, %c0_i32_0 : i32
    scf.if %2 {
      %cst_11 = arith.constant 0.000000e+00 : f32
      %15 = vector.broadcast %cst_11 : f32 to vector<1x128xf32>
      %c0_12 = arith.constant 0 : index
      %c0_13 = arith.constant 0 : index
      %16 = vector.load %arg2[%c0_12, %c0_13] : memref<1x128xf32, #tpu.memory_space<vmem>>, vector<1x128xf32>
      tpu.vector_store %arg2[%c0_12, %c0_13], %15 {strides = array<i32>} : memref<1x128xf32, #tpu.memory_space<vmem>>, vector<1x128xf32>,
      %cst_14 = arith.constant 0.000000e+00 : f32
      %17 = vector.broadcast %cst_14 : f32 to vector<1x128xf32>
      %c0_15 = arith.constant 0 : index
      %c0_16 = arith.constant 0 : index
      %18 = vector.load %arg3[%c0_15, %c0_16] : memref<1x128xf32, #tpu.memory_space<vmem>>, vector<1x128xf32>
      tpu.vector_store %arg3[%c0_15, %c0_16], %17 {strides = array<i32>} : memref<1x128xf32, #tpu.memory_space<vmem>>, vector<1x128xf32>,
    } else {
    }
    %c0 = arith.constant 0 : index
    %c0_1 = arith.constant 0 : index
    %3 = vector.load %arg1[%c0, %c0_1] : memref<256x128xf32, #tpu.memory_space<vmem>>, vector<256x128xf32>
    %c0_2 = arith.constant 0 : index
    %c0_3 = arith.constant 0 : index
    %4 = vector.load %arg2[%c0_2, %c0_3] : memref<1x128xf32, #tpu.memory_space<vmem>>, vector<1x128xf32>
    %cst = arith.constant dense<0.000000e+00> : vector<128xf32>
    %5 = vector.multi_reduction <add>, %3, %cst [0] : vector<256x128xf32> to vector<128xf32>
    %6 = vector.shape_cast %5 : vector<128xf32> to vector<1x128xf32>
    %7 = arith.addf %4, %6 : vector<1x128xf32>
    %c0_4 = arith.constant 0 : index
    %c0_5 = arith.constant 0 : index
    %8 = vector.load %arg2[%c0_4, %c0_5] : memref<1x128xf32, #tpu.memory_space<vmem>>, vector<1x128xf32>
    tpu.vector_store %arg2[%c0_4, %c0_5], %7 {strides = array<i32>} : memref<1x128xf32, #tpu.memory_space<vmem>>, vector<1x128xf32>,
    %c0_6 = arith.constant 0 : index
    %c0_7 = arith.constant 0 : index
    %9 = vector.load %arg3[%c0_6, %c0_7] : memref<1x128xf32, #tpu.memory_space<vmem>>, vector<1x128xf32>
    %10 = arith.mulf %3, %3 : vector<256x128xf32>
    %cst_8 = arith.constant dense<0.000000e+00> : vector<128xf32>
    %11 = vector.multi_reduction <add>, %10, %cst_8 [0] : vector<256x128xf32> to vector<128xf32>
    %12 = vector.shape_cast %11 : vector<128xf32> to vector<1x128xf32>
    %13 = arith.addf %9, %12 : vector<1x128xf32>
    %c0_9 = arith.constant 0 : index
    %c0_10 = arith.constant 0 : index
    %14 = vector.load %arg3[%c0_9, %c0_10] : memref<1x128xf32, #tpu.memory_space<vmem>>, vector<1x128xf32>
    tpu.vector_store %arg3[%c0_9, %c0_10], %13 {strides = array<i32>} : memref<1x128xf32, #tpu.memory_space<vmem>>, vector<1x128xf32>,
    return
  }
  func.func @transform_0(%arg0: i32) -> (i32, i32) {
    %c0_i32 = arith.constant 0 : i32
    %c0_i32_0 = arith.constant 0 : i32
    return %arg0, %c0_i32 : i32, i32
  }
  func.func @transform_1(%arg0: i32) -> (i32, i32) {
    %c0_i32 = arith.constant 0 : i32
    %c0_i32_0 = arith.constant 0 : i32
    %c0_i32_1 = arith.constant 0 : i32
    return %c0_i32, %c0_i32_0 : i32, i32
  }
  func.func @transform_2(%arg0: i32) -> (i32, i32) {
    %c0_i32 = arith.constant 0 : i32
    %c0_i32_0 = arith.constant 0 : i32
    %c0_i32_1 = arith.constant 0 : i32
    return %c0_i32, %c0_i32_0 : i32, i32
  }
}

module attributes {stable_mosaic.version = 11 : i64} {
  func.func @_bn_relu_conv1_kernel(%arg0: i32, %arg1: memref<1x256x128xf32, #tpu.memory_space<vmem>>, %arg2: memref<1x128xf32, #tpu.memory_space<vmem>>, %arg3: memref<1x128xf32, #tpu.memory_space<vmem>>, %arg4: memref<9x128x128xbf16, #tpu.memory_space<vmem>>, %arg5: memref<1x128xf32, #tpu.memory_space<vmem>>, %arg6: memref<1x256x128xf32, #tpu.memory_space<vmem>>, %arg7: memref<1x1x128xf32, #tpu.memory_space<vmem>>, %arg8: memref<1x1x128xf32, #tpu.memory_space<vmem>>, %arg9: memref<304x128xf32, #tpu.memory_space<vmem>>) attributes {dimension_semantics = [#tpu.dimension_semantics<parallel>], iteration_bounds = array<i64: 2>, scalar_prefetch = 0 : i64, scratch_operands = 1 : i64, tpu.core_type = #tpu.core_type<tc>, window_params = [{transform_indices = @transform_0, window_bounds = array<i64: 1, 256, 128>}, {pipeline_mode = #tpu.pipeline_mode<synchronous>, transform_indices = @transform_1, window_bounds = array<i64: 1, 128>}, {pipeline_mode = #tpu.pipeline_mode<synchronous>, transform_indices = @transform_2, window_bounds = array<i64: 1, 128>}, {pipeline_mode = #tpu.pipeline_mode<synchronous>, transform_indices = @transform_3, window_bounds = array<i64: 9, 128, 128>}, {pipeline_mode = #tpu.pipeline_mode<synchronous>, transform_indices = @transform_4, window_bounds = array<i64: 1, 128>}, {transform_indices = @transform_5, window_bounds = array<i64: 1, 256, 128>}, {transform_indices = @transform_6, window_bounds = array<i64: 1, 1, 128>}, {transform_indices = @transform_7, window_bounds = array<i64: 1, 1, 128>}]} {
    %c0 = arith.constant 0 : index
    %c0_0 = arith.constant 0 : index
    %c0_1 = arith.constant 0 : index
    %0 = vector.load %arg1[%c0, %c0_0, %c0_1] : memref<1x256x128xf32, #tpu.memory_space<vmem>>, vector<1x256x128xf32>
    %1 = vector.shape_cast %0 : vector<1x256x128xf32> to vector<256x128xf32>
    %c0_2 = arith.constant 0 : index
    %c0_3 = arith.constant 0 : index
    %2 = vector.load %arg2[%c0_2, %c0_3] : memref<1x128xf32, #tpu.memory_space<vmem>>, vector<1x128xf32>
    %3 = vector.broadcast %2 : vector<1x128xf32> to vector<256x128xf32>
    %4 = arith.mulf %1, %3 : vector<256x128xf32>
    %c0_4 = arith.constant 0 : index
    %c0_5 = arith.constant 0 : index
    %5 = vector.load %arg3[%c0_4, %c0_5] : memref<1x128xf32, #tpu.memory_space<vmem>>, vector<1x128xf32>
    %6 = vector.broadcast %5 : vector<1x128xf32> to vector<256x128xf32>
    %7 = arith.addf %4, %6 : vector<256x128xf32>
    %cst = arith.constant 0.000000e+00 : f32
    %8 = vector.broadcast %cst : f32 to vector<256x128xf32>
    %9 = arith.maximumf %7, %8 : vector<256x128xf32>
    %cst_6 = arith.constant 0.000000e+00 : f32
    %10 = vector.broadcast %cst_6 : f32 to vector<24x128xf32>
    %c0_7 = arith.constant 0 : index
    %c0_8 = arith.constant 0 : index
    %11 = vector.load %arg9[%c0_7, %c0_8] : memref<304x128xf32, #tpu.memory_space<vmem>>, vector<24x128xf32>
    tpu.vector_store %arg9[%c0_7, %c0_8], %10 {strides = array<i32>} : memref<304x128xf32, #tpu.memory_space<vmem>>, vector<24x128xf32>,
    %cst_9 = arith.constant 0.000000e+00 : f32
    %12 = vector.broadcast %cst_9 : f32 to vector<24x128xf32>
    %c280 = arith.constant 280 : index
    %c0_10 = arith.constant 0 : index
    %13 = vector.load %arg9[%c280, %c0_10] : memref<304x128xf32, #tpu.memory_space<vmem>>, vector<24x128xf32>
    tpu.vector_store %arg9[%c280, %c0_10], %12 {strides = array<i32>} : memref<304x128xf32, #tpu.memory_space<vmem>>, vector<24x128xf32>,
    %c24 = arith.constant 24 : index
    %c0_11 = arith.constant 0 : index
    %14 = vector.load %arg9[%c24, %c0_11] : memref<304x128xf32, #tpu.memory_space<vmem>>, vector<256x128xf32>
    tpu.vector_store %arg9[%c24, %c0_11], %9 {strides = array<i32>} : memref<304x128xf32, #tpu.memory_space<vmem>>, vector<256x128xf32>,
    %15 = tpu.iota {dimensions = array<i32: 0>} : vector<256x128xi32>
    %c16_i32 = arith.constant 16 : i32
    %c0_i32 = arith.constant 0 : i32
    %16 = arith.cmpi eq, %c16_i32, %c0_i32 : i32
    %c1_i32 = arith.constant 1 : i32
    %17 = arith.select %16, %c1_i32, %c16_i32 : i32
    %18 = vector.broadcast %17 : i32 to vector<256x128xi32>
    %19 = arith.remsi %15, %18 : vector<256x128xi32>
    %c0_i32_12 = arith.constant 0 : i32
    %20 = vector.broadcast %c0_i32_12 : i32 to vector<256x128xi32>
    %21 = arith.cmpi ne, %19, %20 : vector<256x128xi32>
    %c0_i32_13 = arith.constant 0 : i32
    %22 = vector.broadcast %c0_i32_13 : i32 to vector<256x128xi32>
    %23 = arith.cmpi slt, %19, %22 : vector<256x128xi32>
    %c0_i32_14 = arith.constant 0 : i32
    %24 = arith.cmpi slt, %17, %c0_i32_14 : i32
    %25 = vector.broadcast %24 : i1 to vector<256x128xi1>
    %26 = vector.broadcast %25 : vector<256x128xi1> to vector<256x128xi1>
    %27 = arith.xori %23, %26 : vector<256x128xi1>
    %28 = arith.andi %27, %21 : vector<256x128xi1>
    %29 = vector.broadcast %17 : i32 to vector<256x128xi32>
    %30 = arith.addi %19, %29 : vector<256x128xi32>
    %31 = arith.select %28, %30, %19 : vector<256x128xi1>, vector<256x128xi32>
    %c1_i32_15 = arith.constant 1 : i32
    %32 = vector.broadcast %c1_i32_15 : i32 to vector<256x128xi32>
    %33 = arith.cmpi sge, %31, %32 : vector<256x128xi32>
    %c14_i32 = arith.constant 14 : i32
    %34 = vector.broadcast %c14_i32 : i32 to vector<256x128xi32>
    %35 = arith.cmpi sle, %31, %34 : vector<256x128xi32>
    %c7 = arith.constant 7 : index
    %c0_16 = arith.constant 0 : index
    %36 = vector.load %arg9[%c7, %c0_16] : memref<304x128xf32, #tpu.memory_space<vmem>>, vector<256x128xf32>
    %cst_17 = arith.constant 0.000000e+00 : f32
    %37 = vector.broadcast %cst_17 : f32 to vector<256x128xf32>
    %38 = arith.select %33, %36, %37 : vector<256x128xi1>, vector<256x128xf32>
    %39 = arith.truncf %38 : vector<256x128xf32> to vector<256x128xbf16>
    %c0_18 = arith.constant 0 : index
    %c0_19 = arith.constant 0 : index
    %c0_20 = arith.constant 0 : index
    %40 = vector.load %arg4[%c0_18, %c0_19, %c0_20] : memref<9x128x128xbf16, #tpu.memory_space<vmem>>, vector<1x128x128xbf16>
    %41 = vector.shape_cast %40 : vector<1x128x128xbf16> to vector<128x128xbf16>
    %cst_21 = arith.constant dense<0.000000e+00> : vector<256x128xf32>
    %42 = tpu.matmul %39, %41, %cst_21 {dimension_numbers = #tpu.dot_dimension_numbers<[1], [0], [0], [1], [0, 0, 1, 1], [], []>} : vector<256x128xbf16>, vector<128x128xbf16>, vector<256x128xf32> -> vector<256x128xf32>
    %c8 = arith.constant 8 : index
    %c0_22 = arith.constant 0 : index
    %43 = vector.load %arg9[%c8, %c0_22] : memref<304x128xf32, #tpu.memory_space<vmem>>, vector<256x128xf32>
    %44 = arith.truncf %43 : vector<256x128xf32> to vector<256x128xbf16>
    %c1 = arith.constant 1 : index
    %c0_23 = arith.constant 0 : index
    %c0_24 = arith.constant 0 : index
    %45 = vector.load %arg4[%c1, %c0_23, %c0_24] : memref<9x128x128xbf16, #tpu.memory_space<vmem>>, vector<1x128x128xbf16>
    %46 = vector.shape_cast %45 : vector<1x128x128xbf16> to vector<128x128xbf16>
    %cst_25 = arith.constant dense<0.000000e+00> : vector<256x128xf32>
    %47 = tpu.matmul %44, %46, %cst_25 {dimension_numbers = #tpu.dot_dimension_numbers<[1], [0], [0], [1], [0, 0, 1, 1], [], []>} : vector<256x128xbf16>, vector<128x128xbf16>, vector<256x128xf32> -> vector<256x128xf32>
    %48 = arith.addf %42, %47 : vector<256x128xf32>
    %c9 = arith.constant 9 : index
    %c0_26 = arith.constant 0 : index
    %49 = vector.load %arg9[%c9, %c0_26] : memref<304x128xf32, #tpu.memory_space<vmem>>, vector<256x128xf32>
    %cst_27 = arith.constant 0.000000e+00 : f32
    %50 = vector.broadcast %cst_27 : f32 to vector<256x128xf32>
    %51 = arith.select %35, %49, %50 : vector<256x128xi1>, vector<256x128xf32>
    %52 = arith.truncf %51 : vector<256x128xf32> to vector<256x128xbf16>
    %c2 = arith.constant 2 : index
    %c0_28 = arith.constant 0 : index
    %c0_29 = arith.constant 0 : index
    %53 = vector.load %arg4[%c2, %c0_28, %c0_29] : memref<9x128x128xbf16, #tpu.memory_space<vmem>>, vector<1x128x128xbf16>
    %54 = vector.shape_cast %53 : vector<1x128x128xbf16> to vector<128x128xbf16>
    %cst_30 = arith.constant dense<0.000000e+00> : vector<256x128xf32>
    %55 = tpu.matmul %52, %54, %cst_30 {dimension_numbers = #tpu.dot_dimension_numbers<[1], [0], [0], [1], [0, 0, 1, 1], [], []>} : vector<256x128xbf16>, vector<128x128xbf16>, vector<256x128xf32> -> vector<256x128xf32>
    %56 = arith.addf %48, %55 : vector<256x128xf32>
    %c23 = arith.constant 23 : index
    %c0_31 = arith.constant 0 : index
    %57 = vector.load %arg9[%c23, %c0_31] : memref<304x128xf32, #tpu.memory_space<vmem>>, vector<256x128xf32>
    %cst_32 = arith.constant 0.000000e+00 : f32
    %58 = vector.broadcast %cst_32 : f32 to vector<256x128xf32>
    %59 = arith.select %33, %57, %58 : vector<256x128xi1>, vector<256x128xf32>
    %60 = arith.truncf %59 : vector<256x128xf32> to vector<256x128xbf16>
    %c3 = arith.constant 3 : index
    %c0_33 = arith.constant 0 : index
    %c0_34 = arith.constant 0 : index
    %61 = vector.load %arg4[%c3, %c0_33, %c0_34] : memref<9x128x128xbf16, #tpu.memory_space<vmem>>, vector<1x128x128xbf16>
    %62 = vector.shape_cast %61 : vector<1x128x128xbf16> to vector<128x128xbf16>
    %cst_35 = arith.constant dense<0.000000e+00> : vector<256x128xf32>
    %63 = tpu.matmul %60, %62, %cst_35 {dimension_numbers = #tpu.dot_dimension_numbers<[1], [0], [0], [1], [0, 0, 1, 1], [], []>} : vector<256x128xbf16>, vector<128x128xbf16>, vector<256x128xf32> -> vector<256x128xf32>
    %64 = arith.addf %56, %63 : vector<256x128xf32>
    %c24_36 = arith.constant 24 : index
    %c0_37 = arith.constant 0 : index
    %65 = vector.load %arg9[%c24_36, %c0_37] : memref<304x128xf32, #tpu.memory_space<vmem>>, vector<256x128xf32>
    %66 = arith.truncf %65 : vector<256x128xf32> to vector<256x128xbf16>
    %c4 = arith.constant 4 : index
    %c0_38 = arith.constant 0 : index
    %c0_39 = arith.constant 0 : index
    %67 = vector.load %arg4[%c4, %c0_38, %c0_39] : memref<9x128x128xbf16, #tpu.memory_space<vmem>>, vector<1x128x128xbf16>
    %68 = vector.shape_cast %67 : vector<1x128x128xbf16> to vector<128x128xbf16>
    %cst_40 = arith.constant dense<0.000000e+00> : vector<256x128xf32>
    %69 = tpu.matmul %66, %68, %cst_40 {dimension_numbers = #tpu.dot_dimension_numbers<[1], [0], [0], [1], [0, 0, 1, 1], [], []>} : vector<256x128xbf16>, vector<128x128xbf16>, vector<256x128xf32> -> vector<256x128xf32>
    %70 = arith.addf %64, %69 : vector<256x128xf32>
    %c25 = arith.constant 25 : index
    %c0_41 = arith.constant 0 : index
    %71 = vector.load %arg9[%c25, %c0_41] : memref<304x128xf32, #tpu.memory_space<vmem>>, vector<256x128xf32>
    %cst_42 = arith.constant 0.000000e+00 : f32
    %72 = vector.broadcast %cst_42 : f32 to vector<256x128xf32>
    %73 = arith.select %35, %71, %72 : vector<256x128xi1>, vector<256x128xf32>
    %74 = arith.truncf %73 : vector<256x128xf32> to vector<256x128xbf16>
    %c5 = arith.constant 5 : index
    %c0_43 = arith.constant 0 : index
    %c0_44 = arith.constant 0 : index
    %75 = vector.load %arg4[%c5, %c0_43, %c0_44] : memref<9x128x128xbf16, #tpu.memory_space<vmem>>, vector<1x128x128xbf16>
    %76 = vector.shape_cast %75 : vector<1x128x128xbf16> to vector<128x128xbf16>
    %cst_45 = arith.constant dense<0.000000e+00> : vector<256x128xf32>
    %77 = tpu.matmul %74, %76, %cst_45 {dimension_numbers = #tpu.dot_dimension_numbers<[1], [0], [0], [1], [0, 0, 1, 1], [], []>} : vector<256x128xbf16>, vector<128x128xbf16>, vector<256x128xf32> -> vector<256x128xf32>
    %78 = arith.addf %70, %77 : vector<256x128xf32>
    %c39 = arith.constant 39 : index
    %c0_46 = arith.constant 0 : index
    %79 = vector.load %arg9[%c39, %c0_46] : memref<304x128xf32, #tpu.memory_space<vmem>>, vector<256x128xf32>
    %cst_47 = arith.constant 0.000000e+00 : f32
    %80 = vector.broadcast %cst_47 : f32 to vector<256x128xf32>
    %81 = arith.select %33, %79, %80 : vector<256x128xi1>, vector<256x128xf32>
    %82 = arith.truncf %81 : vector<256x128xf32> to vector<256x128xbf16>
    %c6 = arith.constant 6 : index
    %c0_48 = arith.constant 0 : index
    %c0_49 = arith.constant 0 : index
    %83 = vector.load %arg4[%c6, %c0_48, %c0_49] : memref<9x128x128xbf16, #tpu.memory_space<vmem>>, vector<1x128x128xbf16>
    %84 = vector.shape_cast %83 : vector<1x128x128xbf16> to vector<128x128xbf16>
    %cst_50 = arith.constant dense<0.000000e+00> : vector<256x128xf32>
    %85 = tpu.matmul %82, %84, %cst_50 {dimension_numbers = #tpu.dot_dimension_numbers<[1], [0], [0], [1], [0, 0, 1, 1], [], []>} : vector<256x128xbf16>, vector<128x128xbf16>, vector<256x128xf32> -> vector<256x128xf32>
    %86 = arith.addf %78, %85 : vector<256x128xf32>
    %c40 = arith.constant 40 : index
    %c0_51 = arith.constant 0 : index
    %87 = vector.load %arg9[%c40, %c0_51] : memref<304x128xf32, #tpu.memory_space<vmem>>, vector<256x128xf32>
    %88 = arith.truncf %87 : vector<256x128xf32> to vector<256x128xbf16>
    %c7_52 = arith.constant 7 : index
    %c0_53 = arith.constant 0 : index
    %c0_54 = arith.constant 0 : index
    %89 = vector.load %arg4[%c7_52, %c0_53, %c0_54] : memref<9x128x128xbf16, #tpu.memory_space<vmem>>, vector<1x128x128xbf16>
    %90 = vector.shape_cast %89 : vector<1x128x128xbf16> to vector<128x128xbf16>
    %cst_55 = arith.constant dense<0.000000e+00> : vector<256x128xf32>
    %91 = tpu.matmul %88, %90, %cst_55 {dimension_numbers = #tpu.dot_dimension_numbers<[1], [0], [0], [1], [0, 0, 1, 1], [], []>} : vector<256x128xbf16>, vector<128x128xbf16>, vector<256x128xf32> -> vector<256x128xf32>
    %92 = arith.addf %86, %91 : vector<256x128xf32>
    %c41 = arith.constant 41 : index
    %c0_56 = arith.constant 0 : index
    %93 = vector.load %arg9[%c41, %c0_56] : memref<304x128xf32, #tpu.memory_space<vmem>>, vector<256x128xf32>
    %cst_57 = arith.constant 0.000000e+00 : f32
    %94 = vector.broadcast %cst_57 : f32 to vector<256x128xf32>
    %95 = arith.select %35, %93, %94 : vector<256x128xi1>, vector<256x128xf32>
    %96 = arith.truncf %95 : vector<256x128xf32> to vector<256x128xbf16>
    %c8_58 = arith.constant 8 : index
    %c0_59 = arith.constant 0 : index
    %c0_60 = arith.constant 0 : index
    %97 = vector.load %arg4[%c8_58, %c0_59, %c0_60] : memref<9x128x128xbf16, #tpu.memory_space<vmem>>, vector<1x128x128xbf16>
    %98 = vector.shape_cast %97 : vector<1x128x128xbf16> to vector<128x128xbf16>
    %cst_61 = arith.constant dense<0.000000e+00> : vector<256x128xf32>
    %99 = tpu.matmul %96, %98, %cst_61 {dimension_numbers = #tpu.dot_dimension_numbers<[1], [0], [0], [1], [0, 0, 1, 1], [], []>} : vector<256x128xbf16>, vector<128x128xbf16>, vector<256x128xf32> -> vector<256x128xf32>
    %100 = arith.addf %92, %99 : vector<256x128xf32>
    %c0_62 = arith.constant 0 : index
    %c0_63 = arith.constant 0 : index
    %101 = vector.load %arg5[%c0_62, %c0_63] : memref<1x128xf32, #tpu.memory_space<vmem>>, vector<1x128xf32>
    %102 = vector.broadcast %101 : vector<1x128xf32> to vector<256x128xf32>
    %103 = arith.addf %100, %102 : vector<256x128xf32>
    %c0_64 = arith.constant 0 : index
    %c0_65 = arith.constant 0 : index
    %c0_66 = arith.constant 0 : index
    %104 = vector.load %arg6[%c0_64, %c0_65, %c0_66] : memref<1x256x128xf32, #tpu.memory_space<vmem>>, vector<1x256x128xf32>
    %105 = vector.shape_cast %104 : vector<1x256x128xf32> to vector<256x128xf32>
    %106 = vector.shape_cast %103 : vector<256x128xf32> to vector<1x256x128xf32>
    tpu.vector_store %arg6[%c0_64, %c0_65, %c0_66], %106 {strides = array<i32>} : memref<1x256x128xf32, #tpu.memory_space<vmem>>, vector<1x256x128xf32>,
    %cst_67 = arith.constant dense<0.000000e+00> : vector<128xf32>
    %107 = vector.multi_reduction <add>, %103, %cst_67 [0] : vector<256x128xf32> to vector<128xf32>
    %108 = vector.shape_cast %107 : vector<128xf32> to vector<1x128xf32>
    %c0_68 = arith.constant 0 : index
    %c0_69 = arith.constant 0 : index
    %c0_70 = arith.constant 0 : index
    %109 = vector.load %arg7[%c0_68, %c0_69, %c0_70] : memref<1x1x128xf32, #tpu.memory_space<vmem>>, vector<1x1x128xf32>
    %110 = vector.shape_cast %109 : vector<1x1x128xf32> to vector<1x128xf32>
    %111 = vector.shape_cast %108 : vector<1x128xf32> to vector<1x1x128xf32>
    tpu.vector_store %arg7[%c0_68, %c0_69, %c0_70], %111 {strides = array<i32>} : memref<1x1x128xf32, #tpu.memory_space<vmem>>, vector<1x1x128xf32>,
    %112 = arith.mulf %103, %103 : vector<256x128xf32>
    %cst_71 = arith.constant dense<0.000000e+00> : vector<128xf32>
    %113 = vector.multi_reduction <add>, %112, %cst_71 [0] : vector<256x128xf32> to vector<128xf32>
    %114 = vector.shape_cast %113 : vector<128xf32> to vector<1x128xf32>
    %c0_72 = arith.constant 0 : index
    %c0_73 = arith.constant 0 : index
    %c0_74 = arith.constant 0 : index
    %115 = vector.load %arg8[%c0_72, %c0_73, %c0_74] : memref<1x1x128xf32, #tpu.memory_space<vmem>>, vector<1x1x128xf32>
    %116 = vector.shape_cast %115 : vector<1x1x128xf32> to vector<1x128xf32>
    %117 = vector.shape_cast %114 : vector<1x128xf32> to vector<1x1x128xf32>
    tpu.vector_store %arg8[%c0_72, %c0_73, %c0_74], %117 {strides = array<i32>} : memref<1x1x128xf32, #tpu.memory_space<vmem>>, vector<1x1x128xf32>,
    return
  }
  func.func @transform_0(%arg0: i32) -> (i32, i32, i32) {
    %c0_i32 = arith.constant 0 : i32
    %c0_i32_0 = arith.constant 0 : i32
    %c0_i32_1 = arith.constant 0 : i32
    return %arg0, %c0_i32, %c0_i32_0 : i32, i32, i32
  }
  func.func @transform_1(%arg0: i32) -> (i32, i32) {
    %c0_i32 = arith.constant 0 : i32
    %c0_i32_0 = arith.constant 0 : i32
    %c0_i32_1 = arith.constant 0 : i32
    return %c0_i32, %c0_i32_0 : i32, i32
  }
  func.func @transform_2(%arg0: i32) -> (i32, i32) {
    %c0_i32 = arith.constant 0 : i32
    %c0_i32_0 = arith.constant 0 : i32
    %c0_i32_1 = arith.constant 0 : i32
    return %c0_i32, %c0_i32_0 : i32, i32
  }
  func.func @transform_3(%arg0: i32) -> (i32, i32, i32) {
    %c0_i32 = arith.constant 0 : i32
    %c0_i32_0 = arith.constant 0 : i32
    %c0_i32_1 = arith.constant 0 : i32
    %c0_i32_2 = arith.constant 0 : i32
    return %c0_i32, %c0_i32_0, %c0_i32_1 : i32, i32, i32
  }
  func.func @transform_4(%arg0: i32) -> (i32, i32) {
    %c0_i32 = arith.constant 0 : i32
    %c0_i32_0 = arith.constant 0 : i32
    %c0_i32_1 = arith.constant 0 : i32
    return %c0_i32, %c0_i32_0 : i32, i32
  }
  func.func @transform_5(%arg0: i32) -> (i32, i32, i32) {
    %c0_i32 = arith.constant 0 : i32
    %c0_i32_0 = arith.constant 0 : i32
    %c0_i32_1 = arith.constant 0 : i32
    return %arg0, %c0_i32, %c0_i32_0 : i32, i32, i32
  }
  func.func @transform_6(%arg0: i32) -> (i32, i32, i32) {
    %c0_i32 = arith.constant 0 : i32
    %c0_i32_0 = arith.constant 0 : i32
    %c0_i32_1 = arith.constant 0 : i32
    return %arg0, %c0_i32, %c0_i32_0 : i32, i32, i32
  }
  func.func @transform_7(%arg0: i32) -> (i32, i32, i32) {
    %c0_i32 = arith.constant 0 : i32
    %c0_i32_0 = arith.constant 0 : i32
    %c0_i32_1 = arith.constant 0 : i32
    return %arg0, %c0_i32, %c0_i32_0 : i32, i32, i32
  }
}

module attributes {stable_mosaic.version = 11 : i64} {
  func.func @_bn_relu_conv2_res_kernel(%arg0: i32, %arg1: memref<1x256x128xf32, #tpu.memory_space<vmem>>, %arg2: memref<1x256x128xf32, #tpu.memory_space<vmem>>, %arg3: memref<1x128xf32, #tpu.memory_space<vmem>>, %arg4: memref<1x128xf32, #tpu.memory_space<vmem>>, %arg5: memref<9x128x128xbf16, #tpu.memory_space<vmem>>, %arg6: memref<1x128xf32, #tpu.memory_space<vmem>>, %arg7: memref<128x128xbf16, #tpu.memory_space<vmem>>, %arg8: memref<1x128xf32, #tpu.memory_space<vmem>>, %arg9: memref<1x256x128xf32, #tpu.memory_space<vmem>>, %arg10: memref<1x256x128xf32, #tpu.memory_space<vmem>>, %arg11: memref<1x256x128xf32, #tpu.memory_space<vmem>>, %arg12: memref<304x128xf32, #tpu.memory_space<vmem>>) attributes {dimension_semantics = [#tpu.dimension_semantics<parallel>], iteration_bounds = array<i64: 2>, scalar_prefetch = 0 : i64, scratch_operands = 1 : i64, tpu.core_type = #tpu.core_type<tc>, window_params = [{transform_indices = @transform_0, window_bounds = array<i64: 1, 256, 128>}, {transform_indices = @transform_1, window_bounds = array<i64: 1, 256, 128>}, {pipeline_mode = #tpu.pipeline_mode<synchronous>, transform_indices = @transform_2, window_bounds = array<i64: 1, 128>}, {pipeline_mode = #tpu.pipeline_mode<synchronous>, transform_indices = @transform_3, window_bounds = array<i64: 1, 128>}, {pipeline_mode = #tpu.pipeline_mode<synchronous>, transform_indices = @transform_4, window_bounds = array<i64: 9, 128, 128>}, {pipeline_mode = #tpu.pipeline_mode<synchronous>, transform_indices = @transform_5, window_bounds = array<i64: 1, 128>}, {pipeline_mode = #tpu.pipeline_mode<synchronous>, transform_indices = @transform_6, window_bounds = array<i64: 128, 128>}, {pipeline_mode = #tpu.pipeline_mode<synchronous>, transform_indices = @transform_7, window_bounds = array<i64: 1, 128>}, {transform_indices = @transform_8, window_bounds = array<i64: 1, 256, 128>}, {transform_indices = @transform_9, window_bounds = array<i64: 1, 256, 128>}, {transform_indices = @transform_10, window_bounds = array<i64: 1, 256, 128>}]} {
    %c0 = arith.constant 0 : index
    %c0_0 = arith.constant 0 : index
    %c0_1 = arith.constant 0 : index
    %0 = vector.load %arg1[%c0, %c0_0, %c0_1] : memref<1x256x128xf32, #tpu.memory_space<vmem>>, vector<1x256x128xf32>
    %1 = vector.shape_cast %0 : vector<1x256x128xf32> to vector<256x128xf32>
    %c0_2 = arith.constant 0 : index
    %c0_3 = arith.constant 0 : index
    %2 = vector.load %arg3[%c0_2, %c0_3] : memref<1x128xf32, #tpu.memory_space<vmem>>, vector<1x128xf32>
    %3 = vector.broadcast %2 : vector<1x128xf32> to vector<256x128xf32>
    %4 = arith.mulf %1, %3 : vector<256x128xf32>
    %c0_4 = arith.constant 0 : index
    %c0_5 = arith.constant 0 : index
    %5 = vector.load %arg4[%c0_4, %c0_5] : memref<1x128xf32, #tpu.memory_space<vmem>>, vector<1x128xf32>
    %6 = vector.broadcast %5 : vector<1x128xf32> to vector<256x128xf32>
    %7 = arith.addf %4, %6 : vector<256x128xf32>
    %cst = arith.constant 0.000000e+00 : f32
    %8 = vector.broadcast %cst : f32 to vector<256x128xf32>
    %9 = arith.maximumf %7, %8 : vector<256x128xf32>
    %cst_6 = arith.constant 0.000000e+00 : f32
    %10 = vector.broadcast %cst_6 : f32 to vector<24x128xf32>
    %c0_7 = arith.constant 0 : index
    %c0_8 = arith.constant 0 : index
    %11 = vector.load %arg12[%c0_7, %c0_8] : memref<304x128xf32, #tpu.memory_space<vmem>>, vector<24x128xf32>
    tpu.vector_store %arg12[%c0_7, %c0_8], %10 {strides = array<i32>} : memref<304x128xf32, #tpu.memory_space<vmem>>, vector<24x128xf32>,
    %cst_9 = arith.constant 0.000000e+00 : f32
    %12 = vector.broadcast %cst_9 : f32 to vector<24x128xf32>
    %c280 = arith.constant 280 : index
    %c0_10 = arith.constant 0 : index
    %13 = vector.load %arg12[%c280, %c0_10] : memref<304x128xf32, #tpu.memory_space<vmem>>, vector<24x128xf32>
    tpu.vector_store %arg12[%c280, %c0_10], %12 {strides = array<i32>} : memref<304x128xf32, #tpu.memory_space<vmem>>, vector<24x128xf32>,
    %c24 = arith.constant 24 : index
    %c0_11 = arith.constant 0 : index
    %14 = vector.load %arg12[%c24, %c0_11] : memref<304x128xf32, #tpu.memory_space<vmem>>, vector<256x128xf32>
    tpu.vector_store %arg12[%c24, %c0_11], %9 {strides = array<i32>} : memref<304x128xf32, #tpu.memory_space<vmem>>, vector<256x128xf32>,
    %15 = tpu.iota {dimensions = array<i32: 0>} : vector<256x128xi32>
    %c16_i32 = arith.constant 16 : i32
    %c0_i32 = arith.constant 0 : i32
    %16 = arith.cmpi eq, %c16_i32, %c0_i32 : i32
    %c1_i32 = arith.constant 1 : i32
    %17 = arith.select %16, %c1_i32, %c16_i32 : i32
    %18 = vector.broadcast %17 : i32 to vector<256x128xi32>
    %19 = arith.remsi %15, %18 : vector<256x128xi32>
    %c0_i32_12 = arith.constant 0 : i32
    %20 = vector.broadcast %c0_i32_12 : i32 to vector<256x128xi32>
    %21 = arith.cmpi ne, %19, %20 : vector<256x128xi32>
    %c0_i32_13 = arith.constant 0 : i32
    %22 = vector.broadcast %c0_i32_13 : i32 to vector<256x128xi32>
    %23 = arith.cmpi slt, %19, %22 : vector<256x128xi32>
    %c0_i32_14 = arith.constant 0 : i32
    %24 = arith.cmpi slt, %17, %c0_i32_14 : i32
    %25 = vector.broadcast %24 : i1 to vector<256x128xi1>
    %26 = vector.broadcast %25 : vector<256x128xi1> to vector<256x128xi1>
    %27 = arith.xori %23, %26 : vector<256x128xi1>
    %28 = arith.andi %27, %21 : vector<256x128xi1>
    %29 = vector.broadcast %17 : i32 to vector<256x128xi32>
    %30 = arith.addi %19, %29 : vector<256x128xi32>
    %31 = arith.select %28, %30, %19 : vector<256x128xi1>, vector<256x128xi32>
    %c1_i32_15 = arith.constant 1 : i32
    %32 = vector.broadcast %c1_i32_15 : i32 to vector<256x128xi32>
    %33 = arith.cmpi sge, %31, %32 : vector<256x128xi32>
    %c14_i32 = arith.constant 14 : i32
    %34 = vector.broadcast %c14_i32 : i32 to vector<256x128xi32>
    %35 = arith.cmpi sle, %31, %34 : vector<256x128xi32>
    %c7 = arith.constant 7 : index
    %c0_16 = arith.constant 0 : index
    %36 = vector.load %arg12[%c7, %c0_16] : memref<304x128xf32, #tpu.memory_space<vmem>>, vector<256x128xf32>
    %cst_17 = arith.constant 0.000000e+00 : f32
    %37 = vector.broadcast %cst_17 : f32 to vector<256x128xf32>
    %38 = arith.select %33, %36, %37 : vector<256x128xi1>, vector<256x128xf32>
    %39 = arith.truncf %38 : vector<256x128xf32> to vector<256x128xbf16>
    %c0_18 = arith.constant 0 : index
    %c0_19 = arith.constant 0 : index
    %c0_20 = arith.constant 0 : index
    %40 = vector.load %arg5[%c0_18, %c0_19, %c0_20] : memref<9x128x128xbf16, #tpu.memory_space<vmem>>, vector<1x128x128xbf16>
    %41 = vector.shape_cast %40 : vector<1x128x128xbf16> to vector<128x128xbf16>
    %cst_21 = arith.constant dense<0.000000e+00> : vector<256x128xf32>
    %42 = tpu.matmul %39, %41, %cst_21 {dimension_numbers = #tpu.dot_dimension_numbers<[1], [0], [0], [1], [0, 0, 1, 1], [], []>} : vector<256x128xbf16>, vector<128x128xbf16>, vector<256x128xf32> -> vector<256x128xf32>
    %c8 = arith.constant 8 : index
    %c0_22 = arith.constant 0 : index
    %43 = vector.load %arg12[%c8, %c0_22] : memref<304x128xf32, #tpu.memory_space<vmem>>, vector<256x128xf32>
    %44 = arith.truncf %43 : vector<256x128xf32> to vector<256x128xbf16>
    %c1 = arith.constant 1 : index
    %c0_23 = arith.constant 0 : index
    %c0_24 = arith.constant 0 : index
    %45 = vector.load %arg5[%c1, %c0_23, %c0_24] : memref<9x128x128xbf16, #tpu.memory_space<vmem>>, vector<1x128x128xbf16>
    %46 = vector.shape_cast %45 : vector<1x128x128xbf16> to vector<128x128xbf16>
    %cst_25 = arith.constant dense<0.000000e+00> : vector<256x128xf32>
    %47 = tpu.matmul %44, %46, %cst_25 {dimension_numbers = #tpu.dot_dimension_numbers<[1], [0], [0], [1], [0, 0, 1, 1], [], []>} : vector<256x128xbf16>, vector<128x128xbf16>, vector<256x128xf32> -> vector<256x128xf32>
    %48 = arith.addf %42, %47 : vector<256x128xf32>
    %c9 = arith.constant 9 : index
    %c0_26 = arith.constant 0 : index
    %49 = vector.load %arg12[%c9, %c0_26] : memref<304x128xf32, #tpu.memory_space<vmem>>, vector<256x128xf32>
    %cst_27 = arith.constant 0.000000e+00 : f32
    %50 = vector.broadcast %cst_27 : f32 to vector<256x128xf32>
    %51 = arith.select %35, %49, %50 : vector<256x128xi1>, vector<256x128xf32>
    %52 = arith.truncf %51 : vector<256x128xf32> to vector<256x128xbf16>
    %c2 = arith.constant 2 : index
    %c0_28 = arith.constant 0 : index
    %c0_29 = arith.constant 0 : index
    %53 = vector.load %arg5[%c2, %c0_28, %c0_29] : memref<9x128x128xbf16, #tpu.memory_space<vmem>>, vector<1x128x128xbf16>
    %54 = vector.shape_cast %53 : vector<1x128x128xbf16> to vector<128x128xbf16>
    %cst_30 = arith.constant dense<0.000000e+00> : vector<256x128xf32>
    %55 = tpu.matmul %52, %54, %cst_30 {dimension_numbers = #tpu.dot_dimension_numbers<[1], [0], [0], [1], [0, 0, 1, 1], [], []>} : vector<256x128xbf16>, vector<128x128xbf16>, vector<256x128xf32> -> vector<256x128xf32>
    %56 = arith.addf %48, %55 : vector<256x128xf32>
    %c23 = arith.constant 23 : index
    %c0_31 = arith.constant 0 : index
    %57 = vector.load %arg12[%c23, %c0_31] : memref<304x128xf32, #tpu.memory_space<vmem>>, vector<256x128xf32>
    %cst_32 = arith.constant 0.000000e+00 : f32
    %58 = vector.broadcast %cst_32 : f32 to vector<256x128xf32>
    %59 = arith.select %33, %57, %58 : vector<256x128xi1>, vector<256x128xf32>
    %60 = arith.truncf %59 : vector<256x128xf32> to vector<256x128xbf16>
    %c3 = arith.constant 3 : index
    %c0_33 = arith.constant 0 : index
    %c0_34 = arith.constant 0 : index
    %61 = vector.load %arg5[%c3, %c0_33, %c0_34] : memref<9x128x128xbf16, #tpu.memory_space<vmem>>, vector<1x128x128xbf16>
    %62 = vector.shape_cast %61 : vector<1x128x128xbf16> to vector<128x128xbf16>
    %cst_35 = arith.constant dense<0.000000e+00> : vector<256x128xf32>
    %63 = tpu.matmul %60, %62, %cst_35 {dimension_numbers = #tpu.dot_dimension_numbers<[1], [0], [0], [1], [0, 0, 1, 1], [], []>} : vector<256x128xbf16>, vector<128x128xbf16>, vector<256x128xf32> -> vector<256x128xf32>
    %64 = arith.addf %56, %63 : vector<256x128xf32>
    %c24_36 = arith.constant 24 : index
    %c0_37 = arith.constant 0 : index
    %65 = vector.load %arg12[%c24_36, %c0_37] : memref<304x128xf32, #tpu.memory_space<vmem>>, vector<256x128xf32>
    %66 = arith.truncf %65 : vector<256x128xf32> to vector<256x128xbf16>
    %c4 = arith.constant 4 : index
    %c0_38 = arith.constant 0 : index
    %c0_39 = arith.constant 0 : index
    %67 = vector.load %arg5[%c4, %c0_38, %c0_39] : memref<9x128x128xbf16, #tpu.memory_space<vmem>>, vector<1x128x128xbf16>
    %68 = vector.shape_cast %67 : vector<1x128x128xbf16> to vector<128x128xbf16>
    %cst_40 = arith.constant dense<0.000000e+00> : vector<256x128xf32>
    %69 = tpu.matmul %66, %68, %cst_40 {dimension_numbers = #tpu.dot_dimension_numbers<[1], [0], [0], [1], [0, 0, 1, 1], [], []>} : vector<256x128xbf16>, vector<128x128xbf16>, vector<256x128xf32> -> vector<256x128xf32>
    %70 = arith.addf %64, %69 : vector<256x128xf32>
    %c25 = arith.constant 25 : index
    %c0_41 = arith.constant 0 : index
    %71 = vector.load %arg12[%c25, %c0_41] : memref<304x128xf32, #tpu.memory_space<vmem>>, vector<256x128xf32>
    %cst_42 = arith.constant 0.000000e+00 : f32
    %72 = vector.broadcast %cst_42 : f32 to vector<256x128xf32>
    %73 = arith.select %35, %71, %72 : vector<256x128xi1>, vector<256x128xf32>
    %74 = arith.truncf %73 : vector<256x128xf32> to vector<256x128xbf16>
    %c5 = arith.constant 5 : index
    %c0_43 = arith.constant 0 : index
    %c0_44 = arith.constant 0 : index
    %75 = vector.load %arg5[%c5, %c0_43, %c0_44] : memref<9x128x128xbf16, #tpu.memory_space<vmem>>, vector<1x128x128xbf16>
    %76 = vector.shape_cast %75 : vector<1x128x128xbf16> to vector<128x128xbf16>
    %cst_45 = arith.constant dense<0.000000e+00> : vector<256x128xf32>
    %77 = tpu.matmul %74, %76, %cst_45 {dimension_numbers = #tpu.dot_dimension_numbers<[1], [0], [0], [1], [0, 0, 1, 1], [], []>} : vector<256x128xbf16>, vector<128x128xbf16>, vector<256x128xf32> -> vector<256x128xf32>
    %78 = arith.addf %70, %77 : vector<256x128xf32>
    %c39 = arith.constant 39 : index
    %c0_46 = arith.constant 0 : index
    %79 = vector.load %arg12[%c39, %c0_46] : memref<304x128xf32, #tpu.memory_space<vmem>>, vector<256x128xf32>
    %cst_47 = arith.constant 0.000000e+00 : f32
    %80 = vector.broadcast %cst_47 : f32 to vector<256x128xf32>
    %81 = arith.select %33, %79, %80 : vector<256x128xi1>, vector<256x128xf32>
    %82 = arith.truncf %81 : vector<256x128xf32> to vector<256x128xbf16>
    %c6 = arith.constant 6 : index
    %c0_48 = arith.constant 0 : index
    %c0_49 = arith.constant 0 : index
    %83 = vector.load %arg5[%c6, %c0_48, %c0_49] : memref<9x128x128xbf16, #tpu.memory_space<vmem>>, vector<1x128x128xbf16>
    %84 = vector.shape_cast %83 : vector<1x128x128xbf16> to vector<128x128xbf16>
    %cst_50 = arith.constant dense<0.000000e+00> : vector<256x128xf32>
    %85 = tpu.matmul %82, %84, %cst_50 {dimension_numbers = #tpu.dot_dimension_numbers<[1], [0], [0], [1], [0, 0, 1, 1], [], []>} : vector<256x128xbf16>, vector<128x128xbf16>, vector<256x128xf32> -> vector<256x128xf32>
    %86 = arith.addf %78, %85 : vector<256x128xf32>
    %c40 = arith.constant 40 : index
    %c0_51 = arith.constant 0 : index
    %87 = vector.load %arg12[%c40, %c0_51] : memref<304x128xf32, #tpu.memory_space<vmem>>, vector<256x128xf32>
    %88 = arith.truncf %87 : vector<256x128xf32> to vector<256x128xbf16>
    %c7_52 = arith.constant 7 : index
    %c0_53 = arith.constant 0 : index
    %c0_54 = arith.constant 0 : index
    %89 = vector.load %arg5[%c7_52, %c0_53, %c0_54] : memref<9x128x128xbf16, #tpu.memory_space<vmem>>, vector<1x128x128xbf16>
    %90 = vector.shape_cast %89 : vector<1x128x128xbf16> to vector<128x128xbf16>
    %cst_55 = arith.constant dense<0.000000e+00> : vector<256x128xf32>
    %91 = tpu.matmul %88, %90, %cst_55 {dimension_numbers = #tpu.dot_dimension_numbers<[1], [0], [0], [1], [0, 0, 1, 1], [], []>} : vector<256x128xbf16>, vector<128x128xbf16>, vector<256x128xf32> -> vector<256x128xf32>
    %92 = arith.addf %86, %91 : vector<256x128xf32>
    %c41 = arith.constant 41 : index
    %c0_56 = arith.constant 0 : index
    %93 = vector.load %arg12[%c41, %c0_56] : memref<304x128xf32, #tpu.memory_space<vmem>>, vector<256x128xf32>
    %cst_57 = arith.constant 0.000000e+00 : f32
    %94 = vector.broadcast %cst_57 : f32 to vector<256x128xf32>
    %95 = arith.select %35, %93, %94 : vector<256x128xi1>, vector<256x128xf32>
    %96 = arith.truncf %95 : vector<256x128xf32> to vector<256x128xbf16>
    %c8_58 = arith.constant 8 : index
    %c0_59 = arith.constant 0 : index
    %c0_60 = arith.constant 0 : index
    %97 = vector.load %arg5[%c8_58, %c0_59, %c0_60] : memref<9x128x128xbf16, #tpu.memory_space<vmem>>, vector<1x128x128xbf16>
    %98 = vector.shape_cast %97 : vector<1x128x128xbf16> to vector<128x128xbf16>
    %cst_61 = arith.constant dense<0.000000e+00> : vector<256x128xf32>
    %99 = tpu.matmul %96, %98, %cst_61 {dimension_numbers = #tpu.dot_dimension_numbers<[1], [0], [0], [1], [0, 0, 1, 1], [], []>} : vector<256x128xbf16>, vector<128x128xbf16>, vector<256x128xf32> -> vector<256x128xf32>
    %100 = arith.addf %92, %99 : vector<256x128xf32>
    %c0_62 = arith.constant 0 : index
    %c0_63 = arith.constant 0 : index
    %101 = vector.load %arg6[%c0_62, %c0_63] : memref<1x128xf32, #tpu.memory_space<vmem>>, vector<1x128xf32>
    %102 = vector.broadcast %101 : vector<1x128xf32> to vector<256x128xf32>
    %103 = arith.addf %100, %102 : vector<256x128xf32>
    %c0_64 = arith.constant 0 : index
    %c0_65 = arith.constant 0 : index
    %c0_66 = arith.constant 0 : index
    %104 = vector.load %arg2[%c0_64, %c0_65, %c0_66] : memref<1x256x128xf32, #tpu.memory_space<vmem>>, vector<1x256x128xf32>
    %105 = vector.shape_cast %104 : vector<1x256x128xf32> to vector<256x128xf32>
    %106 = arith.truncf %105 : vector<256x128xf32> to vector<256x128xbf16>
    %c0_67 = arith.constant 0 : index
    %c0_68 = arith.constant 0 : index
    %107 = vector.load %arg7[%c0_67, %c0_68] : memref<128x128xbf16, #tpu.memory_space<vmem>>, vector<128x128xbf16>
    %cst_69 = arith.constant dense<0.000000e+00> : vector<256x128xf32>
    %108 = tpu.matmul %106, %107, %cst_69 {dimension_numbers = #tpu.dot_dimension_numbers<[1], [0], [0], [1], [0, 0, 1, 1], [], []>} : vector<256x128xbf16>, vector<128x128xbf16>, vector<256x128xf32> -> vector<256x128xf32>
    %c0_70 = arith.constant 0 : index
    %c0_71 = arith.constant 0 : index
    %109 = vector.load %arg8[%c0_70, %c0_71] : memref<1x128xf32, #tpu.memory_space<vmem>>, vector<1x128xf32>
    %110 = vector.broadcast %109 : vector<1x128xf32> to vector<256x128xf32>
    %111 = arith.addf %108, %110 : vector<256x128xf32>
    %112 = arith.addf %103, %111 : vector<256x128xf32>
    %cst_72 = arith.constant dense<0.000000e+00> : vector<256xf32>
    %113 = vector.multi_reduction <add>, %112, %cst_72 [1] : vector<256x128xf32> to vector<256xf32>
    %114 = vector.shape_cast %113 : vector<256xf32> to vector<256x1xf32>
    %cst_73 = arith.constant dense<0.000000e+00> : vector<1xf32>
    %115 = vector.multi_reduction <add>, %114, %cst_73 [0] : vector<256x1xf32> to vector<1xf32>
    %116 = vector.shape_cast %115 : vector<1xf32> to vector<1x1xf32>
    %cst_74 = arith.constant 2.048000e+03 : f32
    %117 = vector.broadcast %cst_74 : f32 to vector<1x1xf32>
    %118 = arith.divf %116, %117 : vector<1x1xf32>
    %119 = tpu.iota {dimensions = array<i32: 1>} : vector<256x128xi32>
    %c8_i32 = arith.constant 8 : i32
    %120 = vector.broadcast %c8_i32 : i32 to vector<256x128xi32>
    %121 = arith.cmpi slt, %119, %120 : vector<256x128xi32>
    %122 = vector.broadcast %118 : vector<1x1xf32> to vector<256x128xf32>
    %123 = arith.subf %112, %122 : vector<256x128xf32>
    %cst_75 = arith.constant 0.000000e+00 : f32
    %124 = vector.broadcast %cst_75 : f32 to vector<256x128xf32>
    %125 = arith.select %121, %123, %124 : vector<256x128xi1>, vector<256x128xf32>
    %126 = arith.mulf %125, %125 : vector<256x128xf32>
    %cst_76 = arith.constant dense<0.000000e+00> : vector<256xf32>
    %127 = vector.multi_reduction <add>, %126, %cst_76 [1] : vector<256x128xf32> to vector<256xf32>
    %128 = vector.shape_cast %127 : vector<256xf32> to vector<256x1xf32>
    %cst_77 = arith.constant dense<0.000000e+00> : vector<1xf32>
    %129 = vector.multi_reduction <add>, %128, %cst_77 [0] : vector<256x1xf32> to vector<1xf32>
    %130 = vector.shape_cast %129 : vector<1xf32> to vector<1x1xf32>
    %cst_78 = arith.constant 2.047000e+03 : f32
    %131 = vector.broadcast %cst_78 : f32 to vector<1x1xf32>
    %132 = arith.divf %130, %131 : vector<1x1xf32>
    %133 = math.rsqrt %132 : vector<1x1xf32>
    %134 = vector.broadcast %133 : vector<1x1xf32> to vector<256x128xf32>
    %135 = arith.mulf %125, %134 : vector<256x128xf32>
    %c0_79 = arith.constant 0 : index
    %c0_80 = arith.constant 0 : index
    %c0_81 = arith.constant 0 : index
    %136 = vector.load %arg9[%c0_79, %c0_80, %c0_81] : memref<1x256x128xf32, #tpu.memory_space<vmem>>, vector<1x256x128xf32>
    %137 = vector.shape_cast %136 : vector<1x256x128xf32> to vector<256x128xf32>
    %cst_82 = arith.constant 1.000000e+00 : f32
    %138 = vector.broadcast %cst_82 : f32 to vector<256x128xf32>
    %139 = arith.addf %138, %137 : vector<256x128xf32>
    %140 = arith.mulf %135, %139 : vector<256x128xf32>
    %c0_83 = arith.constant 0 : index
    %c0_84 = arith.constant 0 : index
    %c0_85 = arith.constant 0 : index
    %141 = vector.load %arg10[%c0_83, %c0_84, %c0_85] : memref<1x256x128xf32, #tpu.memory_space<vmem>>, vector<1x256x128xf32>
    %142 = vector.shape_cast %141 : vector<1x256x128xf32> to vector<256x128xf32>
    %143 = arith.addf %140, %142 : vector<256x128xf32>
    %c0_86 = arith.constant 0 : index
    %c0_87 = arith.constant 0 : index
    %c0_88 = arith.constant 0 : index
    %144 = vector.load %arg11[%c0_86, %c0_87, %c0_88] : memref<1x256x128xf32, #tpu.memory_space<vmem>>, vector<1x256x128xf32>
    %145 = vector.shape_cast %144 : vector<1x256x128xf32> to vector<256x128xf32>
    %146 = vector.shape_cast %143 : vector<256x128xf32> to vector<1x256x128xf32>
    tpu.vector_store %arg11[%c0_86, %c0_87, %c0_88], %146 {strides = array<i32>} : memref<1x256x128xf32, #tpu.memory_space<vmem>>, vector<1x256x128xf32>,
    return
  }
  func.func @transform_0(%arg0: i32) -> (i32, i32, i32) {
    %c0_i32 = arith.constant 0 : i32
    %c0_i32_0 = arith.constant 0 : i32
    %c0_i32_1 = arith.constant 0 : i32
    return %arg0, %c0_i32, %c0_i32_0 : i32, i32, i32
  }
  func.func @transform_1(%arg0: i32) -> (i32, i32, i32) {
    %c0_i32 = arith.constant 0 : i32
    %c0_i32_0 = arith.constant 0 : i32
    %c0_i32_1 = arith.constant 0 : i32
    return %arg0, %c0_i32, %c0_i32_0 : i32, i32, i32
  }
  func.func @transform_2(%arg0: i32) -> (i32, i32) {
    %c0_i32 = arith.constant 0 : i32
    %c0_i32_0 = arith.constant 0 : i32
    %c0_i32_1 = arith.constant 0 : i32
    return %c0_i32, %c0_i32_0 : i32, i32
  }
  func.func @transform_3(%arg0: i32) -> (i32, i32) {
    %c0_i32 = arith.constant 0 : i32
    %c0_i32_0 = arith.constant 0 : i32
    %c0_i32_1 = arith.constant 0 : i32
    return %c0_i32, %c0_i32_0 : i32, i32
  }
  func.func @transform_4(%arg0: i32) -> (i32, i32, i32) {
    %c0_i32 = arith.constant 0 : i32
    %c0_i32_0 = arith.constant 0 : i32
    %c0_i32_1 = arith.constant 0 : i32
    %c0_i32_2 = arith.constant 0 : i32
    return %c0_i32, %c0_i32_0, %c0_i32_1 : i32, i32, i32
  }
  func.func @transform_5(%arg0: i32) -> (i32, i32) {
    %c0_i32 = arith.constant 0 : i32
    %c0_i32_0 = arith.constant 0 : i32
    %c0_i32_1 = arith.constant 0 : i32
    return %c0_i32, %c0_i32_0 : i32, i32
  }
  func.func @transform_6(%arg0: i32) -> (i32, i32) {
    %c0_i32 = arith.constant 0 : i32
    %c0_i32_0 = arith.constant 0 : i32
    %c0_i32_1 = arith.constant 0 : i32
    return %c0_i32, %c0_i32_0 : i32, i32
  }
  func.func @transform_7(%arg0: i32) -> (i32, i32) {
    %c0_i32 = arith.constant 0 : i32
    %c0_i32_0 = arith.constant 0 : i32
    %c0_i32_1 = arith.constant 0 : i32
    return %c0_i32, %c0_i32_0 : i32, i32
  }
  func.func @transform_8(%arg0: i32) -> (i32, i32, i32) {
    %c0_i32 = arith.constant 0 : i32
    %c0_i32_0 = arith.constant 0 : i32
    %c0_i32_1 = arith.constant 0 : i32
    return %arg0, %c0_i32, %c0_i32_0 : i32, i32, i32
  }
  func.func @transform_9(%arg0: i32) -> (i32, i32, i32) {
    %c0_i32 = arith.constant 0 : i32
    %c0_i32_0 = arith.constant 0 : i32
    %c0_i32_1 = arith.constant 0 : i32
    return %arg0, %c0_i32, %c0_i32_0 : i32, i32, i32
  }
  func.func @transform_10(%arg0: i32) -> (i32, i32, i32) {
    %c0_i32 = arith.constant 0 : i32
    %c0_i32_0 = arith.constant 0 : i32
    %c0_i32_1 = arith.constant 0 : i32
    return %arg0, %c0_i32, %c0_i32_0 : i32, i32, i32
  }
}

</mosaic_0001>

<llo_original>
// kernel: gblock_forward.3
$region0: #{gblock_forward.3}
  #allocation0 [shape = 'u32[]', space=smem, size = 0x4, offset = 0x4, fixed_abs, tag = 'smem constant byte address 0x4 - core index']
  #allocation1 [shape = 'u32[144,128]{1,0:T(1,128)}', space=vmem, size = 0x12000, scoped, tag = 'internal scratch']
  %s0 = inlined_call_operand.vmem [shape: f32[512,128], index: 0, kind: input, shape index: {}]
  %s1 = inlined_call_operand.vmem [shape: f32[1,128], index: 1, kind: output, shape index: {0}]
  %s2 = inlined_call_operand.vmem [shape: f32[1,128], index: 2, kind: output, shape index: {1}]
  %3 = xla_tuple %s1, %s2
  %s4 = sld [smem:[#allocation0]]
  $region49: #{gblock_forward.3} parent=0
    _
  %s6 = ssub.s32 1, %s4
  %s7 = scalar_select 0, %s6, %s4
  loop: start=0, step=1, limit=4
  $region2: #{gblock_forward.3} parent=0 // loop_pre_header
    _
  $region3: #{gblock_forward.3} parent=0 // loop_header
    %s9 = sphi 0, %s13
    %p10 = scmp.ge.s32.totalorder %s9, 4
    %s19 = sphi 0, %s21
    %s22 = sphi 0, %s19
    %s23 = sphi 0, %s22
    %s39 = sphi 0, %s23
    %s43 = sphi 0, %s43
    %s45 = sphi 0, %s43
    %s46 = sphi 0, %s45
    %s60 = sphi 0, %s46
    %s64 = sphi 0, %s64
    %s66 = sphi 0, %s64
    %s67 = sphi 0, %s66
    %s81 = sphi 0, %s67
  $region4: #{gblock_forward.3} parent=0 // loop_header_branch
    %12 = sbr.rel (%p10) target = $region8
  $region5: #{gblock_forward.3} parent=0 // loop_body
    %s14 = ssub.s32 %s9, 1
    %s15 = ssub.s32 %s9, 2
    %s16 = sadd.s32 %s9, 1
    %s17 = ssub.s32 %s9, %s16
    %p18 = scmp.eq.s32.totalorder %s17, 0
    %s20 = sadd.s32 %s19, 1
    %s21 = scalar_select %p18, %s19, %s20
    %p24 = pneg %p18
    %p25 = scmp.eq.s32.totalorder %s9, 1
    %p26 = por %p24, %p25
    %p27 = scmp.ne.s32.totalorder %s19, %s22
    %p28 = scmp.eq.s32.totalorder %s9, 0
    %p29 = por %p27, %p28
    %p30 = scmp.ne.s32.totalorder %s19, %s22
    %p31 = scmp.eq.s32.totalorder %s14, 1
    %p32 = por %p30, %p31
    %p33 = scmp.ne.s32.totalorder %s22, %s23
    %p34 = scmp.eq.s32.totalorder %s14, 0
    %p35 = por %p33, %p34
    %p36 = scmp.ne.s32.totalorder %s22, %s23
    %p37 = scmp.eq.s32.totalorder %s15, 1
    %p38 = por %p36, %p37
    %p40 = scmp.ne.s32.totalorder %s23, %s39
    %p41 = scmp.eq.s32.totalorder %s15, 0
    %p42 = por %p40, %p41
    %s44 = sadd.s32 %s43, 1
    %p47 = scmp.eq.s32.totalorder %s9, 1
    %p48 = scmp.ne.s32.totalorder %s43, %s45
    %p49 = scmp.eq.s32.totalorder %s9, 0
    %p50 = por %p48, %p49
    %p51 = scmp.ne.s32.totalorder %s43, %s45
    %p52 = scmp.eq.s32.totalorder %s14, 1
    %p53 = por %p51, %p52
    %p54 = scmp.ne.s32.totalorder %s45, %s46
    %p55 = scmp.eq.s32.totalorder %s14, 0
    %p56 = por %p54, %p55
    %p57 = scmp.ne.s32.totalorder %s45, %s46
    %p58 = scmp.eq.s32.totalorder %s15, 1
    %p59 = por %p57, %p58
    %p61 = scmp.ne.s32.totalorder %s46, %s60
    %p62 = scmp.eq.s32.totalorder %s15, 0
    %p63 = por %p61, %p62
    %s65 = sadd.s32 %s64, 1
    %p68 = scmp.eq.s32.totalorder %s9, 1
    %p69 = scmp.ne.s32.totalorder %s64, %s66
    %p70 = scmp.eq.s32.totalorder %s9, 0
    %p71 = por %p69, %p70
    %p72 = scmp.ne.s32.totalorder %s64, %s66
    %p73 = scmp.eq.s32.totalorder %s14, 1
    %p74 = por %p72, %p73
    %p75 = scmp.ne.s32.totalorder %s66, %s67
    %p76 = scmp.eq.s32.totalorder %s14, 0
    %p77 = por %p75, %p76
    %p78 = scmp.ne.s32.totalorder %s66, %s67
    %p79 = scmp.eq.s32.totalorder %s15, 1
    %p80 = por %p78, %p79
    %p82 = scmp.ne.s32.totalorder %s67, %s81
    %p83 = scmp.eq.s32.totalorder %s15, 0
    %p84 = por %p82, %p83
    %p85 = scmp.le.s32.totalorder 1, %s9
    %p86 = scmp.lt.s32.totalorder %s9, 3
    %p87 = pnand %p85, %p86
    %p88 = pneg %p87
    // Predicated region
    $region9: #{gblock_forward.3} parent=5 // pred_check
      _
    $region10: #{gblock_forward.3} parent=5 // pred_check_branch
      %90 = sbr.rel (%p87) target = $region12
    $region11: #{gblock_forward.3} parent=5 // pred_region
      %s91 = ssub.s32 %s9, 1
    $region12: #{gblock_forward.3} parent=5 // pred_fallthru
      _
    %p92 = scmp.lt.s32.totalorder %s9, 2
    // Predicated region
    $region13: #{gblock_forward.3} parent=5 // pred_check
      %p93 = pneg %p92
    $region14: #{gblock_forward.3} parent=5 // pred_check_branch
      %95 = sbr.rel (%p93) target = $region16
    $region15: #{gblock_forward.3} parent=5 // pred_region
      // Predicated region
      $region17: #{gblock_forward.3} parent=15 // pred_check
        %p96 = pneg %p29
      $region18: #{gblock_forward.3} parent=15 // pred_check_branch
        %98 = sbr.rel (%p96) target = $region20
      $region19: #{gblock_forward.3} parent=15 // pred_region
        %s99 = smul.u32 32, %s9
        %p100 = scmp.lt.s32.totalorder %s99, 63
        %s101 = scalar_select %p100, %s99, 63
        %s102 = smul.addr %s101, 8
        %s103 = scalar_lea.vmem %s0, %s102
        %s104 = smul.u32 32, %s9
      $region20: #{gblock_forward.3} parent=15 // pred_fallthru
        _
    $region16: #{gblock_forward.3} parent=5 // pred_fallthru
      _
    %p105 = scmp.le.s32.totalorder 1, %s9
    %p106 = scmp.lt.s32.totalorder %s9, 3
    %p107 = pnand %p105, %p106
    %p108 = pneg %p107
    // Predicated region
    $region21: #{gblock_forward.3} parent=5 // pred_check
      _
    $region22: #{gblock_forward.3} parent=5 // pred_check_branch
      %110 = sbr.rel (%p107) target = $region24
    $region23: #{gblock_forward.3} parent=5 // pred_region
      %s111 = ssub.s32 %s9, 1
      %s112 = smul.u32 32, %s14
      %p113 = scmp.lt.s32.totalorder %s112, 63
      %s114 = scalar_select %p113, %s112, 63
      %s115 = smul.addr %s114, 8
      %s116 = scalar_lea.vmem %s0, %s115
      %p117 = pneg %p35
      %p118 = pneg %p32
      %p119 = pneg %p56
      %p120 = pneg %p53
      %p121 = pneg %p77
      %p122 = pneg %p74
      %s123 = smul.u32 32, %s14
      %p124 = scmp.lt.s32.totalorder %s123, 63
      %s125 = scalar_select %p124, %s123, 63
      %s126 = smul.addr %s125, 8
      %s127 = scalar_lea.vmem %s0, %s126
      %s128 = smul.u32 32, %s14
      %p129 = scmp.eq.s32.totalorder %s14, 0
      // Predicated region
      $region25: #{gblock_forward.3} parent=23 // pred_check
        %p130 = pneg %p129
      $region26: #{gblock_forward.3} parent=23 // pred_check_branch
        %132 = sbr.rel (%p130) target = $region28
      $region27: #{gblock_forward.3} parent=23 // pred_region
        %133 = vst [vmem:[%s1] sm:$0x1] 0.0
        %134 = vst [vmem:[%s2] sm:$0x1] 0.0
      $region28: #{gblock_forward.3} parent=23 // pred_fallthru
        _
      %v135 = vld [vmem:[%s127] sm:$0xff]
      %v136 = vld [vmem:[%s127 + $0x8] sm:$0xff]
      %v137 = vld [vmem:[%s127 + $0x10] sm:$0xff]
      %v138 = vld [vmem:[%s127 + $0x18] sm:$0xff]
      %v139 = vld [vmem:[%s127 + $0x20] sm:$0xff]
      %v140 = vld [vmem:[%s127 + $0x28] sm:$0xff]
      %v141 = vld [vmem:[%s127 + $0x30] sm:$0xff]
      %v142 = vld [vmem:[%s127 + $0x38] sm:$0xff]
      %v143 = vld [vmem:[%s127 + $0x40] sm:$0xff]
      %v144 = vld [vmem:[%s127 + $0x48] sm:$0xff]
      %v145 = vld [vmem:[%s127 + $0x50] sm:$0xff]
      %v146 = vld [vmem:[%s127 + $0x58] sm:$0xff]
      %v147 = vld [vmem:[%s127 + $0x60] sm:$0xff]
      %v148 = vld [vmem:[%s127 + $0x68] sm:$0xff]
      %v149 = vld [vmem:[%s127 + $0x70] sm:$0xff]
      %v150 = vld [vmem:[%s127 + $0x78] sm:$0xff]
      %v151 = vld [vmem:[%s127 + $0x80] sm:$0xff]
      %v152 = vld [vmem:[%s127 + $0x88] sm:$0xff]
      %v153 = vld [vmem:[%s127 + $0x90] sm:$0xff]
      %v154 = vld [vmem:[%s127 + $0x98] sm:$0xff]
      %v155 = vld [vmem:[%s127 + $0xa0] sm:$0xff]
      %v156 = vld [vmem:[%s127 + $0xa8] sm:$0xff]
      %v157 = vld [vmem:[%s127 + $0xb0] sm:$0xff]
      %v158 = vld [vmem:[%s127 + $0xb8] sm:$0xff]
      %v159 = vld [vmem:[%s127 + $0xc0] sm:$0xff]
      %v160 = vld [vmem:[%s127 + $0xc8] sm:$0xff]
      %v161 = vld [vmem:[%s127 + $0xd0] sm:$0xff]
      %v162 = vld [vmem:[%s127 + $0xd8] sm:$0xff]
      %v163 = vld [vmem:[%s127 + $0xe0] sm:$0xff]
      %v164 = vld [vmem:[%s127 + $0xe8] sm:$0xff]
      %v165 = vld [vmem:[%s127 + $0xf0] sm:$0xff]
      %v166 = vld [vmem:[%s127 + $0xf8] sm:$0xff]
      %v167 = vld [vmem:[%s1] sm:$0x1]
      %v168 = vadd.f32 %v135, %v136
      %v169 = vadd.f32 %v168, %v137
      %v170 = vadd.f32 %v169, %v138
      %v171 = vadd.f32 %v170, %v139
      %v172 = vadd.f32 %v171, %v140
      %v173 = vadd.f32 %v172, %v141
      %v174 = vadd.f32 %v173, %v142
      %v175 = vadd.f32 %v174, %v143
      %v176 = vadd.f32 %v175, %v144
      %v177 = vadd.f32 %v176, %v145
      %v178 = vadd.f32 %v177, %v146
      %v179 = vadd.f32 %v178, %v147
      %v180 = vadd.f32 %v179, %v148
      %v181 = vadd.f32 %v180, %v149
      %v182 = vadd.f32 %v181, %v150
      %v183 = vadd.f32 %v182, %v151
      %v184 = vadd.f32 %v183, %v152
      %v185 = vadd.f32 %v184, %v153
      %v186 = vadd.f32 %v185, %v154
      %v187 = vadd.f32 %v186, %v155
      %v188 = vadd.f32 %v187, %v156
      %v189 = vadd.f32 %v188, %v157
      %v190 = vadd.f32 %v189, %v158
      %v191 = vadd.f32 %v190, %v159
      %v192 = vadd.f32 %v191, %v160
      %v193 = vadd.f32 %v192, %v161
      %v194 = vadd.f32 %v193, %v162
      %v195 = vadd.f32 %v194, %v163
      %v196 = vadd.f32 %v195, %v164
      %v197 = vadd.f32 %v196, %v165
      %v198 = vadd.f32 %v197, %v166
      %v199 = vrot.slane %v198, 4
      %v200 = vadd.f32 %v198, %v199
      %v201 = vrot.slane %v200, 2
      %v202 = vadd.f32 %v200, %v201
      %v203 = vrot.slane %v202, 1
      %v204 = vadd.f32 %v202, %v203
      %v205 = vadd.f32 %v167, %v204
      %206 = vst [vmem:[%s1] sm:$0x1] %v205
      %v207 = vld [vmem:[%s2] sm:$0x1]
      %v208 = vmul.f32 %v135, %v135
      %v209 = vmul.f32 %v136, %v136
      %v210 = vmul.f32 %v137, %v137
      %v211 = vmul.f32 %v138, %v138
      %v212 = vmul.f32 %v139, %v139
      %v213 = vmul.f32 %v140, %v140
      %v214 = vmul.f32 %v141, %v141
      %v215 = vmul.f32 %v142, %v142
      %v216 = vmul.f32 %v143, %v143
      %v217 = vmul.f32 %v144, %v144
      %v218 = vmul.f32 %v145, %v145
      %v219 = vmul.f32 %v146, %v146
      %v220 = vmul.f32 %v147, %v147
      %v221 = vmul.f32 %v148, %v148
      %v222 = vmul.f32 %v149, %v149
      %v223 = vmul.f32 %v150, %v150
      %v224 = vmul.f32 %v151, %v151
      %v225 = vmul.f32 %v152, %v152
      %v226 = vmul.f32 %v153, %v153
      %v227 = vmul.f32 %v154, %v154
      %v228 = vmul.f32 %v155, %v155
      %v229 = vmul.f32 %v156, %v156
      %v230 = vmul.f32 %v157, %v157
      %v231 = vmul.f32 %v158, %v158
      %v232 = vmul.f32 %v159, %v159
      %v233 = vmul.f32 %v160, %v160
      %v234 = vmul.f32 %v161, %v161
      %v235 = vmul.f32 %v162, %v162
      %v236 = vmul.f32 %v163, %v163
      %v237 = vmul.f32 %v164, %v164
      %v238 = vmul.f32 %v165, %v165
      %v239 = vmul.f32 %v166, %v166
      %v240 = vadd.f32 %v208, %v209
      %v241 = vadd.f32 %v240, %v210
      %v242 = vadd.f32 %v241, %v211
      %v243 = vadd.f32 %v242, %v212
      %v244 = vadd.f32 %v243, %v213
      %v245 = vadd.f32 %v244, %v214
      %v246 = vadd.f32 %v245, %v215
      %v247 = vadd.f32 %v246, %v216
      %v248 = vadd.f32 %v247, %v217
      %v249 = vadd.f32 %v248, %v218
      %v250 = vadd.f32 %v249, %v219
      %v251 = vadd.f32 %v250, %v220
      %v252 = vadd.f32 %v251, %v221
      %v253 = vadd.f32 %v252, %v222
      %v254 = vadd.f32 %v253, %v223
      %v255 = vadd.f32 %v254, %v224
      %v256 = vadd.f32 %v255, %v225
      %v257 = vadd.f32 %v256, %v226
      %v258 = vadd.f32 %v257, %v227
      %v259 = vadd.f32 %v258, %v228
      %v260 = vadd.f32 %v259, %v229
      %v261 = vadd.f32 %v260, %v230
      %v262 = vadd.f32 %v261, %v231
      %v263 = vadd.f32 %v262, %v232
      %v264 = vadd.f32 %v263, %v233
      %v265 = vadd.f32 %v264, %v234
      %v266 = vadd.f32 %v265, %v235
      %v267 = vadd.f32 %v266, %v236
      %v268 = vadd.f32 %v267, %v237
      %v269 = vadd.f32 %v268, %v238
      %v270 = vadd.f32 %v269, %v239
      %v271 = vrot.slane %v270, 4
      %v272 = vadd.f32 %v270, %v271
      %v273 = vrot.slane %v272, 2
      %v274 = vadd.f32 %v272, %v273
      %v275 = vrot.slane %v274, 1
      %v276 = vadd.f32 %v274, %v275
      %v277 = vadd.f32 %v207, %v276
      %278 = vst [vmem:[%s2] sm:$0x1] %v277
      // Predicated region
      $region29: #{gblock_forward.3} parent=23 // pred_check
        %p279 = pneg %p53
      $region30: #{gblock_forward.3} parent=23 // pred_check_branch
        %281 = sbr.rel (%p279) target = $region32
      $region31: #{gblock_forward.3} parent=23 // pred_region
        _
      $region32: #{gblock_forward.3} parent=23 // pred_fallthru
        _
      // Predicated region
      $region33: #{gblock_forward.3} parent=23 // pred_check
        %p282 = pneg %p74
      $region34: #{gblock_forward.3} parent=23 // pred_check_branch
        %284 = sbr.rel (%p282) target = $region36
      $region35: #{gblock_forward.3} parent=23 // pred_region
        _
      $region36: #{gblock_forward.3} parent=23 // pred_fallthru
        _
      // Predicated region
      $region37: #{gblock_forward.3} parent=23 // pred_check
        %p285 = pneg %p53
      $region38: #{gblock_forward.3} parent=23 // pred_check_branch
        %287 = sbr.rel (%p285) target = $region40
      $region39: #{gblock_forward.3} parent=23 // pred_region
        _
      $region40: #{gblock_forward.3} parent=23 // pred_fallthru
        _
      // Predicated region
      $region41: #{gblock_forward.3} parent=23 // pred_check
        %p288 = pneg %p74
      $region42: #{gblock_forward.3} parent=23 // pred_check_branch
        %290 = sbr.rel (%p288) target = $region44
      $region43: #{gblock_forward.3} parent=23 // pred_region
        _
      $region44: #{gblock_forward.3} parent=23 // pred_fallthru
        _
    $region24: #{gblock_forward.3} parent=5 // pred_fallthru
      _
    %p291 = scmp.le.s32.totalorder 2, %s9
    // Predicated region
    $region45: #{gblock_forward.3} parent=5 // pred_check
      %p292 = pneg %p291
    $region46: #{gblock_forward.3} parent=5 // pred_check_branch
      %294 = sbr.rel (%p292) target = $region48
    $region47: #{gblock_forward.3} parent=5 // pred_region
      %s295 = ssub.s32 %s9, 2
    $region48: #{gblock_forward.3} parent=5 // pred_fallthru
      _
  $region6: #{gblock_forward.3} parent=0 // loop_footer
    %s13 = sadd.s32 1, %s9
  $region7: #{gblock_forward.3} parent=0 // loop_footer_branch
    %8 = sbr.rel target = $region3
  $region8: #{gblock_forward.3} parent=0 // loop_exit
    _

// kernel: gblock_forward.4
$region0: #{gblock_forward.4}
  #allocation0 [shape = 'u32[]', space=smem, size = 0x4, offset = 0x4, fixed_abs, tag = 'smem constant byte address 0x4 - core index']
  #allocation1 [shape = 'u32[144,128]{1,0:T(1,128)}', space=vmem, size = 0x12000, scoped, tag = 'internal scratch']
  #allocation2 [shape = 'f32[304,128]{1,0:T(8,128)}', space=vmem, size = 0x26000, scoped, tag = 'scratch operand']
  %s0 = inlined_call_operand.vmem [shape: f32[2,256,128], index: 0, kind: input, shape index: {}]
  %s1 = inlined_call_operand.vmem [shape: f32[1,128], index: 1, kind: input, shape index: {}]
  %s2 = inlined_call_operand.vmem [shape: f32[1,128], index: 2, kind: input, shape index: {}]
  %s3 = inlined_call_operand.vmem [shape: bf16[9,128,128], index: 3, kind: input, shape index: {}]
  %s4 = inlined_call_operand.vmem [shape: f32[1,128], index: 4, kind: input, shape index: {}]
  %s5 = inlined_call_operand.vmem [shape: f32[2,256,128], index: 5, kind: output, shape index: {0}]
  %s6 = inlined_call_operand.vmem [shape: f32[2,1,128], index: 6, kind: output, shape index: {1}]
  %s7 = inlined_call_operand.vmem [shape: f32[2,1,128], index: 7, kind: output, shape index: {2}]
  %8 = xla_tuple %s5, %s6, %s7
  %s9 = sld [smem:[#allocation0]]
  $region69: #{gblock_forward.4} parent=0
    _
  %s11 = ssub.s32 1, %s9
  %s12 = scalar_select 0, %s11, %s9
  loop: start=0, step=1, limit=4
  $region2: #{gblock_forward.4} parent=0 // loop_pre_header
    _
  $region3: #{gblock_forward.4} parent=0 // loop_header
    %s14 = sphi 0, %s18
    %p15 = scmp.ge.s32.totalorder %s14, 4
    %s24 = sphi 0, %s26
    %s27 = sphi 0, %s24
    %s28 = sphi 0, %s27
    %s44 = sphi 0, %s28
    %s48 = sphi 0, %s48
    %s50 = sphi 0, %s48
    %s51 = sphi 0, %s50
    %s65 = sphi 0, %s51
    %s69 = sphi 0, %s69
    %s71 = sphi 0, %s69
    %s72 = sphi 0, %s71
    %s86 = sphi 0, %s72
    %s90 = sphi 0, %s90
    %s92 = sphi 0, %s90
    %s93 = sphi 0, %s92
    %s107 = sphi 0, %s93
    %s111 = sphi 0, %s111
    %s113 = sphi 0, %s111
    %s114 = sphi 0, %s113
    %s128 = sphi 0, %s114
    %s134 = sphi 0, %s136
    %s137 = sphi 0, %s134
    %s138 = sphi 0, %s137
    %s154 = sphi 0, %s138
    %s160 = sphi 0, %s162
    %s163 = sphi 0, %s160
    %s164 = sphi 0, %s163
    %s180 = sphi 0, %s164
    %s186 = sphi 0, %s188
    %s189 = sphi 0, %s186
    %s190 = sphi 0, %s189
    %s206 = sphi 0, %s190
  $region4: #{gblock_forward.4} parent=0 // loop_header_branch
    %17 = sbr.rel (%p15) target = $region8
  $region5: #{gblock_forward.4} parent=0 // loop_body
    %s19 = ssub.s32 %s14, 1
    %s20 = ssub.s32 %s14, 2
    %s21 = sadd.s32 %s14, 1
    %s22 = ssub.s32 %s14, %s21
    %p23 = scmp.eq.s32.totalorder %s22, 0
    %s25 = sadd.s32 %s24, 1
    %s26 = scalar_select %p23, %s24, %s25
    %p29 = pneg %p23
    %p30 = scmp.eq.s32.totalorder %s14, 1
    %p31 = por %p29, %p30
    %p32 = scmp.ne.s32.totalorder %s24, %s27
    %p33 = scmp.eq.s32.totalorder %s14, 0
    %p34 = por %p32, %p33
    %p35 = scmp.ne.s32.totalorder %s24, %s27
    %p36 = scmp.eq.s32.totalorder %s19, 1
    %p37 = por %p35, %p36
    %p38 = scmp.ne.s32.totalorder %s27, %s28
    %p39 = scmp.eq.s32.totalorder %s19, 0
    %p40 = por %p38, %p39
    %p41 = scmp.ne.s32.totalorder %s27, %s28
    %p42 = scmp.eq.s32.totalorder %s20, 1
    %p43 = por %p41, %p42
    %p45 = scmp.ne.s32.totalorder %s28, %s44
    %p46 = scmp.eq.s32.totalorder %s20, 0
    %p47 = por %p45, %p46
    %s49 = sadd.s32 %s48, 1
    %p52 = scmp.eq.s32.totalorder %s14, 1
    %p53 = scmp.ne.s32.totalorder %s48, %s50
    %p54 = scmp.eq.s32.totalorder %s14, 0
    %p55 = por %p53, %p54
    %p56 = scmp.ne.s32.totalorder %s48, %s50
    %p57 = scmp.eq.s32.totalorder %s19, 1
    %p58 = por %p56, %p57
    %p59 = scmp.ne.s32.totalorder %s50, %s51
    %p60 = scmp.eq.s32.totalorder %s19, 0
    %p61 = por %p59, %p60
    %p62 = scmp.ne.s32.totalorder %s50, %s51
    %p63 = scmp.eq.s32.totalorder %s20, 1
    %p64 = por %p62, %p63
    %p66 = scmp.ne.s32.totalorder %s51, %s65
    %p67 = scmp.eq.s32.totalorder %s20, 0
    %p68 = por %p66, %p67
    %s70 = sadd.s32 %s69, 1
    %p73 = scmp.eq.s32.totalorder %s14, 1
    %p74 = scmp.ne.s32.totalorder %s69, %s71
    %p75 = scmp.eq.s32.totalorder %s14, 0
    %p76 = por %p74, %p75
    %p77 = scmp.ne.s32.totalorder %s69, %s71
    %p78 = scmp.eq.s32.totalorder %s19, 1
    %p79 = por %p77, %p78
    %p80 = scmp.ne.s32.totalorder %s71, %s72
    %p81 = scmp.eq.s32.totalorder %s19, 0
    %p82 = por %p80, %p81
    %p83 = scmp.ne.s32.totalorder %s71, %s72
    %p84 = scmp.eq.s32.totalorder %s20, 1
    %p85 = por %p83, %p84
    %p87 = scmp.ne.s32.totalorder %s72, %s86
    %p88 = scmp.eq.s32.totalorder %s20, 0
    %p89 = por %p87, %p88
    %s91 = sadd.s32 %s90, 1
    %p94 = scmp.eq.s32.totalorder %s14, 1
    %p95 = scmp.ne.s32.totalorder %s90, %s92
    %p96 = scmp.eq.s32.totalorder %s14, 0
    %p97 = por %p95, %p96
    %p98 = scmp.ne.s32.totalorder %s90, %s92
    %p99 = scmp.eq.s32.totalorder %s19, 1
    %p100 = por %p98, %p99
    %p101 = scmp.ne.s32.totalorder %s92, %s93
    %p102 = scmp.eq.s32.totalorder %s19, 0
    %p103 = por %p101, %p102
    %p104 = scmp.ne.s32.totalorder %s92, %s93
    %p105 = scmp.eq.s32.totalorder %s20, 1
    %p106 = por %p104, %p105
    %p108 = scmp.ne.s32.totalorder %s93, %s107
    %p109 = scmp.eq.s32.totalorder %s20, 0
    %p110 = por %p108, %p109
    %s112 = sadd.s32 %s111, 1
    %p115 = scmp.eq.s32.totalorder %s14, 1
    %p116 = scmp.ne.s32.totalorder %s111, %s113
    %p117 = scmp.eq.s32.totalorder %s14, 0
    %p118 = por %p116, %p117
    %p119 = scmp.ne.s32.totalorder %s111, %s113
    %p120 = scmp.eq.s32.totalorder %s19, 1
    %p121 = por %p119, %p120
    %p122 = scmp.ne.s32.totalorder %s113, %s114
    %p123 = scmp.eq.s32.totalorder %s19, 0
    %p124 = por %p122, %p123
    %p125 = scmp.ne.s32.totalorder %s113, %s114
    %p126 = scmp.eq.s32.totalorder %s20, 1
    %p127 = por %p125, %p126
    %p129 = scmp.ne.s32.totalorder %s114, %s128
    %p130 = scmp.eq.s32.totalorder %s20, 0
    %p131 = por %p129, %p130
    %s132 = ssub.s32 %s14, %s21
    %p133 = scmp.eq.s32.totalorder %s132, 0
    %s135 = sadd.s32 %s134, 1
    %s136 = scalar_select %p133, %s134, %s135
    %p139 = pneg %p133
    %p140 = scmp.eq.s32.totalorder %s14, 1
    %p141 = por %p139, %p140
    %p142 = scmp.ne.s32.totalorder %s134, %s137
    %p143 = scmp.eq.s32.totalorder %s14, 0
    %p144 = por %p142, %p143
    %p145 = scmp.ne.s32.totalorder %s134, %s137
    %p146 = scmp.eq.s32.totalorder %s19, 1
    %p147 = por %p145, %p146
    %p148 = scmp.ne.s32.totalorder %s137, %s138
    %p149 = scmp.eq.s32.totalorder %s19, 0
    %p150 = por %p148, %p149
    %p151 = scmp.ne.s32.totalorder %s137, %s138
    %p152 = scmp.eq.s32.totalorder %s20, 1
    %p153 = por %p151, %p152
    %p155 = scmp.ne.s32.totalorder %s138, %s154
    %p156 = scmp.eq.s32.totalorder %s20, 0
    %p157 = por %p155, %p156
    %s158 = ssub.s32 %s14, %s21
    %p159 = scmp.eq.s32.totalorder %s158, 0
    %s161 = sadd.s32 %s160, 1
    %s162 = scalar_select %p159, %s160, %s161
    %p165 = pneg %p159
    %p166 = scmp.eq.s32.totalorder %s14, 1
    %p167 = por %p165, %p166
    %p168 = scmp.ne.s32.totalorder %s160, %s163
    %p169 = scmp.eq.s32.totalorder %s14, 0
    %p170 = por %p168, %p169
    %p171 = scmp.ne.s32.totalorder %s160, %s163
    %p172 = scmp.eq.s32.totalorder %s19, 1
    %p173 = por %p171, %p172
    %p174 = scmp.ne.s32.totalorder %s163, %s164
    %p175 = scmp.eq.s32.totalorder %s19, 0
    %p176 = por %p174, %p175
    %p177 = scmp.ne.s32.totalorder %s163, %s164
    %p178 = scmp.eq.s32.totalorder %s20, 1
    %p179 = por %p177, %p178
    %p181 = scmp.ne.s32.totalorder %s164, %s180
    %p182 = scmp.eq.s32.totalorder %s20, 0
    %p183 = por %p181, %p182
    %s184 = ssub.s32 %s14, %s21
    %p185 = scmp.eq.s32.totalorder %s184, 0
    %s187 = sadd.s32 %s186, 1
    %s188 = scalar_select %p185, %s186, %s187
    %p191 = pneg %p185
    %p192 = scmp.eq.s32.totalorder %s14, 1
    %p193 = por %p191, %p192
    %p194 = scmp.ne.s32.totalorder %s186, %s189
    %p195 = scmp.eq.s32.totalorder %s14, 0
    %p196 = por %p194, %p195
    %p197 = scmp.ne.s32.totalorder %s186, %s189
    %p198 = scmp.eq.s32.totalorder %s19, 1
    %p199 = por %p197, %p198
    %p200 = scmp.ne.s32.totalorder %s189, %s190
    %p201 = scmp.eq.s32.totalorder %s19, 0
    %p202 = por %p200, %p201
    %p203 = scmp.ne.s32.totalorder %s189, %s190
    %p204 = scmp.eq.s32.totalorder %s20, 1
    %p205 = por %p203, %p204
    %p207 = scmp.ne.s32.totalorder %s190, %s206
    %p208 = scmp.eq.s32.totalorder %s20, 0
    %p209 = por %p207, %p208
    %p210 = scmp.le.s32.totalorder 1, %s14
    %p211 = scmp.lt.s32.totalorder %s14, 3
    %p212 = pnand %p210, %p211
    %p213 = pneg %p212
    // Predicated region
    $region9: #{gblock_forward.4} parent=5 // pred_check
      _
    $region10: #{gblock_forward.4} parent=5 // pred_check_branch
      %215 = sbr.rel (%p212) target = $region12
    $region11: #{gblock_forward.4} parent=5 // pred_region
      %s216 = ssub.s32 %s14, 1
      // Predicated region
      $region13: #{gblock_forward.4} parent=11 // pred_check
        %p217 = pneg %p61
      $region14: #{gblock_forward.4} parent=11 // pred_check_branch
        %219 = sbr.rel (%p217) target = $region16
      $region15: #{gblock_forward.4} parent=11 // pred_region
        _
      $region16: #{gblock_forward.4} parent=11 // pred_fallthru
        _
      // Predicated region
      $region17: #{gblock_forward.4} parent=11 // pred_check
        %p220 = pneg %p82
      $region18: #{gblock_forward.4} parent=11 // pred_check_branch
        %222 = sbr.rel (%p220) target = $region20
      $region19: #{gblock_forward.4} parent=11 // pred_region
        _
      $region20: #{gblock_forward.4} parent=11 // pred_fallthru
        _
      // Predicated region
      $region21: #{gblock_forward.4} parent=11 // pred_check
        %p223 = pneg %p103
      $region22: #{gblock_forward.4} parent=11 // pred_check_branch
        %225 = sbr.rel (%p223) target = $region24
      $region23: #{gblock_forward.4} parent=11 // pred_region
        _
      $region24: #{gblock_forward.4} parent=11 // pred_fallthru
        _
      // Predicated region
      $region25: #{gblock_forward.4} parent=11 // pred_check
        %p226 = pneg %p124
      $region26: #{gblock_forward.4} parent=11 // pred_check_branch
        %228 = sbr.rel (%p226) target = $region28
      $region27: #{gblock_forward.4} parent=11 // pred_region
        _
      $region28: #{gblock_forward.4} parent=11 // pred_fallthru
        _
    $region12: #{gblock_forward.4} parent=5 // pred_fallthru
      _
    %p229 = scmp.lt.s32.totalorder %s14, 2
    // Predicated region
    $region29: #{gblock_forward.4} parent=5 // pred_check
      %p230 = pneg %p229
    $region30: #{gblock_forward.4} parent=5 // pred_check_branch
      %232 = sbr.rel (%p230) target = $region32
    $region31: #{gblock_forward.4} parent=5 // pred_region
      // Predicated region
      $region33: #{gblock_forward.4} parent=31 // pred_check
        %p233 = pneg %p34
      $region34: #{gblock_forward.4} parent=31 // pred_check_branch
        %235 = sbr.rel (%p233) target = $region36
      $region35: #{gblock_forward.4} parent=31 // pred_region
        %p236 = scmp.lt.s32.totalorder %s14, 1
        %s237 = scalar_select %p236, %s14, 1
        %s238 = smul.addr %s237, 32
        %s239 = smul.addr %s238, 8
        %s240 = scalar_lea.vmem %s0, %s239
      $region36: #{gblock_forward.4} parent=31 // pred_fallthru
        _
    $region32: #{gblock_forward.4} parent=5 // pred_fallthru
      _
    %p241 = scmp.le.s32.totalorder 1, %s14
    %p242 = scmp.lt.s32.totalorder %s14, 3
    %p243 = pnand %p241, %p242
    %p244 = pneg %p243
    // Predicated region
    $region37: #{gblock_forward.4} parent=5 // pred_check
      _
    $region38: #{gblock_forward.4} parent=5 // pred_check_branch
      %246 = sbr.rel (%p243) target = $region40
    $region39: #{gblock_forward.4} parent=5 // pred_region
      %s247 = ssub.s32 %s14, 1
      %p248 = scmp.lt.s32.totalorder %s19, 1
      %s249 = scalar_select %p248, %s19, 1
      %s250 = smul.addr %s249, 32
      %s251 = smul.addr %s250, 8
      %s252 = scalar_lea.vmem %s0, %s251
      %p253 = pneg %p40
      %p254 = pneg %p37
      %p255 = pneg %p61
      %p256 = pneg %p58
      %p257 = pneg %p82
      %p258 = pneg %p79
      %p259 = pneg %p103
      %p260 = pneg %p100
      %p261 = pneg %p124
      %p262 = pneg %p121
      %p263 = pneg %p150
      %p264 = pneg %p147
      %p265 = scmp.lt.s32.totalorder %s19, 1
      %s266 = scalar_select %p265, %s19, 1
      %s267 = smul.addr %s266, 32
      %s268 = smul.addr %s267, 8
      %s269 = scalar_lea.vmem %s5, %s268
      %p270 = pneg %p176
      %p271 = pneg %p173
      %p272 = scmp.lt.s32.totalorder %s19, 1
      %s273 = scalar_select %p272, %s19, 1
      %s274 = scalar_lea.vmem %s6, %s273
      %p275 = pneg %p202
      %p276 = pneg %p199
      %p277 = scmp.lt.s32.totalorder %s19, 1
      %s278 = scalar_select %p277, %s19, 1
      %s279 = scalar_lea.vmem %s7, %s278
      %p280 = scmp.lt.s32.totalorder %s19, 1
      %s281 = scalar_select %p280, %s19, 1
      %s282 = smul.addr %s281, 32
      %s283 = smul.addr %s282, 8
      %s284 = scalar_lea.vmem %s0, %s283
      %p285 = scmp.lt.s32.totalorder %s19, 1
      %s286 = scalar_select %p285, %s19, 1
      %s287 = smul.addr %s286, 32
      %s288 = smul.addr %s287, 8
      %s289 = scalar_lea.vmem %s5, %s288
      %p290 = scmp.lt.s32.totalorder %s19, 1
      %s291 = scalar_select %p290, %s19, 1
      %s292 = scalar_lea.vmem %s6, %s291
      %p293 = scmp.lt.s32.totalorder %s19, 1
      %s294 = scalar_select %p293, %s19, 1
      %s295 = scalar_lea.vmem %s7, %s294
      %v297 = vld [vmem:[%s284] sm:$0xff]
      %v298 = vld [vmem:[%s284 + $0x8] sm:$0xff]
      %v299 = vld [vmem:[%s284 + $0x10] sm:$0xff]
      %v300 = vld [vmem:[%s284 + $0x18] sm:$0xff]
      %v301 = vld [vmem:[%s284 + $0x20] sm:$0xff]
      %v302 = vld [vmem:[%s284 + $0x28] sm:$0xff]
      %v303 = vld [vmem:[%s284 + $0x30] sm:$0xff]
      %v304 = vld [vmem:[%s284 + $0x38] sm:$0xff]
      %v305 = vld [vmem:[%s284 + $0x40] sm:$0xff]
      %v306 = vld [vmem:[%s284 + $0x48] sm:$0xff]
      %v307 = vld [vmem:[%s284 + $0x50] sm:$0xff]
      %v308 = vld [vmem:[%s284 + $0x58] sm:$0xff]
      %v309 = vld [vmem:[%s284 + $0x60] sm:$0xff]
      %v310 = vld [vmem:[%s284 + $0x68] sm:$0xff]
      %v311 = vld [vmem:[%s284 + $0x70] sm:$0xff]
      %v312 = vld [vmem:[%s284 + $0x78] sm:$0xff]
      %v313 = vld [vmem:[%s284 + $0x80] sm:$0xff]
      %v314 = vld [vmem:[%s284 + $0x88] sm:$0xff]
      %v315 = vld [vmem:[%s284 + $0x90] sm:$0xff]
      %v316 = vld [vmem:[%s284 + $0x98] sm:$0xff]
      %v317 = vld [vmem:[%s284 + $0xa0] sm:$0xff]
      %v318 = vld [vmem:[%s284 + $0xa8] sm:$0xff]
      %v319 = vld [vmem:[%s284 + $0xb0] sm:$0xff]
      %v320 = vld [vmem:[%s284 + $0xb8] sm:$0xff]
      %v321 = vld [vmem:[%s284 + $0xc0] sm:$0xff]
      %v322 = vld [vmem:[%s284 + $0xc8] sm:$0xff]
      %v323 = vld [vmem:[%s284 + $0xd0] sm:$0xff]
      %v324 = vld [vmem:[%s284 + $0xd8] sm:$0xff]
      %v325 = vld [vmem:[%s284 + $0xe0] sm:$0xff]
      %v326 = vld [vmem:[%s284 + $0xe8] sm:$0xff]
      %v327 = vld [vmem:[%s284 + $0xf0] sm:$0xff]
      %v328 = vld [vmem:[%s284 + $0xf8] sm:$0xff]
      %v329 = vld [vmem:[%s1] sm:$0x1]
      %v331 = vlaneseq
      %v332 = vshrl.u32 %v331, 7
      %v333 = vsub.s32 0, %v332
      %v334 = vrot.slane %v329, %v333
      %v336 = vmul.f32 %v297, %v334
      %v337 = vmul.f32 %v298, %v334
      %v338 = vmul.f32 %v299, %v334
      %v339 = vmul.f32 %v300, %v334
      %v340 = vmul.f32 %v301, %v334
      %v341 = vmul.f32 %v302, %v334
      %v342 = vmul.f32 %v303, %v334
      %v343 = vmul.f32 %v304, %v334
      %v344 = vmul.f32 %v305, %v334
      %v345 = vmul.f32 %v306, %v334
      %v346 = vmul.f32 %v307, %v334
      %v347 = vmul.f32 %v308, %v334
      %v348 = vmul.f32 %v309, %v334
      %v349 = vmul.f32 %v310, %v334
      %v350 = vmul.f32 %v311, %v334
      %v351 = vmul.f32 %v312, %v334
      %v352 = vmul.f32 %v313, %v334
      %v353 = vmul.f32 %v314, %v334
      %v354 = vmul.f32 %v315, %v334
      %v355 = vmul.f32 %v316, %v334
      %v356 = vmul.f32 %v317, %v334
      %v357 = vmul.f32 %v318, %v334
      %v358 = vmul.f32 %v319, %v334
      %v359 = vmul.f32 %v320, %v334
      %v360 = vmul.f32 %v321, %v334
      %v361 = vmul.f32 %v322, %v334
      %v362 = vmul.f32 %v323, %v334
      %v363 = vmul.f32 %v324, %v334
      %v364 = vmul.f32 %v325, %v334
      %v365 = vmul.f32 %v326, %v334
      %v366 = vmul.f32 %v327, %v334
      %v367 = vmul.f32 %v328, %v334
      %v368 = vld [vmem:[%s2] sm:$0x1]
      %v370 = vlaneseq
      %v371 = vshrl.u32 %v370, 7
      %v372 = vsub.s32 0, %v371
      %v373 = vrot.slane %v368, %v372
      %v375 = vadd.f32 %v336, %v373
      %v376 = vadd.f32 %v337, %v373
      %v377 = vadd.f32 %v338, %v373
      %v378 = vadd.f32 %v339, %v373
      %v379 = vadd.f32 %v340, %v373
      %v380 = vadd.f32 %v341, %v373
      %v381 = vadd.f32 %v342, %v373
      %v382 = vadd.f32 %v343, %v373
      %v383 = vadd.f32 %v344, %v373
      %v384 = vadd.f32 %v345, %v373
      %v385 = vadd.f32 %v346, %v373
      %v386 = vadd.f32 %v347, %v373
      %v387 = vadd.f32 %v348, %v373
      %v388 = vadd.f32 %v349, %v373
      %v389 = vadd.f32 %v350, %v373
      %v390 = vadd.f32 %v351, %v373
      %v391 = vadd.f32 %v352, %v373
      %v392 = vadd.f32 %v353, %v373
      %v393 = vadd.f32 %v354, %v373
      %v394 = vadd.f32 %v355, %v373
      %v395 = vadd.f32 %v356, %v373
      %v396 = vadd.f32 %v357, %v373
      %v397 = vadd.f32 %v358, %v373
      %v398 = vadd.f32 %v359, %v373
      %v399 = vadd.f32 %v360, %v373
      %v400 = vadd.f32 %v361, %v373
      %v401 = vadd.f32 %v362, %v373
      %v402 = vadd.f32 %v363, %v373
      %v403 = vadd.f32 %v364, %v373
      %v404 = vadd.f32 %v365, %v373
      %v405 = vadd.f32 %v366, %v373
      %v406 = vadd.f32 %v367, %v373
      %v407 = vmax.f32 %v375, 0.0
      %v408 = vmax.f32 %v376, 0.0
      %v409 = vmax.f32 %v377, 0.0
      %v410 = vmax.f32 %v378, 0.0
      %v411 = vmax.f32 %v379, 0.0
      %v412 = vmax.f32 %v380, 0.0
      %v413 = vmax.f32 %v381, 0.0
      %v414 = vmax.f32 %v382, 0.0
      %v415 = vmax.f32 %v383, 0.0
      %v416 = vmax.f32 %v384, 0.0
      %v417 = vmax.f32 %v385, 0.0
      %v418 = vmax.f32 %v386, 0.0
      %v419 = vmax.f32 %v387, 0.0
      %v420 = vmax.f32 %v388, 0.0
      %v421 = vmax.f32 %v389, 0.0
      %v422 = vmax.f32 %v390, 0.0
      %v423 = vmax.f32 %v391, 0.0
      %v424 = vmax.f32 %v392, 0.0
      %v425 = vmax.f32 %v393, 0.0
      %v426 = vmax.f32 %v394, 0.0
      %v427 = vmax.f32 %v395, 0.0
      %v428 = vmax.f32 %v396, 0.0
      %v429 = vmax.f32 %v397, 0.0
      %v430 = vmax.f32 %v398, 0.0
      %v431 = vmax.f32 %v399, 0.0
      %v432 = vmax.f32 %v400, 0.0
      %v433 = vmax.f32 %v401, 0.0
      %v434 = vmax.f32 %v402, 0.0
      %v435 = vmax.f32 %v403, 0.0
      %v436 = vmax.f32 %v404, 0.0
      %v437 = vmax.f32 %v405, 0.0
      %v438 = vmax.f32 %v406, 0.0
      %439 = vst [vmem:[#allocation2] sm:$0xff] 0.0
      %440 = vst [vmem:[#allocation2 + $0x8] sm:$0xff] 0.0
      %441 = vst [vmem:[#allocation2 + $0x10] sm:$0xff] 0.0
      %442 = vst [vmem:[#allocation2 + $0x118] sm:$0xff] 0.0
      %443 = vst [vmem:[#allocation2 + $0x120] sm:$0xff] 0.0
      %444 = vst [vmem:[#allocation2 + $0x128] sm:$0xff] 0.0
      %445 = vst [vmem:[#allocation2 + $0x18] sm:$0xff] %v407
      %446 = vst [vmem:[#allocation2 + $0x20] sm:$0xff] %v408
      %447 = vst [vmem:[#allocation2 + $0x28] sm:$0xff] %v409
      %448 = vst [vmem:[#allocation2 + $0x30] sm:$0xff] %v410
      %449 = vst [vmem:[#allocation2 + $0x38] sm:$0xff] %v411
      %450 = vst [vmem:[#allocation2 + $0x40] sm:$0xff] %v412
      %451 = vst [vmem:[#allocation2 + $0x48] sm:$0xff] %v413
      %452 = vst [vmem:[#allocation2 + $0x50] sm:$0xff] %v414
      %453 = vst [vmem:[#allocation2 + $0x58] sm:$0xff] %v415
      %454 = vst [vmem:[#allocation2 + $0x60] sm:$0xff] %v416
      %455 = vst [vmem:[#allocation2 + $0x68] sm:$0xff] %v417
      %456 = vst [vmem:[#allocation2 + $0x70] sm:$0xff] %v418
      %457 = vst [vmem:[#allocation2 + $0x78] sm:$0xff] %v419
      %458 = vst [vmem:[#allocation2 + $0x80] sm:$0xff] %v420
      %459 = vst [vmem:[#allocation2 + $0x88] sm:$0xff] %v421
      %460 = vst [vmem:[#allocation2 + $0x90] sm:$0xff] %v422
      %461 = vst [vmem:[#allocation2 + $0x98] sm:$0xff] %v423
      %462 = vst [vmem:[#allocation2 + $0xa0] sm:$0xff] %v424
      %463 = vst [vmem:[#allocation2 + $0xa8] sm:$0xff] %v425
      %464 = vst [vmem:[#allocation2 + $0xb0] sm:$0xff] %v426
      %465 = vst [vmem:[#allocation2 + $0xb8] sm:$0xff] %v427
      %466 = vst [vmem:[#allocation2 + $0xc0] sm:$0xff] %v428
      %467 = vst [vmem:[#allocation2 + $0xc8] sm:$0xff] %v429
      %468 = vst [vmem:[#allocation2 + $0xd0] sm:$0xff] %v430
      %469 = vst [vmem:[#allocation2 + $0xd8] sm:$0xff] %v431
      %470 = vst [vmem:[#allocation2 + $0xe0] sm:$0xff] %v432
      %471 = vst [vmem:[#allocation2 + $0xe8] sm:$0xff] %v433
      %472 = vst [vmem:[#allocation2 + $0xf0] sm:$0xff] %v434
      %473 = vst [vmem:[#allocation2 + $0xf8] sm:$0xff] %v435
      %474 = vst [vmem:[#allocation2 + $0x100] sm:$0xff] %v436
      %475 = vst [vmem:[#allocation2 + $0x108] sm:$0xff] %v437
      %476 = vst [vmem:[#allocation2 + $0x110] sm:$0xff] %v438
      %v477 = vlaneseq
      %v478 = vshrl.u32 %v477, 7
      %v479 = vadd.s32 %v478, 8
      %v480 = vadd.s32 %v478, 16
      %v481 = vadd.s32 %v478, 24
      %v482 = vadd.s32 %v478, 32
      %v483 = vadd.s32 %v478, 40
      %v484 = vadd.s32 %v478, 48
      %v485 = vadd.s32 %v478, 56
      %v486 = vadd.s32 %v478, 64
      %v487 = vadd.s32 %v478, 72
      %v488 = vadd.s32 %v478, 80
      %v489 = vadd.s32 %v478, 88
      %v490 = vadd.s32 %v478, 96
      %v491 = vadd.s32 %v478, 104
      %v492 = vadd.s32 %v478, 112
      %v493 = vadd.s32 %v478, 120
      %v494 = vadd.s32 %v478, 128
      %v495 = vadd.s32 %v478, 136
      %v496 = vadd.s32 %v478, 144
      %v497 = vadd.s32 %v478, 152
      %v498 = vadd.s32 %v478, 160
      %v499 = vadd.s32 %v478, 168
      %v500 = vadd.s32 %v478, 176
      %v501 = vadd.s32 %v478, 184
      %v502 = vadd.s32 %v478, 192
      %v503 = vadd.s32 %v478, 200
      %v504 = vadd.s32 %v478, 208
      %v505 = vadd.s32 %v478, 216
      %v506 = vadd.s32 %v478, 224
      %v507 = vadd.s32 %v478, 232
      %v508 = vadd.s32 %v478, 240
      %v509 = vadd.s32 %v478, 248
      %vm510 = vcmp.lt.s32.totalorder %v478, 0
      %v511 = vsub.s32 0, %v478
      %v512 = vsel %vm510, %v511, %v478
      %v513 = vshrl.u32 %v512, 4
      %v514 = vand.u32 %v512, 15
      %v515 = vsub.s32 0, %v514
      %v516 = vsel %vm510, %v515, %v514
      %vm517 = vcmp.lt.s32.totalorder %v479, 0
      %v518 = vsub.s32 0, %v479
      %v519 = vsel %vm517, %v518, %v479
      %v520 = vshrl.u32 %v519, 4
      %v521 = vand.u32 %v519, 15
      %v522 = vsub.s32 0, %v521
      %v523 = vsel %vm517, %v522, %v521
      %vm524 = vcmp.lt.s32.totalorder %v480, 0
      %v525 = vsub.s32 0, %v480
      %v526 = vsel %vm524, %v525, %v480
      %v527 = vshrl.u32 %v526, 4
      %v528 = vand.u32 %v526, 15
      %v529 = vsub.s32 0, %v528
      %v530 = vsel %vm524, %v529, %v528
      %vm531 = vcmp.lt.s32.totalorder %v481, 0
      %v532 = vsub.s32 0, %v481
      %v533 = vsel %vm531, %v532, %v481
      %v534 = vshrl.u32 %v533, 4
      %v535 = vand.u32 %v533, 15
      %v536 = vsub.s32 0, %v535
      %v537 = vsel %vm531, %v536, %v535
      %vm538 = vcmp.lt.s32.totalorder %v482, 0
      %v539 = vsub.s32 0, %v482
      %v540 = vsel %vm538, %v539, %v482
      %v541 = vshrl.u32 %v540, 4
      %v542 = vand.u32 %v540, 15
      %v543 = vsub.s32 0, %v542
      %v544 = vsel %vm538, %v543, %v542
      %vm545 = vcmp.lt.s32.totalorder %v483, 0
      %v546 = vsub.s32 0, %v483
      %v547 = vsel %vm545, %v546, %v483
      %v548 = vshrl.u32 %v547, 4
      %v549 = vand.u32 %v547, 15
      %v550 = vsub.s32 0, %v549
      %v551 = vsel %vm545, %v550, %v549
      %vm552 = vcmp.lt.s32.totalorder %v484, 0
      %v553 = vsub.s32 0, %v484
      %v554 = vsel %vm552, %v553, %v484
      %v555 = vshrl.u32 %v554, 4
      %v556 = vand.u32 %v554, 15
      %v557 = vsub.s32 0, %v556
      %v558 = vsel %vm552, %v557, %v556
      %vm559 = vcmp.lt.s32.totalorder %v485, 0
      %v560 = vsub.s32 0, %v485
      %v561 = vsel %vm559, %v560, %v485
      %v562 = vshrl.u32 %v561, 4
      %v563 = vand.u32 %v561, 15
      %v564 = vsub.s32 0, %v563
      %v565 = vsel %vm559, %v564, %v563
      %vm566 = vcmp.lt.s32.totalorder %v486, 0
      %v567 = vsub.s32 0, %v486
      %v568 = vsel %vm566, %v567, %v486
      %v569 = vshrl.u32 %v568, 4
      %v570 = vand.u32 %v568, 15
      %v571 = vsub.s32 0, %v570
      %v572 = vsel %vm566, %v571, %v570
      %vm573 = vcmp.lt.s32.totalorder %v487, 0
      %v574 = vsub.s32 0, %v487
      %v575 = vsel %vm573, %v574, %v487
      %v576 = vshrl.u32 %v575, 4
      %v577 = vand.u32 %v575, 15
      %v578 = vsub.s32 0, %v577
      %v579 = vsel %vm573, %v578, %v577
      %vm580 = vcmp.lt.s32.totalorder %v488, 0
      %v581 = vsub.s32 0, %v488
      %v582 = vsel %vm580, %v581, %v488
      %v583 = vshrl.u32 %v582, 4
      %v584 = vand.u32 %v582, 15
      %v585 = vsub.s32 0, %v584
      %v586 = vsel %vm580, %v585, %v584
      %vm587 = vcmp.lt.s32.totalorder %v489, 0
      %v588 = vsub.s32 0, %v489
      %v589 = vsel %vm587, %v588, %v489
      %v590 = vshrl.u32 %v589, 4
      %v591 = vand.u32 %v589, 15
      %v592 = vsub.s32 0, %v591
      %v593 = vsel %vm587, %v592, %v591
      %vm594 = vcmp.lt.s32.totalorder %v490, 0
      %v595 = vsub.s32 0, %v490
      %v596 = vsel %vm594, %v595, %v490
      %v597 = vshrl.u32 %v596, 4
      %v598 = vand.u32 %v596, 15
      %v599 = vsub.s32 0, %v598
      %v600 = vsel %vm594, %v599, %v598
      %vm601 = vcmp.lt.s32.totalorder %v491, 0
      %v602 = vsub.s32 0, %v491
      %v603 = vsel %vm601, %v602, %v491
      %v604 = vshrl.u32 %v603, 4
      %v605 = vand.u32 %v603, 15
      %v606 = vsub.s32 0, %v605
      %v607 = vsel %vm601, %v606, %v605
      %vm608 = vcmp.lt.s32.totalorder %v492, 0
      %v609 = vsub.s32 0, %v492
      %v610 = vsel %vm608, %v609, %v492
      %v611 = vshrl.u32 %v610, 4
      %v612 = vand.u32 %v610, 15
      %v613 = vsub.s32 0, %v612
      %v614 = vsel %vm608, %v613, %v612
      %vm615 = vcmp.lt.s32.totalorder %v493, 0
      %v616 = vsub.s32 0, %v493
      %v617 = vsel %vm615, %v616, %v493
      %v618 = vshrl.u32 %v617, 4
      %v619 = vand.u32 %v617, 15
      %v620 = vsub.s32 0, %v619
      %v621 = vsel %vm615, %v620, %v619
      %vm622 = vcmp.lt.s32.totalorder %v494, 0
      %v623 = vsub.s32 0, %v494
      %v624 = vsel %vm622, %v623, %v494
      %v625 = vshrl.u32 %v624, 4
      %v626 = vand.u32 %v624, 15
      %v627 = vsub.s32 0, %v626
      %v628 = vsel %vm622, %v627, %v626
      %vm629 = vcmp.lt.s32.totalorder %v495, 0
      %v630 = vsub.s32 0, %v495
      %v631 = vsel %vm629, %v630, %v495
      %v632 = vshrl.u32 %v631, 4
      %v633 = vand.u32 %v631, 15
      %v634 = vsub.s32 0, %v633
      %v635 = vsel %vm629, %v634, %v633
      %vm636 = vcmp.lt.s32.totalorder %v496, 0
      %v637 = vsub.s32 0, %v496
      %v638 = vsel %vm636, %v637, %v496
      %v639 = vshrl.u32 %v638, 4
      %v640 = vand.u32 %v638, 15
      %v641 = vsub.s32 0, %v640
      %v642 = vsel %vm636, %v641, %v640
      %vm643 = vcmp.lt.s32.totalorder %v497, 0
      %v644 = vsub.s32 0, %v497
      %v645 = vsel %vm643, %v644, %v497
      %v646 = vshrl.u32 %v645, 4
      %v647 = vand.u32 %v645, 15
      %v648 = vsub.s32 0, %v647
      %v649 = vsel %vm643, %v648, %v647
      %vm650 = vcmp.lt.s32.totalorder %v498, 0
      %v651 = vsub.s32 0, %v498
      %v652 = vsel %vm650, %v651, %v498
      %v653 = vshrl.u32 %v652, 4
      %v654 = vand.u32 %v652, 15
      %v655 = vsub.s32 0, %v654
      %v656 = vsel %vm650, %v655, %v654
      %vm657 = vcmp.lt.s32.totalorder %v499, 0
      %v658 = vsub.s32 0, %v499
      %v659 = vsel %vm657, %v658, %v499
      %v660 = vshrl.u32 %v659, 4
      %v661 = vand.u32 %v659, 15
      %v662 = vsub.s32 0, %v661
      %v663 = vsel %vm657, %v662, %v661
      %vm664 = vcmp.lt.s32.totalorder %v500, 0
      %v665 = vsub.s32 0, %v500
      %v666 = vsel %vm664, %v665, %v500
      %v667 = vshrl.u32 %v666, 4
      %v668 = vand.u32 %v666, 15
      %v669 = vsub.s32 0, %v668
      %v670 = vsel %vm664, %v669, %v668
      %vm671 = vcmp.lt.s32.totalorder %v501, 0
      %v672 = vsub.s32 0, %v501
      %v673 = vsel %vm671, %v672, %v501
      %v674 = vshrl.u32 %v673, 4
      %v675 = vand.u32 %v673, 15
      %v676 = vsub.s32 0, %v675
      %v677 = vsel %vm671, %v676, %v675
      %vm678 = vcmp.lt.s32.totalorder %v502, 0
      %v679 = vsub.s32 0, %v502
      %v680 = vsel %vm678, %v679, %v502
      %v681 = vshrl.u32 %v680, 4
      %v682 = vand.u32 %v680, 15
      %v683 = vsub.s32 0, %v682
      %v684 = vsel %vm678, %v683, %v682
      %vm685 = vcmp.lt.s32.totalorder %v503, 0
      %v686 = vsub.s32 0, %v503
      %v687 = vsel %vm685, %v686, %v503
      %v688 = vshrl.u32 %v687, 4
      %v689 = vand.u32 %v687, 15
      %v690 = vsub.s32 0, %v689
      %v691 = vsel %vm685, %v690, %v689
      %vm692 = vcmp.lt.s32.totalorder %v504, 0
      %v693 = vsub.s32 0, %v504
      %v694 = vsel %vm692, %v693, %v504
      %v695 = vshrl.u32 %v694, 4
      %v696 = vand.u32 %v694, 15
      %v697 = vsub.s32 0, %v696
      %v698 = vsel %vm692, %v697, %v696
      %vm699 = vcmp.lt.s32.totalorder %v505, 0
      %v700 = vsub.s32 0, %v505
      %v701 = vsel %vm699, %v700, %v505
      %v702 = vshrl.u32 %v701, 4
      %v703 = vand.u32 %v701, 15
      %v704 = vsub.s32 0, %v703
      %v705 = vsel %vm699, %v704, %v703
      %vm706 = vcmp.lt.s32.totalorder %v506, 0
      %v707 = vsub.s32 0, %v506
      %v708 = vsel %vm706, %v707, %v506
      %v709 = vshrl.u32 %v708, 4
      %v710 = vand.u32 %v708, 15
      %v711 = vsub.s32 0, %v710
      %v712 = vsel %vm706, %v711, %v710
      %vm713 = vcmp.lt.s32.totalorder %v507, 0
      %v714 = vsub.s32 0, %v507
      %v715 = vsel %vm713, %v714, %v507
      %v716 = vshrl.u32 %v715, 4
      %v717 = vand.u32 %v715, 15
      %v718 = vsub.s32 0, %v717
      %v719 = vsel %vm713, %v718, %v717
      %vm720 = vcmp.lt.s32.totalorder %v508, 0
      %v721 = vsub.s32 0, %v508
      %v722 = vsel %vm720, %v721, %v508
      %v723 = vshrl.u32 %v722, 4
      %v724 = vand.u32 %v722, 15
      %v725 = vsub.s32 0, %v724
      %v726 = vsel %vm720, %v725, %v724
      %vm727 = vcmp.lt.s32.totalorder %v509, 0
      %v728 = vsub.s32 0, %v509
      %v729 = vsel %vm727, %v728, %v509
      %v730 = vshrl.u32 %v729, 4
      %v731 = vand.u32 %v729, 15
      %v732 = vsub.s32 0, %v731
      %v733 = vsel %vm727, %v732, %v731
      %vm734 = vcmp.ne.s32.totalorder %v516, 0
      %vm735 = vcmp.ne.s32.totalorder %v523, 0
      %vm736 = vcmp.ne.s32.totalorder %v530, 0
      %vm737 = vcmp.ne.s32.totalorder %v537, 0
      %vm738 = vcmp.ne.s32.totalorder %v544, 0
      %vm739 = vcmp.ne.s32.totalorder %v551, 0
      %vm740 = vcmp.ne.s32.totalorder %v558, 0
      %vm741 = vcmp.ne.s32.totalorder %v565, 0
      %vm742 = vcmp.ne.s32.totalorder %v572, 0
      %vm743 = vcmp.ne.s32.totalorder %v579, 0
      %vm744 = vcmp.ne.s32.totalorder %v586, 0
      %vm745 = vcmp.ne.s32.totalorder %v593, 0
      %vm746 = vcmp.ne.s32.totalorder %v600, 0
      %vm747 = vcmp.ne.s32.totalorder %v607, 0
      %vm748 = vcmp.ne.s32.totalorder %v614, 0
      %vm749 = vcmp.ne.s32.totalorder %v621, 0
      %vm750 = vcmp.ne.s32.totalorder %v628, 0
      %vm751 = vcmp.ne.s32.totalorder %v635, 0
      %vm752 = vcmp.ne.s32.totalorder %v642, 0
      %vm753 = vcmp.ne.s32.totalorder %v649, 0
      %vm754 = vcmp.ne.s32.totalorder %v656, 0
      %vm755 = vcmp.ne.s32.totalorder %v663, 0
      %vm756 = vcmp.ne.s32.totalorder %v670, 0
      %vm757 = vcmp.ne.s32.totalorder %v677, 0
      %vm758 = vcmp.ne.s32.totalorder %v684, 0
      %vm759 = vcmp.ne.s32.totalorder %v691, 0
      %vm760 = vcmp.ne.s32.totalorder %v698, 0
      %vm761 = vcmp.ne.s32.totalorder %v705, 0
      %vm762 = vcmp.ne.s32.totalorder %v712, 0
      %vm763 = vcmp.ne.s32.totalorder %v719, 0
      %vm764 = vcmp.ne.s32.totalorder %v726, 0
      %vm765 = vcmp.ne.s32.totalorder %v733, 0
      %vm766 = vcmp.lt.s32.totalorder %v516, 0
      %vm767 = vcmp.lt.s32.totalorder %v523, 0
      %vm768 = vcmp.lt.s32.totalorder %v530, 0
      %vm769 = vcmp.lt.s32.totalorder %v537, 0
      %vm770 = vcmp.lt.s32.totalorder %v544, 0
      %vm771 = vcmp.lt.s32.totalorder %v551, 0
      %vm772 = vcmp.lt.s32.totalorder %v558, 0
      %vm773 = vcmp.lt.s32.totalorder %v565, 0
      %vm774 = vcmp.lt.s32.totalorder %v572, 0
      %vm775 = vcmp.lt.s32.totalorder %v579, 0
      %vm776 = vcmp.lt.s32.totalorder %v586, 0
      %vm777 = vcmp.lt.s32.totalorder %v593, 0
      %vm778 = vcmp.lt.s32.totalorder %v600, 0
      %vm779 = vcmp.lt.s32.totalorder %v607, 0
      %vm780 = vcmp.lt.s32.totalorder %v614, 0
      %vm781 = vcmp.lt.s32.totalorder %v621, 0
      %vm782 = vcmp.lt.s32.totalorder %v628, 0
      %vm783 = vcmp.lt.s32.totalorder %v635, 0
      %vm784 = vcmp.lt.s32.totalorder %v642, 0
      %vm785 = vcmp.lt.s32.totalorder %v649, 0
      %vm786 = vcmp.lt.s32.totalorder %v656, 0
      %vm787 = vcmp.lt.s32.totalorder %v663, 0
      %vm788 = vcmp.lt.s32.totalorder %v670, 0
      %vm789 = vcmp.lt.s32.totalorder %v677, 0
      %vm790 = vcmp.lt.s32.totalorder %v684, 0
      %vm791 = vcmp.lt.s32.totalorder %v691, 0
      %vm792 = vcmp.lt.s32.totalorder %v698, 0
      %vm793 = vcmp.lt.s32.totalorder %v705, 0
      %vm794 = vcmp.lt.s32.totalorder %v712, 0
      %vm795 = vcmp.lt.s32.totalorder %v719, 0
      %vm796 = vcmp.lt.s32.totalorder %v726, 0
      %vm797 = vcmp.lt.s32.totalorder %v733, 0
      %vm798 = vmand %vm766, %vm734
      %vm799 = vmand %vm767, %vm735
      %vm800 = vmand %vm768, %vm736
      %vm801 = vmand %vm769, %vm737
      %vm802 = vmand %vm770, %vm738
      %vm803 = vmand %vm771, %vm739
      %vm804 = vmand %vm772, %vm740
      %vm805 = vmand %vm773, %vm741
      %vm806 = vmand %vm774, %vm742
      %vm807 = vmand %vm775, %vm743
      %vm808 = vmand %vm776, %vm744
      %vm809 = vmand %vm777, %vm745
      %vm810 = vmand %vm778, %vm746
      %vm811 = vmand %vm779, %vm747
      %vm812 = vmand %vm780, %vm748
      %vm813 = vmand %vm781, %vm749
      %vm814 = vmand %vm782, %vm750
      %vm815 = vmand %vm783, %vm751
      %vm816 = vmand %vm784, %vm752
      %vm817 = vmand %vm785, %vm753
      %vm818 = vmand %vm786, %vm754
      %vm819 = vmand %vm787, %vm755
      %vm820 = vmand %vm788, %vm756
      %vm821 = vmand %vm789, %vm757
      %vm822 = vmand %vm790, %vm758
      %vm823 = vmand %vm791, %vm759
      %vm824 = vmand %vm792, %vm760
      %vm825 = vmand %vm793, %vm761
      %vm826 = vmand %vm794, %vm762
      %vm827 = vmand %vm795, %vm763
      %vm828 = vmand %vm796, %vm764
      %vm829 = vmand %vm797, %vm765
      %v830 = vadd.s32 %v516, 16
      %v831 = vadd.s32 %v523, 16
      %v832 = vadd.s32 %v530, 16
      %v833 = vadd.s32 %v537, 16
      %v834 = vadd.s32 %v544, 16
      %v835 = vadd.s32 %v551, 16
      %v836 = vadd.s32 %v558, 16
      %v837 = vadd.s32 %v565, 16
      %v838 = vadd.s32 %v572, 16
      %v839 = vadd.s32 %v579, 16
      %v840 = vadd.s32 %v586, 16
      %v841 = vadd.s32 %v593, 16
      %v842 = vadd.s32 %v600, 16
      %v843 = vadd.s32 %v607, 16
      %v844 = vadd.s32 %v614, 16
      %v845 = vadd.s32 %v621, 16
      %v846 = vadd.s32 %v628, 16
      %v847 = vadd.s32 %v635, 16
      %v848 = vadd.s32 %v642, 16
      %v849 = vadd.s32 %v649, 16
      %v850 = vadd.s32 %v656, 16
      %v851 = vadd.s32 %v663, 16
      %v852 = vadd.s32 %v670, 16
      %v853 = vadd.s32 %v677, 16
      %v854 = vadd.s32 %v684, 16
      %v855 = vadd.s32 %v691, 16
      %v856 = vadd.s32 %v698, 16
      %v857 = vadd.s32 %v705, 16
      %v858 = vadd.s32 %v712, 16
      %v859 = vadd.s32 %v719, 16
      %v860 = vadd.s32 %v726, 16
      %v861 = vadd.s32 %v733, 16
      %v862 = vsel %vm798, %v830, %v516
      %v863 = vsel %vm799, %v831, %v523
      %v864 = vsel %vm800, %v832, %v530
      %v865 = vsel %vm801, %v833, %v537
      %v866 = vsel %vm802, %v834, %v544
      %v867 = vsel %vm803, %v835, %v551
      %v868 = vsel %vm804, %v836, %v558
      %v869 = vsel %vm805, %v837, %v565
      %v870 = vsel %vm806, %v838, %v572
      %v871 = vsel %vm807, %v839, %v579
      %v872 = vsel %vm808, %v840, %v586
      %v873 = vsel %vm809, %v841, %v593
      %v874 = vsel %vm810, %v842, %v600
      %v875 = vsel %vm811, %v843, %v607
      %v876 = vsel %vm812, %v844, %v614
      %v877 = vsel %vm813, %v845, %v621
      %v878 = vsel %vm814, %v846, %v628
      %v879 = vsel %vm815, %v847, %v635
      %v880 = vsel %vm816, %v848, %v642
      %v881 = vsel %vm817, %v849, %v649
      %v882 = vsel %vm818, %v850, %v656
      %v883 = vsel %vm819, %v851, %v663
      %v884 = vsel %vm820, %v852, %v670
      %v885 = vsel %vm821, %v853, %v677
      %v886 = vsel %vm822, %v854, %v684
      %v887 = vsel %vm823, %v855, %v691
      %v888 = vsel %vm824, %v856, %v698
      %v889 = vsel %vm825, %v857, %v705
      %v890 = vsel %vm826, %v858, %v712
      %v891 = vsel %vm827, %v859, %v719
      %v892 = vsel %vm828, %v860, %v726
      %v893 = vsel %vm829, %v861, %v733
      %vm894 = vcmp.ge.s32.totalorder %v862, 1
      %vm895 = vcmp.ge.s32.totalorder %v863, 1
      %vm896 = vcmp.ge.s32.totalorder %v864, 1
      %vm897 = vcmp.ge.s32.totalorder %v865, 1
      %vm898 = vcmp.ge.s32.totalorder %v866, 1
      %vm899 = vcmp.ge.s32.totalorder %v867, 1
      %vm900 = vcmp.ge.s32.totalorder %v868, 1
      %vm901 = vcmp.ge.s32.totalorder %v869, 1
      %vm902 = vcmp.ge.s32.totalorder %v870, 1
      %vm903 = vcmp.ge.s32.totalorder %v871, 1
      %vm904 = vcmp.ge.s32.totalorder %v872, 1
      %vm905 = vcmp.ge.s32.totalorder %v873, 1
      %vm906 = vcmp.ge.s32.totalorder %v874, 1
      %vm907 = vcmp.ge.s32.totalorder %v875, 1
      %vm908 = vcmp.ge.s32.totalorder %v876, 1
      %vm909 = vcmp.ge.s32.totalorder %v877, 1
      %vm910 = vcmp.ge.s32.totalorder %v878, 1
      %vm911 = vcmp.ge.s32.totalorder %v879, 1
      %vm912 = vcmp.ge.s32.totalorder %v880, 1
      %vm913 = vcmp.ge.s32.totalorder %v881, 1
      %vm914 = vcmp.ge.s32.totalorder %v882, 1
      %vm915 = vcmp.ge.s32.totalorder %v883, 1
      %vm916 = vcmp.ge.s32.totalorder %v884, 1
      %vm917 = vcmp.ge.s32.totalorder %v885, 1
      %vm918 = vcmp.ge.s32.totalorder %v886, 1
      %vm919 = vcmp.ge.s32.totalorder %v887, 1
      %vm920 = vcmp.ge.s32.totalorder %v888, 1
      %vm921 = vcmp.ge.s32.totalorder %v889, 1
      %vm922 = vcmp.ge.s32.totalorder %v890, 1
      %vm923 = vcmp.ge.s32.totalorder %v891, 1
      %vm924 = vcmp.ge.s32.totalorder %v892, 1
      %vm925 = vcmp.ge.s32.totalorder %v893, 1
      %vm926 = vcmp.le.s32.totalorder %v862, 14
      %vm927 = vcmp.le.s32.totalorder %v863, 14
      %vm928 = vcmp.le.s32.totalorder %v864, 14
      %vm929 = vcmp.le.s32.totalorder %v865, 14
      %vm930 = vcmp.le.s32.totalorder %v866, 14
      %vm931 = vcmp.le.s32.totalorder %v867, 14
      %vm932 = vcmp.le.s32.totalorder %v868, 14
      %vm933 = vcmp.le.s32.totalorder %v869, 14
      %vm934 = vcmp.le.s32.totalorder %v870, 14
      %vm935 = vcmp.le.s32.totalorder %v871, 14
      %vm936 = vcmp.le.s32.totalorder %v872, 14
      %vm937 = vcmp.le.s32.totalorder %v873, 14
      %vm938 = vcmp.le.s32.totalorder %v874, 14
      %vm939 = vcmp.le.s32.totalorder %v875, 14
      %vm940 = vcmp.le.s32.totalorder %v876, 14
      %vm941 = vcmp.le.s32.totalorder %v877, 14
      %vm942 = vcmp.le.s32.totalorder %v878, 14
      %vm943 = vcmp.le.s32.totalorder %v879, 14
      %vm944 = vcmp.le.s32.totalorder %v880, 14
      %vm945 = vcmp.le.s32.totalorder %v881, 14
      %vm946 = vcmp.le.s32.totalorder %v882, 14
      %vm947 = vcmp.le.s32.totalorder %v883, 14
      %vm948 = vcmp.le.s32.totalorder %v884, 14
      %vm949 = vcmp.le.s32.totalorder %v885, 14
      %vm950 = vcmp.le.s32.totalorder %v886, 14
      %vm951 = vcmp.le.s32.totalorder %v887, 14
      %vm952 = vcmp.le.s32.totalorder %v888, 14
      %vm953 = vcmp.le.s32.totalorder %v889, 14
      %vm954 = vcmp.le.s32.totalorder %v890, 14
      %vm955 = vcmp.le.s32.totalorder %v891, 14
      %vm956 = vcmp.le.s32.totalorder %v892, 14
      %vm957 = vcmp.le.s32.totalorder %v893, 14
      %v958 = vld [vmem:[#allocation2 + $0x7] sm:$0xff]
      %v959 = vld [vmem:[#allocation2 + $0xf] sm:$0xff]
      %v960 = vld [vmem:[#allocation2 + $0x17] sm:$0xff]
      %v961 = vld [vmem:[#allocation2 + $0x1f] sm:$0xff]
      %v962 = vld [vmem:[#allocation2 + $0x27] sm:$0xff]
      %v963 = vld [vmem:[#allocation2 + $0x2f] sm:$0xff]
      %v964 = vld [vmem:[#allocation2 + $0x37] sm:$0xff]
      %v965 = vld [vmem:[#allocation2 + $0x3f] sm:$0xff]
      %v966 = vld [vmem:[#allocation2 + $0x47] sm:$0xff]
      %v967 = vld [vmem:[#allocation2 + $0x4f] sm:$0xff]
      %v968 = vld [vmem:[#allocation2 + $0x57] sm:$0xff]
      %v969 = vld [vmem:[#allocation2 + $0x5f] sm:$0xff]
      %v970 = vld [vmem:[#allocation2 + $0x67] sm:$0xff]
      %v971 = vld [vmem:[#allocation2 + $0x6f] sm:$0xff]
      %v972 = vld [vmem:[#allocation2 + $0x77] sm:$0xff]
      %v973 = vld [vmem:[#allocation2 + $0x7f] sm:$0xff]
      %v974 = vld [vmem:[#allocation2 + $0x87] sm:$0xff]
      %v975 = vld [vmem:[#allocation2 + $0x8f] sm:$0xff]
      %v976 = vld [vmem:[#allocation2 + $0x97] sm:$0xff]
      %v977 = vld [vmem:[#allocation2 + $0x9f] sm:$0xff]
      %v978 = vld [vmem:[#allocation2 + $0xa7] sm:$0xff]
      %v979 = vld [vmem:[#allocation2 + $0xaf] sm:$0xff]
      %v980 = vld [vmem:[#allocation2 + $0xb7] sm:$0xff]
      %v981 = vld [vmem:[#allocation2 + $0xbf] sm:$0xff]
      %v982 = vld [vmem:[#allocation2 + $0xc7] sm:$0xff]
      %v983 = vld [vmem:[#allocation2 + $0xcf] sm:$0xff]
      %v984 = vld [vmem:[#allocation2 + $0xd7] sm:$0xff]
      %v985 = vld [vmem:[#allocation2 + $0xdf] sm:$0xff]
      %v986 = vld [vmem:[#allocation2 + $0xe7] sm:$0xff]
      %v987 = vld [vmem:[#allocation2 + $0xef] sm:$0xff]
      %v988 = vld [vmem:[#allocation2 + $0xf7] sm:$0xff]
      %v989 = vld [vmem:[#allocation2 + $0xff] sm:$0xff]
      %v990 = vsel %vm894, %v958, 0.0
      %v991 = vsel %vm895, %v959, 0.0
      %v992 = vsel %vm896, %v960, 0.0
      %v993 = vsel %vm897, %v961, 0.0
      %v994 = vsel %vm898, %v962, 0.0
      %v995 = vsel %vm899, %v963, 0.0
      %v996 = vsel %vm900, %v964, 0.0
      %v997 = vsel %vm901, %v965, 0.0
      %v998 = vsel %vm902, %v966, 0.0
      %v999 = vsel %vm903, %v967, 0.0
      %v1000 = vsel %vm904, %v968, 0.0
      %v1001 = vsel %vm905, %v969, 0.0
      %v1002 = vsel %vm906, %v970, 0.0
      %v1003 = vsel %vm907, %v971, 0.0
      %v1004 = vsel %vm908, %v972, 0.0
      %v1005 = vsel %vm909, %v973, 0.0
      %v1006 = vsel %vm910, %v974, 0.0
      %v1007 = vsel %vm911, %v975, 0.0
      %v1008 = vsel %vm912, %v976, 0.0
      %v1009 = vsel %vm913, %v977, 0.0
      %v1010 = vsel %vm914, %v978, 0.0
      %v1011 = vsel %vm915, %v979, 0.0
      %v1012 = vsel %vm916, %v980, 0.0
      %v1013 = vsel %vm917, %v981, 0.0
      %v1014 = vsel %vm918, %v982, 0.0
      %v1015 = vsel %vm919, %v983, 0.0
      %v1016 = vsel %vm920, %v984, 0.0
      %v1017 = vsel %vm921, %v985, 0.0
      %v1018 = vsel %vm922, %v986, 0.0
      %v1019 = vsel %vm923, %v987, 0.0
      %v1020 = vsel %vm924, %v988, 0.0
      %v1021 = vsel %vm925, %v989, 0.0
      %v1022 = vpack.c.bf16 %v991, %v990
      %v1023 = vpack.c.bf16 %v993, %v992
      %v1024 = vpack.c.bf16 %v995, %v994
      %v1025 = vpack.c.bf16 %v997, %v996
      %v1026 = vpack.c.bf16 %v999, %v998
      %v1027 = vpack.c.bf16 %v1001, %v1000
      %v1028 = vpack.c.bf16 %v1003, %v1002
      %v1029 = vpack.c.bf16 %v1005, %v1004
      %v1030 = vpack.c.bf16 %v1007, %v1006
      %v1031 = vpack.c.bf16 %v1009, %v1008
      %v1032 = vpack.c.bf16 %v1011, %v1010
      %v1033 = vpack.c.bf16 %v1013, %v1012
      %v1034 = vpack.c.bf16 %v1015, %v1014
      %v1035 = vpack.c.bf16 %v1017, %v1016
      %v1036 = vpack.c.bf16 %v1019, %v1018
      %v1037 = vpack.c.bf16 %v1021, %v1020
      %v1038 = vld [vmem:[%s3] sm:$0xf]
      %v1039 = vld [vmem:[%s3 + $0x4] sm:$0xf]
      %v1040 = vld [vmem:[%s3 + $0x8] sm:$0xf]
      %v1041 = vld [vmem:[%s3 + $0xc] sm:$0xf]
      %v1042 = vld [vmem:[%s3 + $0x10] sm:$0xf]
      %v1043 = vld [vmem:[%s3 + $0x14] sm:$0xf]
      %v1044 = vld [vmem:[%s3 + $0x18] sm:$0xf]
      %v1045 = vld [vmem:[%s3 + $0x1c] sm:$0xf]
      %v1046 = vld [vmem:[%s3 + $0x20] sm:$0xf]
      %v1047 = vld [vmem:[%s3 + $0x24] sm:$0xf]
      %v1048 = vld [vmem:[%s3 + $0x28] sm:$0xf]
      %v1049 = vld [vmem:[%s3 + $0x2c] sm:$0xf]
      %v1050 = vld [vmem:[%s3 + $0x30] sm:$0xf]
      %v1051 = vld [vmem:[%s3 + $0x34] sm:$0xf]
      %v1052 = vld [vmem:[%s3 + $0x38] sm:$0xf]
      %v1053 = vld [vmem:[%s3 + $0x3c] sm:$0xf]
      %v1054 = vld [vmem:[#allocation2 + $0x8] sm:$0xff]
      %v1055 = vld [vmem:[#allocation2 + $0x10] sm:$0xff]
      %v1056 = vld [vmem:[#allocation2 + $0x18] sm:$0xff]
      %v1057 = vld [vmem:[#allocation2 + $0x20] sm:$0xff]
      %v1058 = vld [vmem:[#allocation2 + $0x28] sm:$0xff]
      %v1059 = vld [vmem:[#allocation2 + $0x30] sm:$0xff]
      %v1060 = vld [vmem:[#allocation2 + $0x38] sm:$0xff]
      %v1061 = vld [vmem:[#allocation2 + $0x40] sm:$0xff]
      %v1062 = vld [vmem:[#allocation2 + $0x48] sm:$0xff]
      %v1063 = vld [vmem:[#allocation2 + $0x50] sm:$0xff]
      %v1064 = vld [vmem:[#allocation2 + $0x58] sm:$0xff]
      %v1065 = vld [vmem:[#allocation2 + $0x60] sm:$0xff]
      %v1066 = vld [vmem:[#allocation2 + $0x68] sm:$0xff]
      %v1067 = vld [vmem:[#allocation2 + $0x70] sm:$0xff]
      %v1068 = vld [vmem:[#allocation2 + $0x78] sm:$0xff]
      %v1069 = vld [vmem:[#allocation2 + $0x80] sm:$0xff]
      %v1070 = vld [vmem:[#allocation2 + $0x88] sm:$0xff]
      %v1071 = vld [vmem:[#allocation2 + $0x90] sm:$0xff]
      %v1072 = vld [vmem:[#allocation2 + $0x98] sm:$0xff]
      %v1073 = vld [vmem:[#allocation2 + $0xa0] sm:$0xff]
      %v1074 = vld [vmem:[#allocation2 + $0xa8] sm:$0xff]
      %v1075 = vld [vmem:[#allocation2 + $0xb0] sm:$0xff]
      %v1076 = vld [vmem:[#allocation2 + $0xb8] sm:$0xff]
      %v1077 = vld [vmem:[#allocation2 + $0xc0] sm:$0xff]
      %v1078 = vld [vmem:[#allocation2 + $0xc8] sm:$0xff]
      %v1079 = vld [vmem:[#allocation2 + $0xd0] sm:$0xff]
      %v1080 = vld [vmem:[#allocation2 + $0xd8] sm:$0xff]
      %v1081 = vld [vmem:[#allocation2 + $0xe0] sm:$0xff]
      %v1082 = vld [vmem:[#allocation2 + $0xe8] sm:$0xff]
      %v1083 = vld [vmem:[#allocation2 + $0xf0] sm:$0xff]
      %v1084 = vld [vmem:[#allocation2 + $0xf8] sm:$0xff]
      %v1085 = vld [vmem:[#allocation2 + $0x100] sm:$0xff]
      %v1086 = vpack.c.bf16 %v1055, %v1054
      %v1087 = vpack.c.bf16 %v1057, %v1056
      %v1088 = vpack.c.bf16 %v1059, %v1058
      %v1089 = vpack.c.bf16 %v1061, %v1060
      %v1090 = vpack.c.bf16 %v1063, %v1062
      %v1091 = vpack.c.bf16 %v1065, %v1064
      %v1092 = vpack.c.bf16 %v1067, %v1066
      %v1093 = vpack.c.bf16 %v1069, %v1068
      %v1094 = vpack.c.bf16 %v1071, %v1070
      %v1095 = vpack.c.bf16 %v1073, %v1072
      %v1096 = vpack.c.bf16 %v1075, %v1074
      %v1097 = vpack.c.bf16 %v1077, %v1076
      %v1098 = vpack.c.bf16 %v1079, %v1078
      %v1099 = vpack.c.bf16 %v1081, %v1080
      %v1100 = vpack.c.bf16 %v1083, %v1082
      %v1101 = vpack.c.bf16 %v1085, %v1084
      %s1102 = scalar_lea.vmem %s3, 64
      %v1103 = vld [vmem:[%s1102] sm:$0xf]
      %v1104 = vld [vmem:[%s1102 + $0x4] sm:$0xf]
      %v1105 = vld [vmem:[%s1102 + $0x8] sm:$0xf]
      %v1106 = vld [vmem:[%s1102 + $0xc] sm:$0xf]
      %v1107 = vld [vmem:[%s1102 + $0x10] sm:$0xf]
      %v1108 = vld [vmem:[%s1102 + $0x14] sm:$0xf]
      %v1109 = vld [vmem:[%s1102 + $0x18] sm:$0xf]
      %v1110 = vld [vmem:[%s1102 + $0x1c] sm:$0xf]
      %v1111 = vld [vmem:[%s1102 + $0x20] sm:$0xf]
      %v1112 = vld [vmem:[%s1102 + $0x24] sm:$0xf]
      %v1113 = vld [vmem:[%s1102 + $0x28] sm:$0xf]
      %v1114 = vld [vmem:[%s1102 + $0x2c] sm:$0xf]
      %v1115 = vld [vmem:[%s1102 + $0x30] sm:$0xf]
      %v1116 = vld [vmem:[%s1102 + $0x34] sm:$0xf]
      %v1117 = vld [vmem:[%s1102 + $0x38] sm:$0xf]
      %v1118 = vld [vmem:[%s1102 + $0x3c] sm:$0xf]
      %v1135 = vunpack.c.l.b16 %v1103
      %v1136 = vunpack.c.l.b16 %v1104
      %v1137 = vunpack.c.l.b16 %v1105
      %v1138 = vunpack.c.l.b16 %v1106
      %v1139 = vunpack.c.l.b16 %v1107
      %v1140 = vunpack.c.l.b16 %v1108
      %v1141 = vunpack.c.l.b16 %v1109
      %v1142 = vunpack.c.l.b16 %v1110
      %v1143 = vunpack.c.l.b16 %v1111
      %v1144 = vunpack.c.l.b16 %v1112
      %v1145 = vunpack.c.l.b16 %v1113
      %v1146 = vunpack.c.l.b16 %v1114
      %v1147 = vunpack.c.l.b16 %v1115
      %v1148 = vunpack.c.l.b16 %v1116
      %v1149 = vunpack.c.l.b16 %v1117
      %v1150 = vunpack.c.l.b16 %v1118
      %v1151 = vpack.c.b16 %v1136, %v1135
      %v1152 = vpack.c.b16 %v1138, %v1137
      %v1153 = vpack.c.b16 %v1140, %v1139
      %v1154 = vpack.c.b16 %v1142, %v1141
      %v1155 = vpack.c.b16 %v1144, %v1143
      %v1156 = vpack.c.b16 %v1146, %v1145
      %v1157 = vpack.c.b16 %v1148, %v1147
      %v1158 = vpack.c.b16 %v1150, %v1149
      %1167 = vmatprep.subr.bf16.mxu0 0
      %1168 = vmatpush1.bf16.msra.mxu0 %v1158
      %1169 = vmatprep.subr.bf16.mxu0 0
      %1170 = vmatpush1.bf16.msra.mxu0 %v1157
      %1171 = vmatprep.subr.bf16.mxu0 0
      %1172 = vmatpush1.bf16.msra.mxu0 %v1156
      %1173 = vmatprep.subr.bf16.mxu0 0
      %1174 = vmatpush1.bf16.msra.mxu0 %v1155
      %1175 = vmatprep.subr.bf16.mxu0 0
      %1176 = vmatpush1.bf16.msra.mxu0 %v1154
      %1177 = vmatprep.subr.bf16.mxu0 0
      %1178 = vmatpush1.bf16.msra.mxu0 %v1153
      %1179 = vmatprep.subr.bf16.mxu0 0
      %1180 = vmatpush1.bf16.msra.mxu0 %v1152
      %1181 = vmatprep.subr.bf16.mxu0 0
      %1182 = vmatpush1.bf16.msra.mxu0 %v1151
      %1183 = vmatprep.subr.bf16.mxu0 0
      %1184 = vmatpush2.bf16.msra.mxu0 0
      %1185 = vmatprep.subr.bf16.mxu0 0
      %1186 = vmatpush2.bf16.msra.mxu0 0
      %1187 = vmatprep.subr.bf16.mxu0 0
      %1188 = vmatpush2.bf16.msra.mxu0 0
      %1189 = vmatprep.subr.bf16.mxu0 0
      %1190 = vmatpush2.bf16.msra.mxu0 0
      %1191 = vmatprep.subr.bf16.mxu0 0
      %1192 = vmatpush2.bf16.msra.mxu0 0
      %1193 = vmatprep.subr.bf16.mxu0 0
      %1194 = vmatpush2.bf16.msra.mxu0 0
      %1195 = vmatprep.subr.bf16.mxu0 0
      %1196 = vmatpush2.bf16.msra.mxu0 0
      %1197 = vmatprep.subr.bf16.mxu0 0
      %1198 = vmatpush2.bf16.msra.mxu0 0
      %1199 = vmatprep.mubr.bf16.mxu0 0
      %1200 = vmatmul.mubr.bf16.gmra.mxu0 %v1086
      %v1201 = vpop.f32.mrf.mxu0
      %v1202 = vadd.f32 0.0, %v1201
      %v1203 = vpop.f32.mrf.mxu0
      %v1204 = vpop.f32.mrf.mxu0
      %v1205 = vadd.f32 0.0, %v1204
      %v1206 = vpop.f32.mrf.mxu0
      %1207 = vmatprep.mubr.bf16.mxu0 0
      %1208 = vmatmul.mubr.bf16.gmra.mxu0 %v1087
      %v1209 = vpop.f32.mrf.mxu0
      %v1210 = vadd.f32 0.0, %v1209
      %v1211 = vpop.f32.mrf.mxu0
      %v1212 = vpop.f32.mrf.mxu0
      %v1213 = vadd.f32 0.0, %v1212
      %v1214 = vpop.f32.mrf.mxu0
      %1215 = vmatprep.mubr.bf16.mxu0 0
      %1216 = vmatmul.mubr.bf16.gmra.mxu0 %v1088
      %v1217 = vpop.f32.mrf.mxu0
      %v1218 = vadd.f32 0.0, %v1217
      %v1219 = vpop.f32.mrf.mxu0
      %v1220 = vpop.f32.mrf.mxu0
      %v1221 = vadd.f32 0.0, %v1220
      %v1222 = vpop.f32.mrf.mxu0
      %1223 = vmatprep.mubr.bf16.mxu0 0
      %1224 = vmatmul.mubr.bf16.gmra.mxu0 %v1089
      %v1225 = vpop.f32.mrf.mxu0
      %v1226 = vadd.f32 0.0, %v1225
      %v1227 = vpop.f32.mrf.mxu0
      %v1228 = vpop.f32.mrf.mxu0
      %v1229 = vadd.f32 0.0, %v1228
      %v1230 = vpop.f32.mrf.mxu0
      %1231 = vmatprep.mubr.bf16.mxu0 0
      %1232 = vmatmul.mubr.bf16.gmra.mxu0 %v1090
      %v1233 = vpop.f32.mrf.mxu0
      %v1234 = vadd.f32 0.0, %v1233
      %v1235 = vpop.f32.mrf.mxu0
      %v1236 = vpop.f32.mrf.mxu0
      %v1237 = vadd.f32 0.0, %v1236
      %v1238 = vpop.f32.mrf.mxu0
      %1239 = vmatprep.mubr.bf16.mxu0 0
      %1240 = vmatmul.mubr.bf16.gmra.mxu0 %v1091
      %v1241 = vpop.f32.mrf.mxu0
      %v1242 = vadd.f32 0.0, %v1241
      %v1243 = vpop.f32.mrf.mxu0
      %v1244 = vpop.f32.mrf.mxu0
      %v1245 = vadd.f32 0.0, %v1244
      %v1246 = vpop.f32.mrf.mxu0
      %1247 = vmatprep.mubr.bf16.mxu0 0
      %1248 = vmatmul.mubr.bf16.gmra.mxu0 %v1092
      %v1249 = vpop.f32.mrf.mxu0
      %v1250 = vadd.f32 0.0, %v1249
      %v1251 = vpop.f32.mrf.mxu0
      %v1252 = vpop.f32.mrf.mxu0
      %v1253 = vadd.f32 0.0, %v1252
      %v1254 = vpop.f32.mrf.mxu0
      %1255 = vmatprep.mubr.bf16.mxu0 0
      %1256 = vmatmul.mubr.bf16.gmra.mxu0 %v1093
      %v1257 = vpop.f32.mrf.mxu0
      %v1258 = vadd.f32 0.0, %v1257
      %v1259 = vpop.f32.mrf.mxu0
      %v1260 = vpop.f32.mrf.mxu0
      %v1261 = vadd.f32 0.0, %v1260
      %v1262 = vpop.f32.mrf.mxu0
      %1263 = vmatprep.mubr.bf16.mxu0 0
      %1264 = vmatmul.mubr.bf16.gmra.mxu0 %v1094
      %v1265 = vpop.f32.mrf.mxu0
      %v1266 = vadd.f32 0.0, %v1265
      %v1267 = vpop.f32.mrf.mxu0
      %v1268 = vpop.f32.mrf.mxu0
      %v1269 = vadd.f32 0.0, %v1268
      %v1270 = vpop.f32.mrf.mxu0
      %1271 = vmatprep.mubr.bf16.mxu0 0
      %1272 = vmatmul.mubr.bf16.gmra.mxu0 %v1095
      %v1273 = vpop.f32.mrf.mxu0
      %v1274 = vadd.f32 0.0, %v1273
      %v1275 = vpop.f32.mrf.mxu0
      %v1276 = vpop.f32.mrf.mxu0
      %v1277 = vadd.f32 0.0, %v1276
      %v1278 = vpop.f32.mrf.mxu0
      %1279 = vmatprep.mubr.bf16.mxu0 0
      %1280 = vmatmul.mubr.bf16.gmra.mxu0 %v1096
      %v1281 = vpop.f32.mrf.mxu0
      %v1282 = vadd.f32 0.0, %v1281
      %v1283 = vpop.f32.mrf.mxu0
      %v1284 = vpop.f32.mrf.mxu0
      %v1285 = vadd.f32 0.0, %v1284
      %v1286 = vpop.f32.mrf.mxu0
      %1287 = vmatprep.mubr.bf16.mxu0 0
      %1288 = vmatmul.mubr.bf16.gmra.mxu0 %v1097
      %v1289 = vpop.f32.mrf.mxu0
      %v1290 = vadd.f32 0.0, %v1289
      %v1291 = vpop.f32.mrf.mxu0
      %v1292 = vpop.f32.mrf.mxu0
      %v1293 = vadd.f32 0.0, %v1292
      %v1294 = vpop.f32.mrf.mxu0
      %1295 = vmatprep.mubr.bf16.mxu0 0
      %1296 = vmatmul.mubr.bf16.gmra.mxu0 %v1098
      %v1297 = vpop.f32.mrf.mxu0
      %v1298 = vadd.f32 0.0, %v1297
      %v1299 = vpop.f32.mrf.mxu0
      %v1300 = vpop.f32.mrf.mxu0
      %v1301 = vadd.f32 0.0, %v1300
      %v1302 = vpop.f32.mrf.mxu0
      %1303 = vmatprep.mubr.bf16.mxu0 0
      %1304 = vmatmul.mubr.bf16.gmra.mxu0 %v1099
      %v1305 = vpop.f32.mrf.mxu0
      %v1306 = vadd.f32 0.0, %v1305
      %v1307 = vpop.f32.mrf.mxu0
      %v1308 = vpop.f32.mrf.mxu0
      %v1309 = vadd.f32 0.0, %v1308
      %v1310 = vpop.f32.mrf.mxu0
      %1311 = vmatprep.mubr.bf16.mxu0 0
      %1312 = vmatmul.mubr.bf16.gmra.mxu0 %v1100
      %v1313 = vpop.f32.mrf.mxu0
      %v1314 = vadd.f32 0.0, %v1313
      %v1315 = vpop.f32.mrf.mxu0
      %v1316 = vpop.f32.mrf.mxu0
      %v1317 = vadd.f32 0.0, %v1316
      %v1318 = vpop.f32.mrf.mxu0
      %1319 = vmatprep.mubr.bf16.mxu0 0
      %1320 = vmatmul.mubr.bf16.gmra.mxu0 %v1101
      %v1321 = vpop.f32.mrf.mxu0
      %v1322 = vadd.f32 0.0, %v1321
      %v1323 = vpop.f32.mrf.mxu0
      %v1324 = vpop.f32.mrf.mxu0
      %v1325 = vadd.f32 0.0, %v1324
      %v1326 = vpop.f32.mrf.mxu0
      %1327 = vdwg.mxu0
      %v1344 = vunpack.c.l.b16 %v1038
      %v1345 = vunpack.c.l.b16 %v1039
      %v1346 = vunpack.c.l.b16 %v1040
      %v1347 = vunpack.c.l.b16 %v1041
      %v1348 = vunpack.c.l.b16 %v1042
      %v1349 = vunpack.c.l.b16 %v1043
      %v1350 = vunpack.c.l.b16 %v1044
      %v1351 = vunpack.c.l.b16 %v1045
      %v1352 = vunpack.c.l.b16 %v1046
      %v1353 = vunpack.c.l.b16 %v1047
      %v1354 = vunpack.c.l.b16 %v1048
      %v1355 = vunpack.c.l.b16 %v1049
      %v1356 = vunpack.c.l.b16 %v1050
      %v1357 = vunpack.c.l.b16 %v1051
      %v1358 = vunpack.c.l.b16 %v1052
      %v1359 = vunpack.c.l.b16 %v1053
      %v1360 = vpack.c.b16 %v1345, %v1344
      %v1361 = vpack.c.b16 %v1347, %v1346
      %v1362 = vpack.c.b16 %v1349, %v1348
      %v1363 = vpack.c.b16 %v1351, %v1350
      %v1364 = vpack.c.b16 %v1353, %v1352
      %v1365 = vpack.c.b16 %v1355, %v1354
      %v1366 = vpack.c.b16 %v1357, %v1356
      %v1367 = vpack.c.b16 %v1359, %v1358
      %1376 = vmatprep.subr.bf16.mxu0 0
      %1377 = vmatpush1.bf16.msra.mxu0 %v1367
      %1378 = vmatprep.subr.bf16.mxu0 0
      %1379 = vmatpush1.bf16.msra.mxu0 %v1366
      %1380 = vmatprep.subr.bf16.mxu0 0
      %1381 = vmatpush1.bf16.msra.mxu0 %v1365
      %1382 = vmatprep.subr.bf16.mxu0 0
      %1383 = vmatpush1.bf16.msra.mxu0 %v1364
      %1384 = vmatprep.subr.bf16.mxu0 0
      %1385 = vmatpush1.bf16.msra.mxu0 %v1363
      %1386 = vmatprep.subr.bf16.mxu0 0
      %1387 = vmatpush1.bf16.msra.mxu0 %v1362
      %1388 = vmatprep.subr.bf16.mxu0 0
      %1389 = vmatpush1.bf16.msra.mxu0 %v1361
      %1390 = vmatprep.subr.bf16.mxu0 0
      %1391 = vmatpush1.bf16.msra.mxu0 %v1360
      %1392 = vmatprep.subr.bf16.mxu0 0
      %1393 = vmatpush2.bf16.msra.mxu0 0
      %1394 = vmatprep.subr.bf16.mxu0 0
      %1395 = vmatpush2.bf16.msra.mxu0 0
      %1396 = vmatprep.subr.bf16.mxu0 0
      %1397 = vmatpush2.bf16.msra.mxu0 0
      %1398 = vmatprep.subr.bf16.mxu0 0
      %1399 = vmatpush2.bf16.msra.mxu0 0
      %1400 = vmatprep.subr.bf16.mxu0 0
      %1401 = vmatpush2.bf16.msra.mxu0 0
      %1402 = vmatprep.subr.bf16.mxu0 0
      %1403 = vmatpush2.bf16.msra.mxu0 0
      %1404 = vmatprep.subr.bf16.mxu0 0
      %1405 = vmatpush2.bf16.msra.mxu0 0
      %1406 = vmatprep.subr.bf16.mxu0 0
      %1407 = vmatpush2.bf16.msra.mxu0 0
      %1408 = vmatprep.mubr.bf16.mxu0 0
      %1409 = vmatmul.mubr.bf16.gmra.mxu0 %v1022
      %v1410 = vpop.f32.mrf.mxu0
      %v1411 = vadd.f32 %v1202, %v1410
      %v1412 = vpop.f32.mrf.mxu0
      %v1413 = vpop.f32.mrf.mxu0
      %v1414 = vadd.f32 %v1205, %v1413
      %v1415 = vpop.f32.mrf.mxu0
      %1416 = vmatprep.mubr.bf16.mxu0 0
      %1417 = vmatmul.mubr.bf16.gmra.mxu0 %v1023
      %v1418 = vpop.f32.mrf.mxu0
      %v1419 = vadd.f32 %v1210, %v1418
      %v1420 = vpop.f32.mrf.mxu0
      %v1421 = vpop.f32.mrf.mxu0
      %v1422 = vadd.f32 %v1213, %v1421
      %v1423 = vpop.f32.mrf.mxu0
      %1424 = vmatprep.mubr.bf16.mxu0 0
      %1425 = vmatmul.mubr.bf16.gmra.mxu0 %v1024
      %v1426 = vpop.f32.mrf.mxu0
      %v1427 = vadd.f32 %v1218, %v1426
      %v1428 = vpop.f32.mrf.mxu0
      %v1429 = vpop.f32.mrf.mxu0
      %v1430 = vadd.f32 %v1221, %v1429
      %v1431 = vpop.f32.mrf.mxu0
      %1432 = vmatprep.mubr.bf16.mxu0 0
      %1433 = vmatmul.mubr.bf16.gmra.mxu0 %v1025
      %v1434 = vpop.f32.mrf.mxu0
      %v1435 = vadd.f32 %v1226, %v1434
      %v1436 = vpop.f32.mrf.mxu0
      %v1437 = vpop.f32.mrf.mxu0
      %v1438 = vadd.f32 %v1229, %v1437
      %v1439 = vpop.f32.mrf.mxu0
      %1440 = vmatprep.mubr.bf16.mxu0 0
      %1441 = vmatmul.mubr.bf16.gmra.mxu0 %v1026
      %v1442 = vpop.f32.mrf.mxu0
      %v1443 = vadd.f32 %v1234, %v1442
      %v1444 = vpop.f32.mrf.mxu0
      %v1445 = vpop.f32.mrf.mxu0
      %v1446 = vadd.f32 %v1237, %v1445
      %v1447 = vpop.f32.mrf.mxu0
      %1448 = vmatprep.mubr.bf16.mxu0 0
      %1449 = vmatmul.mubr.bf16.gmra.mxu0 %v1027
      %v1450 = vpop.f32.mrf.mxu0
      %v1451 = vadd.f32 %v1242, %v1450
      %v1452 = vpop.f32.mrf.mxu0
      %v1453 = vpop.f32.mrf.mxu0
      %v1454 = vadd.f32 %v1245, %v1453
      %v1455 = vpop.f32.mrf.mxu0
      %1456 = vmatprep.mubr.bf16.mxu0 0
      %1457 = vmatmul.mubr.bf16.gmra.mxu0 %v1028
      %v1458 = vpop.f32.mrf.mxu0
      %v1459 = vadd.f32 %v1250, %v1458
      %v1460 = vpop.f32.mrf.mxu0
      %v1461 = vpop.f32.mrf.mxu0
      %v1462 = vadd.f32 %v1253, %v1461
      %v1463 = vpop.f32.mrf.mxu0
      %1464 = vmatprep.mubr.bf16.mxu0 0
      %1465 = vmatmul.mubr.bf16.gmra.mxu0 %v1029
      %v1466 = vpop.f32.mrf.mxu0
      %v1467 = vadd.f32 %v1258, %v1466
      %v1468 = vpop.f32.mrf.mxu0
      %v1469 = vpop.f32.mrf.mxu0
      %v1470 = vadd.f32 %v1261, %v1469
      %v1471 = vpop.f32.mrf.mxu0
      %1472 = vmatprep.mubr.bf16.mxu0 0
      %1473 = vmatmul.mubr.bf16.gmra.mxu0 %v1030
      %v1474 = vpop.f32.mrf.mxu0
      %v1475 = vadd.f32 %v1266, %v1474
      %v1476 = vpop.f32.mrf.mxu0
      %v1477 = vpop.f32.mrf.mxu0
      %v1478 = vadd.f32 %v1269, %v1477
      %v1479 = vpop.f32.mrf.mxu0
      %1480 = vmatprep.mubr.bf16.mxu0 0
      %1481 = vmatmul.mubr.bf16.gmra.mxu0 %v1031
      %v1482 = vpop.f32.mrf.mxu0
      %v1483 = vadd.f32 %v1274, %v1482
      %v1484 = vpop.f32.mrf.mxu0
      %v1485 = vpop.f32.mrf.mxu0
      %v1486 = vadd.f32 %v1277, %v1485
      %v1487 = vpop.f32.mrf.mxu0
      %1488 = vmatprep.mubr.bf16.mxu0 0
      %1489 = vmatmul.mubr.bf16.gmra.mxu0 %v1032
      %v1490 = vpop.f32.mrf.mxu0
      %v1491 = vadd.f32 %v1282, %v1490
      %v1492 = vpop.f32.mrf.mxu0
      %v1493 = vpop.f32.mrf.mxu0
      %v1494 = vadd.f32 %v1285, %v1493
      %v1495 = vpop.f32.mrf.mxu0
      %1496 = vmatprep.mubr.bf16.mxu0 0
      %1497 = vmatmul.mubr.bf16.gmra.mxu0 %v1033
      %v1498 = vpop.f32.mrf.mxu0
      %v1499 = vadd.f32 %v1290, %v1498
      %v1500 = vpop.f32.mrf.mxu0
      %v1501 = vpop.f32.mrf.mxu0
      %v1502 = vadd.f32 %v1293, %v1501
      %v1503 = vpop.f32.mrf.mxu0
      %1504 = vmatprep.mubr.bf16.mxu0 0
      %1505 = vmatmul.mubr.bf16.gmra.mxu0 %v1034
      %v1506 = vpop.f32.mrf.mxu0
      %v1507 = vadd.f32 %v1298, %v1506
      %v1508 = vpop.f32.mrf.mxu0
      %v1509 = vpop.f32.mrf.mxu0
      %v1510 = vadd.f32 %v1301, %v1509
      %v1511 = vpop.f32.mrf.mxu0
      %1512 = vmatprep.mubr.bf16.mxu0 0
      %1513 = vmatmul.mubr.bf16.gmra.mxu0 %v1035
      %v1514 = vpop.f32.mrf.mxu0
      %v1515 = vadd.f32 %v1306, %v1514
      %v1516 = vpop.f32.mrf.mxu0
      %v1517 = vpop.f32.mrf.mxu0
      %v1518 = vadd.f32 %v1309, %v1517
      %v1519 = vpop.f32.mrf.mxu0
      %1520 = vmatprep.mubr.bf16.mxu0 0
      %1521 = vmatmul.mubr.bf16.gmra.mxu0 %v1036
      %v1522 = vpop.f32.mrf.mxu0
      %v1523 = vadd.f32 %v1314, %v1522
      %v1524 = vpop.f32.mrf.mxu0
      %v1525 = vpop.f32.mrf.mxu0
      %v1526 = vadd.f32 %v1317, %v1525
      %v1527 = vpop.f32.mrf.mxu0
      %1528 = vmatprep.mubr.bf16.mxu0 0
      %1529 = vmatmul.mubr.bf16.gmra.mxu0 %v1037
      %v1530 = vpop.f32.mrf.mxu0
      %v1531 = vadd.f32 %v1322, %v1530
      %v1532 = vpop.f32.mrf.mxu0
      %v1533 = vpop.f32.mrf.mxu0
      %v1534 = vadd.f32 %v1325, %v1533
      %v1535 = vpop.f32.mrf.mxu0
      %1536 = vdwg.mxu0
      %v1537 = vld [vmem:[#allocation2 + $0x9] sm:$0xff]
      %v1538 = vld [vmem:[#allocation2 + $0x11] sm:$0xff]
      %v1539 = vld [vmem:[#allocation2 + $0x19] sm:$0xff]
      %v1540 = vld [vmem:[#allocation2 + $0x21] sm:$0xff]
      %v1541 = vld [vmem:[#allocation2 + $0x29] sm:$0xff]
      %v1542 = vld [vmem:[#allocation2 + $0x31] sm:$0xff]
      %v1543 = vld [vmem:[#allocation2 + $0x39] sm:$0xff]
      %v1544 = vld [vmem:[#allocation2 + $0x41] sm:$0xff]
      %v1545 = vld [vmem:[#allocation2 + $0x49] sm:$0xff]
      %v1546 = vld [vmem:[#allocation2 + $0x51] sm:$0xff]
      %v1547 = vld [vmem:[#allocation2 + $0x59] sm:$0xff]
      %v1548 = vld [vmem:[#allocation2 + $0x61] sm:$0xff]
      %v1549 = vld [vmem:[#allocation2 + $0x69] sm:$0xff]
      %v1550 = vld [vmem:[#allocation2 + $0x71] sm:$0xff]
      %v1551 = vld [vmem:[#allocation2 + $0x79] sm:$0xff]
      %v1552 = vld [vmem:[#allocation2 + $0x81] sm:$0xff]
      %v1553 = vld [vmem:[#allocation2 + $0x89] sm:$0xff]
      %v1554 = vld [vmem:[#allocation2 + $0x91] sm:$0xff]
      %v1555 = vld [vmem:[#allocation2 + $0x99] sm:$0xff]
      %v1556 = vld [vmem:[#allocation2 + $0xa1] sm:$0xff]
      %v1557 = vld [vmem:[#allocation2 + $0xa9] sm:$0xff]
      %v1558 = vld [vmem:[#allocation2 + $0xb1] sm:$0xff]
      %v1559 = vld [vmem:[#allocation2 + $0xb9] sm:$0xff]
      %v1560 = vld [vmem:[#allocation2 + $0xc1] sm:$0xff]
      %v1561 = vld [vmem:[#allocation2 + $0xc9] sm:$0xff]
      %v1562 = vld [vmem:[#allocation2 + $0xd1] sm:$0xff]
      %v1563 = vld [vmem:[#allocation2 + $0xd9] sm:$0xff]
      %v1564 = vld [vmem:[#allocation2 + $0xe1] sm:$0xff]
      %v1565 = vld [vmem:[#allocation2 + $0xe9] sm:$0xff]
      %v1566 = vld [vmem:[#allocation2 + $0xf1] sm:$0xff]
      %v1567 = vld [vmem:[#allocation2 + $0xf9] sm:$0xff]
      %v1568 = vld [vmem:[#allocation2 + $0x101] sm:$0xff]
      %v1569 = vsel %vm926, %v1537, 0.0
      %v1570 = vsel %vm927, %v1538, 0.0
      %v1571 = vsel %vm928, %v1539, 0.0
      %v1572 = vsel %vm929, %v1540, 0.0
      %v1573 = vsel %vm930, %v1541, 0.0
      %v1574 = vsel %vm931, %v1542, 0.0
      %v1575 = vsel %vm932, %v1543, 0.0
      %v1576 = vsel %vm933, %v1544, 0.0
      %v1577 = vsel %vm934, %v1545, 0.0
      %v1578 = vsel %vm935, %v1546, 0.0
      %v1579 = vsel %vm936, %v1547, 0.0
      %v1580 = vsel %vm937, %v1548, 0.0
      %v1581 = vsel %vm938, %v1549, 0.0
      %v1582 = vsel %vm939, %v1550, 0.0
      %v1583 = vsel %vm940, %v1551, 0.0
      %v1584 = vsel %vm941, %v1552, 0.0
      %v1585 = vsel %vm942, %v1553, 0.0
      %v1586 = vsel %vm943, %v1554, 0.0
      %v1587 = vsel %vm944, %v1555, 0.0
      %v1588 = vsel %vm945, %v1556, 0.0
      %v1589 = vsel %vm946, %v1557, 0.0
      %v1590 = vsel %vm947, %v1558, 0.0
      %v1591 = vsel %vm948, %v1559, 0.0
      %v1592 = vsel %vm949, %v1560, 0.0
      %v1593 = vsel %vm950, %v1561, 0.0
      %v1594 = vsel %vm951, %v1562, 0.0
      %v1595 = vsel %vm952, %v1563, 0.0
      %v1596 = vsel %vm953, %v1564, 0.0
      %v1597 = vsel %vm954, %v1565, 0.0
      %v1598 = vsel %vm955, %v1566, 0.0
      %v1599 = vsel %vm956, %v1567, 0.0
      %v1600 = vsel %vm957, %v1568, 0.0
      %v1601 = vpack.c.bf16 %v1570, %v1569
      %v1602 = vpack.c.bf16 %v1572, %v1571
      %v1603 = vpack.c.bf16 %v1574, %v1573
      %v1604 = vpack.c.bf16 %v1576, %v1575
      %v1605 = vpack.c.bf16 %v1578, %v1577
      %v1606 = vpack.c.bf16 %v1580, %v1579
      %v1607 = vpack.c.bf16 %v1582, %v1581
      %v1608 = vpack.c.bf16 %v1584, %v1583
      %v1609 = vpack.c.bf16 %v1586, %v1585
      %v1610 = vpack.c.bf16 %v1588, %v1587
      %v1611 = vpack.c.bf16 %v1590, %v1589
      %v1612 = vpack.c.bf16 %v1592, %v1591
      %v1613 = vpack.c.bf16 %v1594, %v1593
      %v1614 = vpack.c.bf16 %v1596, %v1595
      %v1615 = vpack.c.bf16 %v1598, %v1597
      %v1616 = vpack.c.bf16 %v1600, %v1599
      %s1617 = scalar_lea.vmem %s3, 128
      %v1618 = vld [vmem:[%s1617] sm:$0xf]
      %v1619 = vld [vmem:[%s1617 + $0x4] sm:$0xf]
      %v1620 = vld [vmem:[%s1617 + $0x8] sm:$0xf]
      %v1621 = vld [vmem:[%s1617 + $0xc] sm:$0xf]
      %v1622 = vld [vmem:[%s1617 + $0x10] sm:$0xf]
      %v1623 = vld [vmem:[%s1617 + $0x14] sm:$0xf]
      %v1624 = vld [vmem:[%s1617 + $0x18] sm:$0xf]
      %v1625 = vld [vmem:[%s1617 + $0x1c] sm:$0xf]
      %v1626 = vld [vmem:[%s1617 + $0x20] sm:$0xf]
      %v1627 = vld [vmem:[%s1617 + $0x24] sm:$0xf]
      %v1628 = vld [vmem:[%s1617 + $0x28] sm:$0xf]
      %v1629 = vld [vmem:[%s1617 + $0x2c] sm:$0xf]
      %v1630 = vld [vmem:[%s1617 + $0x30] sm:$0xf]
      %v1631 = vld [vmem:[%s1617 + $0x34] sm:$0xf]
      %v1632 = vld [vmem:[%s1617 + $0x38] sm:$0xf]
      %v1633 = vld [vmem:[%s1617 + $0x3c] sm:$0xf]
      %v1650 = vunpack.c.l.b16 %v1618
      %v1651 = vunpack.c.l.b16 %v1619
      %v1652 = vunpack.c.l.b16 %v1620
      %v1653 = vunpack.c.l.b16 %v1621
      %v1654 = vunpack.c.l.b16 %v1622
      %v1655 = vunpack.c.l.b16 %v1623
      %v1656 = vunpack.c.l.b16 %v1624
      %v1657 = vunpack.c.l.b16 %v1625
      %v1658 = vunpack.c.l.b16 %v1626
      %v1659 = vunpack.c.l.b16 %v1627
      %v1660 = vunpack.c.l.b16 %v1628
      %v1661 = vunpack.c.l.b16 %v1629
      %v1662 = vunpack.c.l.b16 %v1630
      %v1663 = vunpack.c.l.b16 %v1631
      %v1664 = vunpack.c.l.b16 %v1632
      %v1665 = vunpack.c.l.b16 %v1633
      %v1666 = vpack.c.b16 %v1651, %v1650
      %v1667 = vpack.c.b16 %v1653, %v1652
      %v1668 = vpack.c.b16 %v1655, %v1654
      %v1669 = vpack.c.b16 %v1657, %v1656
      %v1670 = vpack.c.b16 %v1659, %v1658
      %v1671 = vpack.c.b16 %v1661, %v1660
      %v1672 = vpack.c.b16 %v1663, %v1662
      %v1673 = vpack.c.b16 %v1665, %v1664
      %1682 = vmatprep.subr.bf16.mxu0 0
      %1683 = vmatpush1.bf16.msra.mxu0 %v1673
      %1684 = vmatprep.subr.bf16.mxu0 0
      %1685 = vmatpush1.bf16.msra.mxu0 %v1672
      %1686 = vmatprep.subr.bf16.mxu0 0
      %1687 = vmatpush1.bf16.msra.mxu0 %v1671
      %1688 = vmatprep.subr.bf16.mxu0 0
      %1689 = vmatpush1.bf16.msra.mxu0 %v1670
      %1690 = vmatprep.subr.bf16.mxu0 0
      %1691 = vmatpush1.bf16.msra.mxu0 %v1669
      %1692 = vmatprep.subr.bf16.mxu0 0
      %1693 = vmatpush1.bf16.msra.mxu0 %v1668
      %1694 = vmatprep.subr.bf16.mxu0 0
      %1695 = vmatpush1.bf16.msra.mxu0 %v1667
      %1696 = vmatprep.subr.bf16.mxu0 0
      %1697 = vmatpush1.bf16.msra.mxu0 %v1666
      %1698 = vmatprep.subr.bf16.mxu0 0
      %1699 = vmatpush2.bf16.msra.mxu0 0
      %1700 = vmatprep.subr.bf16.mxu0 0
      %1701 = vmatpush2.bf16.msra.mxu0 0
      %1702 = vmatprep.subr.bf16.mxu0 0
      %1703 = vmatpush2.bf16.msra.mxu0 0
      %1704 = vmatprep.subr.bf16.mxu0 0
      %1705 = vmatpush2.bf16.msra.mxu0 0
      %1706 = vmatprep.subr.bf16.mxu0 0
      %1707 = vmatpush2.bf16.msra.mxu0 0
      %1708 = vmatprep.subr.bf16.mxu0 0
      %1709 = vmatpush2.bf16.msra.mxu0 0
      %1710 = vmatprep.subr.bf16.mxu0 0
      %1711 = vmatpush2.bf16.msra.mxu0 0
      %1712 = vmatprep.subr.bf16.mxu0 0
      %1713 = vmatpush2.bf16.msra.mxu0 0
      %1714 = vmatprep.mubr.bf16.mxu0 0
      %1715 = vmatmul.mubr.bf16.gmra.mxu0 %v1601
      %v1716 = vpop.f32.mrf.mxu0
      %v1717 = vadd.f32 0.0, %v1716
      %v1718 = vpop.f32.mrf.mxu0
      %v1719 = vpop.f32.mrf.mxu0
      %v1720 = vadd.f32 0.0, %v1719
      %v1721 = vpop.f32.mrf.mxu0
      %1722 = vmatprep.mubr.bf16.mxu0 0
      %1723 = vmatmul.mubr.bf16.gmra.mxu0 %v1602
      %v1724 = vpop.f32.mrf.mxu0
      %v1725 = vadd.f32 0.0, %v1724
      %v1726 = vpop.f32.mrf.mxu0
      %v1727 = vpop.f32.mrf.mxu0
      %v1728 = vadd.f32 0.0, %v1727
      %v1729 = vpop.f32.mrf.mxu0
      %1730 = vmatprep.mubr.bf16.mxu0 0
      %1731 = vmatmul.mubr.bf16.gmra.mxu0 %v1603
      %v1732 = vpop.f32.mrf.mxu0
      %v1733 = vadd.f32 0.0, %v1732
      %v1734 = vpop.f32.mrf.mxu0
      %v1735 = vpop.f32.mrf.mxu0
      %v1736 = vadd.f32 0.0, %v1735
      %v1737 = vpop.f32.mrf.mxu0
      %1738 = vmatprep.mubr.bf16.mxu0 0
      %1739 = vmatmul.mubr.bf16.gmra.mxu0 %v1604
      %v1740 = vpop.f32.mrf.mxu0
      %v1741 = vadd.f32 0.0, %v1740
      %v1742 = vpop.f32.mrf.mxu0
      %v1743 = vpop.f32.mrf.mxu0
      %v1744 = vadd.f32 0.0, %v1743
      %v1745 = vpop.f32.mrf.mxu0
      %1746 = vmatprep.mubr.bf16.mxu0 0
      %1747 = vmatmul.mubr.bf16.gmra.mxu0 %v1605
      %v1748 = vpop.f32.mrf.mxu0
      %v1749 = vadd.f32 0.0, %v1748
      %v1750 = vpop.f32.mrf.mxu0
      %v1751 = vpop.f32.mrf.mxu0
      %v1752 = vadd.f32 0.0, %v1751
      %v1753 = vpop.f32.mrf.mxu0
      %1754 = vmatprep.mubr.bf16.mxu0 0
      %1755 = vmatmul.mubr.bf16.gmra.mxu0 %v1606
      %v1756 = vpop.f32.mrf.mxu0
      %v1757 = vadd.f32 0.0, %v1756
      %v1758 = vpop.f32.mrf.mxu0
      %v1759 = vpop.f32.mrf.mxu0
      %v1760 = vadd.f32 0.0, %v1759
      %v1761 = vpop.f32.mrf.mxu0
      %1762 = vmatprep.mubr.bf16.mxu0 0
      %1763 = vmatmul.mubr.bf16.gmra.mxu0 %v1607
      %v1764 = vpop.f32.mrf.mxu0
      %v1765 = vadd.f32 0.0, %v1764
      %v1766 = vpop.f32.mrf.mxu0
      %v1767 = vpop.f32.mrf.mxu0
      %v1768 = vadd.f32 0.0, %v1767
      %v1769 = vpop.f32.mrf.mxu0
      %1770 = vmatprep.mubr.bf16.mxu0 0
      %1771 = vmatmul.mubr.bf16.gmra.mxu0 %v1608
      %v1772 = vpop.f32.mrf.mxu0
      %v1773 = vadd.f32 0.0, %v1772
      %v1774 = vpop.f32.mrf.mxu0
      %v1775 = vpop.f32.mrf.mxu0
      %v1776 = vadd.f32 0.0, %v1775
      %v1777 = vpop.f32.mrf.mxu0
      %1778 = vmatprep.mubr.bf16.mxu0 0
      %1779 = vmatmul.mubr.bf16.gmra.mxu0 %v1609
      %v1780 = vpop.f32.mrf.mxu0
      %v1781 = vadd.f32 0.0, %v1780
      %v1782 = vpop.f32.mrf.mxu0
      %v1783 = vpop.f32.mrf.mxu0
      %v1784 = vadd.f32 0.0, %v1783
      %v1785 = vpop.f32.mrf.mxu0
      %1786 = vmatprep.mubr.bf16.mxu0 0
      %1787 = vmatmul.mubr.bf16.gmra.mxu0 %v1610
      %v1788 = vpop.f32.mrf.mxu0
      %v1789 = vadd.f32 0.0, %v1788
      %v1790 = vpop.f32.mrf.mxu0
      %v1791 = vpop.f32.mrf.mxu0
      %v1792 = vadd.f32 0.0, %v1791
      %v1793 = vpop.f32.mrf.mxu0
      %1794 = vmatprep.mubr.bf16.mxu0 0
      %1795 = vmatmul.mubr.bf16.gmra.mxu0 %v1611
      %v1796 = vpop.f32.mrf.mxu0
      %v1797 = vadd.f32 0.0, %v1796
      %v1798 = vpop.f32.mrf.mxu0
      %v1799 = vpop.f32.mrf.mxu0
      %v1800 = vadd.f32 0.0, %v1799
      %v1801 = vpop.f32.mrf.mxu0
      %1802 = vmatprep.mubr.bf16.mxu0 0
      %1803 = vmatmul.mubr.bf16.gmra.mxu0 %v1612
      %v1804 = vpop.f32.mrf.mxu0
      %v1805 = vadd.f32 0.0, %v1804
      %v1806 = vpop.f32.mrf.mxu0
      %v1807 = vpop.f32.mrf.mxu0
      %v1808 = vadd.f32 0.0, %v1807
      %v1809 = vpop.f32.mrf.mxu0
      %1810 = vmatprep.mubr.bf16.mxu0 0
      %1811 = vmatmul.mubr.bf16.gmra.mxu0 %v1613
      %v1812 = vpop.f32.mrf.mxu0
      %v1813 = vadd.f32 0.0, %v1812
      %v1814 = vpop.f32.mrf.mxu0
      %v1815 = vpop.f32.mrf.mxu0
      %v1816 = vadd.f32 0.0, %v1815
      %v1817 = vpop.f32.mrf.mxu0
      %1818 = vmatprep.mubr.bf16.mxu0 0
      %1819 = vmatmul.mubr.bf16.gmra.mxu0 %v1614
      %v1820 = vpop.f32.mrf.mxu0
      %v1821 = vadd.f32 0.0, %v1820
      %v1822 = vpop.f32.mrf.mxu0
      %v1823 = vpop.f32.mrf.mxu0
      %v1824 = vadd.f32 0.0, %v1823
      %v1825 = vpop.f32.mrf.mxu0
      %1826 = vmatprep.mubr.bf16.mxu0 0
      %1827 = vmatmul.mubr.bf16.gmra.mxu0 %v1615
      %v1828 = vpop.f32.mrf.mxu0
      %v1829 = vadd.f32 0.0, %v1828
      %v1830 = vpop.f32.mrf.mxu0
      %v1831 = vpop.f32.mrf.mxu0
      %v1832 = vadd.f32 0.0, %v1831
      %v1833 = vpop.f32.mrf.mxu0
      %1834 = vmatprep.mubr.bf16.mxu0 0
      %1835 = vmatmul.mubr.bf16.gmra.mxu0 %v1616
      %v1836 = vpop.f32.mrf.mxu0
      %v1837 = vadd.f32 0.0, %v1836
      %v1838 = vpop.f32.mrf.mxu0
      %v1839 = vpop.f32.mrf.mxu0
      %v1840 = vadd.f32 0.0, %v1839
      %v1841 = vpop.f32.mrf.mxu0
      %1842 = vdwg.mxu0
      %v1843 = vadd.f32 %v1411, %v1717
      %v1844 = vadd.f32 %v1414, %v1720
      %v1845 = vadd.f32 %v1419, %v1725
      %v1846 = vadd.f32 %v1422, %v1728
      %v1847 = vadd.f32 %v1427, %v1733
      %v1848 = vadd.f32 %v1430, %v1736
      %v1849 = vadd.f32 %v1435, %v1741
      %v1850 = vadd.f32 %v1438, %v1744
      %v1851 = vadd.f32 %v1443, %v1749
      %v1852 = vadd.f32 %v1446, %v1752
      %v1853 = vadd.f32 %v1451, %v1757
      %v1854 = vadd.f32 %v1454, %v1760
      %v1855 = vadd.f32 %v1459, %v1765
      %v1856 = vadd.f32 %v1462, %v1768
      %v1857 = vadd.f32 %v1467, %v1773
      %v1858 = vadd.f32 %v1470, %v1776
      %v1859 = vadd.f32 %v1475, %v1781
      %v1860 = vadd.f32 %v1478, %v1784
      %v1861 = vadd.f32 %v1483, %v1789
      %v1862 = vadd.f32 %v1486, %v1792
      %v1863 = vadd.f32 %v1491, %v1797
      %v1864 = vadd.f32 %v1494, %v1800
      %v1865 = vadd.f32 %v1499, %v1805
      %v1866 = vadd.f32 %v1502, %v1808
      %v1867 = vadd.f32 %v1507, %v1813
      %v1868 = vadd.f32 %v1510, %v1816
      %v1869 = vadd.f32 %v1515, %v1821
      %v1870 = vadd.f32 %v1518, %v1824
      %v1871 = vadd.f32 %v1523, %v1829
      %v1872 = vadd.f32 %v1526, %v1832
      %v1873 = vadd.f32 %v1531, %v1837
      %v1874 = vadd.f32 %v1534, %v1840
      %v1875 = vld [vmem:[#allocation2 + $0x17] sm:$0xff]
      %v1876 = vld [vmem:[#allocation2 + $0x1f] sm:$0xff]
      %v1877 = vld [vmem:[#allocation2 + $0x27] sm:$0xff]
      %v1878 = vld [vmem:[#allocation2 + $0x2f] sm:$0xff]
      %v1879 = vld [vmem:[#allocation2 + $0x37] sm:$0xff]
      %v1880 = vld [vmem:[#allocation2 + $0x3f] sm:$0xff]
      %v1881 = vld [vmem:[#allocation2 + $0x47] sm:$0xff]
      %v1882 = vld [vmem:[#allocation2 + $0x4f] sm:$0xff]
      %v1883 = vld [vmem:[#allocation2 + $0x57] sm:$0xff]
      %v1884 = vld [vmem:[#allocation2 + $0x5f] sm:$0xff]
      %v1885 = vld [vmem:[#allocation2 + $0x67] sm:$0xff]
      %v1886 = vld [vmem:[#allocation2 + $0x6f] sm:$0xff]
      %v1887 = vld [vmem:[#allocation2 + $0x77] sm:$0xff]
      %v1888 = vld [vmem:[#allocation2 + $0x7f] sm:$0xff]
      %v1889 = vld [vmem:[#allocation2 + $0x87] sm:$0xff]
      %v1890 = vld [vmem:[#allocation2 + $0x8f] sm:$0xff]
      %v1891 = vld [vmem:[#allocation2 + $0x97] sm:$0xff]
      %v1892 = vld [vmem:[#allocation2 + $0x9f] sm:$0xff]
      %v1893 = vld [vmem:[#allocation2 + $0xa7] sm:$0xff]
      %v1894 = vld [vmem:[#allocation2 + $0xaf] sm:$0xff]
      %v1895 = vld [vmem:[#allocation2 + $0xb7] sm:$0xff]
      %v1896 = vld [vmem:[#allocation2 + $0xbf] sm:$0xff]
      %v1897 = vld [vmem:[#allocation2 + $0xc7] sm:$0xff]
      %v1898 = vld [vmem:[#allocation2 + $0xcf] sm:$0xff]
      %v1899 = vld [vmem:[#allocation2 + $0xd7] sm:$0xff]
      %v1900 = vld [vmem:[#allocation2 + $0xdf] sm:$0xff]
      %v1901 = vld [vmem:[#allocation2 + $0xe7] sm:$0xff]
      %v1902 = vld [vmem:[#allocation2 + $0xef] sm:$0xff]
      %v1903 = vld [vmem:[#allocation2 + $0xf7] sm:$0xff]
      %v1904 = vld [vmem:[#allocation2 + $0xff] sm:$0xff]
      %v1905 = vld [vmem:[#allocation2 + $0x107] sm:$0xff]
      %v1906 = vld [vmem:[#allocation2 + $0x10f] sm:$0xff]
      %v1907 = vsel %vm894, %v1875, 0.0
      %v1908 = vsel %vm895, %v1876, 0.0
      %v1909 = vsel %vm896, %v1877, 0.0
      %v1910 = vsel %vm897, %v1878, 0.0
      %v1911 = vsel %vm898, %v1879, 0.0
      %v1912 = vsel %vm899, %v1880, 0.0
      %v1913 = vsel %vm900, %v1881, 0.0
      %v1914 = vsel %vm901, %v1882, 0.0
      %v1915 = vsel %vm902, %v1883, 0.0
      %v1916 = vsel %vm903, %v1884, 0.0
      %v1917 = vsel %vm904, %v1885, 0.0
      %v1918 = vsel %vm905, %v1886, 0.0
      %v1919 = vsel %vm906, %v1887, 0.0
      %v1920 = vsel %vm907, %v1888, 0.0
      %v1921 = vsel %vm908, %v1889, 0.0
      %v1922 = vsel %vm909, %v1890, 0.0
      %v1923 = vsel %vm910, %v1891, 0.0
      %v1924 = vsel %vm911, %v1892, 0.0
      %v1925 = vsel %vm912, %v1893, 0.0
      %v1926 = vsel %vm913, %v1894, 0.0
      %v1927 = vsel %vm914, %v1895, 0.0
      %v1928 = vsel %vm915, %v1896, 0.0
      %v1929 = vsel %vm916, %v1897, 0.0
      %v1930 = vsel %vm917, %v1898, 0.0
      %v1931 = vsel %vm918, %v1899, 0.0
      %v1932 = vsel %vm919, %v1900, 0.0
      %v1933 = vsel %vm920, %v1901, 0.0
      %v1934 = vsel %vm921, %v1902, 0.0
      %v1935 = vsel %vm922, %v1903, 0.0
      %v1936 = vsel %vm923, %v1904, 0.0
      %v1937 = vsel %vm924, %v1905, 0.0
      %v1938 = vsel %vm925, %v1906, 0.0
      %v1939 = vpack.c.bf16 %v1908, %v1907
      %v1940 = vpack.c.bf16 %v1910, %v1909
      %v1941 = vpack.c.bf16 %v1912, %v1911
      %v1942 = vpack.c.bf16 %v1914, %v1913
      %v1943 = vpack.c.bf16 %v1916, %v1915
      %v1944 = vpack.c.bf16 %v1918, %v1917
      %v1945 = vpack.c.bf16 %v1920, %v1919
      %v1946 = vpack.c.bf16 %v1922, %v1921
      %v1947 = vpack.c.bf16 %v1924, %v1923
      %v1948 = vpack.c.bf16 %v1926, %v1925
      %v1949 = vpack.c.bf16 %v1928, %v1927
      %v1950 = vpack.c.bf16 %v1930, %v1929
      %v1951 = vpack.c.bf16 %v1932, %v1931
      %v1952 = vpack.c.bf16 %v1934, %v1933
      %v1953 = vpack.c.bf16 %v1936, %v1935
      %v1954 = vpack.c.bf16 %v1938, %v1937
      %s1955 = scalar_lea.vmem %s3, 192
      %v1956 = vld [vmem:[%s1955] sm:$0xf]
      %v1957 = vld [vmem:[%s1955 + $0x4] sm:$0xf]
      %v1958 = vld [vmem:[%s1955 + $0x8] sm:$0xf]
      %v1959 = vld [vmem:[%s1955 + $0xc] sm:$0xf]
      %v1960 = vld [vmem:[%s1955 + $0x10] sm:$0xf]
      %v1961 = vld [vmem:[%s1955 + $0x14] sm:$0xf]
      %v1962 = vld [vmem:[%s1955 + $0x18] sm:$0xf]
      %v1963 = vld [vmem:[%s1955 + $0x1c] sm:$0xf]
      %v1964 = vld [vmem:[%s1955 + $0x20] sm:$0xf]
      %v1965 = vld [vmem:[%s1955 + $0x24] sm:$0xf]
      %v1966 = vld [vmem:[%s1955 + $0x28] sm:$0xf]
      %v1967 = vld [vmem:[%s1955 + $0x2c] sm:$0xf]
      %v1968 = vld [vmem:[%s1955 + $0x30] sm:$0xf]
      %v1969 = vld [vmem:[%s1955 + $0x34] sm:$0xf]
      %v1970 = vld [vmem:[%s1955 + $0x38] sm:$0xf]
      %v1971 = vld [vmem:[%s1955 + $0x3c] sm:$0xf]
      %v1988 = vunpack.c.l.b16 %v1956
      %v1989 = vunpack.c.l.b16 %v1957
      %v1990 = vunpack.c.l.b16 %v1958
      %v1991 = vunpack.c.l.b16 %v1959
      %v1992 = vunpack.c.l.b16 %v1960
      %v1993 = vunpack.c.l.b16 %v1961
      %v1994 = vunpack.c.l.b16 %v1962
      %v1995 = vunpack.c.l.b16 %v1963
      %v1996 = vunpack.c.l.b16 %v1964
      %v1997 = vunpack.c.l.b16 %v1965
      %v1998 = vunpack.c.l.b16 %v1966
      %v1999 = vunpack.c.l.b16 %v1967
      %v2000 = vunpack.c.l.b16 %v1968
      %v2001 = vunpack.c.l.b16 %v1969
      %v2002 = vunpack.c.l.b16 %v1970
      %v2003 = vunpack.c.l.b16 %v1971
      %v2004 = vpack.c.b16 %v1989, %v1988
      %v2005 = vpack.c.b16 %v1991, %v1990
      %v2006 = vpack.c.b16 %v1993, %v1992
      %v2007 = vpack.c.b16 %v1995, %v1994
      %v2008 = vpack.c.b16 %v1997, %v1996
      %v2009 = vpack.c.b16 %v1999, %v1998
      %v2010 = vpack.c.b16 %v2001, %v2000
      %v2011 = vpack.c.b16 %v2003, %v2002
      %2020 = vmatprep.subr.bf16.mxu0 0
      %2021 = vmatpush1.bf16.msra.mxu0 %v2011
      %2022 = vmatprep.subr.bf16.mxu0 0
      %2023 = vmatpush1.bf16.msra.mxu0 %v2010
      %2024 = vmatprep.subr.bf16.mxu0 0
      %2025 = vmatpush1.bf16.msra.mxu0 %v2009
      %2026 = vmatprep.subr.bf16.mxu0 0
      %2027 = vmatpush1.bf16.msra.mxu0 %v2008
      %2028 = vmatprep.subr.bf16.mxu0 0
      %2029 = vmatpush1.bf16.msra.mxu0 %v2007
      %2030 = vmatprep.subr.bf16.mxu0 0
      %2031 = vmatpush1.bf16.msra.mxu0 %v2006
      %2032 = vmatprep.subr.bf16.mxu0 0
      %2033 = vmatpush1.bf16.msra.mxu0 %v2005
      %2034 = vmatprep.subr.bf16.mxu0 0
      %2035 = vmatpush1.bf16.msra.mxu0 %v2004
      %2036 = vmatprep.subr.bf16.mxu0 0
      %2037 = vmatpush2.bf16.msra.mxu0 0
      %2038 = vmatprep.subr.bf16.mxu0 0
      %2039 = vmatpush2.bf16.msra.mxu0 0
      %2040 = vmatprep.subr.bf16.mxu0 0
      %2041 = vmatpush2.bf16.msra.mxu0 0
      %2042 = vmatprep.subr.bf16.mxu0 0
      %2043 = vmatpush2.bf16.msra.mxu0 0
      %2044 = vmatprep.subr.bf16.mxu0 0
      %2045 = vmatpush2.bf16.msra.mxu0 0
      %2046 = vmatprep.subr.bf16.mxu0 0
      %2047 = vmatpush2.bf16.msra.mxu0 0
      %2048 = vmatprep.subr.bf16.mxu0 0
      %2049 = vmatpush2.bf16.msra.mxu0 0
      %2050 = vmatprep.subr.bf16.mxu0 0
      %2051 = vmatpush2.bf16.msra.mxu0 0
      %2052 = vmatprep.mubr.bf16.mxu0 0
      %2053 = vmatmul.mubr.bf16.gmra.mxu0 %v1939
      %v2054 = vpop.f32.mrf.mxu0
      %v2055 = vadd.f32 0.0, %v2054
      %v2056 = vpop.f32.mrf.mxu0
      %v2057 = vpop.f32.mrf.mxu0
      %v2058 = vadd.f32 0.0, %v2057
      %v2059 = vpop.f32.mrf.mxu0
      %2060 = vmatprep.mubr.bf16.mxu0 0
      %2061 = vmatmul.mubr.bf16.gmra.mxu0 %v1940
      %v2062 = vpop.f32.mrf.mxu0
      %v2063 = vadd.f32 0.0, %v2062
      %v2064 = vpop.f32.mrf.mxu0
      %v2065 = vpop.f32.mrf.mxu0
      %v2066 = vadd.f32 0.0, %v2065
      %v2067 = vpop.f32.mrf.mxu0
      %2068 = vmatprep.mubr.bf16.mxu0 0
      %2069 = vmatmul.mubr.bf16.gmra.mxu0 %v1941
      %v2070 = vpop.f32.mrf.mxu0
      %v2071 = vadd.f32 0.0, %v2070
      %v2072 = vpop.f32.mrf.mxu0
      %v2073 = vpop.f32.mrf.mxu0
      %v2074 = vadd.f32 0.0, %v2073
      %v2075 = vpop.f32.mrf.mxu0
      %2076 = vmatprep.mubr.bf16.mxu0 0
      %2077 = vmatmul.mubr.bf16.gmra.mxu0 %v1942
      %v2078 = vpop.f32.mrf.mxu0
      %v2079 = vadd.f32 0.0, %v2078
      %v2080 = vpop.f32.mrf.mxu0
      %v2081 = vpop.f32.mrf.mxu0
      %v2082 = vadd.f32 0.0, %v2081
      %v2083 = vpop.f32.mrf.mxu0
      %2084 = vmatprep.mubr.bf16.mxu0 0
      %2085 = vmatmul.mubr.bf16.gmra.mxu0 %v1943
      %v2086 = vpop.f32.mrf.mxu0
      %v2087 = vadd.f32 0.0, %v2086
      %v2088 = vpop.f32.mrf.mxu0
      %v2089 = vpop.f32.mrf.mxu0
      %v2090 = vadd.f32 0.0, %v2089
      %v2091 = vpop.f32.mrf.mxu0
      %2092 = vmatprep.mubr.bf16.mxu0 0
      %2093 = vmatmul.mubr.bf16.gmra.mxu0 %v1944
      %v2094 = vpop.f32.mrf.mxu0
      %v2095 = vadd.f32 0.0, %v2094
      %v2096 = vpop.f32.mrf.mxu0
      %v2097 = vpop.f32.mrf.mxu0
      %v2098 = vadd.f32 0.0, %v2097
      %v2099 = vpop.f32.mrf.mxu0
      %2100 = vmatprep.mubr.bf16.mxu0 0
      %2101 = vmatmul.mubr.bf16.gmra.mxu0 %v1945
      %v2102 = vpop.f32.mrf.mxu0
      %v2103 = vadd.f32 0.0, %v2102
      %v2104 = vpop.f32.mrf.mxu0
      %v2105 = vpop.f32.mrf.mxu0
      %v2106 = vadd.f32 0.0, %v2105
      %v2107 = vpop.f32.mrf.mxu0
      %2108 = vmatprep.mubr.bf16.mxu0 0
      %2109 = vmatmul.mubr.bf16.gmra.mxu0 %v1946
      %v2110 = vpop.f32.mrf.mxu0
      %v2111 = vadd.f32 0.0, %v2110
      %v2112 = vpop.f32.mrf.mxu0
      %v2113 = vpop.f32.mrf.mxu0
      %v2114 = vadd.f32 0.0, %v2113
      %v2115 = vpop.f32.mrf.mxu0
      %2116 = vmatprep.mubr.bf16.mxu0 0
      %2117 = vmatmul.mubr.bf16.gmra.mxu0 %v1947
      %v2118 = vpop.f32.mrf.mxu0
      %v2119 = vadd.f32 0.0, %v2118
      %v2120 = vpop.f32.mrf.mxu0
      %v2121 = vpop.f32.mrf.mxu0
      %v2122 = vadd.f32 0.0, %v2121
      %v2123 = vpop.f32.mrf.mxu0
      %2124 = vmatprep.mubr.bf16.mxu0 0
      %2125 = vmatmul.mubr.bf16.gmra.mxu0 %v1948
      %v2126 = vpop.f32.mrf.mxu0
      %v2127 = vadd.f32 0.0, %v2126
      %v2128 = vpop.f32.mrf.mxu0
      %v2129 = vpop.f32.mrf.mxu0
      %v2130 = vadd.f32 0.0, %v2129
      %v2131 = vpop.f32.mrf.mxu0
      %2132 = vmatprep.mubr.bf16.mxu0 0
      %2133 = vmatmul.mubr.bf16.gmra.mxu0 %v1949
      %v2134 = vpop.f32.mrf.mxu0
      %v2135 = vadd.f32 0.0, %v2134
      %v2136 = vpop.f32.mrf.mxu0
      %v2137 = vpop.f32.mrf.mxu0
      %v2138 = vadd.f32 0.0, %v2137
      %v2139 = vpop.f32.mrf.mxu0
      %2140 = vmatprep.mubr.bf16.mxu0 0
      %2141 = vmatmul.mubr.bf16.gmra.mxu0 %v1950
      %v2142 = vpop.f32.mrf.mxu0
      %v2143 = vadd.f32 0.0, %v2142
      %v2144 = vpop.f32.mrf.mxu0
      %v2145 = vpop.f32.mrf.mxu0
      %v2146 = vadd.f32 0.0, %v2145
      %v2147 = vpop.f32.mrf.mxu0
      %2148 = vmatprep.mubr.bf16.mxu0 0
      %2149 = vmatmul.mubr.bf16.gmra.mxu0 %v1951
      %v2150 = vpop.f32.mrf.mxu0
      %v2151 = vadd.f32 0.0, %v2150
      %v2152 = vpop.f32.mrf.mxu0
      %v2153 = vpop.f32.mrf.mxu0
      %v2154 = vadd.f32 0.0, %v2153
      %v2155 = vpop.f32.mrf.mxu0
      %2156 = vmatprep.mubr.bf16.mxu0 0
      %2157 = vmatmul.mubr.bf16.gmra.mxu0 %v1952
      %v2158 = vpop.f32.mrf.mxu0
      %v2159 = vadd.f32 0.0, %v2158
      %v2160 = vpop.f32.mrf.mxu0
      %v2161 = vpop.f32.mrf.mxu0
      %v2162 = vadd.f32 0.0, %v2161
      %v2163 = vpop.f32.mrf.mxu0
      %2164 = vmatprep.mubr.bf16.mxu0 0
      %2165 = vmatmul.mubr.bf16.gmra.mxu0 %v1953
      %v2166 = vpop.f32.mrf.mxu0
      %v2167 = vadd.f32 0.0, %v2166
      %v2168 = vpop.f32.mrf.mxu0
      %v2169 = vpop.f32.mrf.mxu0
      %v2170 = vadd.f32 0.0, %v2169
      %v2171 = vpop.f32.mrf.mxu0
      %2172 = vmatprep.mubr.bf16.mxu0 0
      %2173 = vmatmul.mubr.bf16.gmra.mxu0 %v1954
      %v2174 = vpop.f32.mrf.mxu0
      %v2175 = vadd.f32 0.0, %v2174
      %v2176 = vpop.f32.mrf.mxu0
      %v2177 = vpop.f32.mrf.mxu0
      %v2178 = vadd.f32 0.0, %v2177
      %v2179 = vpop.f32.mrf.mxu0
      %2180 = vdwg.mxu0
      %v2181 = vadd.f32 %v1843, %v2055
      %v2182 = vadd.f32 %v1844, %v2058
      %v2183 = vadd.f32 %v1845, %v2063
      %v2184 = vadd.f32 %v1846, %v2066
      %v2185 = vadd.f32 %v1847, %v2071
      %v2186 = vadd.f32 %v1848, %v2074
      %v2187 = vadd.f32 %v1849, %v2079
      %v2188 = vadd.f32 %v1850, %v2082
      %v2189 = vadd.f32 %v1851, %v2087
      %v2190 = vadd.f32 %v1852, %v2090
      %v2191 = vadd.f32 %v1853, %v2095
      %v2192 = vadd.f32 %v1854, %v2098
      %v2193 = vadd.f32 %v1855, %v2103
      %v2194 = vadd.f32 %v1856, %v2106
      %v2195 = vadd.f32 %v1857, %v2111
      %v2196 = vadd.f32 %v1858, %v2114
      %v2197 = vadd.f32 %v1859, %v2119
      %v2198 = vadd.f32 %v1860, %v2122
      %v2199 = vadd.f32 %v1861, %v2127
      %v2200 = vadd.f32 %v1862, %v2130
      %v2201 = vadd.f32 %v1863, %v2135
      %v2202 = vadd.f32 %v1864, %v2138
      %v2203 = vadd.f32 %v1865, %v2143
      %v2204 = vadd.f32 %v1866, %v2146
      %v2205 = vadd.f32 %v1867, %v2151
      %v2206 = vadd.f32 %v1868, %v2154
      %v2207 = vadd.f32 %v1869, %v2159
      %v2208 = vadd.f32 %v1870, %v2162
      %v2209 = vadd.f32 %v1871, %v2167
      %v2210 = vadd.f32 %v1872, %v2170
      %v2211 = vadd.f32 %v1873, %v2175
      %v2212 = vadd.f32 %v1874, %v2178
      %v2213 = vld [vmem:[#allocation2 + $0x18] sm:$0xff]
      %v2214 = vld [vmem:[#allocation2 + $0x20] sm:$0xff]
      %v2215 = vld [vmem:[#allocation2 + $0x28] sm:$0xff]
      %v2216 = vld [vmem:[#allocation2 + $0x30] sm:$0xff]
      %v2217 = vld [vmem:[#allocation2 + $0x38] sm:$0xff]
      %v2218 = vld [vmem:[#allocation2 + $0x40] sm:$0xff]
      %v2219 = vld [vmem:[#allocation2 + $0x48] sm:$0xff]
      %v2220 = vld [vmem:[#allocation2 + $0x50] sm:$0xff]
      %v2221 = vld [vmem:[#allocation2 + $0x58] sm:$0xff]
      %v2222 = vld [vmem:[#allocation2 + $0x60] sm:$0xff]
      %v2223 = vld [vmem:[#allocation2 + $0x68] sm:$0xff]
      %v2224 = vld [vmem:[#allocation2 + $0x70] sm:$0xff]
      %v2225 = vld [vmem:[#allocation2 + $0x78] sm:$0xff]
      %v2226 = vld [vmem:[#allocation2 + $0x80] sm:$0xff]
      %v2227 = vld [vmem:[#allocation2 + $0x88] sm:$0xff]
      %v2228 = vld [vmem:[#allocation2 + $0x90] sm:$0xff]
      %v2229 = vld [vmem:[#allocation2 + $0x98] sm:$0xff]
      %v2230 = vld [vmem:[#allocation2 + $0xa0] sm:$0xff]
      %v2231 = vld [vmem:[#allocation2 + $0xa8] sm:$0xff]
      %v2232 = vld [vmem:[#allocation2 + $0xb0] sm:$0xff]
      %v2233 = vld [vmem:[#allocation2 + $0xb8] sm:$0xff]
      %v2234 = vld [vmem:[#allocation2 + $0xc0] sm:$0xff]
      %v2235 = vld [vmem:[#allocation2 + $0xc8] sm:$0xff]
      %v2236 = vld [vmem:[#allocation2 + $0xd0] sm:$0xff]
      %v2237 = vld [vmem:[#allocation2 + $0xd8] sm:$0xff]
      %v2238 = vld [vmem:[#allocation2 + $0xe0] sm:$0xff]
      %v2239 = vld [vmem:[#allocation2 + $0xe8] sm:$0xff]
      %v2240 = vld [vmem:[#allocation2 + $0xf0] sm:$0xff]
      %v2241 = vld [vmem:[#allocation2 + $0xf8] sm:$0xff]
      %v2242 = vld [vmem:[#allocation2 + $0x100] sm:$0xff]
      %v2243 = vld [vmem:[#allocation2 + $0x108] sm:$0xff]
      %v2244 = vld [vmem:[#allocation2 + $0x110] sm:$0xff]
      %v2245 = vpack.c.bf16 %v2214, %v2213
      %v2246 = vpack.c.bf16 %v2216, %v2215
      %v2247 = vpack.c.bf16 %v2218, %v2217
      %v2248 = vpack.c.bf16 %v2220, %v2219
      %v2249 = vpack.c.bf16 %v2222, %v2221
      %v2250 = vpack.c.bf16 %v2224, %v2223
      %v2251 = vpack.c.bf16 %v2226, %v2225
      %v2252 = vpack.c.bf16 %v2228, %v2227
      %v2253 = vpack.c.bf16 %v2230, %v2229
      %v2254 = vpack.c.bf16 %v2232, %v2231
      %v2255 = vpack.c.bf16 %v2234, %v2233
      %v2256 = vpack.c.bf16 %v2236, %v2235
      %v2257 = vpack.c.bf16 %v2238, %v2237
      %v2258 = vpack.c.bf16 %v2240, %v2239
      %v2259 = vpack.c.bf16 %v2242, %v2241
      %v2260 = vpack.c.bf16 %v2244, %v2243
      %s2261 = scalar_lea.vmem %s3, 256
      %v2262 = vld [vmem:[%s2261] sm:$0xf]
      %v2263 = vld [vmem:[%s2261 + $0x4] sm:$0xf]
      %v2264 = vld [vmem:[%s2261 + $0x8] sm:$0xf]
      %v2265 = vld [vmem:[%s2261 + $0xc] sm:$0xf]
      %v2266 = vld [vmem:[%s2261 + $0x10] sm:$0xf]
      %v2267 = vld [vmem:[%s2261 + $0x14] sm:$0xf]
      %v2268 = vld [vmem:[%s2261 + $0x18] sm:$0xf]
      %v2269 = vld [vmem:[%s2261 + $0x1c] sm:$0xf]
      %v2270 = vld [vmem:[%s2261 + $0x20] sm:$0xf]
      %v2271 = vld [vmem:[%s2261 + $0x24] sm:$0xf]
      %v2272 = vld [vmem:[%s2261 + $0x28] sm:$0xf]
      %v2273 = vld [vmem:[%s2261 + $0x2c] sm:$0xf]
      %v2274 = vld [vmem:[%s2261 + $0x30] sm:$0xf]
      %v2275 = vld [vmem:[%s2261 + $0x34] sm:$0xf]
      %v2276 = vld [vmem:[%s2261 + $0x38] sm:$0xf]
      %v2277 = vld [vmem:[%s2261 + $0x3c] sm:$0xf]
      %v2294 = vunpack.c.l.b16 %v2262
      %v2295 = vunpack.c.l.b16 %v2263
      %v2296 = vunpack.c.l.b16 %v2264
      %v2297 = vunpack.c.l.b16 %v2265
      %v2298 = vunpack.c.l.b16 %v2266
      %v2299 = vunpack.c.l.b16 %v2267
      %v2300 = vunpack.c.l.b16 %v2268
      %v2301 = vunpack.c.l.b16 %v2269
      %v2302 = vunpack.c.l.b16 %v2270
      %v2303 = vunpack.c.l.b16 %v2271
      %v2304 = vunpack.c.l.b16 %v2272
      %v2305 = vunpack.c.l.b16 %v2273
      %v2306 = vunpack.c.l.b16 %v2274
      %v2307 = vunpack.c.l.b16 %v2275
      %v2308 = vunpack.c.l.b16 %v2276
      %v2309 = vunpack.c.l.b16 %v2277
      %v2310 = vpack.c.b16 %v2295, %v2294
      %v2311 = vpack.c.b16 %v2297, %v2296
      %v2312 = vpack.c.b16 %v2299, %v2298
      %v2313 = vpack.c.b16 %v2301, %v2300
      %v2314 = vpack.c.b16 %v2303, %v2302
      %v2315 = vpack.c.b16 %v2305, %v2304
      %v2316 = vpack.c.b16 %v2307, %v2306
      %v2317 = vpack.c.b16 %v2309, %v2308
      %2326 = vmatprep.subr.bf16.mxu0 0
      %2327 = vmatpush1.bf16.msra.mxu0 %v2317
      %2328 = vmatprep.subr.bf16.mxu0 0
      %2329 = vmatpush1.bf16.msra.mxu0 %v2316
      %2330 = vmatprep.subr.bf16.mxu0 0
      %2331 = vmatpush1.bf16.msra.mxu0 %v2315
      %2332 = vmatprep.subr.bf16.mxu0 0
      %2333 = vmatpush1.bf16.msra.mxu0 %v2314
      %2334 = vmatprep.subr.bf16.mxu0 0
      %2335 = vmatpush1.bf16.msra.mxu0 %v2313
      %2336 = vmatprep.subr.bf16.mxu0 0
      %2337 = vmatpush1.bf16.msra.mxu0 %v2312
      %2338 = vmatprep.subr.bf16.mxu0 0
      %2339 = vmatpush1.bf16.msra.mxu0 %v2311
      %2340 = vmatprep.subr.bf16.mxu0 0
      %2341 = vmatpush1.bf16.msra.mxu0 %v2310
      %2342 = vmatprep.subr.bf16.mxu0 0
      %2343 = vmatpush2.bf16.msra.mxu0 0
      %2344 = vmatprep.subr.bf16.mxu0 0
      %2345 = vmatpush2.bf16.msra.mxu0 0
      %2346 = vmatprep.subr.bf16.mxu0 0
      %2347 = vmatpush2.bf16.msra.mxu0 0
      %2348 = vmatprep.subr.bf16.mxu0 0
      %2349 = vmatpush2.bf16.msra.mxu0 0
      %2350 = vmatprep.subr.bf16.mxu0 0
      %2351 = vmatpush2.bf16.msra.mxu0 0
      %2352 = vmatprep.subr.bf16.mxu0 0
      %2353 = vmatpush2.bf16.msra.mxu0 0
      %2354 = vmatprep.subr.bf16.mxu0 0
      %2355 = vmatpush2.bf16.msra.mxu0 0
      %2356 = vmatprep.subr.bf16.mxu0 0
      %2357 = vmatpush2.bf16.msra.mxu0 0
      %2358 = vmatprep.mubr.bf16.mxu0 0
      %2359 = vmatmul.mubr.bf16.gmra.mxu0 %v2245
      %v2360 = vpop.f32.mrf.mxu0
      %v2361 = vadd.f32 0.0, %v2360
      %v2362 = vpop.f32.mrf.mxu0
      %v2363 = vpop.f32.mrf.mxu0
      %v2364 = vadd.f32 0.0, %v2363
      %v2365 = vpop.f32.mrf.mxu0
      %2366 = vmatprep.mubr.bf16.mxu0 0
      %2367 = vmatmul.mubr.bf16.gmra.mxu0 %v2246
      %v2368 = vpop.f32.mrf.mxu0
      %v2369 = vadd.f32 0.0, %v2368
      %v2370 = vpop.f32.mrf.mxu0
      %v2371 = vpop.f32.mrf.mxu0
      %v2372 = vadd.f32 0.0, %v2371
      %v2373 = vpop.f32.mrf.mxu0
      %2374 = vmatprep.mubr.bf16.mxu0 0
      %2375 = vmatmul.mubr.bf16.gmra.mxu0 %v2247
      %v2376 = vpop.f32.mrf.mxu0
      %v2377 = vadd.f32 0.0, %v2376
      %v2378 = vpop.f32.mrf.mxu0
      %v2379 = vpop.f32.mrf.mxu0
      %v2380 = vadd.f32 0.0, %v2379
      %v2381 = vpop.f32.mrf.mxu0
      %2382 = vmatprep.mubr.bf16.mxu0 0
      %2383 = vmatmul.mubr.bf16.gmra.mxu0 %v2248
      %v2384 = vpop.f32.mrf.mxu0
      %v2385 = vadd.f32 0.0, %v2384
      %v2386 = vpop.f32.mrf.mxu0
      %v2387 = vpop.f32.mrf.mxu0
      %v2388 = vadd.f32 0.0, %v2387
      %v2389 = vpop.f32.mrf.mxu0
      %2390 = vmatprep.mubr.bf16.mxu0 0
      %2391 = vmatmul.mubr.bf16.gmra.mxu0 %v2249
      %v2392 = vpop.f32.mrf.mxu0
      %v2393 = vadd.f32 0.0, %v2392
      %v2394 = vpop.f32.mrf.mxu0
      %v2395 = vpop.f32.mrf.mxu0
      %v2396 = vadd.f32 0.0, %v2395
      %v2397 = vpop.f32.mrf.mxu0
      %2398 = vmatprep.mubr.bf16.mxu0 0
      %2399 = vmatmul.mubr.bf16.gmra.mxu0 %v2250
      %v2400 = vpop.f32.mrf.mxu0
      %v2401 = vadd.f32 0.0, %v2400
      %v2402 = vpop.f32.mrf.mxu0
      %v2403 = vpop.f32.mrf.mxu0
      %v2404 = vadd.f32 0.0, %v2403
      %v2405 = vpop.f32.mrf.mxu0
      %2406 = vmatprep.mubr.bf16.mxu0 0
      %2407 = vmatmul.mubr.bf16.gmra.mxu0 %v2251
      %v2408 = vpop.f32.mrf.mxu0
      %v2409 = vadd.f32 0.0, %v2408
      %v2410 = vpop.f32.mrf.mxu0
      %v2411 = vpop.f32.mrf.mxu0
      %v2412 = vadd.f32 0.0, %v2411
      %v2413 = vpop.f32.mrf.mxu0
      %2414 = vmatprep.mubr.bf16.mxu0 0
      %2415 = vmatmul.mubr.bf16.gmra.mxu0 %v2252
      %v2416 = vpop.f32.mrf.mxu0
      %v2417 = vadd.f32 0.0, %v2416
      %v2418 = vpop.f32.mrf.mxu0
      %v2419 = vpop.f32.mrf.mxu0
      %v2420 = vadd.f32 0.0, %v2419
      %v2421 = vpop.f32.mrf.mxu0
      %2422 = vmatprep.mubr.bf16.mxu0 0
      %2423 = vmatmul.mubr.bf16.gmra.mxu0 %v2253
      %v2424 = vpop.f32.mrf.mxu0
      %v2425 = vadd.f32 0.0, %v2424
      %v2426 = vpop.f32.mrf.mxu0
      %v2427 = vpop.f32.mrf.mxu0
      %v2428 = vadd.f32 0.0, %v2427
      %v2429 = vpop.f32.mrf.mxu0
      %2430 = vmatprep.mubr.bf16.mxu0 0
      %2431 = vmatmul.mubr.bf16.gmra.mxu0 %v2254
      %v2432 = vpop.f32.mrf.mxu0
      %v2433 = vadd.f32 0.0, %v2432
      %v2434 = vpop.f32.mrf.mxu0
      %v2435 = vpop.f32.mrf.mxu0
      %v2436 = vadd.f32 0.0, %v2435
      %v2437 = vpop.f32.mrf.mxu0
      %2438 = vmatprep.mubr.bf16.mxu0 0
      %2439 = vmatmul.mubr.bf16.gmra.mxu0 %v2255
      %v2440 = vpop.f32.mrf.mxu0
      %v2441 = vadd.f32 0.0, %v2440
      %v2442 = vpop.f32.mrf.mxu0
      %v2443 = vpop.f32.mrf.mxu0
      %v2444 = vadd.f32 0.0, %v2443
      %v2445 = vpop.f32.mrf.mxu0
      %2446 = vmatprep.mubr.bf16.mxu0 0
      %2447 = vmatmul.mubr.bf16.gmra.mxu0 %v2256
      %v2448 = vpop.f32.mrf.mxu0
      %v2449 = vadd.f32 0.0, %v2448
      %v2450 = vpop.f32.mrf.mxu0
      %v2451 = vpop.f32.mrf.mxu0
      %v2452 = vadd.f32 0.0, %v2451
      %v2453 = vpop.f32.mrf.mxu0
      %2454 = vmatprep.mubr.bf16.mxu0 0
      %2455 = vmatmul.mubr.bf16.gmra.mxu0 %v2257
      %v2456 = vpop.f32.mrf.mxu0
      %v2457 = vadd.f32 0.0, %v2456
      %v2458 = vpop.f32.mrf.mxu0
      %v2459 = vpop.f32.mrf.mxu0
      %v2460 = vadd.f32 0.0, %v2459
      %v2461 = vpop.f32.mrf.mxu0
      %2462 = vmatprep.mubr.bf16.mxu0 0
      %2463 = vmatmul.mubr.bf16.gmra.mxu0 %v2258
      %v2464 = vpop.f32.mrf.mxu0
      %v2465 = vadd.f32 0.0, %v2464
      %v2466 = vpop.f32.mrf.mxu0
      %v2467 = vpop.f32.mrf.mxu0
      %v2468 = vadd.f32 0.0, %v2467
      %v2469 = vpop.f32.mrf.mxu0
      %2470 = vmatprep.mubr.bf16.mxu0 0
      %2471 = vmatmul.mubr.bf16.gmra.mxu0 %v2259
      %v2472 = vpop.f32.mrf.mxu0
      %v2473 = vadd.f32 0.0, %v2472
      %v2474 = vpop.f32.mrf.mxu0
      %v2475 = vpop.f32.mrf.mxu0
      %v2476 = vadd.f32 0.0, %v2475
      %v2477 = vpop.f32.mrf.mxu0
      %2478 = vmatprep.mubr.bf16.mxu0 0
      %2479 = vmatmul.mubr.bf16.gmra.mxu0 %v2260
      %v2480 = vpop.f32.mrf.mxu0
      %v2481 = vadd.f32 0.0, %v2480
      %v2482 = vpop.f32.mrf.mxu0
      %v2483 = vpop.f32.mrf.mxu0
      %v2484 = vadd.f32 0.0, %v2483
      %v2485 = vpop.f32.mrf.mxu0
      %2486 = vdwg.mxu0
      %v2487 = vadd.f32 %v2181, %v2361
      %v2488 = vadd.f32 %v2182, %v2364
      %v2489 = vadd.f32 %v2183, %v2369
      %v2490 = vadd.f32 %v2184, %v2372
      %v2491 = vadd.f32 %v2185, %v2377
      %v2492 = vadd.f32 %v2186, %v2380
      %v2493 = vadd.f32 %v2187, %v2385
      %v2494 = vadd.f32 %v2188, %v2388
      %v2495 = vadd.f32 %v2189, %v2393
      %v2496 = vadd.f32 %v2190, %v2396
      %v2497 = vadd.f32 %v2191, %v2401
      %v2498 = vadd.f32 %v2192, %v2404
      %v2499 = vadd.f32 %v2193, %v2409
      %v2500 = vadd.f32 %v2194, %v2412
      %v2501 = vadd.f32 %v2195, %v2417
      %v2502 = vadd.f32 %v2196, %v2420
      %v2503 = vadd.f32 %v2197, %v2425
      %v2504 = vadd.f32 %v2198, %v2428
      %v2505 = vadd.f32 %v2199, %v2433
      %v2506 = vadd.f32 %v2200, %v2436
      %v2507 = vadd.f32 %v2201, %v2441
      %v2508 = vadd.f32 %v2202, %v2444
      %v2509 = vadd.f32 %v2203, %v2449
      %v2510 = vadd.f32 %v2204, %v2452
      %v2511 = vadd.f32 %v2205, %v2457
      %v2512 = vadd.f32 %v2206, %v2460
      %v2513 = vadd.f32 %v2207, %v2465
      %v2514 = vadd.f32 %v2208, %v2468
      %v2515 = vadd.f32 %v2209, %v2473
      %v2516 = vadd.f32 %v2210, %v2476
      %v2517 = vadd.f32 %v2211, %v2481
      %v2518 = vadd.f32 %v2212, %v2484
      %v2519 = vld [vmem:[#allocation2 + $0x19] sm:$0xff]
      %v2520 = vld [vmem:[#allocation2 + $0x21] sm:$0xff]
      %v2521 = vld [vmem:[#allocation2 + $0x29] sm:$0xff]
      %v2522 = vld [vmem:[#allocation2 + $0x31] sm:$0xff]
      %v2523 = vld [vmem:[#allocation2 + $0x39] sm:$0xff]
      %v2524 = vld [vmem:[#allocation2 + $0x41] sm:$0xff]
      %v2525 = vld [vmem:[#allocation2 + $0x49] sm:$0xff]
      %v2526 = vld [vmem:[#allocation2 + $0x51] sm:$0xff]
      %v2527 = vld [vmem:[#allocation2 + $0x59] sm:$0xff]
      %v2528 = vld [vmem:[#allocation2 + $0x61] sm:$0xff]
      %v2529 = vld [vmem:[#allocation2 + $0x69] sm:$0xff]
      %v2530 = vld [vmem:[#allocation2 + $0x71] sm:$0xff]
      %v2531 = vld [vmem:[#allocation2 + $0x79] sm:$0xff]
      %v2532 = vld [vmem:[#allocation2 + $0x81] sm:$0xff]
      %v2533 = vld [vmem:[#allocation2 + $0x89] sm:$0xff]
      %v2534 = vld [vmem:[#allocation2 + $0x91] sm:$0xff]
      %v2535 = vld [vmem:[#allocation2 + $0x99] sm:$0xff]
      %v2536 = vld [vmem:[#allocation2 + $0xa1] sm:$0xff]
      %v2537 = vld [vmem:[#allocation2 + $0xa9] sm:$0xff]
      %v2538 = vld [vmem:[#allocation2 + $0xb1] sm:$0xff]
      %v2539 = vld [vmem:[#allocation2 + $0xb9] sm:$0xff]
      %v2540 = vld [vmem:[#allocation2 + $0xc1] sm:$0xff]
      %v2541 = vld [vmem:[#allocation2 + $0xc9] sm:$0xff]
      %v2542 = vld [vmem:[#allocation2 + $0xd1] sm:$0xff]
      %v2543 = vld [vmem:[#allocation2 + $0xd9] sm:$0xff]
      %v2544 = vld [vmem:[#allocation2 + $0xe1] sm:$0xff]
      %v2545 = vld [vmem:[#allocation2 + $0xe9] sm:$0xff]
      %v2546 = vld [vmem:[#allocation2 + $0xf1] sm:$0xff]
      %v2547 = vld [vmem:[#allocation2 + $0xf9] sm:$0xff]
      %v2548 = vld [vmem:[#allocation2 + $0x101] sm:$0xff]
      %v2549 = vld [vmem:[#allocation2 + $0x109] sm:$0xff]
      %v2550 = vld [vmem:[#allocation2 + $0x111] sm:$0xff]
      %v2551 = vsel %vm926, %v2519, 0.0
      %v2552 = vsel %vm927, %v2520, 0.0
      %v2553 = vsel %vm928, %v2521, 0.0
      %v2554 = vsel %vm929, %v2522, 0.0
      %v2555 = vsel %vm930, %v2523, 0.0
      %v2556 = vsel %vm931, %v2524, 0.0
      %v2557 = vsel %vm932, %v2525, 0.0
      %v2558 = vsel %vm933, %v2526, 0.0
      %v2559 = vsel %vm934, %v2527, 0.0
      %v2560 = vsel %vm935, %v2528, 0.0
      %v2561 = vsel %vm936, %v2529, 0.0
      %v2562 = vsel %vm937, %v2530, 0.0
      %v2563 = vsel %vm938, %v2531, 0.0
      %v2564 = vsel %vm939, %v2532, 0.0
      %v2565 = vsel %vm940, %v2533, 0.0
      %v2566 = vsel %vm941, %v2534, 0.0
      %v2567 = vsel %vm942, %v2535, 0.0
      %v2568 = vsel %vm943, %v2536, 0.0
      %v2569 = vsel %vm944, %v2537, 0.0
      %v2570 = vsel %vm945, %v2538, 0.0
      %v2571 = vsel %vm946, %v2539, 0.0
      %v2572 = vsel %vm947, %v2540, 0.0
      %v2573 = vsel %vm948, %v2541, 0.0
      %v2574 = vsel %vm949, %v2542, 0.0
      %v2575 = vsel %vm950, %v2543, 0.0
      %v2576 = vsel %vm951, %v2544, 0.0
      %v2577 = vsel %vm952, %v2545, 0.0
      %v2578 = vsel %vm953, %v2546, 0.0
      %v2579 = vsel %vm954, %v2547, 0.0
      %v2580 = vsel %vm955, %v2548, 0.0
      %v2581 = vsel %vm956, %v2549, 0.0
      %v2582 = vsel %vm957, %v2550, 0.0
      %v2583 = vpack.c.bf16 %v2552, %v2551
      %v2584 = vpack.c.bf16 %v2554, %v2553
      %v2585 = vpack.c.bf16 %v2556, %v2555
      %v2586 = vpack.c.bf16 %v2558, %v2557
      %v2587 = vpack.c.bf16 %v2560, %v2559
      %v2588 = vpack.c.bf16 %v2562, %v2561
      %v2589 = vpack.c.bf16 %v2564, %v2563
      %v2590 = vpack.c.bf16 %v2566, %v2565
      %v2591 = vpack.c.bf16 %v2568, %v2567
      %v2592 = vpack.c.bf16 %v2570, %v2569
      %v2593 = vpack.c.bf16 %v2572, %v2571
      %v2594 = vpack.c.bf16 %v2574, %v2573
      %v2595 = vpack.c.bf16 %v2576, %v2575
      %v2596 = vpack.c.bf16 %v2578, %v2577
      %v2597 = vpack.c.bf16 %v2580, %v2579
      %v2598 = vpack.c.bf16 %v2582, %v2581
      %s2599 = scalar_lea.vmem %s3, 320
      %v2600 = vld [vmem:[%s2599] sm:$0xf]
      %v2601 = vld [vmem:[%s2599 + $0x4] sm:$0xf]
      %v2602 = vld [vmem:[%s2599 + $0x8] sm:$0xf]
      %v2603 = vld [vmem:[%s2599 + $0xc] sm:$0xf]
      %v2604 = vld [vmem:[%s2599 + $0x10] sm:$0xf]
      %v2605 = vld [vmem:[%s2599 + $0x14] sm:$0xf]
      %v2606 = vld [vmem:[%s2599 + $0x18] sm:$0xf]
      %v2607 = vld [vmem:[%s2599 + $0x1c] sm:$0xf]
      %v2608 = vld [vmem:[%s2599 + $0x20] sm:$0xf]
      %v2609 = vld [vmem:[%s2599 + $0x24] sm:$0xf]
      %v2610 = vld [vmem:[%s2599 + $0x28] sm:$0xf]
      %v2611 = vld [vmem:[%s2599 + $0x2c] sm:$0xf]
      %v2612 = vld [vmem:[%s2599 + $0x30] sm:$0xf]
      %v2613 = vld [vmem:[%s2599 + $0x34] sm:$0xf]
      %v2614 = vld [vmem:[%s2599 + $0x38] sm:$0xf]
      %v2615 = vld [vmem:[%s2599 + $0x3c] sm:$0xf]
      %v2632 = vunpack.c.l.b16 %v2600
      %v2633 = vunpack.c.l.b16 %v2601
      %v2634 = vunpack.c.l.b16 %v2602
      %v2635 = vunpack.c.l.b16 %v2603
      %v2636 = vunpack.c.l.b16 %v2604
      %v2637 = vunpack.c.l.b16 %v2605
      %v2638 = vunpack.c.l.b16 %v2606
      %v2639 = vunpack.c.l.b16 %v2607
      %v2640 = vunpack.c.l.b16 %v2608
      %v2641 = vunpack.c.l.b16 %v2609
      %v2642 = vunpack.c.l.b16 %v2610
      %v2643 = vunpack.c.l.b16 %v2611
      %v2644 = vunpack.c.l.b16 %v2612
      %v2645 = vunpack.c.l.b16 %v2613
      %v2646 = vunpack.c.l.b16 %v2614
      %v2647 = vunpack.c.l.b16 %v2615
      %v2648 = vpack.c.b16 %v2633, %v2632
      %v2649 = vpack.c.b16 %v2635, %v2634
      %v2650 = vpack.c.b16 %v2637, %v2636
      %v2651 = vpack.c.b16 %v2639, %v2638
      %v2652 = vpack.c.b16 %v2641, %v2640
      %v2653 = vpack.c.b16 %v2643, %v2642
      %v2654 = vpack.c.b16 %v2645, %v2644
      %v2655 = vpack.c.b16 %v2647, %v2646
      %2664 = vmatprep.subr.bf16.mxu0 0
      %2665 = vmatpush1.bf16.msra.mxu0 %v2655
      %2666 = vmatprep.subr.bf16.mxu0 0
      %2667 = vmatpush1.bf16.msra.mxu0 %v2654
      %2668 = vmatprep.subr.bf16.mxu0 0
      %2669 = vmatpush1.bf16.msra.mxu0 %v2653
      %2670 = vmatprep.subr.bf16.mxu0 0
      %2671 = vmatpush1.bf16.msra.mxu0 %v2652
      %2672 = vmatprep.subr.bf16.mxu0 0
      %2673 = vmatpush1.bf16.msra.mxu0 %v2651
      %2674 = vmatprep.subr.bf16.mxu0 0
      %2675 = vmatpush1.bf16.msra.mxu0 %v2650
      %2676 = vmatprep.subr.bf16.mxu0 0
      %2677 = vmatpush1.bf16.msra.mxu0 %v2649
      %2678 = vmatprep.subr.bf16.mxu0 0
      %2679 = vmatpush1.bf16.msra.mxu0 %v2648
      %2680 = vmatprep.subr.bf16.mxu0 0
      %2681 = vmatpush2.bf16.msra.mxu0 0
      %2682 = vmatprep.subr.bf16.mxu0 0
      %2683 = vmatpush2.bf16.msra.mxu0 0
      %2684 = vmatprep.subr.bf16.mxu0 0
      %2685 = vmatpush2.bf16.msra.mxu0 0
      %2686 = vmatprep.subr.bf16.mxu0 0
      %2687 = vmatpush2.bf16.msra.mxu0 0
      %2688 = vmatprep.subr.bf16.mxu0 0
      %2689 = vmatpush2.bf16.msra.mxu0 0
      %2690 = vmatprep.subr.bf16.mxu0 0
      %2691 = vmatpush2.bf16.msra.mxu0 0
      %2692 = vmatprep.subr.bf16.mxu0 0
      %2693 = vmatpush2.bf16.msra.mxu0 0
      %2694 = vmatprep.subr.bf16.mxu0 0
      %2695 = vmatpush2.bf16.msra.mxu0 0
      %2696 = vmatprep.mubr.bf16.mxu0 0
      %2697 = vmatmul.mubr.bf16.gmra.mxu0 %v2583
      %v2698 = vpop.f32.mrf.mxu0
      %v2699 = vadd.f32 0.0, %v2698
      %v2700 = vpop.f32.mrf.mxu0
      %v2701 = vpop.f32.mrf.mxu0
      %v2702 = vadd.f32 0.0, %v2701
      %v2703 = vpop.f32.mrf.mxu0
      %2704 = vmatprep.mubr.bf16.mxu0 0
      %2705 = vmatmul.mubr.bf16.gmra.mxu0 %v2584
      %v2706 = vpop.f32.mrf.mxu0
      %v2707 = vadd.f32 0.0, %v2706
      %v2708 = vpop.f32.mrf.mxu0
      %v2709 = vpop.f32.mrf.mxu0
      %v2710 = vadd.f32 0.0, %v2709
      %v2711 = vpop.f32.mrf.mxu0
      %2712 = vmatprep.mubr.bf16.mxu0 0
      %2713 = vmatmul.mubr.bf16.gmra.mxu0 %v2585
      %v2714 = vpop.f32.mrf.mxu0
      %v2715 = vadd.f32 0.0, %v2714
      %v2716 = vpop.f32.mrf.mxu0
      %v2717 = vpop.f32.mrf.mxu0
      %v2718 = vadd.f32 0.0, %v2717
      %v2719 = vpop.f32.mrf.mxu0
      %2720 = vmatprep.mubr.bf16.mxu0 0
      %2721 = vmatmul.mubr.bf16.gmra.mxu0 %v2586
      %v2722 = vpop.f32.mrf.mxu0
      %v2723 = vadd.f32 0.0, %v2722
      %v2724 = vpop.f32.mrf.mxu0
      %v2725 = vpop.f32.mrf.mxu0
      %v2726 = vadd.f32 0.0, %v2725
      %v2727 = vpop.f32.mrf.mxu0
      %2728 = vmatprep.mubr.bf16.mxu0 0
      %2729 = vmatmul.mubr.bf16.gmra.mxu0 %v2587
      %v2730 = vpop.f32.mrf.mxu0
      %v2731 = vadd.f32 0.0, %v2730
      %v2732 = vpop.f32.mrf.mxu0
      %v2733 = vpop.f32.mrf.mxu0
      %v2734 = vadd.f32 0.0, %v2733
      %v2735 = vpop.f32.mrf.mxu0
      %2736 = vmatprep.mubr.bf16.mxu0 0
      %2737 = vmatmul.mubr.bf16.gmra.mxu0 %v2588
      %v2738 = vpop.f32.mrf.mxu0
      %v2739 = vadd.f32 0.0, %v2738
      %v2740 = vpop.f32.mrf.mxu0
      %v2741 = vpop.f32.mrf.mxu0
      %v2742 = vadd.f32 0.0, %v2741
      %v2743 = vpop.f32.mrf.mxu0
      %2744 = vmatprep.mubr.bf16.mxu0 0
      %2745 = vmatmul.mubr.bf16.gmra.mxu0 %v2589
      %v2746 = vpop.f32.mrf.mxu0
      %v2747 = vadd.f32 0.0, %v2746
      %v2748 = vpop.f32.mrf.mxu0
      %v2749 = vpop.f32.mrf.mxu0
      %v2750 = vadd.f32 0.0, %v2749
      %v2751 = vpop.f32.mrf.mxu0
      %2752 = vmatprep.mubr.bf16.mxu0 0
      %2753 = vmatmul.mubr.bf16.gmra.mxu0 %v2590
      %v2754 = vpop.f32.mrf.mxu0
      %v2755 = vadd.f32 0.0, %v2754
      %v2756 = vpop.f32.mrf.mxu0
      %v2757 = vpop.f32.mrf.mxu0
      %v2758 = vadd.f32 0.0, %v2757
      %v2759 = vpop.f32.mrf.mxu0
      %2760 = vmatprep.mubr.bf16.mxu0 0
      %2761 = vmatmul.mubr.bf16.gmra.mxu0 %v2591
      %v2762 = vpop.f32.mrf.mxu0
      %v2763 = vadd.f32 0.0, %v2762
      %v2764 = vpop.f32.mrf.mxu0
      %v2765 = vpop.f32.mrf.mxu0
      %v2766 = vadd.f32 0.0, %v2765
      %v2767 = vpop.f32.mrf.mxu0
      %2768 = vmatprep.mubr.bf16.mxu0 0
      %2769 = vmatmul.mubr.bf16.gmra.mxu0 %v2592
      %v2770 = vpop.f32.mrf.mxu0
      %v2771 = vadd.f32 0.0, %v2770
      %v2772 = vpop.f32.mrf.mxu0
      %v2773 = vpop.f32.mrf.mxu0
      %v2774 = vadd.f32 0.0, %v2773
      %v2775 = vpop.f32.mrf.mxu0
      %2776 = vmatprep.mubr.bf16.mxu0 0
      %2777 = vmatmul.mubr.bf16.gmra.mxu0 %v2593
      %v2778 = vpop.f32.mrf.mxu0
      %v2779 = vadd.f32 0.0, %v2778
      %v2780 = vpop.f32.mrf.mxu0
      %v2781 = vpop.f32.mrf.mxu0
      %v2782 = vadd.f32 0.0, %v2781
      %v2783 = vpop.f32.mrf.mxu0
      %2784 = vmatprep.mubr.bf16.mxu0 0
      %2785 = vmatmul.mubr.bf16.gmra.mxu0 %v2594
      %v2786 = vpop.f32.mrf.mxu0
      %v2787 = vadd.f32 0.0, %v2786
      %v2788 = vpop.f32.mrf.mxu0
      %v2789 = vpop.f32.mrf.mxu0
      %v2790 = vadd.f32 0.0, %v2789
      %v2791 = vpop.f32.mrf.mxu0
      %2792 = vmatprep.mubr.bf16.mxu0 0
      %2793 = vmatmul.mubr.bf16.gmra.mxu0 %v2595
      %v2794 = vpop.f32.mrf.mxu0
      %v2795 = vadd.f32 0.0, %v2794
      %v2796 = vpop.f32.mrf.mxu0
      %v2797 = vpop.f32.mrf.mxu0
      %v2798 = vadd.f32 0.0, %v2797
      %v2799 = vpop.f32.mrf.mxu0
      %2800 = vmatprep.mubr.bf16.mxu0 0
      %2801 = vmatmul.mubr.bf16.gmra.mxu0 %v2596
      %v2802 = vpop.f32.mrf.mxu0
      %v2803 = vadd.f32 0.0, %v2802
      %v2804 = vpop.f32.mrf.mxu0
      %v2805 = vpop.f32.mrf.mxu0
      %v2806 = vadd.f32 0.0, %v2805
      %v2807 = vpop.f32.mrf.mxu0
      %2808 = vmatprep.mubr.bf16.mxu0 0
      %2809 = vmatmul.mubr.bf16.gmra.mxu0 %v2597
      %v2810 = vpop.f32.mrf.mxu0
      %v2811 = vadd.f32 0.0, %v2810
      %v2812 = vpop.f32.mrf.mxu0
      %v2813 = vpop.f32.mrf.mxu0
      %v2814 = vadd.f32 0.0, %v2813
      %v2815 = vpop.f32.mrf.mxu0
      %2816 = vmatprep.mubr.bf16.mxu0 0
      %2817 = vmatmul.mubr.bf16.gmra.mxu0 %v2598
      %v2818 = vpop.f32.mrf.mxu0
      %v2819 = vadd.f32 0.0, %v2818
      %v2820 = vpop.f32.mrf.mxu0
      %v2821 = vpop.f32.mrf.mxu0
      %v2822 = vadd.f32 0.0, %v2821
      %v2823 = vpop.f32.mrf.mxu0
      %2824 = vdwg.mxu0
      %v2825 = vadd.f32 %v2487, %v2699
      %v2826 = vadd.f32 %v2488, %v2702
      %v2827 = vadd.f32 %v2489, %v2707
      %v2828 = vadd.f32 %v2490, %v2710
      %v2829 = vadd.f32 %v2491, %v2715
      %v2830 = vadd.f32 %v2492, %v2718
      %v2831 = vadd.f32 %v2493, %v2723
      %v2832 = vadd.f32 %v2494, %v2726
      %v2833 = vadd.f32 %v2495, %v2731
      %v2834 = vadd.f32 %v2496, %v2734
      %v2835 = vadd.f32 %v2497, %v2739
      %v2836 = vadd.f32 %v2498, %v2742
      %v2837 = vadd.f32 %v2499, %v2747
      %v2838 = vadd.f32 %v2500, %v2750
      %v2839 = vadd.f32 %v2501, %v2755
      %v2840 = vadd.f32 %v2502, %v2758
      %v2841 = vadd.f32 %v2503, %v2763
      %v2842 = vadd.f32 %v2504, %v2766
      %v2843 = vadd.f32 %v2505, %v2771
      %v2844 = vadd.f32 %v2506, %v2774
      %v2845 = vadd.f32 %v2507, %v2779
      %v2846 = vadd.f32 %v2508, %v2782
      %v2847 = vadd.f32 %v2509, %v2787
      %v2848 = vadd.f32 %v2510, %v2790
      %v2849 = vadd.f32 %v2511, %v2795
      %v2850 = vadd.f32 %v2512, %v2798
      %v2851 = vadd.f32 %v2513, %v2803
      %v2852 = vadd.f32 %v2514, %v2806
      %v2853 = vadd.f32 %v2515, %v2811
      %v2854 = vadd.f32 %v2516, %v2814
      %v2855 = vadd.f32 %v2517, %v2819
      %v2856 = vadd.f32 %v2518, %v2822
      %v2857 = vld [vmem:[#allocation2 + $0x27] sm:$0xff]
      %v2858 = vld [vmem:[#allocation2 + $0x2f] sm:$0xff]
      %v2859 = vld [vmem:[#allocation2 + $0x37] sm:$0xff]
      %v2860 = vld [vmem:[#allocation2 + $0x3f] sm:$0xff]
      %v2861 = vld [vmem:[#allocation2 + $0x47] sm:$0xff]
      %v2862 = vld [vmem:[#allocation2 + $0x4f] sm:$0xff]
      %v2863 = vld [vmem:[#allocation2 + $0x57] sm:$0xff]
      %v2864 = vld [vmem:[#allocation2 + $0x5f] sm:$0xff]
      %v2865 = vld [vmem:[#allocation2 + $0x67] sm:$0xff]
      %v2866 = vld [vmem:[#allocation2 + $0x6f] sm:$0xff]
      %v2867 = vld [vmem:[#allocation2 + $0x77] sm:$0xff]
      %v2868 = vld [vmem:[#allocation2 + $0x7f] sm:$0xff]
      %v2869 = vld [vmem:[#allocation2 + $0x87] sm:$0xff]
      %v2870 = vld [vmem:[#allocation2 + $0x8f] sm:$0xff]
      %v2871 = vld [vmem:[#allocation2 + $0x97] sm:$0xff]
      %v2872 = vld [vmem:[#allocation2 + $0x9f] sm:$0xff]
      %v2873 = vld [vmem:[#allocation2 + $0xa7] sm:$0xff]
      %v2874 = vld [vmem:[#allocation2 + $0xaf] sm:$0xff]
      %v2875 = vld [vmem:[#allocation2 + $0xb7] sm:$0xff]
      %v2876 = vld [vmem:[#allocation2 + $0xbf] sm:$0xff]
      %v2877 = vld [vmem:[#allocation2 + $0xc7] sm:$0xff]
      %v2878 = vld [vmem:[#allocation2 + $0xcf] sm:$0xff]
      %v2879 = vld [vmem:[#allocation2 + $0xd7] sm:$0xff]
      %v2880 = vld [vmem:[#allocation2 + $0xdf] sm:$0xff]
      %v2881 = vld [vmem:[#allocation2 + $0xe7] sm:$0xff]
      %v2882 = vld [vmem:[#allocation2 + $0xef] sm:$0xff]
      %v2883 = vld [vmem:[#allocation2 + $0xf7] sm:$0xff]
      %v2884 = vld [vmem:[#allocation2 + $0xff] sm:$0xff]
      %v2885 = vld [vmem:[#allocation2 + $0x107] sm:$0xff]
      %v2886 = vld [vmem:[#allocation2 + $0x10f] sm:$0xff]
      %v2887 = vld [vmem:[#allocation2 + $0x117] sm:$0xff]
      %v2888 = vld [vmem:[#allocation2 + $0x11f] sm:$0xff]
      %v2889 = vsel %vm894, %v2857, 0.0
      %v2890 = vsel %vm895, %v2858, 0.0
      %v2891 = vsel %vm896, %v2859, 0.0
      %v2892 = vsel %vm897, %v2860, 0.0
      %v2893 = vsel %vm898, %v2861, 0.0
      %v2894 = vsel %vm899, %v2862, 0.0
      %v2895 = vsel %vm900, %v2863, 0.0
      %v2896 = vsel %vm901, %v2864, 0.0
      %v2897 = vsel %vm902, %v2865, 0.0
      %v2898 = vsel %vm903, %v2866, 0.0
      %v2899 = vsel %vm904, %v2867, 0.0
      %v2900 = vsel %vm905, %v2868, 0.0
      %v2901 = vsel %vm906, %v2869, 0.0
      %v2902 = vsel %vm907, %v2870, 0.0
      %v2903 = vsel %vm908, %v2871, 0.0
      %v2904 = vsel %vm909, %v2872, 0.0
      %v2905 = vsel %vm910, %v2873, 0.0
      %v2906 = vsel %vm911, %v2874, 0.0
      %v2907 = vsel %vm912, %v2875, 0.0
      %v2908 = vsel %vm913, %v2876, 0.0
      %v2909 = vsel %vm914, %v2877, 0.0
      %v2910 = vsel %vm915, %v2878, 0.0
      %v2911 = vsel %vm916, %v2879, 0.0
      %v2912 = vsel %vm917, %v2880, 0.0
      %v2913 = vsel %vm918, %v2881, 0.0
      %v2914 = vsel %vm919, %v2882, 0.0
      %v2915 = vsel %vm920, %v2883, 0.0
      %v2916 = vsel %vm921, %v2884, 0.0
      %v2917 = vsel %vm922, %v2885, 0.0
      %v2918 = vsel %vm923, %v2886, 0.0
      %v2919 = vsel %vm924, %v2887, 0.0
      %v2920 = vsel %vm925, %v2888, 0.0
      %v2921 = vpack.c.bf16 %v2890, %v2889
      %v2922 = vpack.c.bf16 %v2892, %v2891
      %v2923 = vpack.c.bf16 %v2894, %v2893
      %v2924 = vpack.c.bf16 %v2896, %v2895
      %v2925 = vpack.c.bf16 %v2898, %v2897
      %v2926 = vpack.c.bf16 %v2900, %v2899
      %v2927 = vpack.c.bf16 %v2902, %v2901
      %v2928 = vpack.c.bf16 %v2904, %v2903
      %v2929 = vpack.c.bf16 %v2906, %v2905
      %v2930 = vpack.c.bf16 %v2908, %v2907
      %v2931 = vpack.c.bf16 %v2910, %v2909
      %v2932 = vpack.c.bf16 %v2912, %v2911
      %v2933 = vpack.c.bf16 %v2914, %v2913
      %v2934 = vpack.c.bf16 %v2916, %v2915
      %v2935 = vpack.c.bf16 %v2918, %v2917
      %v2936 = vpack.c.bf16 %v2920, %v2919
      %s2937 = scalar_lea.vmem %s3, 384
      %v2938 = vld [vmem:[%s2937] sm:$0xf]
      %v2939 = vld [vmem:[%s2937 + $0x4] sm:$0xf]
      %v2940 = vld [vmem:[%s2937 + $0x8] sm:$0xf]
      %v2941 = vld [vmem:[%s2937 + $0xc] sm:$0xf]
      %v2942 = vld [vmem:[%s2937 + $0x10] sm:$0xf]
      %v2943 = vld [vmem:[%s2937 + $0x14] sm:$0xf]
      %v2944 = vld [vmem:[%s2937 + $0x18] sm:$0xf]
      %v2945 = vld [vmem:[%s2937 + $0x1c] sm:$0xf]
      %v2946 = vld [vmem:[%s2937 + $0x20] sm:$0xf]
      %v2947 = vld [vmem:[%s2937 + $0x24] sm:$0xf]
      %v2948 = vld [vmem:[%s2937 + $0x28] sm:$0xf]
      %v2949 = vld [vmem:[%s2937 + $0x2c] sm:$0xf]
      %v2950 = vld [vmem:[%s2937 + $0x30] sm:$0xf]
      %v2951 = vld [vmem:[%s2937 + $0x34] sm:$0xf]
      %v2952 = vld [vmem:[%s2937 + $0x38] sm:$0xf]
      %v2953 = vld [vmem:[%s2937 + $0x3c] sm:$0xf]
      %v2970 = vunpack.c.l.b16 %v2938
      %v2971 = vunpack.c.l.b16 %v2939
      %v2972 = vunpack.c.l.b16 %v2940
      %v2973 = vunpack.c.l.b16 %v2941
      %v2974 = vunpack.c.l.b16 %v2942
      %v2975 = vunpack.c.l.b16 %v2943
      %v2976 = vunpack.c.l.b16 %v2944
      %v2977 = vunpack.c.l.b16 %v2945
      %v2978 = vunpack.c.l.b16 %v2946
      %v2979 = vunpack.c.l.b16 %v2947
      %v2980 = vunpack.c.l.b16 %v2948
      %v2981 = vunpack.c.l.b16 %v2949
      %v2982 = vunpack.c.l.b16 %v2950
      %v2983 = vunpack.c.l.b16 %v2951
      %v2984 = vunpack.c.l.b16 %v2952
      %v2985 = vunpack.c.l.b16 %v2953
      %v2986 = vpack.c.b16 %v2971, %v2970
      %v2987 = vpack.c.b16 %v2973, %v2972
      %v2988 = vpack.c.b16 %v2975, %v2974
      %v2989 = vpack.c.b16 %v2977, %v2976
      %v2990 = vpack.c.b16 %v2979, %v2978
      %v2991 = vpack.c.b16 %v2981, %v2980
      %v2992 = vpack.c.b16 %v2983, %v2982
      %v2993 = vpack.c.b16 %v2985, %v2984
      %3002 = vmatprep.subr.bf16.mxu0 0
      %3003 = vmatpush1.bf16.msra.mxu0 %v2993
      %3004 = vmatprep.subr.bf16.mxu0 0
      %3005 = vmatpush1.bf16.msra.mxu0 %v2992
      %3006 = vmatprep.subr.bf16.mxu0 0
      %3007 = vmatpush1.bf16.msra.mxu0 %v2991
      %3008 = vmatprep.subr.bf16.mxu0 0
      %3009 = vmatpush1.bf16.msra.mxu0 %v2990
      %3010 = vmatprep.subr.bf16.mxu0 0
      %3011 = vmatpush1.bf16.msra.mxu0 %v2989
      %3012 = vmatprep.subr.bf16.mxu0 0
      %3013 = vmatpush1.bf16.msra.mxu0 %v2988
      %3014 = vmatprep.subr.bf16.mxu0 0
      %3015 = vmatpush1.bf16.msra.mxu0 %v2987
      %3016 = vmatprep.subr.bf16.mxu0 0
      %3017 = vmatpush1.bf16.msra.mxu0 %v2986
      %3018 = vmatprep.subr.bf16.mxu0 0
      %3019 = vmatpush2.bf16.msra.mxu0 0
      %3020 = vmatprep.subr.bf16.mxu0 0
      %3021 = vmatpush2.bf16.msra.mxu0 0
      %3022 = vmatprep.subr.bf16.mxu0 0
      %3023 = vmatpush2.bf16.msra.mxu0 0
      %3024 = vmatprep.subr.bf16.mxu0 0
      %3025 = vmatpush2.bf16.msra.mxu0 0
      %3026 = vmatprep.subr.bf16.mxu0 0
      %3027 = vmatpush2.bf16.msra.mxu0 0
      %3028 = vmatprep.subr.bf16.mxu0 0
      %3029 = vmatpush2.bf16.msra.mxu0 0
      %3030 = vmatprep.subr.bf16.mxu0 0
      %3031 = vmatpush2.bf16.msra.mxu0 0
      %3032 = vmatprep.subr.bf16.mxu0 0
      %3033 = vmatpush2.bf16.msra.mxu0 0
      %3034 = vmatprep.mubr.bf16.mxu0 0
      %3035 = vmatmul.mubr.bf16.gmra.mxu0 %v2921
      %v3036 = vpop.f32.mrf.mxu0
      %v3037 = vadd.f32 0.0, %v3036
      %v3038 = vpop.f32.mrf.mxu0
      %v3039 = vpop.f32.mrf.mxu0
      %v3040 = vadd.f32 0.0, %v3039
      %v3041 = vpop.f32.mrf.mxu0
      %3042 = vmatprep.mubr.bf16.mxu0 0
      %3043 = vmatmul.mubr.bf16.gmra.mxu0 %v2922
      %v3044 = vpop.f32.mrf.mxu0
      %v3045 = vadd.f32 0.0, %v3044
      %v3046 = vpop.f32.mrf.mxu0
      %v3047 = vpop.f32.mrf.mxu0
      %v3048 = vadd.f32 0.0, %v3047
      %v3049 = vpop.f32.mrf.mxu0
      %3050 = vmatprep.mubr.bf16.mxu0 0
      %3051 = vmatmul.mubr.bf16.gmra.mxu0 %v2923
      %v3052 = vpop.f32.mrf.mxu0
      %v3053 = vadd.f32 0.0, %v3052
      %v3054 = vpop.f32.mrf.mxu0
      %v3055 = vpop.f32.mrf.mxu0
      %v3056 = vadd.f32 0.0, %v3055
      %v3057 = vpop.f32.mrf.mxu0
      %3058 = vmatprep.mubr.bf16.mxu0 0
      %3059 = vmatmul.mubr.bf16.gmra.mxu0 %v2924
      %v3060 = vpop.f32.mrf.mxu0
      %v3061 = vadd.f32 0.0, %v3060
      %v3062 = vpop.f32.mrf.mxu0
      %v3063 = vpop.f32.mrf.mxu0
      %v3064 = vadd.f32 0.0, %v3063
      %v3065 = vpop.f32.mrf.mxu0
      %3066 = vmatprep.mubr.bf16.mxu0 0
      %3067 = vmatmul.mubr.bf16.gmra.mxu0 %v2925
      %v3068 = vpop.f32.mrf.mxu0
      %v3069 = vadd.f32 0.0, %v3068
      %v3070 = vpop.f32.mrf.mxu0
      %v3071 = vpop.f32.mrf.mxu0
      %v3072 = vadd.f32 0.0, %v3071
      %v3073 = vpop.f32.mrf.mxu0
      %3074 = vmatprep.mubr.bf16.mxu0 0
      %3075 = vmatmul.mubr.bf16.gmra.mxu0 %v2926
      %v3076 = vpop.f32.mrf.mxu0
      %v3077 = vadd.f32 0.0, %v3076
      %v3078 = vpop.f32.mrf.mxu0
      %v3079 = vpop.f32.mrf.mxu0
      %v3080 = vadd.f32 0.0, %v3079
      %v3081 = vpop.f32.mrf.mxu0
      %3082 = vmatprep.mubr.bf16.mxu0 0
      %3083 = vmatmul.mubr.bf16.gmra.mxu0 %v2927
      %v3084 = vpop.f32.mrf.mxu0
      %v3085 = vadd.f32 0.0, %v3084
      %v3086 = vpop.f32.mrf.mxu0
      %v3087 = vpop.f32.mrf.mxu0
      %v3088 = vadd.f32 0.0, %v3087
      %v3089 = vpop.f32.mrf.mxu0
      %3090 = vmatprep.mubr.bf16.mxu0 0
      %3091 = vmatmul.mubr.bf16.gmra.mxu0 %v2928
      %v3092 = vpop.f32.mrf.mxu0
      %v3093 = vadd.f32 0.0, %v3092
      %v3094 = vpop.f32.mrf.mxu0
      %v3095 = vpop.f32.mrf.mxu0
      %v3096 = vadd.f32 0.0, %v3095
      %v3097 = vpop.f32.mrf.mxu0
      %3098 = vmatprep.mubr.bf16.mxu0 0
      %3099 = vmatmul.mubr.bf16.gmra.mxu0 %v2929
      %v3100 = vpop.f32.mrf.mxu0
      %v3101 = vadd.f32 0.0, %v3100
      %v3102 = vpop.f32.mrf.mxu0
      %v3103 = vpop.f32.mrf.mxu0
      %v3104 = vadd.f32 0.0, %v3103
      %v3105 = vpop.f32.mrf.mxu0
      %3106 = vmatprep.mubr.bf16.mxu0 0
      %3107 = vmatmul.mubr.bf16.gmra.mxu0 %v2930
      %v3108 = vpop.f32.mrf.mxu0
      %v3109 = vadd.f32 0.0, %v3108
      %v3110 = vpop.f32.mrf.mxu0
      %v3111 = vpop.f32.mrf.mxu0
      %v3112 = vadd.f32 0.0, %v3111
      %v3113 = vpop.f32.mrf.mxu0
      %3114 = vmatprep.mubr.bf16.mxu0 0
      %3115 = vmatmul.mubr.bf16.gmra.mxu0 %v2931
      %v3116 = vpop.f32.mrf.mxu0
      %v3117 = vadd.f32 0.0, %v3116
      %v3118 = vpop.f32.mrf.mxu0
      %v3119 = vpop.f32.mrf.mxu0
      %v3120 = vadd.f32 0.0, %v3119
      %v3121 = vpop.f32.mrf.mxu0
      %3122 = vmatprep.mubr.bf16.mxu0 0
      %3123 = vmatmul.mubr.bf16.gmra.mxu0 %v2932
      %v3124 = vpop.f32.mrf.mxu0
      %v3125 = vadd.f32 0.0, %v3124
      %v3126 = vpop.f32.mrf.mxu0
      %v3127 = vpop.f32.mrf.mxu0
      %v3128 = vadd.f32 0.0, %v3127
      %v3129 = vpop.f32.mrf.mxu0
      %3130 = vmatprep.mubr.bf16.mxu0 0
      %3131 = vmatmul.mubr.bf16.gmra.mxu0 %v2933
      %v3132 = vpop.f32.mrf.mxu0
      %v3133 = vadd.f32 0.0, %v3132
      %v3134 = vpop.f32.mrf.mxu0
      %v3135 = vpop.f32.mrf.mxu0
      %v3136 = vadd.f32 0.0, %v3135
      %v3137 = vpop.f32.mrf.mxu0
      %3138 = vmatprep.mubr.bf16.mxu0 0
      %3139 = vmatmul.mubr.bf16.gmra.mxu0 %v2934
      %v3140 = vpop.f32.mrf.mxu0
      %v3141 = vadd.f32 0.0, %v3140
      %v3142 = vpop.f32.mrf.mxu0
      %v3143 = vpop.f32.mrf.mxu0
      %v3144 = vadd.f32 0.0, %v3143
      %v3145 = vpop.f32.mrf.mxu0
      %3146 = vmatprep.mubr.bf16.mxu0 0
      %3147 = vmatmul.mubr.bf16.gmra.mxu0 %v2935
      %v3148 = vpop.f32.mrf.mxu0
      %v3149 = vadd.f32 0.0, %v3148
      %v3150 = vpop.f32.mrf.mxu0
      %v3151 = vpop.f32.mrf.mxu0
      %v3152 = vadd.f32 0.0, %v3151
      %v3153 = vpop.f32.mrf.mxu0
      %3154 = vmatprep.mubr.bf16.mxu0 0
      %3155 = vmatmul.mubr.bf16.gmra.mxu0 %v2936
      %v3156 = vpop.f32.mrf.mxu0
      %v3157 = vadd.f32 0.0, %v3156
      %v3158 = vpop.f32.mrf.mxu0
      %v3159 = vpop.f32.mrf.mxu0
      %v3160 = vadd.f32 0.0, %v3159
      %v3161 = vpop.f32.mrf.mxu0
      %3162 = vdwg.mxu0
      %v3163 = vadd.f32 %v2825, %v3037
      %v3164 = vadd.f32 %v2826, %v3040
      %v3165 = vadd.f32 %v2827, %v3045
      %v3166 = vadd.f32 %v2828, %v3048
      %v3167 = vadd.f32 %v2829, %v3053
      %v3168 = vadd.f32 %v2830, %v3056
      %v3169 = vadd.f32 %v2831, %v3061
      %v3170 = vadd.f32 %v2832, %v3064
      %v3171 = vadd.f32 %v2833, %v3069
      %v3172 = vadd.f32 %v2834, %v3072
      %v3173 = vadd.f32 %v2835, %v3077
      %v3174 = vadd.f32 %v2836, %v3080
      %v3175 = vadd.f32 %v2837, %v3085
      %v3176 = vadd.f32 %v2838, %v3088
      %v3177 = vadd.f32 %v2839, %v3093
      %v3178 = vadd.f32 %v2840, %v3096
      %v3179 = vadd.f32 %v2841, %v3101
      %v3180 = vadd.f32 %v2842, %v3104
      %v3181 = vadd.f32 %v2843, %v3109
      %v3182 = vadd.f32 %v2844, %v3112
      %v3183 = vadd.f32 %v2845, %v3117
      %v3184 = vadd.f32 %v2846, %v3120
      %v3185 = vadd.f32 %v2847, %v3125
      %v3186 = vadd.f32 %v2848, %v3128
      %v3187 = vadd.f32 %v2849, %v3133
      %v3188 = vadd.f32 %v2850, %v3136
      %v3189 = vadd.f32 %v2851, %v3141
      %v3190 = vadd.f32 %v2852, %v3144
      %v3191 = vadd.f32 %v2853, %v3149
      %v3192 = vadd.f32 %v2854, %v3152
      %v3193 = vadd.f32 %v2855, %v3157
      %v3194 = vadd.f32 %v2856, %v3160
      %v3195 = vld [vmem:[#allocation2 + $0x28] sm:$0xff]
      %v3196 = vld [vmem:[#allocation2 + $0x30] sm:$0xff]
      %v3197 = vld [vmem:[#allocation2 + $0x38] sm:$0xff]
      %v3198 = vld [vmem:[#allocation2 + $0x40] sm:$0xff]
      %v3199 = vld [vmem:[#allocation2 + $0x48] sm:$0xff]
      %v3200 = vld [vmem:[#allocation2 + $0x50] sm:$0xff]
      %v3201 = vld [vmem:[#allocation2 + $0x58] sm:$0xff]
      %v3202 = vld [vmem:[#allocation2 + $0x60] sm:$0xff]
      %v3203 = vld [vmem:[#allocation2 + $0x68] sm:$0xff]
      %v3204 = vld [vmem:[#allocation2 + $0x70] sm:$0xff]
      %v3205 = vld [vmem:[#allocation2 + $0x78] sm:$0xff]
      %v3206 = vld [vmem:[#allocation2 + $0x80] sm:$0xff]
      %v3207 = vld [vmem:[#allocation2 + $0x88] sm:$0xff]
      %v3208 = vld [vmem:[#allocation2 + $0x90] sm:$0xff]
      %v3209 = vld [vmem:[#allocation2 + $0x98] sm:$0xff]
      %v3210 = vld [vmem:[#allocation2 + $0xa0] sm:$0xff]
      %v3211 = vld [vmem:[#allocation2 + $0xa8] sm:$0xff]
      %v3212 = vld [vmem:[#allocation2 + $0xb0] sm:$0xff]
      %v3213 = vld [vmem:[#allocation2 + $0xb8] sm:$0xff]
      %v3214 = vld [vmem:[#allocation2 + $0xc0] sm:$0xff]
      %v3215 = vld [vmem:[#allocation2 + $0xc8] sm:$0xff]
      %v3216 = vld [vmem:[#allocation2 + $0xd0] sm:$0xff]
      %v3217 = vld [vmem:[#allocation2 + $0xd8] sm:$0xff]
      %v3218 = vld [vmem:[#allocation2 + $0xe0] sm:$0xff]
      %v3219 = vld [vmem:[#allocation2 + $0xe8] sm:$0xff]
      %v3220 = vld [vmem:[#allocation2 + $0xf0] sm:$0xff]
      %v3221 = vld [vmem:[#allocation2 + $0xf8] sm:$0xff]
      %v3222 = vld [vmem:[#allocation2 + $0x100] sm:$0xff]
      %v3223 = vld [vmem:[#allocation2 + $0x108] sm:$0xff]
      %v3224 = vld [vmem:[#allocation2 + $0x110] sm:$0xff]
      %v3225 = vld [vmem:[#allocation2 + $0x118] sm:$0xff]
      %v3226 = vld [vmem:[#allocation2 + $0x120] sm:$0xff]
      %v3227 = vpack.c.bf16 %v3196, %v3195
      %v3228 = vpack.c.bf16 %v3198, %v3197
      %v3229 = vpack.c.bf16 %v3200, %v3199
      %v3230 = vpack.c.bf16 %v3202, %v3201
      %v3231 = vpack.c.bf16 %v3204, %v3203
      %v3232 = vpack.c.bf16 %v3206, %v3205
      %v3233 = vpack.c.bf16 %v3208, %v3207
      %v3234 = vpack.c.bf16 %v3210, %v3209
      %v3235 = vpack.c.bf16 %v3212, %v3211
      %v3236 = vpack.c.bf16 %v3214, %v3213
      %v3237 = vpack.c.bf16 %v3216, %v3215
      %v3238 = vpack.c.bf16 %v3218, %v3217
      %v3239 = vpack.c.bf16 %v3220, %v3219
      %v3240 = vpack.c.bf16 %v3222, %v3221
      %v3241 = vpack.c.bf16 %v3224, %v3223
      %v3242 = vpack.c.bf16 %v3226, %v3225
      %s3243 = scalar_lea.vmem %s3, 448
      %v3244 = vld [vmem:[%s3243] sm:$0xf]
      %v3245 = vld [vmem:[%s3243 + $0x4] sm:$0xf]
      %v3246 = vld [vmem:[%s3243 + $0x8] sm:$0xf]
      %v3247 = vld [vmem:[%s3243 + $0xc] sm:$0xf]
      %v3248 = vld [vmem:[%s3243 + $0x10] sm:$0xf]
      %v3249 = vld [vmem:[%s3243 + $0x14] sm:$0xf]
      %v3250 = vld [vmem:[%s3243 + $0x18] sm:$0xf]
      %v3251 = vld [vmem:[%s3243 + $0x1c] sm:$0xf]
      %v3252 = vld [vmem:[%s3243 + $0x20] sm:$0xf]
      %v3253 = vld [vmem:[%s3243 + $0x24] sm:$0xf]
      %v3254 = vld [vmem:[%s3243 + $0x28] sm:$0xf]
      %v3255 = vld [vmem:[%s3243 + $0x2c] sm:$0xf]
      %v3256 = vld [vmem:[%s3243 + $0x30] sm:$0xf]
      %v3257 = vld [vmem:[%s3243 + $0x34] sm:$0xf]
      %v3258 = vld [vmem:[%s3243 + $0x38] sm:$0xf]
      %v3259 = vld [vmem:[%s3243 + $0x3c] sm:$0xf]
      %v3276 = vunpack.c.l.b16 %v3244
      %v3277 = vunpack.c.l.b16 %v3245
      %v3278 = vunpack.c.l.b16 %v3246
      %v3279 = vunpack.c.l.b16 %v3247
      %v3280 = vunpack.c.l.b16 %v3248
      %v3281 = vunpack.c.l.b16 %v3249
      %v3282 = vunpack.c.l.b16 %v3250
      %v3283 = vunpack.c.l.b16 %v3251
      %v3284 = vunpack.c.l.b16 %v3252
      %v3285 = vunpack.c.l.b16 %v3253
      %v3286 = vunpack.c.l.b16 %v3254
      %v3287 = vunpack.c.l.b16 %v3255
      %v3288 = vunpack.c.l.b16 %v3256
      %v3289 = vunpack.c.l.b16 %v3257
      %v3290 = vunpack.c.l.b16 %v3258
      %v3291 = vunpack.c.l.b16 %v3259
      %v3292 = vpack.c.b16 %v3277, %v3276
      %v3293 = vpack.c.b16 %v3279, %v3278
      %v3294 = vpack.c.b16 %v3281, %v3280
      %v3295 = vpack.c.b16 %v3283, %v3282
      %v3296 = vpack.c.b16 %v3285, %v3284
      %v3297 = vpack.c.b16 %v3287, %v3286
      %v3298 = vpack.c.b16 %v3289, %v3288
      %v3299 = vpack.c.b16 %v3291, %v3290
      %3308 = vmatprep.subr.bf16.mxu0 0
      %3309 = vmatpush1.bf16.msra.mxu0 %v3299
      %3310 = vmatprep.subr.bf16.mxu0 0
      %3311 = vmatpush1.bf16.msra.mxu0 %v3298
      %3312 = vmatprep.subr.bf16.mxu0 0
      %3313 = vmatpush1.bf16.msra.mxu0 %v3297
      %3314 = vmatprep.subr.bf16.mxu0 0
      %3315 = vmatpush1.bf16.msra.mxu0 %v3296
      %3316 = vmatprep.subr.bf16.mxu0 0
      %3317 = vmatpush1.bf16.msra.mxu0 %v3295
      %3318 = vmatprep.subr.bf16.mxu0 0
      %3319 = vmatpush1.bf16.msra.mxu0 %v3294
      %3320 = vmatprep.subr.bf16.mxu0 0
      %3321 = vmatpush1.bf16.msra.mxu0 %v3293
      %3322 = vmatprep.subr.bf16.mxu0 0
      %3323 = vmatpush1.bf16.msra.mxu0 %v3292
      %3324 = vmatprep.subr.bf16.mxu0 0
      %3325 = vmatpush2.bf16.msra.mxu0 0
      %3326 = vmatprep.subr.bf16.mxu0 0
      %3327 = vmatpush2.bf16.msra.mxu0 0
      %3328 = vmatprep.subr.bf16.mxu0 0
      %3329 = vmatpush2.bf16.msra.mxu0 0
      %3330 = vmatprep.subr.bf16.mxu0 0
      %3331 = vmatpush2.bf16.msra.mxu0 0
      %3332 = vmatprep.subr.bf16.mxu0 0
      %3333 = vmatpush2.bf16.msra.mxu0 0
      %3334 = vmatprep.subr.bf16.mxu0 0
      %3335 = vmatpush2.bf16.msra.mxu0 0
      %3336 = vmatprep.subr.bf16.mxu0 0
      %3337 = vmatpush2.bf16.msra.mxu0 0
      %3338 = vmatprep.subr.bf16.mxu0 0
      %3339 = vmatpush2.bf16.msra.mxu0 0
      %3340 = vmatprep.mubr.bf16.mxu0 0
      %3341 = vmatmul.mubr.bf16.gmra.mxu0 %v3227
      %v3342 = vpop.f32.mrf.mxu0
      %v3343 = vadd.f32 0.0, %v3342
      %v3344 = vpop.f32.mrf.mxu0
      %v3345 = vpop.f32.mrf.mxu0
      %v3346 = vadd.f32 0.0, %v3345
      %v3347 = vpop.f32.mrf.mxu0
      %3348 = vmatprep.mubr.bf16.mxu0 0
      %3349 = vmatmul.mubr.bf16.gmra.mxu0 %v3228
      %v3350 = vpop.f32.mrf.mxu0
      %v3351 = vadd.f32 0.0, %v3350
      %v3352 = vpop.f32.mrf.mxu0
      %v3353 = vpop.f32.mrf.mxu0
      %v3354 = vadd.f32 0.0, %v3353
      %v3355 = vpop.f32.mrf.mxu0
      %3356 = vmatprep.mubr.bf16.mxu0 0
      %3357 = vmatmul.mubr.bf16.gmra.mxu0 %v3229
      %v3358 = vpop.f32.mrf.mxu0
      %v3359 = vadd.f32 0.0, %v3358
      %v3360 = vpop.f32.mrf.mxu0
      %v3361 = vpop.f32.mrf.mxu0
      %v3362 = vadd.f32 0.0, %v3361
      %v3363 = vpop.f32.mrf.mxu0
      %3364 = vmatprep.mubr.bf16.mxu0 0
      %3365 = vmatmul.mubr.bf16.gmra.mxu0 %v3230
      %v3366 = vpop.f32.mrf.mxu0
      %v3367 = vadd.f32 0.0, %v3366
      %v3368 = vpop.f32.mrf.mxu0
      %v3369 = vpop.f32.mrf.mxu0
      %v3370 = vadd.f32 0.0, %v3369
      %v3371 = vpop.f32.mrf.mxu0
      %3372 = vmatprep.mubr.bf16.mxu0 0
      %3373 = vmatmul.mubr.bf16.gmra.mxu0 %v3231
      %v3374 = vpop.f32.mrf.mxu0
      %v3375 = vadd.f32 0.0, %v3374
      %v3376 = vpop.f32.mrf.mxu0
      %v3377 = vpop.f32.mrf.mxu0
      %v3378 = vadd.f32 0.0, %v3377
      %v3379 = vpop.f32.mrf.mxu0
      %3380 = vmatprep.mubr.bf16.mxu0 0
      %3381 = vmatmul.mubr.bf16.gmra.mxu0 %v3232
      %v3382 = vpop.f32.mrf.mxu0
      %v3383 = vadd.f32 0.0, %v3382
      %v3384 = vpop.f32.mrf.mxu0
      %v3385 = vpop.f32.mrf.mxu0
      %v3386 = vadd.f32 0.0, %v3385
      %v3387 = vpop.f32.mrf.mxu0
      %3388 = vmatprep.mubr.bf16.mxu0 0
      %3389 = vmatmul.mubr.bf16.gmra.mxu0 %v3233
      %v3390 = vpop.f32.mrf.mxu0
      %v3391 = vadd.f32 0.0, %v3390
      %v3392 = vpop.f32.mrf.mxu0
      %v3393 = vpop.f32.mrf.mxu0
      %v3394 = vadd.f32 0.0, %v3393
      %v3395 = vpop.f32.mrf.mxu0
      %3396 = vmatprep.mubr.bf16.mxu0 0
      %3397 = vmatmul.mubr.bf16.gmra.mxu0 %v3234
      %v3398 = vpop.f32.mrf.mxu0
      %v3399 = vadd.f32 0.0, %v3398
      %v3400 = vpop.f32.mrf.mxu0
      %v3401 = vpop.f32.mrf.mxu0
      %v3402 = vadd.f32 0.0, %v3401
      %v3403 = vpop.f32.mrf.mxu0
      %3404 = vmatprep.mubr.bf16.mxu0 0
      %3405 = vmatmul.mubr.bf16.gmra.mxu0 %v3235
      %v3406 = vpop.f32.mrf.mxu0
      %v3407 = vadd.f32 0.0, %v3406
      %v3408 = vpop.f32.mrf.mxu0
      %v3409 = vpop.f32.mrf.mxu0
      %v3410 = vadd.f32 0.0, %v3409
      %v3411 = vpop.f32.mrf.mxu0
      %3412 = vmatprep.mubr.bf16.mxu0 0
      %3413 = vmatmul.mubr.bf16.gmra.mxu0 %v3236
      %v3414 = vpop.f32.mrf.mxu0
      %v3415 = vadd.f32 0.0, %v3414
      %v3416 = vpop.f32.mrf.mxu0
      %v3417 = vpop.f32.mrf.mxu0
      %v3418 = vadd.f32 0.0, %v3417
      %v3419 = vpop.f32.mrf.mxu0
      %3420 = vmatprep.mubr.bf16.mxu0 0
      %3421 = vmatmul.mubr.bf16.gmra.mxu0 %v3237
      %v3422 = vpop.f32.mrf.mxu0
      %v3423 = vadd.f32 0.0, %v3422
      %v3424 = vpop.f32.mrf.mxu0
      %v3425 = vpop.f32.mrf.mxu0
      %v3426 = vadd.f32 0.0, %v3425
      %v3427 = vpop.f32.mrf.mxu0
      %3428 = vmatprep.mubr.bf16.mxu0 0
      %3429 = vmatmul.mubr.bf16.gmra.mxu0 %v3238
      %v3430 = vpop.f32.mrf.mxu0
      %v3431 = vadd.f32 0.0, %v3430
      %v3432 = vpop.f32.mrf.mxu0
      %v3433 = vpop.f32.mrf.mxu0
      %v3434 = vadd.f32 0.0, %v3433
      %v3435 = vpop.f32.mrf.mxu0
      %3436 = vmatprep.mubr.bf16.mxu0 0
      %3437 = vmatmul.mubr.bf16.gmra.mxu0 %v3239
      %v3438 = vpop.f32.mrf.mxu0
      %v3439 = vadd.f32 0.0, %v3438
      %v3440 = vpop.f32.mrf.mxu0
      %v3441 = vpop.f32.mrf.mxu0
      %v3442 = vadd.f32 0.0, %v3441
      %v3443 = vpop.f32.mrf.mxu0
      %3444 = vmatprep.mubr.bf16.mxu0 0
      %3445 = vmatmul.mubr.bf16.gmra.mxu0 %v3240
      %v3446 = vpop.f32.mrf.mxu0
      %v3447 = vadd.f32 0.0, %v3446
      %v3448 = vpop.f32.mrf.mxu0
      %v3449 = vpop.f32.mrf.mxu0
      %v3450 = vadd.f32 0.0, %v3449
      %v3451 = vpop.f32.mrf.mxu0
      %3452 = vmatprep.mubr.bf16.mxu0 0
      %3453 = vmatmul.mubr.bf16.gmra.mxu0 %v3241
      %v3454 = vpop.f32.mrf.mxu0
      %v3455 = vadd.f32 0.0, %v3454
      %v3456 = vpop.f32.mrf.mxu0
      %v3457 = vpop.f32.mrf.mxu0
      %v3458 = vadd.f32 0.0, %v3457
      %v3459 = vpop.f32.mrf.mxu0
      %3460 = vmatprep.mubr.bf16.mxu0 0
      %3461 = vmatmul.mubr.bf16.gmra.mxu0 %v3242
      %v3462 = vpop.f32.mrf.mxu0
      %v3463 = vadd.f32 0.0, %v3462
      %v3464 = vpop.f32.mrf.mxu0
      %v3465 = vpop.f32.mrf.mxu0
      %v3466 = vadd.f32 0.0, %v3465
      %v3467 = vpop.f32.mrf.mxu0
      %3468 = vdwg.mxu0
      %v3469 = vadd.f32 %v3163, %v3343
      %v3470 = vadd.f32 %v3164, %v3346
      %v3471 = vadd.f32 %v3165, %v3351
      %v3472 = vadd.f32 %v3166, %v3354
      %v3473 = vadd.f32 %v3167, %v3359
      %v3474 = vadd.f32 %v3168, %v3362
      %v3475 = vadd.f32 %v3169, %v3367
      %v3476 = vadd.f32 %v3170, %v3370
      %v3477 = vadd.f32 %v3171, %v3375
      %v3478 = vadd.f32 %v3172, %v3378
      %v3479 = vadd.f32 %v3173, %v3383
      %v3480 = vadd.f32 %v3174, %v3386
      %v3481 = vadd.f32 %v3175, %v3391
      %v3482 = vadd.f32 %v3176, %v3394
      %v3483 = vadd.f32 %v3177, %v3399
      %v3484 = vadd.f32 %v3178, %v3402
      %v3485 = vadd.f32 %v3179, %v3407
      %v3486 = vadd.f32 %v3180, %v3410
      %v3487 = vadd.f32 %v3181, %v3415
      %v3488 = vadd.f32 %v3182, %v3418
      %v3489 = vadd.f32 %v3183, %v3423
      %v3490 = vadd.f32 %v3184, %v3426
      %v3491 = vadd.f32 %v3185, %v3431
      %v3492 = vadd.f32 %v3186, %v3434
      %v3493 = vadd.f32 %v3187, %v3439
      %v3494 = vadd.f32 %v3188, %v3442
      %v3495 = vadd.f32 %v3189, %v3447
      %v3496 = vadd.f32 %v3190, %v3450
      %v3497 = vadd.f32 %v3191, %v3455
      %v3498 = vadd.f32 %v3192, %v3458
      %v3499 = vadd.f32 %v3193, %v3463
      %v3500 = vadd.f32 %v3194, %v3466
      %v3501 = vld [vmem:[#allocation2 + $0x29] sm:$0xff]
      %v3502 = vld [vmem:[#allocation2 + $0x31] sm:$0xff]
      %v3503 = vld [vmem:[#allocation2 + $0x39] sm:$0xff]
      %v3504 = vld [vmem:[#allocation2 + $0x41] sm:$0xff]
      %v3505 = vld [vmem:[#allocation2 + $0x49] sm:$0xff]
      %v3506 = vld [vmem:[#allocation2 + $0x51] sm:$0xff]
      %v3507 = vld [vmem:[#allocation2 + $0x59] sm:$0xff]
      %v3508 = vld [vmem:[#allocation2 + $0x61] sm:$0xff]
      %v3509 = vld [vmem:[#allocation2 + $0x69] sm:$0xff]
      %v3510 = vld [vmem:[#allocation2 + $0x71] sm:$0xff]
      %v3511 = vld [vmem:[#allocation2 + $0x79] sm:$0xff]
      %v3512 = vld [vmem:[#allocation2 + $0x81] sm:$0xff]
      %v3513 = vld [vmem:[#allocation2 + $0x89] sm:$0xff]
      %v3514 = vld [vmem:[#allocation2 + $0x91] sm:$0xff]
      %v3515 = vld [vmem:[#allocation2 + $0x99] sm:$0xff]
      %v3516 = vld [vmem:[#allocation2 + $0xa1] sm:$0xff]
      %v3517 = vld [vmem:[#allocation2 + $0xa9] sm:$0xff]
      %v3518 = vld [vmem:[#allocation2 + $0xb1] sm:$0xff]
      %v3519 = vld [vmem:[#allocation2 + $0xb9] sm:$0xff]
      %v3520 = vld [vmem:[#allocation2 + $0xc1] sm:$0xff]
      %v3521 = vld [vmem:[#allocation2 + $0xc9] sm:$0xff]
      %v3522 = vld [vmem:[#allocation2 + $0xd1] sm:$0xff]
      %v3523 = vld [vmem:[#allocation2 + $0xd9] sm:$0xff]
      %v3524 = vld [vmem:[#allocation2 + $0xe1] sm:$0xff]
      %v3525 = vld [vmem:[#allocation2 + $0xe9] sm:$0xff]
      %v3526 = vld [vmem:[#allocation2 + $0xf1] sm:$0xff]
      %v3527 = vld [vmem:[#allocation2 + $0xf9] sm:$0xff]
      %v3528 = vld [vmem:[#allocation2 + $0x101] sm:$0xff]
      %v3529 = vld [vmem:[#allocation2 + $0x109] sm:$0xff]
      %v3530 = vld [vmem:[#allocation2 + $0x111] sm:$0xff]
      %v3531 = vld [vmem:[#allocation2 + $0x119] sm:$0xff]
      %v3532 = vld [vmem:[#allocation2 + $0x121] sm:$0xff]
      %v3533 = vsel %vm926, %v3501, 0.0
      %v3534 = vsel %vm927, %v3502, 0.0
      %v3535 = vsel %vm928, %v3503, 0.0
      %v3536 = vsel %vm929, %v3504, 0.0
      %v3537 = vsel %vm930, %v3505, 0.0
      %v3538 = vsel %vm931, %v3506, 0.0
      %v3539 = vsel %vm932, %v3507, 0.0
      %v3540 = vsel %vm933, %v3508, 0.0
      %v3541 = vsel %vm934, %v3509, 0.0
      %v3542 = vsel %vm935, %v3510, 0.0
      %v3543 = vsel %vm936, %v3511, 0.0
      %v3544 = vsel %vm937, %v3512, 0.0
      %v3545 = vsel %vm938, %v3513, 0.0
      %v3546 = vsel %vm939, %v3514, 0.0
      %v3547 = vsel %vm940, %v3515, 0.0
      %v3548 = vsel %vm941, %v3516, 0.0
      %v3549 = vsel %vm942, %v3517, 0.0
      %v3550 = vsel %vm943, %v3518, 0.0
      %v3551 = vsel %vm944, %v3519, 0.0
      %v3552 = vsel %vm945, %v3520, 0.0
      %v3553 = vsel %vm946, %v3521, 0.0
      %v3554 = vsel %vm947, %v3522, 0.0
      %v3555 = vsel %vm948, %v3523, 0.0
      %v3556 = vsel %vm949, %v3524, 0.0
      %v3557 = vsel %vm950, %v3525, 0.0
      %v3558 = vsel %vm951, %v3526, 0.0
      %v3559 = vsel %vm952, %v3527, 0.0
      %v3560 = vsel %vm953, %v3528, 0.0
      %v3561 = vsel %vm954, %v3529, 0.0
      %v3562 = vsel %vm955, %v3530, 0.0
      %v3563 = vsel %vm956, %v3531, 0.0
      %v3564 = vsel %vm957, %v3532, 0.0
      %v3565 = vpack.c.bf16 %v3534, %v3533
      %v3566 = vpack.c.bf16 %v3536, %v3535
      %v3567 = vpack.c.bf16 %v3538, %v3537
      %v3568 = vpack.c.bf16 %v3540, %v3539
      %v3569 = vpack.c.bf16 %v3542, %v3541
      %v3570 = vpack.c.bf16 %v3544, %v3543
      %v3571 = vpack.c.bf16 %v3546, %v3545
      %v3572 = vpack.c.bf16 %v3548, %v3547
      %v3573 = vpack.c.bf16 %v3550, %v3549
      %v3574 = vpack.c.bf16 %v3552, %v3551
      %v3575 = vpack.c.bf16 %v3554, %v3553
      %v3576 = vpack.c.bf16 %v3556, %v3555
      %v3577 = vpack.c.bf16 %v3558, %v3557
      %v3578 = vpack.c.bf16 %v3560, %v3559
      %v3579 = vpack.c.bf16 %v3562, %v3561
      %v3580 = vpack.c.bf16 %v3564, %v3563
      %s3581 = scalar_lea.vmem %s3, 512
      %v3582 = vld [vmem:[%s3581] sm:$0xf]
      %v3583 = vld [vmem:[%s3581 + $0x4] sm:$0xf]
      %v3584 = vld [vmem:[%s3581 + $0x8] sm:$0xf]
      %v3585 = vld [vmem:[%s3581 + $0xc] sm:$0xf]
      %v3586 = vld [vmem:[%s3581 + $0x10] sm:$0xf]
      %v3587 = vld [vmem:[%s3581 + $0x14] sm:$0xf]
      %v3588 = vld [vmem:[%s3581 + $0x18] sm:$0xf]
      %v3589 = vld [vmem:[%s3581 + $0x1c] sm:$0xf]
      %v3590 = vld [vmem:[%s3581 + $0x20] sm:$0xf]
      %v3591 = vld [vmem:[%s3581 + $0x24] sm:$0xf]
      %v3592 = vld [vmem:[%s3581 + $0x28] sm:$0xf]
      %v3593 = vld [vmem:[%s3581 + $0x2c] sm:$0xf]
      %v3594 = vld [vmem:[%s3581 + $0x30] sm:$0xf]
      %v3595 = vld [vmem:[%s3581 + $0x34] sm:$0xf]
      %v3596 = vld [vmem:[%s3581 + $0x38] sm:$0xf]
      %v3597 = vld [vmem:[%s3581 + $0x3c] sm:$0xf]
      %v3614 = vunpack.c.l.b16 %v3582
      %v3615 = vunpack.c.l.b16 %v3583
      %v3616 = vunpack.c.l.b16 %v3584
      %v3617 = vunpack.c.l.b16 %v3585
      %v3618 = vunpack.c.l.b16 %v3586
      %v3619 = vunpack.c.l.b16 %v3587
      %v3620 = vunpack.c.l.b16 %v3588
      %v3621 = vunpack.c.l.b16 %v3589
      %v3622 = vunpack.c.l.b16 %v3590
      %v3623 = vunpack.c.l.b16 %v3591
      %v3624 = vunpack.c.l.b16 %v3592
      %v3625 = vunpack.c.l.b16 %v3593
      %v3626 = vunpack.c.l.b16 %v3594
      %v3627 = vunpack.c.l.b16 %v3595
      %v3628 = vunpack.c.l.b16 %v3596
      %v3629 = vunpack.c.l.b16 %v3597
      %v3630 = vpack.c.b16 %v3615, %v3614
      %v3631 = vpack.c.b16 %v3617, %v3616
      %v3632 = vpack.c.b16 %v3619, %v3618
      %v3633 = vpack.c.b16 %v3621, %v3620
      %v3634 = vpack.c.b16 %v3623, %v3622
      %v3635 = vpack.c.b16 %v3625, %v3624
      %v3636 = vpack.c.b16 %v3627, %v3626
      %v3637 = vpack.c.b16 %v3629, %v3628
      %3646 = vmatprep.subr.bf16.mxu0 0
      %3647 = vmatpush1.bf16.msra.mxu0 %v3637
      %3648 = vmatprep.subr.bf16.mxu0 0
      %3649 = vmatpush1.bf16.msra.mxu0 %v3636
      %3650 = vmatprep.subr.bf16.mxu0 0
      %3651 = vmatpush1.bf16.msra.mxu0 %v3635
      %3652 = vmatprep.subr.bf16.mxu0 0
      %3653 = vmatpush1.bf16.msra.mxu0 %v3634
      %3654 = vmatprep.subr.bf16.mxu0 0
      %3655 = vmatpush1.bf16.msra.mxu0 %v3633
      %3656 = vmatprep.subr.bf16.mxu0 0
      %3657 = vmatpush1.bf16.msra.mxu0 %v3632
      %3658 = vmatprep.subr.bf16.mxu0 0
      %3659 = vmatpush1.bf16.msra.mxu0 %v3631
      %3660 = vmatprep.subr.bf16.mxu0 0
      %3661 = vmatpush1.bf16.msra.mxu0 %v3630
      %3662 = vmatprep.subr.bf16.mxu0 0
      %3663 = vmatpush2.bf16.msra.mxu0 0
      %3664 = vmatprep.subr.bf16.mxu0 0
      %3665 = vmatpush2.bf16.msra.mxu0 0
      %3666 = vmatprep.subr.bf16.mxu0 0
      %3667 = vmatpush2.bf16.msra.mxu0 0
      %3668 = vmatprep.subr.bf16.mxu0 0
      %3669 = vmatpush2.bf16.msra.mxu0 0
      %3670 = vmatprep.subr.bf16.mxu0 0
      %3671 = vmatpush2.bf16.msra.mxu0 0
      %3672 = vmatprep.subr.bf16.mxu0 0
      %3673 = vmatpush2.bf16.msra.mxu0 0
      %3674 = vmatprep.subr.bf16.mxu0 0
      %3675 = vmatpush2.bf16.msra.mxu0 0
      %3676 = vmatprep.subr.bf16.mxu0 0
      %3677 = vmatpush2.bf16.msra.mxu0 0
      %3678 = vmatprep.mubr.bf16.mxu0 0
      %3679 = vmatmul.mubr.bf16.gmra.mxu0 %v3565
      %v3680 = vpop.f32.mrf.mxu0
      %v3681 = vadd.f32 0.0, %v3680
      %v3682 = vpop.f32.mrf.mxu0
      %v3683 = vpop.f32.mrf.mxu0
      %v3684 = vadd.f32 0.0, %v3683
      %v3685 = vpop.f32.mrf.mxu0
      %3686 = vmatprep.mubr.bf16.mxu0 0
      %3687 = vmatmul.mubr.bf16.gmra.mxu0 %v3566
      %v3688 = vpop.f32.mrf.mxu0
      %v3689 = vadd.f32 0.0, %v3688
      %v3690 = vpop.f32.mrf.mxu0
      %v3691 = vpop.f32.mrf.mxu0
      %v3692 = vadd.f32 0.0, %v3691
      %v3693 = vpop.f32.mrf.mxu0
      %3694 = vmatprep.mubr.bf16.mxu0 0
      %3695 = vmatmul.mubr.bf16.gmra.mxu0 %v3567
      %v3696 = vpop.f32.mrf.mxu0
      %v3697 = vadd.f32 0.0, %v3696
      %v3698 = vpop.f32.mrf.mxu0
      %v3699 = vpop.f32.mrf.mxu0
      %v3700 = vadd.f32 0.0, %v3699
      %v3701 = vpop.f32.mrf.mxu0
      %3702 = vmatprep.mubr.bf16.mxu0 0
      %3703 = vmatmul.mubr.bf16.gmra.mxu0 %v3568
      %v3704 = vpop.f32.mrf.mxu0
      %v3705 = vadd.f32 0.0, %v3704
      %v3706 = vpop.f32.mrf.mxu0
      %v3707 = vpop.f32.mrf.mxu0
      %v3708 = vadd.f32 0.0, %v3707
      %v3709 = vpop.f32.mrf.mxu0
      %3710 = vmatprep.mubr.bf16.mxu0 0
      %3711 = vmatmul.mubr.bf16.gmra.mxu0 %v3569
      %v3712 = vpop.f32.mrf.mxu0
      %v3713 = vadd.f32 0.0, %v3712
      %v3714 = vpop.f32.mrf.mxu0
      %v3715 = vpop.f32.mrf.mxu0
      %v3716 = vadd.f32 0.0, %v3715
      %v3717 = vpop.f32.mrf.mxu0
      %3718 = vmatprep.mubr.bf16.mxu0 0
      %3719 = vmatmul.mubr.bf16.gmra.mxu0 %v3570
      %v3720 = vpop.f32.mrf.mxu0
      %v3721 = vadd.f32 0.0, %v3720
      %v3722 = vpop.f32.mrf.mxu0
      %v3723 = vpop.f32.mrf.mxu0
      %v3724 = vadd.f32 0.0, %v3723
      %v3725 = vpop.f32.mrf.mxu0
      %3726 = vmatprep.mubr.bf16.mxu0 0
      %3727 = vmatmul.mubr.bf16.gmra.mxu0 %v3571
      %v3728 = vpop.f32.mrf.mxu0
      %v3729 = vadd.f32 0.0, %v3728
      %v3730 = vpop.f32.mrf.mxu0
      %v3731 = vpop.f32.mrf.mxu0
      %v3732 = vadd.f32 0.0, %v3731
      %v3733 = vpop.f32.mrf.mxu0
      %3734 = vmatprep.mubr.bf16.mxu0 0
      %3735 = vmatmul.mubr.bf16.gmra.mxu0 %v3572
      %v3736 = vpop.f32.mrf.mxu0
      %v3737 = vadd.f32 0.0, %v3736
      %v3738 = vpop.f32.mrf.mxu0
      %v3739 = vpop.f32.mrf.mxu0
      %v3740 = vadd.f32 0.0, %v3739
      %v3741 = vpop.f32.mrf.mxu0
      %3742 = vmatprep.mubr.bf16.mxu0 0
      %3743 = vmatmul.mubr.bf16.gmra.mxu0 %v3573
      %v3744 = vpop.f32.mrf.mxu0
      %v3745 = vadd.f32 0.0, %v3744
      %v3746 = vpop.f32.mrf.mxu0
      %v3747 = vpop.f32.mrf.mxu0
      %v3748 = vadd.f32 0.0, %v3747
      %v3749 = vpop.f32.mrf.mxu0
      %3750 = vmatprep.mubr.bf16.mxu0 0
      %3751 = vmatmul.mubr.bf16.gmra.mxu0 %v3574
      %v3752 = vpop.f32.mrf.mxu0
      %v3753 = vadd.f32 0.0, %v3752
      %v3754 = vpop.f32.mrf.mxu0
      %v3755 = vpop.f32.mrf.mxu0
      %v3756 = vadd.f32 0.0, %v3755
      %v3757 = vpop.f32.mrf.mxu0
      %3758 = vmatprep.mubr.bf16.mxu0 0
      %3759 = vmatmul.mubr.bf16.gmra.mxu0 %v3575
      %v3760 = vpop.f32.mrf.mxu0
      %v3761 = vadd.f32 0.0, %v3760
      %v3762 = vpop.f32.mrf.mxu0
      %v3763 = vpop.f32.mrf.mxu0
      %v3764 = vadd.f32 0.0, %v3763
      %v3765 = vpop.f32.mrf.mxu0
      %3766 = vmatprep.mubr.bf16.mxu0 0
      %3767 = vmatmul.mubr.bf16.gmra.mxu0 %v3576
      %v3768 = vpop.f32.mrf.mxu0
      %v3769 = vadd.f32 0.0, %v3768
      %v3770 = vpop.f32.mrf.mxu0
      %v3771 = vpop.f32.mrf.mxu0
      %v3772 = vadd.f32 0.0, %v3771
      %v3773 = vpop.f32.mrf.mxu0
      %3774 = vmatprep.mubr.bf16.mxu0 0
      %3775 = vmatmul.mubr.bf16.gmra.mxu0 %v3577
      %v3776 = vpop.f32.mrf.mxu0
      %v3777 = vadd.f32 0.0, %v3776
      %v3778 = vpop.f32.mrf.mxu0
      %v3779 = vpop.f32.mrf.mxu0
      %v3780 = vadd.f32 0.0, %v3779
      %v3781 = vpop.f32.mrf.mxu0
      %3782 = vmatprep.mubr.bf16.mxu0 0
      %3783 = vmatmul.mubr.bf16.gmra.mxu0 %v3578
      %v3784 = vpop.f32.mrf.mxu0
      %v3785 = vadd.f32 0.0, %v3784
      %v3786 = vpop.f32.mrf.mxu0
      %v3787 = vpop.f32.mrf.mxu0
      %v3788 = vadd.f32 0.0, %v3787
      %v3789 = vpop.f32.mrf.mxu0
      %3790 = vmatprep.mubr.bf16.mxu0 0
      %3791 = vmatmul.mubr.bf16.gmra.mxu0 %v3579
      %v3792 = vpop.f32.mrf.mxu0
      %v3793 = vadd.f32 0.0, %v3792
      %v3794 = vpop.f32.mrf.mxu0
      %v3795 = vpop.f32.mrf.mxu0
      %v3796 = vadd.f32 0.0, %v3795
      %v3797 = vpop.f32.mrf.mxu0
      %3798 = vmatprep.mubr.bf16.mxu0 0
      %3799 = vmatmul.mubr.bf16.gmra.mxu0 %v3580
      %v3800 = vpop.f32.mrf.mxu0
      %v3801 = vadd.f32 0.0, %v3800
      %v3802 = vpop.f32.mrf.mxu0
      %v3803 = vpop.f32.mrf.mxu0
      %v3804 = vadd.f32 0.0, %v3803
      %v3805 = vpop.f32.mrf.mxu0
      %3806 = vdwg.mxu0
      %v3807 = vadd.f32 %v3469, %v3681
      %v3808 = vadd.f32 %v3470, %v3684
      %v3809 = vadd.f32 %v3471, %v3689
      %v3810 = vadd.f32 %v3472, %v3692
      %v3811 = vadd.f32 %v3473, %v3697
      %v3812 = vadd.f32 %v3474, %v3700
      %v3813 = vadd.f32 %v3475, %v3705
      %v3814 = vadd.f32 %v3476, %v3708
      %v3815 = vadd.f32 %v3477, %v3713
      %v3816 = vadd.f32 %v3478, %v3716
      %v3817 = vadd.f32 %v3479, %v3721
      %v3818 = vadd.f32 %v3480, %v3724
      %v3819 = vadd.f32 %v3481, %v3729
      %v3820 = vadd.f32 %v3482, %v3732
      %v3821 = vadd.f32 %v3483, %v3737
      %v3822 = vadd.f32 %v3484, %v3740
      %v3823 = vadd.f32 %v3485, %v3745
      %v3824 = vadd.f32 %v3486, %v3748
      %v3825 = vadd.f32 %v3487, %v3753
      %v3826 = vadd.f32 %v3488, %v3756
      %v3827 = vadd.f32 %v3489, %v3761
      %v3828 = vadd.f32 %v3490, %v3764
      %v3829 = vadd.f32 %v3491, %v3769
      %v3830 = vadd.f32 %v3492, %v3772
      %v3831 = vadd.f32 %v3493, %v3777
      %v3832 = vadd.f32 %v3494, %v3780
      %v3833 = vadd.f32 %v3495, %v3785
      %v3834 = vadd.f32 %v3496, %v3788
      %v3835 = vadd.f32 %v3497, %v3793
      %v3836 = vadd.f32 %v3498, %v3796
      %v3837 = vadd.f32 %v3499, %v3801
      %v3838 = vadd.f32 %v3500, %v3804
      %v3839 = vld [vmem:[%s4] sm:$0x1]
      %v3841 = vlaneseq
      %v3842 = vshrl.u32 %v3841, 7
      %v3843 = vsub.s32 0, %v3842
      %v3844 = vrot.slane %v3839, %v3843
      %v3846 = vadd.f32 %v3807, %v3844
      %v3847 = vadd.f32 %v3808, %v3844
      %v3848 = vadd.f32 %v3809, %v3844
      %v3849 = vadd.f32 %v3810, %v3844
      %v3850 = vadd.f32 %v3811, %v3844
      %v3851 = vadd.f32 %v3812, %v3844
      %v3852 = vadd.f32 %v3813, %v3844
      %v3853 = vadd.f32 %v3814, %v3844
      %v3854 = vadd.f32 %v3815, %v3844
      %v3855 = vadd.f32 %v3816, %v3844
      %v3856 = vadd.f32 %v3817, %v3844
      %v3857 = vadd.f32 %v3818, %v3844
      %v3858 = vadd.f32 %v3819, %v3844
      %v3859 = vadd.f32 %v3820, %v3844
      %v3860 = vadd.f32 %v3821, %v3844
      %v3861 = vadd.f32 %v3822, %v3844
      %v3862 = vadd.f32 %v3823, %v3844
      %v3863 = vadd.f32 %v3824, %v3844
      %v3864 = vadd.f32 %v3825, %v3844
      %v3865 = vadd.f32 %v3826, %v3844
      %v3866 = vadd.f32 %v3827, %v3844
      %v3867 = vadd.f32 %v3828, %v3844
      %v3868 = vadd.f32 %v3829, %v3844
      %v3869 = vadd.f32 %v3830, %v3844
      %v3870 = vadd.f32 %v3831, %v3844
      %v3871 = vadd.f32 %v3832, %v3844
      %v3872 = vadd.f32 %v3833, %v3844
      %v3873 = vadd.f32 %v3834, %v3844
      %v3874 = vadd.f32 %v3835, %v3844
      %v3875 = vadd.f32 %v3836, %v3844
      %v3876 = vadd.f32 %v3837, %v3844
      %v3877 = vadd.f32 %v3838, %v3844
      %3878 = vst [vmem:[%s289] sm:$0xff] %v3846
      %3879 = vst [vmem:[%s289 + $0x8] sm:$0xff] %v3847
      %3880 = vst [vmem:[%s289 + $0x10] sm:$0xff] %v3848
      %3881 = vst [vmem:[%s289 + $0x18] sm:$0xff] %v3849
      %3882 = vst [vmem:[%s289 + $0x20] sm:$0xff] %v3850
      %3883 = vst [vmem:[%s289 + $0x28] sm:$0xff] %v3851
      %3884 = vst [vmem:[%s289 + $0x30] sm:$0xff] %v3852
      %3885 = vst [vmem:[%s289 + $0x38] sm:$0xff] %v3853
      %3886 = vst [vmem:[%s289 + $0x40] sm:$0xff] %v3854
      %3887 = vst [vmem:[%s289 + $0x48] sm:$0xff] %v3855
      %3888 = vst [vmem:[%s289 + $0x50] sm:$0xff] %v3856
      %3889 = vst [vmem:[%s289 + $0x58] sm:$0xff] %v3857
      %3890 = vst [vmem:[%s289 + $0x60] sm:$0xff] %v3858
      %3891 = vst [vmem:[%s289 + $0x68] sm:$0xff] %v3859
      %3892 = vst [vmem:[%s289 + $0x70] sm:$0xff] %v3860
      %3893 = vst [vmem:[%s289 + $0x78] sm:$0xff] %v3861
      %3894 = vst [vmem:[%s289 + $0x80] sm:$0xff] %v3862
      %3895 = vst [vmem:[%s289 + $0x88] sm:$0xff] %v3863
      %3896 = vst [vmem:[%s289 + $0x90] sm:$0xff] %v3864
      %3897 = vst [vmem:[%s289 + $0x98] sm:$0xff] %v3865
      %3898 = vst [vmem:[%s289 + $0xa0] sm:$0xff] %v3866
      %3899 = vst [vmem:[%s289 + $0xa8] sm:$0xff] %v3867
      %3900 = vst [vmem:[%s289 + $0xb0] sm:$0xff] %v3868
      %3901 = vst [vmem:[%s289 + $0xb8] sm:$0xff] %v3869
      %3902 = vst [vmem:[%s289 + $0xc0] sm:$0xff] %v3870
      %3903 = vst [vmem:[%s289 + $0xc8] sm:$0xff] %v3871
      %3904 = vst [vmem:[%s289 + $0xd0] sm:$0xff] %v3872
      %3905 = vst [vmem:[%s289 + $0xd8] sm:$0xff] %v3873
      %3906 = vst [vmem:[%s289 + $0xe0] sm:$0xff] %v3874
      %3907 = vst [vmem:[%s289 + $0xe8] sm:$0xff] %v3875
      %3908 = vst [vmem:[%s289 + $0xf0] sm:$0xff] %v3876
      %3909 = vst [vmem:[%s289 + $0xf8] sm:$0xff] %v3877
      %v3910 = vadd.f32 %v3846, %v3847
      %v3911 = vadd.f32 %v3910, %v3848
      %v3912 = vadd.f32 %v3911, %v3849
      %v3913 = vadd.f32 %v3912, %v3850
      %v3914 = vadd.f32 %v3913, %v3851
      %v3915 = vadd.f32 %v3914, %v3852
      %v3916 = vadd.f32 %v3915, %v3853
      %v3917 = vadd.f32 %v3916, %v3854
      %v3918 = vadd.f32 %v3917, %v3855
      %v3919 = vadd.f32 %v3918, %v3856
      %v3920 = vadd.f32 %v3919, %v3857
      %v3921 = vadd.f32 %v3920, %v3858
      %v3922 = vadd.f32 %v3921, %v3859
      %v3923 = vadd.f32 %v3922, %v3860
      %v3924 = vadd.f32 %v3923, %v3861
      %v3925 = vadd.f32 %v3924, %v3862
      %v3926 = vadd.f32 %v3925, %v3863
      %v3927 = vadd.f32 %v3926, %v3864
      %v3928 = vadd.f32 %v3927, %v3865
      %v3929 = vadd.f32 %v3928, %v3866
      %v3930 = vadd.f32 %v3929, %v3867
      %v3931 = vadd.f32 %v3930, %v3868
      %v3932 = vadd.f32 %v3931, %v3869
      %v3933 = vadd.f32 %v3932, %v3870
      %v3934 = vadd.f32 %v3933, %v3871
      %v3935 = vadd.f32 %v3934, %v3872
      %v3936 = vadd.f32 %v3935, %v3873
      %v3937 = vadd.f32 %v3936, %v3874
      %v3938 = vadd.f32 %v3937, %v3875
      %v3939 = vadd.f32 %v3938, %v3876
      %v3940 = vadd.f32 %v3939, %v3877
      %v3941 = vrot.slane %v3940, 4
      %v3942 = vadd.f32 %v3940, %v3941
      %v3943 = vrot.slane %v3942, 2
      %v3944 = vadd.f32 %v3942, %v3943
      %v3945 = vrot.slane %v3944, 1
      %v3946 = vadd.f32 %v3944, %v3945
      %3947 = vst [vmem:[%s292] sm:$0x1] %v3946
      %v3948 = vmul.f32 %v3846, %v3846
      %v3949 = vmul.f32 %v3847, %v3847
      %v3950 = vmul.f32 %v3848, %v3848
      %v3951 = vmul.f32 %v3849, %v3849
      %v3952 = vmul.f32 %v3850, %v3850
      %v3953 = vmul.f32 %v3851, %v3851
      %v3954 = vmul.f32 %v3852, %v3852
      %v3955 = vmul.f32 %v3853, %v3853
      %v3956 = vmul.f32 %v3854, %v3854
      %v3957 = vmul.f32 %v3855, %v3855
      %v3958 = vmul.f32 %v3856, %v3856
      %v3959 = vmul.f32 %v3857, %v3857
      %v3960 = vmul.f32 %v3858, %v3858
      %v3961 = vmul.f32 %v3859, %v3859
      %v3962 = vmul.f32 %v3860, %v3860
      %v3963 = vmul.f32 %v3861, %v3861
      %v3964 = vmul.f32 %v3862, %v3862
      %v3965 = vmul.f32 %v3863, %v3863
      %v3966 = vmul.f32 %v3864, %v3864
      %v3967 = vmul.f32 %v3865, %v3865
      %v3968 = vmul.f32 %v3866, %v3866
      %v3969 = vmul.f32 %v3867, %v3867
      %v3970 = vmul.f32 %v3868, %v3868
      %v3971 = vmul.f32 %v3869, %v3869
      %v3972 = vmul.f32 %v3870, %v3870
      %v3973 = vmul.f32 %v3871, %v3871
      %v3974 = vmul.f32 %v3872, %v3872
      %v3975 = vmul.f32 %v3873, %v3873
      %v3976 = vmul.f32 %v3874, %v3874
      %v3977 = vmul.f32 %v3875, %v3875
      %v3978 = vmul.f32 %v3876, %v3876
      %v3979 = vmul.f32 %v3877, %v3877
      %v3980 = vadd.f32 %v3948, %v3949
      %v3981 = vadd.f32 %v3980, %v3950
      %v3982 = vadd.f32 %v3981, %v3951
      %v3983 = vadd.f32 %v3982, %v3952
      %v3984 = vadd.f32 %v3983, %v3953
      %v3985 = vadd.f32 %v3984, %v3954
      %v3986 = vadd.f32 %v3985, %v3955
      %v3987 = vadd.f32 %v3986, %v3956
      %v3988 = vadd.f32 %v3987, %v3957
      %v3989 = vadd.f32 %v3988, %v3958
      %v3990 = vadd.f32 %v3989, %v3959
      %v3991 = vadd.f32 %v3990, %v3960
      %v3992 = vadd.f32 %v3991, %v3961
      %v3993 = vadd.f32 %v3992, %v3962
      %v3994 = vadd.f32 %v3993, %v3963
      %v3995 = vadd.f32 %v3994, %v3964
      %v3996 = vadd.f32 %v3995, %v3965
      %v3997 = vadd.f32 %v3996, %v3966
      %v3998 = vadd.f32 %v3997, %v3967
      %v3999 = vadd.f32 %v3998, %v3968
      %v4000 = vadd.f32 %v3999, %v3969
      %v4001 = vadd.f32 %v4000, %v3970
      %v4002 = vadd.f32 %v4001, %v3971
      %v4003 = vadd.f32 %v4002, %v3972
      %v4004 = vadd.f32 %v4003, %v3973
      %v4005 = vadd.f32 %v4004, %v3974
      %v4006 = vadd.f32 %v4005, %v3975
      %v4007 = vadd.f32 %v4006, %v3976
      %v4008 = vadd.f32 %v4007, %v3977
      %v4009 = vadd.f32 %v4008, %v3978
      %v4010 = vadd.f32 %v4009, %v3979
      %v4011 = vrot.slane %v4010, 4
      %v4012 = vadd.f32 %v4010, %v4011
      %v4013 = vrot.slane %v4012, 2
      %v4014 = vadd.f32 %v4012, %v4013
      %v4015 = vrot.slane %v4014, 1
      %v4016 = vadd.f32 %v4014, %v4015
      %4017 = vst [vmem:[%s295] sm:$0x1] %v4016
      %p4018 = scmp.lt.s32.totalorder %s19, 1
      %s4019 = scalar_select %p4018, %s19, 1
      %s4020 = smul.addr %s4019, 32
      %s4021 = smul.addr %s4020, 8
      %s4022 = scalar_lea.vmem %s5, %s4021
      %p4023 = scmp.lt.s32.totalorder %s19, 1
      %s4024 = scalar_select %p4023, %s19, 1
      %s4025 = scalar_lea.vmem %s6, %s4024
      %p4026 = scmp.lt.s32.totalorder %s19, 1
      %s4027 = scalar_select %p4026, %s19, 1
      %s4028 = scalar_lea.vmem %s7, %s4027
      // Predicated region
      $region41: #{gblock_forward.4} parent=39 // pred_check
        %p4029 = pneg %p147
      $region42: #{gblock_forward.4} parent=39 // pred_check_branch
        %4031 = sbr.rel (%p4029) target = $region44
      $region43: #{gblock_forward.4} parent=39 // pred_region
        _
      $region44: #{gblock_forward.4} parent=39 // pred_fallthru
        _
      // Predicated region
      $region45: #{gblock_forward.4} parent=39 // pred_check
        %p4032 = pneg %p173
      $region46: #{gblock_forward.4} parent=39 // pred_check_branch
        %4034 = sbr.rel (%p4032) target = $region48
      $region47: #{gblock_forward.4} parent=39 // pred_region
        _
      $region48: #{gblock_forward.4} parent=39 // pred_fallthru
        _
      // Predicated region
      $region49: #{gblock_forward.4} parent=39 // pred_check
        %p4035 = pneg %p199
      $region50: #{gblock_forward.4} parent=39 // pred_check_branch
        %4037 = sbr.rel (%p4035) target = $region52
      $region51: #{gblock_forward.4} parent=39 // pred_region
        _
      $region52: #{gblock_forward.4} parent=39 // pred_fallthru
        _
    $region40: #{gblock_forward.4} parent=5 // pred_fallthru
      _
    %p4038 = scmp.le.s32.totalorder 2, %s14
    // Predicated region
    $region53: #{gblock_forward.4} parent=5 // pred_check
      %p4039 = pneg %p4038
    $region54: #{gblock_forward.4} parent=5 // pred_check_branch
      %4041 = sbr.rel (%p4039) target = $region56
    $region55: #{gblock_forward.4} parent=5 // pred_region
      %s4042 = ssub.s32 %s14, 2
      // Predicated region
      $region57: #{gblock_forward.4} parent=55 // pred_check
        %p4043 = pneg %p153
      $region58: #{gblock_forward.4} parent=55 // pred_check_branch
        %4045 = sbr.rel (%p4043) target = $region60
      $region59: #{gblock_forward.4} parent=55 // pred_region
        %p4046 = scmp.lt.s32.totalorder %s20, 1
        %s4047 = scalar_select %p4046, %s20, 1
        %s4048 = smul.addr %s4047, 32
        %s4049 = smul.addr %s4048, 8
        %s4050 = scalar_lea.vmem %s5, %s4049
      $region60: #{gblock_forward.4} parent=55 // pred_fallthru
        _
      // Predicated region
      $region61: #{gblock_forward.4} parent=55 // pred_check
        %p4051 = pneg %p179
      $region62: #{gblock_forward.4} parent=55 // pred_check_branch
        %4053 = sbr.rel (%p4051) target = $region64
      $region63: #{gblock_forward.4} parent=55 // pred_region
        %p4054 = scmp.lt.s32.totalorder %s20, 1
        %s4055 = scalar_select %p4054, %s20, 1
        %s4056 = scalar_lea.vmem %s6, %s4055
      $region64: #{gblock_forward.4} parent=55 // pred_fallthru
        _
      // Predicated region
      $region65: #{gblock_forward.4} parent=55 // pred_check
        %p4057 = pneg %p205
      $region66: #{gblock_forward.4} parent=55 // pred_check_branch
        %4059 = sbr.rel (%p4057) target = $region68
      $region67: #{gblock_forward.4} parent=55 // pred_region
        %p4060 = scmp.lt.s32.totalorder %s20, 1
        %s4061 = scalar_select %p4060, %s20, 1
        %s4062 = scalar_lea.vmem %s7, %s4061
      $region68: #{gblock_forward.4} parent=55 // pred_fallthru
        _
    $region56: #{gblock_forward.4} parent=5 // pred_fallthru
      _
  $region6: #{gblock_forward.4} parent=0 // loop_footer
    %s18 = sadd.s32 1, %s14
  $region7: #{gblock_forward.4} parent=0 // loop_footer_branch
    %13 = sbr.rel target = $region3
  $region8: #{gblock_forward.4} parent=0 // loop_exit
    _

// kernel: gblock_forward.5
$region0: #{gblock_forward.5}
  #allocation0 [shape = 'u32[]', space=smem, size = 0x4, offset = 0x4, fixed_abs, tag = 'smem constant byte address 0x4 - core index']
  #allocation1 [shape = 'u32[144,128]{1,0:T(1,128)}', space=vmem, size = 0x12000, scoped, tag = 'internal scratch']
  #allocation2 [shape = 'f32[304,128]{1,0:T(8,128)}', space=vmem, size = 0x26000, scoped, tag = 'scratch operand']
  %s0 = inlined_call_operand.vmem [shape: f32[2,256,128], index: 0, kind: input, shape index: {}]
  %s1 = inlined_call_operand.vmem [shape: f32[2,256,128], index: 1, kind: input, shape index: {}]
  %s2 = inlined_call_operand.vmem [shape: f32[1,128], index: 2, kind: input, shape index: {}]
  %s3 = inlined_call_operand.vmem [shape: f32[1,128], index: 3, kind: input, shape index: {}]
  %s4 = inlined_call_operand.vmem [shape: bf16[9,128,128], index: 4, kind: input, shape index: {}]
  %s5 = inlined_call_operand.vmem [shape: f32[1,128], index: 5, kind: input, shape index: {}]
  %s6 = inlined_call_operand.vmem [shape: bf16[128,128], index: 6, kind: input, shape index: {}]
  %s7 = inlined_call_operand.vmem [shape: f32[1,128], index: 7, kind: input, shape index: {}]
  %s8 = inlined_call_operand.vmem [shape: f32[2,256,128], index: 8, kind: input, shape index: {}]
  %s9 = inlined_call_operand.vmem [shape: f32[2,256,128], index: 9, kind: input, shape index: {}]
  %s10 = inlined_call_operand.vmem [shape: f32[2,256,128], index: 10, kind: output, shape index: {}]
  %s11 = sld [smem:[#allocation0]]
  $region73: #{gblock_forward.5} parent=0
    _
  %s13 = ssub.s32 1, %s11
  %s14 = scalar_select 0, %s13, %s11
  loop: start=0, step=1, limit=4
  $region2: #{gblock_forward.5} parent=0 // loop_pre_header
    _
  $region3: #{gblock_forward.5} parent=0 // loop_header
    %s16 = sphi 0, %s20
    %p17 = scmp.ge.s32.totalorder %s16, 4
    %s26 = sphi 0, %s28
    %s29 = sphi 0, %s26
    %s30 = sphi 0, %s29
    %s46 = sphi 0, %s30
    %s52 = sphi 0, %s54
    %s55 = sphi 0, %s52
    %s56 = sphi 0, %s55
    %s72 = sphi 0, %s56
    %s76 = sphi 0, %s76
    %s78 = sphi 0, %s76
    %s79 = sphi 0, %s78
    %s93 = sphi 0, %s79
    %s97 = sphi 0, %s97
    %s99 = sphi 0, %s97
    %s100 = sphi 0, %s99
    %s114 = sphi 0, %s100
    %s118 = sphi 0, %s118
    %s120 = sphi 0, %s118
    %s121 = sphi 0, %s120
    %s135 = sphi 0, %s121
    %s139 = sphi 0, %s139
    %s141 = sphi 0, %s139
    %s142 = sphi 0, %s141
    %s156 = sphi 0, %s142
    %s160 = sphi 0, %s160
    %s162 = sphi 0, %s160
    %s163 = sphi 0, %s162
    %s177 = sphi 0, %s163
    %s181 = sphi 0, %s181
    %s183 = sphi 0, %s181
    %s184 = sphi 0, %s183
    %s198 = sphi 0, %s184
    %s204 = sphi 0, %s206
    %s207 = sphi 0, %s204
    %s208 = sphi 0, %s207
    %s224 = sphi 0, %s208
    %s230 = sphi 0, %s232
    %s233 = sphi 0, %s230
    %s234 = sphi 0, %s233
    %s250 = sphi 0, %s234
    %s256 = sphi 0, %s258
    %s259 = sphi 0, %s256
    %s260 = sphi 0, %s259
    %s276 = sphi 0, %s260
  $region4: #{gblock_forward.5} parent=0 // loop_header_branch
    %19 = sbr.rel (%p17) target = $region8
  $region5: #{gblock_forward.5} parent=0 // loop_body
    %s21 = ssub.s32 %s16, 1
    %s22 = ssub.s32 %s16, 2
    %s23 = sadd.s32 %s16, 1
    %s24 = ssub.s32 %s16, %s23
    %p25 = scmp.eq.s32.totalorder %s24, 0
    %s27 = sadd.s32 %s26, 1
    %s28 = scalar_select %p25, %s26, %s27
    %p31 = pneg %p25
    %p32 = scmp.eq.s32.totalorder %s16, 1
    %p33 = por %p31, %p32
    %p34 = scmp.ne.s32.totalorder %s26, %s29
    %p35 = scmp.eq.s32.totalorder %s16, 0
    %p36 = por %p34, %p35
    %p37 = scmp.ne.s32.totalorder %s26, %s29
    %p38 = scmp.eq.s32.totalorder %s21, 1
    %p39 = por %p37, %p38
    %p40 = scmp.ne.s32.totalorder %s29, %s30
    %p41 = scmp.eq.s32.totalorder %s21, 0
    %p42 = por %p40, %p41
    %p43 = scmp.ne.s32.totalorder %s29, %s30
    %p44 = scmp.eq.s32.totalorder %s22, 1
    %p45 = por %p43, %p44
    %p47 = scmp.ne.s32.totalorder %s30, %s46
    %p48 = scmp.eq.s32.totalorder %s22, 0
    %p49 = por %p47, %p48
    %s50 = ssub.s32 %s16, %s23
    %p51 = scmp.eq.s32.totalorder %s50, 0
    %s53 = sadd.s32 %s52, 1
    %s54 = scalar_select %p51, %s52, %s53
    %p57 = pneg %p51
    %p58 = scmp.eq.s32.totalorder %s16, 1
    %p59 = por %p57, %p58
    %p60 = scmp.ne.s32.totalorder %s52, %s55
    %p61 = scmp.eq.s32.totalorder %s16, 0
    %p62 = por %p60, %p61
    %p63 = scmp.ne.s32.totalorder %s52, %s55
    %p64 = scmp.eq.s32.totalorder %s21, 1
    %p65 = por %p63, %p64
    %p66 = scmp.ne.s32.totalorder %s55, %s56
    %p67 = scmp.eq.s32.totalorder %s21, 0
    %p68 = por %p66, %p67
    %p69 = scmp.ne.s32.totalorder %s55, %s56
    %p70 = scmp.eq.s32.totalorder %s22, 1
    %p71 = por %p69, %p70
    %p73 = scmp.ne.s32.totalorder %s56, %s72
    %p74 = scmp.eq.s32.totalorder %s22, 0
    %p75 = por %p73, %p74
    %s77 = sadd.s32 %s76, 1
    %p80 = scmp.eq.s32.totalorder %s16, 1
    %p81 = scmp.ne.s32.totalorder %s76, %s78
    %p82 = scmp.eq.s32.totalorder %s16, 0
    %p83 = por %p81, %p82
    %p84 = scmp.ne.s32.totalorder %s76, %s78
    %p85 = scmp.eq.s32.totalorder %s21, 1
    %p86 = por %p84, %p85
    %p87 = scmp.ne.s32.totalorder %s78, %s79
    %p88 = scmp.eq.s32.totalorder %s21, 0
    %p89 = por %p87, %p88
    %p90 = scmp.ne.s32.totalorder %s78, %s79
    %p91 = scmp.eq.s32.totalorder %s22, 1
    %p92 = por %p90, %p91
    %p94 = scmp.ne.s32.totalorder %s79, %s93
    %p95 = scmp.eq.s32.totalorder %s22, 0
    %p96 = por %p94, %p95
    %s98 = sadd.s32 %s97, 1
    %p101 = scmp.eq.s32.totalorder %s16, 1
    %p102 = scmp.ne.s32.totalorder %s97, %s99
    %p103 = scmp.eq.s32.totalorder %s16, 0
    %p104 = por %p102, %p103
    %p105 = scmp.ne.s32.totalorder %s97, %s99
    %p106 = scmp.eq.s32.totalorder %s21, 1
    %p107 = por %p105, %p106
    %p108 = scmp.ne.s32.totalorder %s99, %s100
    %p109 = scmp.eq.s32.totalorder %s21, 0
    %p110 = por %p108, %p109
    %p111 = scmp.ne.s32.totalorder %s99, %s100
    %p112 = scmp.eq.s32.totalorder %s22, 1
    %p113 = por %p111, %p112
    %p115 = scmp.ne.s32.totalorder %s100, %s114
    %p116 = scmp.eq.s32.totalorder %s22, 0
    %p117 = por %p115, %p116
    %s119 = sadd.s32 %s118, 1
    %p122 = scmp.eq.s32.totalorder %s16, 1
    %p123 = scmp.ne.s32.totalorder %s118, %s120
    %p124 = scmp.eq.s32.totalorder %s16, 0
    %p125 = por %p123, %p124
    %p126 = scmp.ne.s32.totalorder %s118, %s120
    %p127 = scmp.eq.s32.totalorder %s21, 1
    %p128 = por %p126, %p127
    %p129 = scmp.ne.s32.totalorder %s120, %s121
    %p130 = scmp.eq.s32.totalorder %s21, 0
    %p131 = por %p129, %p130
    %p132 = scmp.ne.s32.totalorder %s120, %s121
    %p133 = scmp.eq.s32.totalorder %s22, 1
    %p134 = por %p132, %p133
    %p136 = scmp.ne.s32.totalorder %s121, %s135
    %p137 = scmp.eq.s32.totalorder %s22, 0
    %p138 = por %p136, %p137
    %s140 = sadd.s32 %s139, 1
    %p143 = scmp.eq.s32.totalorder %s16, 1
    %p144 = scmp.ne.s32.totalorder %s139, %s141
    %p145 = scmp.eq.s32.totalorder %s16, 0
    %p146 = por %p144, %p145
    %p147 = scmp.ne.s32.totalorder %s139, %s141
    %p148 = scmp.eq.s32.totalorder %s21, 1
    %p149 = por %p147, %p148
    %p150 = scmp.ne.s32.totalorder %s141, %s142
    %p151 = scmp.eq.s32.totalorder %s21, 0
    %p152 = por %p150, %p151
    %p153 = scmp.ne.s32.totalorder %s141, %s142
    %p154 = scmp.eq.s32.totalorder %s22, 1
    %p155 = por %p153, %p154
    %p157 = scmp.ne.s32.totalorder %s142, %s156
    %p158 = scmp.eq.s32.totalorder %s22, 0
    %p159 = por %p157, %p158
    %s161 = sadd.s32 %s160, 1
    %p164 = scmp.eq.s32.totalorder %s16, 1
    %p165 = scmp.ne.s32.totalorder %s160, %s162
    %p166 = scmp.eq.s32.totalorder %s16, 0
    %p167 = por %p165, %p166
    %p168 = scmp.ne.s32.totalorder %s160, %s162
    %p169 = scmp.eq.s32.totalorder %s21, 1
    %p170 = por %p168, %p169
    %p171 = scmp.ne.s32.totalorder %s162, %s163
    %p172 = scmp.eq.s32.totalorder %s21, 0
    %p173 = por %p171, %p172
    %p174 = scmp.ne.s32.totalorder %s162, %s163
    %p175 = scmp.eq.s32.totalorder %s22, 1
    %p176 = por %p174, %p175
    %p178 = scmp.ne.s32.totalorder %s163, %s177
    %p179 = scmp.eq.s32.totalorder %s22, 0
    %p180 = por %p178, %p179
    %s182 = sadd.s32 %s181, 1
    %p185 = scmp.eq.s32.totalorder %s16, 1
    %p186 = scmp.ne.s32.totalorder %s181, %s183
    %p187 = scmp.eq.s32.totalorder %s16, 0
    %p188 = por %p186, %p187
    %p189 = scmp.ne.s32.totalorder %s181, %s183
    %p190 = scmp.eq.s32.totalorder %s21, 1
    %p191 = por %p189, %p190
    %p192 = scmp.ne.s32.totalorder %s183, %s184
    %p193 = scmp.eq.s32.totalorder %s21, 0
    %p194 = por %p192, %p193
    %p195 = scmp.ne.s32.totalorder %s183, %s184
    %p196 = scmp.eq.s32.totalorder %s22, 1
    %p197 = por %p195, %p196
    %p199 = scmp.ne.s32.totalorder %s184, %s198
    %p200 = scmp.eq.s32.totalorder %s22, 0
    %p201 = por %p199, %p200
    %s202 = ssub.s32 %s16, %s23
    %p203 = scmp.eq.s32.totalorder %s202, 0
    %s205 = sadd.s32 %s204, 1
    %s206 = scalar_select %p203, %s204, %s205
    %p209 = pneg %p203
    %p210 = scmp.eq.s32.totalorder %s16, 1
    %p211 = por %p209, %p210
    %p212 = scmp.ne.s32.totalorder %s204, %s207
    %p213 = scmp.eq.s32.totalorder %s16, 0
    %p214 = por %p212, %p213
    %p215 = scmp.ne.s32.totalorder %s204, %s207
    %p216 = scmp.eq.s32.totalorder %s21, 1
    %p217 = por %p215, %p216
    %p218 = scmp.ne.s32.totalorder %s207, %s208
    %p219 = scmp.eq.s32.totalorder %s21, 0
    %p220 = por %p218, %p219
    %p221 = scmp.ne.s32.totalorder %s207, %s208
    %p222 = scmp.eq.s32.totalorder %s22, 1
    %p223 = por %p221, %p222
    %p225 = scmp.ne.s32.totalorder %s208, %s224
    %p226 = scmp.eq.s32.totalorder %s22, 0
    %p227 = por %p225, %p226
    %s228 = ssub.s32 %s16, %s23
    %p229 = scmp.eq.s32.totalorder %s228, 0
    %s231 = sadd.s32 %s230, 1
    %s232 = scalar_select %p229, %s230, %s231
    %p235 = pneg %p229
    %p236 = scmp.eq.s32.totalorder %s16, 1
    %p237 = por %p235, %p236
    %p238 = scmp.ne.s32.totalorder %s230, %s233
    %p239 = scmp.eq.s32.totalorder %s16, 0
    %p240 = por %p238, %p239
    %p241 = scmp.ne.s32.totalorder %s230, %s233
    %p242 = scmp.eq.s32.totalorder %s21, 1
    %p243 = por %p241, %p242
    %p244 = scmp.ne.s32.totalorder %s233, %s234
    %p245 = scmp.eq.s32.totalorder %s21, 0
    %p246 = por %p244, %p245
    %p247 = scmp.ne.s32.totalorder %s233, %s234
    %p248 = scmp.eq.s32.totalorder %s22, 1
    %p249 = por %p247, %p248
    %p251 = scmp.ne.s32.totalorder %s234, %s250
    %p252 = scmp.eq.s32.totalorder %s22, 0
    %p253 = por %p251, %p252
    %s254 = ssub.s32 %s16, %s23
    %p255 = scmp.eq.s32.totalorder %s254, 0
    %s257 = sadd.s32 %s256, 1
    %s258 = scalar_select %p255, %s256, %s257
    %p261 = pneg %p255
    %p262 = scmp.eq.s32.totalorder %s16, 1
    %p263 = por %p261, %p262
    %p264 = scmp.ne.s32.totalorder %s256, %s259
    %p265 = scmp.eq.s32.totalorder %s16, 0
    %p266 = por %p264, %p265
    %p267 = scmp.ne.s32.totalorder %s256, %s259
    %p268 = scmp.eq.s32.totalorder %s21, 1
    %p269 = por %p267, %p268
    %p270 = scmp.ne.s32.totalorder %s259, %s260
    %p271 = scmp.eq.s32.totalorder %s21, 0
    %p272 = por %p270, %p271
    %p273 = scmp.ne.s32.totalorder %s259, %s260
    %p274 = scmp.eq.s32.totalorder %s22, 1
    %p275 = por %p273, %p274
    %p277 = scmp.ne.s32.totalorder %s260, %s276
    %p278 = scmp.eq.s32.totalorder %s22, 0
    %p279 = por %p277, %p278
    %p280 = scmp.le.s32.totalorder 1, %s16
    %p281 = scmp.lt.s32.totalorder %s16, 3
    %p282 = pnand %p280, %p281
    %p283 = pneg %p282
    // Predicated region
    $region9: #{gblock_forward.5} parent=5 // pred_check
      _
    $region10: #{gblock_forward.5} parent=5 // pred_check_branch
      %285 = sbr.rel (%p282) target = $region12
    $region11: #{gblock_forward.5} parent=5 // pred_region
      %s286 = ssub.s32 %s16, 1
      // Predicated region
      $region13: #{gblock_forward.5} parent=11 // pred_check
        %p287 = pneg %p89
      $region14: #{gblock_forward.5} parent=11 // pred_check_branch
        %289 = sbr.rel (%p287) target = $region16
      $region15: #{gblock_forward.5} parent=11 // pred_region
        _
      $region16: #{gblock_forward.5} parent=11 // pred_fallthru
        _
      // Predicated region
      $region17: #{gblock_forward.5} parent=11 // pred_check
        %p290 = pneg %p110
      $region18: #{gblock_forward.5} parent=11 // pred_check_branch
        %292 = sbr.rel (%p290) target = $region20
      $region19: #{gblock_forward.5} parent=11 // pred_region
        _
      $region20: #{gblock_forward.5} parent=11 // pred_fallthru
        _
      // Predicated region
      $region21: #{gblock_forward.5} parent=11 // pred_check
        %p293 = pneg %p131
      $region22: #{gblock_forward.5} parent=11 // pred_check_branch
        %295 = sbr.rel (%p293) target = $region24
      $region23: #{gblock_forward.5} parent=11 // pred_region
        _
      $region24: #{gblock_forward.5} parent=11 // pred_fallthru
        _
      // Predicated region
      $region25: #{gblock_forward.5} parent=11 // pred_check
        %p296 = pneg %p152
      $region26: #{gblock_forward.5} parent=11 // pred_check_branch
        %298 = sbr.rel (%p296) target = $region28
      $region27: #{gblock_forward.5} parent=11 // pred_region
        _
      $region28: #{gblock_forward.5} parent=11 // pred_fallthru
        _
      // Predicated region
      $region29: #{gblock_forward.5} parent=11 // pred_check
        %p299 = pneg %p173
      $region30: #{gblock_forward.5} parent=11 // pred_check_branch
        %301 = sbr.rel (%p299) target = $region32
      $region31: #{gblock_forward.5} parent=11 // pred_region
        _
      $region32: #{gblock_forward.5} parent=11 // pred_fallthru
        _
      // Predicated region
      $region33: #{gblock_forward.5} parent=11 // pred_check
        %p302 = pneg %p194
      $region34: #{gblock_forward.5} parent=11 // pred_check_branch
        %304 = sbr.rel (%p302) target = $region36
      $region35: #{gblock_forward.5} parent=11 // pred_region
        _
      $region36: #{gblock_forward.5} parent=11 // pred_fallthru
        _
    $region12: #{gblock_forward.5} parent=5 // pred_fallthru
      _
    %p305 = scmp.lt.s32.totalorder %s16, 2
    // Predicated region
    $region37: #{gblock_forward.5} parent=5 // pred_check
      %p306 = pneg %p305
    $region38: #{gblock_forward.5} parent=5 // pred_check_branch
      %308 = sbr.rel (%p306) target = $region40
    $region39: #{gblock_forward.5} parent=5 // pred_region
      // Predicated region
      $region41: #{gblock_forward.5} parent=39 // pred_check
        %p309 = pneg %p36
      $region42: #{gblock_forward.5} parent=39 // pred_check_branch
        %311 = sbr.rel (%p309) target = $region44
      $region43: #{gblock_forward.5} parent=39 // pred_region
        %p312 = scmp.lt.s32.totalorder %s16, 1
        %s313 = scalar_select %p312, %s16, 1
        %s314 = smul.addr %s313, 32
        %s315 = smul.addr %s314, 8
        %s316 = scalar_lea.vmem %s0, %s315
      $region44: #{gblock_forward.5} parent=39 // pred_fallthru
        _
      // Predicated region
      $region45: #{gblock_forward.5} parent=39 // pred_check
        %p317 = pneg %p62
      $region46: #{gblock_forward.5} parent=39 // pred_check_branch
        %319 = sbr.rel (%p317) target = $region48
      $region47: #{gblock_forward.5} parent=39 // pred_region
        %p320 = scmp.lt.s32.totalorder %s16, 1
        %s321 = scalar_select %p320, %s16, 1
        %s322 = smul.addr %s321, 32
        %s323 = smul.addr %s322, 8
        %s324 = scalar_lea.vmem %s1, %s323
      $region48: #{gblock_forward.5} parent=39 // pred_fallthru
        _
      // Predicated region
      $region49: #{gblock_forward.5} parent=39 // pred_check
        %p325 = pneg %p214
      $region50: #{gblock_forward.5} parent=39 // pred_check_branch
        %327 = sbr.rel (%p325) target = $region52
      $region51: #{gblock_forward.5} parent=39 // pred_region
        %p328 = scmp.lt.s32.totalorder %s16, 1
        %s329 = scalar_select %p328, %s16, 1
        %s330 = smul.addr %s329, 32
        %s331 = smul.addr %s330, 8
        %s332 = scalar_lea.vmem %s8, %s331
      $region52: #{gblock_forward.5} parent=39 // pred_fallthru
        _
      // Predicated region
      $region53: #{gblock_forward.5} parent=39 // pred_check
        %p333 = pneg %p240
      $region54: #{gblock_forward.5} parent=39 // pred_check_branch
        %335 = sbr.rel (%p333) target = $region56
      $region55: #{gblock_forward.5} parent=39 // pred_region
        %p336 = scmp.lt.s32.totalorder %s16, 1
        %s337 = scalar_select %p336, %s16, 1
        %s338 = smul.addr %s337, 32
        %s339 = smul.addr %s338, 8
        %s340 = scalar_lea.vmem %s9, %s339
      $region56: #{gblock_forward.5} parent=39 // pred_fallthru
        _
    $region40: #{gblock_forward.5} parent=5 // pred_fallthru
      _
    %p341 = scmp.le.s32.totalorder 1, %s16
    %p342 = scmp.lt.s32.totalorder %s16, 3
    %p343 = pnand %p341, %p342
    %p344 = pneg %p343
    // Predicated region
    $region57: #{gblock_forward.5} parent=5 // pred_check
      _
    $region58: #{gblock_forward.5} parent=5 // pred_check_branch
      %346 = sbr.rel (%p343) target = $region60
    $region59: #{gblock_forward.5} parent=5 // pred_region
      %s347 = ssub.s32 %s16, 1
      %p348 = scmp.lt.s32.totalorder %s21, 1
      %s349 = scalar_select %p348, %s21, 1
      %s350 = smul.addr %s349, 32
      %s351 = smul.addr %s350, 8
      %s352 = scalar_lea.vmem %s0, %s351
      %p353 = pneg %p42
      %p354 = pneg %p39
      %p355 = scmp.lt.s32.totalorder %s21, 1
      %s356 = scalar_select %p355, %s21, 1
      %s357 = smul.addr %s356, 32
      %s358 = smul.addr %s357, 8
      %s359 = scalar_lea.vmem %s1, %s358
      %p360 = pneg %p68
      %p361 = pneg %p65
      %p362 = pneg %p89
      %p363 = pneg %p86
      %p364 = pneg %p110
      %p365 = pneg %p107
      %p366 = pneg %p131
      %p367 = pneg %p128
      %p368 = pneg %p152
      %p369 = pneg %p149
      %p370 = pneg %p173
      %p371 = pneg %p170
      %p372 = pneg %p194
      %p373 = pneg %p191
      %p374 = scmp.lt.s32.totalorder %s21, 1
      %s375 = scalar_select %p374, %s21, 1
      %s376 = smul.addr %s375, 32
      %s377 = smul.addr %s376, 8
      %s378 = scalar_lea.vmem %s8, %s377
      %p379 = pneg %p220
      %p380 = pneg %p217
      %p381 = scmp.lt.s32.totalorder %s21, 1
      %s382 = scalar_select %p381, %s21, 1
      %s383 = smul.addr %s382, 32
      %s384 = smul.addr %s383, 8
      %s385 = scalar_lea.vmem %s9, %s384
      %p386 = pneg %p246
      %p387 = pneg %p243
      %p388 = pneg %p272
      %p389 = pneg %p269
      %p390 = scmp.lt.s32.totalorder %s21, 1
      %s391 = scalar_select %p390, %s21, 1
      %s392 = smul.addr %s391, 32
      %s393 = smul.addr %s392, 8
      %s394 = scalar_lea.vmem %s10, %s393
      %p395 = scmp.lt.s32.totalorder %s21, 1
      %s396 = scalar_select %p395, %s21, 1
      %s397 = smul.addr %s396, 32
      %s398 = smul.addr %s397, 8
      %s399 = scalar_lea.vmem %s0, %s398
      %p400 = scmp.lt.s32.totalorder %s21, 1
      %s401 = scalar_select %p400, %s21, 1
      %s402 = smul.addr %s401, 32
      %s403 = smul.addr %s402, 8
      %s404 = scalar_lea.vmem %s1, %s403
      %p405 = scmp.lt.s32.totalorder %s21, 1
      %s406 = scalar_select %p405, %s21, 1
      %s407 = smul.addr %s406, 32
      %s408 = smul.addr %s407, 8
      %s409 = scalar_lea.vmem %s8, %s408
      %p410 = scmp.lt.s32.totalorder %s21, 1
      %s411 = scalar_select %p410, %s21, 1
      %s412 = smul.addr %s411, 32
      %s413 = smul.addr %s412, 8
      %s414 = scalar_lea.vmem %s9, %s413
      %p415 = scmp.lt.s32.totalorder %s21, 1
      %s416 = scalar_select %p415, %s21, 1
      %s417 = smul.addr %s416, 32
      %s418 = smul.addr %s417, 8
      %s419 = scalar_lea.vmem %s10, %s418
      %v421 = vld [vmem:[%s399] sm:$0xff]
      %v422 = vld [vmem:[%s399 + $0x8] sm:$0xff]
      %v423 = vld [vmem:[%s399 + $0x10] sm:$0xff]
      %v424 = vld [vmem:[%s399 + $0x18] sm:$0xff]
      %v425 = vld [vmem:[%s399 + $0x20] sm:$0xff]
      %v426 = vld [vmem:[%s399 + $0x28] sm:$0xff]
      %v427 = vld [vmem:[%s399 + $0x30] sm:$0xff]
      %v428 = vld [vmem:[%s399 + $0x38] sm:$0xff]
      %v429 = vld [vmem:[%s399 + $0x40] sm:$0xff]
      %v430 = vld [vmem:[%s399 + $0x48] sm:$0xff]
      %v431 = vld [vmem:[%s399 + $0x50] sm:$0xff]
      %v432 = vld [vmem:[%s399 + $0x58] sm:$0xff]
      %v433 = vld [vmem:[%s399 + $0x60] sm:$0xff]
      %v434 = vld [vmem:[%s399 + $0x68] sm:$0xff]
      %v435 = vld [vmem:[%s399 + $0x70] sm:$0xff]
      %v436 = vld [vmem:[%s399 + $0x78] sm:$0xff]
      %v437 = vld [vmem:[%s399 + $0x80] sm:$0xff]
      %v438 = vld [vmem:[%s399 + $0x88] sm:$0xff]
      %v439 = vld [vmem:[%s399 + $0x90] sm:$0xff]
      %v440 = vld [vmem:[%s399 + $0x98] sm:$0xff]
      %v441 = vld [vmem:[%s399 + $0xa0] sm:$0xff]
      %v442 = vld [vmem:[%s399 + $0xa8] sm:$0xff]
      %v443 = vld [vmem:[%s399 + $0xb0] sm:$0xff]
      %v444 = vld [vmem:[%s399 + $0xb8] sm:$0xff]
      %v445 = vld [vmem:[%s399 + $0xc0] sm:$0xff]
      %v446 = vld [vmem:[%s399 + $0xc8] sm:$0xff]
      %v447 = vld [vmem:[%s399 + $0xd0] sm:$0xff]
      %v448 = vld [vmem:[%s399 + $0xd8] sm:$0xff]
      %v449 = vld [vmem:[%s399 + $0xe0] sm:$0xff]
      %v450 = vld [vmem:[%s399 + $0xe8] sm:$0xff]
      %v451 = vld [vmem:[%s399 + $0xf0] sm:$0xff]
      %v452 = vld [vmem:[%s399 + $0xf8] sm:$0xff]
      %v453 = vld [vmem:[%s2] sm:$0x1]
      %v455 = vlaneseq
      %v456 = vshrl.u32 %v455, 7
      %v457 = vsub.s32 0, %v456
      %v458 = vrot.slane %v453, %v457
      %v460 = vmul.f32 %v421, %v458
      %v461 = vmul.f32 %v422, %v458
      %v462 = vmul.f32 %v423, %v458
      %v463 = vmul.f32 %v424, %v458
      %v464 = vmul.f32 %v425, %v458
      %v465 = vmul.f32 %v426, %v458
      %v466 = vmul.f32 %v427, %v458
      %v467 = vmul.f32 %v428, %v458
      %v468 = vmul.f32 %v429, %v458
      %v469 = vmul.f32 %v430, %v458
      %v470 = vmul.f32 %v431, %v458
      %v471 = vmul.f32 %v432, %v458
      %v472 = vmul.f32 %v433, %v458
      %v473 = vmul.f32 %v434, %v458
      %v474 = vmul.f32 %v435, %v458
      %v475 = vmul.f32 %v436, %v458
      %v476 = vmul.f32 %v437, %v458
      %v477 = vmul.f32 %v438, %v458
      %v478 = vmul.f32 %v439, %v458
      %v479 = vmul.f32 %v440, %v458
      %v480 = vmul.f32 %v441, %v458
      %v481 = vmul.f32 %v442, %v458
      %v482 = vmul.f32 %v443, %v458
      %v483 = vmul.f32 %v444, %v458
      %v484 = vmul.f32 %v445, %v458
      %v485 = vmul.f32 %v446, %v458
      %v486 = vmul.f32 %v447, %v458
      %v487 = vmul.f32 %v448, %v458
      %v488 = vmul.f32 %v449, %v458
      %v489 = vmul.f32 %v450, %v458
      %v490 = vmul.f32 %v451, %v458
      %v491 = vmul.f32 %v452, %v458
      %v492 = vld [vmem:[%s3] sm:$0x1]
      %v494 = vlaneseq
      %v495 = vshrl.u32 %v494, 7
      %v496 = vsub.s32 0, %v495
      %v497 = vrot.slane %v492, %v496
      %v499 = vadd.f32 %v460, %v497
      %v500 = vadd.f32 %v461, %v497
      %v501 = vadd.f32 %v462, %v497
      %v502 = vadd.f32 %v463, %v497
      %v503 = vadd.f32 %v464, %v497
      %v504 = vadd.f32 %v465, %v497
      %v505 = vadd.f32 %v466, %v497
      %v506 = vadd.f32 %v467, %v497
      %v507 = vadd.f32 %v468, %v497
      %v508 = vadd.f32 %v469, %v497
      %v509 = vadd.f32 %v470, %v497
      %v510 = vadd.f32 %v471, %v497
      %v511 = vadd.f32 %v472, %v497
      %v512 = vadd.f32 %v473, %v497
      %v513 = vadd.f32 %v474, %v497
      %v514 = vadd.f32 %v475, %v497
      %v515 = vadd.f32 %v476, %v497
      %v516 = vadd.f32 %v477, %v497
      %v517 = vadd.f32 %v478, %v497
      %v518 = vadd.f32 %v479, %v497
      %v519 = vadd.f32 %v480, %v497
      %v520 = vadd.f32 %v481, %v497
      %v521 = vadd.f32 %v482, %v497
      %v522 = vadd.f32 %v483, %v497
      %v523 = vadd.f32 %v484, %v497
      %v524 = vadd.f32 %v485, %v497
      %v525 = vadd.f32 %v486, %v497
      %v526 = vadd.f32 %v487, %v497
      %v527 = vadd.f32 %v488, %v497
      %v528 = vadd.f32 %v489, %v497
      %v529 = vadd.f32 %v490, %v497
      %v530 = vadd.f32 %v491, %v497
      %v531 = vmax.f32 %v499, 0.0
      %v532 = vmax.f32 %v500, 0.0
      %v533 = vmax.f32 %v501, 0.0
      %v534 = vmax.f32 %v502, 0.0
      %v535 = vmax.f32 %v503, 0.0
      %v536 = vmax.f32 %v504, 0.0
      %v537 = vmax.f32 %v505, 0.0
      %v538 = vmax.f32 %v506, 0.0
      %v539 = vmax.f32 %v507, 0.0
      %v540 = vmax.f32 %v508, 0.0
      %v541 = vmax.f32 %v509, 0.0
      %v542 = vmax.f32 %v510, 0.0
      %v543 = vmax.f32 %v511, 0.0
      %v544 = vmax.f32 %v512, 0.0
      %v545 = vmax.f32 %v513, 0.0
      %v546 = vmax.f32 %v514, 0.0
      %v547 = vmax.f32 %v515, 0.0
      %v548 = vmax.f32 %v516, 0.0
      %v549 = vmax.f32 %v517, 0.0
      %v550 = vmax.f32 %v518, 0.0
      %v551 = vmax.f32 %v519, 0.0
      %v552 = vmax.f32 %v520, 0.0
      %v553 = vmax.f32 %v521, 0.0
      %v554 = vmax.f32 %v522, 0.0
      %v555 = vmax.f32 %v523, 0.0
      %v556 = vmax.f32 %v524, 0.0
      %v557 = vmax.f32 %v525, 0.0
      %v558 = vmax.f32 %v526, 0.0
      %v559 = vmax.f32 %v527, 0.0
      %v560 = vmax.f32 %v528, 0.0
      %v561 = vmax.f32 %v529, 0.0
      %v562 = vmax.f32 %v530, 0.0
      %563 = vst [vmem:[#allocation2] sm:$0xff] 0.0
      %564 = vst [vmem:[#allocation2 + $0x8] sm:$0xff] 0.0
      %565 = vst [vmem:[#allocation2 + $0x10] sm:$0xff] 0.0
      %566 = vst [vmem:[#allocation2 + $0x118] sm:$0xff] 0.0
      %567 = vst [vmem:[#allocation2 + $0x120] sm:$0xff] 0.0
      %568 = vst [vmem:[#allocation2 + $0x128] sm:$0xff] 0.0
      %569 = vst [vmem:[#allocation2 + $0x18] sm:$0xff] %v531
      %570 = vst [vmem:[#allocation2 + $0x20] sm:$0xff] %v532
      %571 = vst [vmem:[#allocation2 + $0x28] sm:$0xff] %v533
      %572 = vst [vmem:[#allocation2 + $0x30] sm:$0xff] %v534
      %573 = vst [vmem:[#allocation2 + $0x38] sm:$0xff] %v535
      %574 = vst [vmem:[#allocation2 + $0x40] sm:$0xff] %v536
      %575 = vst [vmem:[#allocation2 + $0x48] sm:$0xff] %v537
      %576 = vst [vmem:[#allocation2 + $0x50] sm:$0xff] %v538
      %577 = vst [vmem:[#allocation2 + $0x58] sm:$0xff] %v539
      %578 = vst [vmem:[#allocation2 + $0x60] sm:$0xff] %v540
      %579 = vst [vmem:[#allocation2 + $0x68] sm:$0xff] %v541
      %580 = vst [vmem:[#allocation2 + $0x70] sm:$0xff] %v542
      %581 = vst [vmem:[#allocation2 + $0x78] sm:$0xff] %v543
      %582 = vst [vmem:[#allocation2 + $0x80] sm:$0xff] %v544
      %583 = vst [vmem:[#allocation2 + $0x88] sm:$0xff] %v545
      %584 = vst [vmem:[#allocation2 + $0x90] sm:$0xff] %v546
      %585 = vst [vmem:[#allocation2 + $0x98] sm:$0xff] %v547
      %586 = vst [vmem:[#allocation2 + $0xa0] sm:$0xff] %v548
      %587 = vst [vmem:[#allocation2 + $0xa8] sm:$0xff] %v549
      %588 = vst [vmem:[#allocation2 + $0xb0] sm:$0xff] %v550
      %589 = vst [vmem:[#allocation2 + $0xb8] sm:$0xff] %v551
      %590 = vst [vmem:[#allocation2 + $0xc0] sm:$0xff] %v552
      %591 = vst [vmem:[#allocation2 + $0xc8] sm:$0xff] %v553
      %592 = vst [vmem:[#allocation2 + $0xd0] sm:$0xff] %v554
      %593 = vst [vmem:[#allocation2 + $0xd8] sm:$0xff] %v555
      %594 = vst [vmem:[#allocation2 + $0xe0] sm:$0xff] %v556
      %595 = vst [vmem:[#allocation2 + $0xe8] sm:$0xff] %v557
      %596 = vst [vmem:[#allocation2 + $0xf0] sm:$0xff] %v558
      %597 = vst [vmem:[#allocation2 + $0xf8] sm:$0xff] %v559
      %598 = vst [vmem:[#allocation2 + $0x100] sm:$0xff] %v560
      %599 = vst [vmem:[#allocation2 + $0x108] sm:$0xff] %v561
      %600 = vst [vmem:[#allocation2 + $0x110] sm:$0xff] %v562
      %v601 = vlaneseq
      %v602 = vshrl.u32 %v601, 7
      %v603 = vadd.s32 %v602, 8
      %v604 = vadd.s32 %v602, 16
      %v605 = vadd.s32 %v602, 24
      %v606 = vadd.s32 %v602, 32
      %v607 = vadd.s32 %v602, 40
      %v608 = vadd.s32 %v602, 48
      %v609 = vadd.s32 %v602, 56
      %v610 = vadd.s32 %v602, 64
      %v611 = vadd.s32 %v602, 72
      %v612 = vadd.s32 %v602, 80
      %v613 = vadd.s32 %v602, 88
      %v614 = vadd.s32 %v602, 96
      %v615 = vadd.s32 %v602, 104
      %v616 = vadd.s32 %v602, 112
      %v617 = vadd.s32 %v602, 120
      %v618 = vadd.s32 %v602, 128
      %v619 = vadd.s32 %v602, 136
      %v620 = vadd.s32 %v602, 144
      %v621 = vadd.s32 %v602, 152
      %v622 = vadd.s32 %v602, 160
      %v623 = vadd.s32 %v602, 168
      %v624 = vadd.s32 %v602, 176
      %v625 = vadd.s32 %v602, 184
      %v626 = vadd.s32 %v602, 192
      %v627 = vadd.s32 %v602, 200
      %v628 = vadd.s32 %v602, 208
      %v629 = vadd.s32 %v602, 216
      %v630 = vadd.s32 %v602, 224
      %v631 = vadd.s32 %v602, 232
      %v632 = vadd.s32 %v602, 240
      %v633 = vadd.s32 %v602, 248
      %vm634 = vcmp.lt.s32.totalorder %v602, 0
      %v635 = vsub.s32 0, %v602
      %v636 = vsel %vm634, %v635, %v602
      %v637 = vshrl.u32 %v636, 4
      %v638 = vand.u32 %v636, 15
      %v639 = vsub.s32 0, %v638
      %v640 = vsel %vm634, %v639, %v638
      %vm641 = vcmp.lt.s32.totalorder %v603, 0
      %v642 = vsub.s32 0, %v603
      %v643 = vsel %vm641, %v642, %v603
      %v644 = vshrl.u32 %v643, 4
      %v645 = vand.u32 %v643, 15
      %v646 = vsub.s32 0, %v645
      %v647 = vsel %vm641, %v646, %v645
      %vm648 = vcmp.lt.s32.totalorder %v604, 0
      %v649 = vsub.s32 0, %v604
      %v650 = vsel %vm648, %v649, %v604
      %v651 = vshrl.u32 %v650, 4
      %v652 = vand.u32 %v650, 15
      %v653 = vsub.s32 0, %v652
      %v654 = vsel %vm648, %v653, %v652
      %vm655 = vcmp.lt.s32.totalorder %v605, 0
      %v656 = vsub.s32 0, %v605
      %v657 = vsel %vm655, %v656, %v605
      %v658 = vshrl.u32 %v657, 4
      %v659 = vand.u32 %v657, 15
      %v660 = vsub.s32 0, %v659
      %v661 = vsel %vm655, %v660, %v659
      %vm662 = vcmp.lt.s32.totalorder %v606, 0
      %v663 = vsub.s32 0, %v606
      %v664 = vsel %vm662, %v663, %v606
      %v665 = vshrl.u32 %v664, 4
      %v666 = vand.u32 %v664, 15
      %v667 = vsub.s32 0, %v666
      %v668 = vsel %vm662, %v667, %v666
      %vm669 = vcmp.lt.s32.totalorder %v607, 0
      %v670 = vsub.s32 0, %v607
      %v671 = vsel %vm669, %v670, %v607
      %v672 = vshrl.u32 %v671, 4
      %v673 = vand.u32 %v671, 15
      %v674 = vsub.s32 0, %v673
      %v675 = vsel %vm669, %v674, %v673
      %vm676 = vcmp.lt.s32.totalorder %v608, 0
      %v677 = vsub.s32 0, %v608
      %v678 = vsel %vm676, %v677, %v608
      %v679 = vshrl.u32 %v678, 4
      %v680 = vand.u32 %v678, 15
      %v681 = vsub.s32 0, %v680
      %v682 = vsel %vm676, %v681, %v680
      %vm683 = vcmp.lt.s32.totalorder %v609, 0
      %v684 = vsub.s32 0, %v609
      %v685 = vsel %vm683, %v684, %v609
      %v686 = vshrl.u32 %v685, 4
      %v687 = vand.u32 %v685, 15
      %v688 = vsub.s32 0, %v687
      %v689 = vsel %vm683, %v688, %v687
      %vm690 = vcmp.lt.s32.totalorder %v610, 0
      %v691 = vsub.s32 0, %v610
      %v692 = vsel %vm690, %v691, %v610
      %v693 = vshrl.u32 %v692, 4
      %v694 = vand.u32 %v692, 15
      %v695 = vsub.s32 0, %v694
      %v696 = vsel %vm690, %v695, %v694
      %vm697 = vcmp.lt.s32.totalorder %v611, 0
      %v698 = vsub.s32 0, %v611
      %v699 = vsel %vm697, %v698, %v611
      %v700 = vshrl.u32 %v699, 4
      %v701 = vand.u32 %v699, 15
      %v702 = vsub.s32 0, %v701
      %v703 = vsel %vm697, %v702, %v701
      %vm704 = vcmp.lt.s32.totalorder %v612, 0
      %v705 = vsub.s32 0, %v612
      %v706 = vsel %vm704, %v705, %v612
      %v707 = vshrl.u32 %v706, 4
      %v708 = vand.u32 %v706, 15
      %v709 = vsub.s32 0, %v708
      %v710 = vsel %vm704, %v709, %v708
      %vm711 = vcmp.lt.s32.totalorder %v613, 0
      %v712 = vsub.s32 0, %v613
      %v713 = vsel %vm711, %v712, %v613
      %v714 = vshrl.u32 %v713, 4
      %v715 = vand.u32 %v713, 15
      %v716 = vsub.s32 0, %v715
      %v717 = vsel %vm711, %v716, %v715
      %vm718 = vcmp.lt.s32.totalorder %v614, 0
      %v719 = vsub.s32 0, %v614
      %v720 = vsel %vm718, %v719, %v614
      %v721 = vshrl.u32 %v720, 4
      %v722 = vand.u32 %v720, 15
      %v723 = vsub.s32 0, %v722
      %v724 = vsel %vm718, %v723, %v722
      %vm725 = vcmp.lt.s32.totalorder %v615, 0
      %v726 = vsub.s32 0, %v615
      %v727 = vsel %vm725, %v726, %v615
      %v728 = vshrl.u32 %v727, 4
      %v729 = vand.u32 %v727, 15
      %v730 = vsub.s32 0, %v729
      %v731 = vsel %vm725, %v730, %v729
      %vm732 = vcmp.lt.s32.totalorder %v616, 0
      %v733 = vsub.s32 0, %v616
      %v734 = vsel %vm732, %v733, %v616
      %v735 = vshrl.u32 %v734, 4
      %v736 = vand.u32 %v734, 15
      %v737 = vsub.s32 0, %v736
      %v738 = vsel %vm732, %v737, %v736
      %vm739 = vcmp.lt.s32.totalorder %v617, 0
      %v740 = vsub.s32 0, %v617
      %v741 = vsel %vm739, %v740, %v617
      %v742 = vshrl.u32 %v741, 4
      %v743 = vand.u32 %v741, 15
      %v744 = vsub.s32 0, %v743
      %v745 = vsel %vm739, %v744, %v743
      %vm746 = vcmp.lt.s32.totalorder %v618, 0
      %v747 = vsub.s32 0, %v618
      %v748 = vsel %vm746, %v747, %v618
      %v749 = vshrl.u32 %v748, 4
      %v750 = vand.u32 %v748, 15
      %v751 = vsub.s32 0, %v750
      %v752 = vsel %vm746, %v751, %v750
      %vm753 = vcmp.lt.s32.totalorder %v619, 0
      %v754 = vsub.s32 0, %v619
      %v755 = vsel %vm753, %v754, %v619
      %v756 = vshrl.u32 %v755, 4
      %v757 = vand.u32 %v755, 15
      %v758 = vsub.s32 0, %v757
      %v759 = vsel %vm753, %v758, %v757
      %vm760 = vcmp.lt.s32.totalorder %v620, 0
      %v761 = vsub.s32 0, %v620
      %v762 = vsel %vm760, %v761, %v620
      %v763 = vshrl.u32 %v762, 4
      %v764 = vand.u32 %v762, 15
      %v765 = vsub.s32 0, %v764
      %v766 = vsel %vm760, %v765, %v764
      %vm767 = vcmp.lt.s32.totalorder %v621, 0
      %v768 = vsub.s32 0, %v621
      %v769 = vsel %vm767, %v768, %v621
      %v770 = vshrl.u32 %v769, 4
      %v771 = vand.u32 %v769, 15
      %v772 = vsub.s32 0, %v771
      %v773 = vsel %vm767, %v772, %v771
      %vm774 = vcmp.lt.s32.totalorder %v622, 0
      %v775 = vsub.s32 0, %v622
      %v776 = vsel %vm774, %v775, %v622
      %v777 = vshrl.u32 %v776, 4
      %v778 = vand.u32 %v776, 15
      %v779 = vsub.s32 0, %v778
      %v780 = vsel %vm774, %v779, %v778
      %vm781 = vcmp.lt.s32.totalorder %v623, 0
      %v782 = vsub.s32 0, %v623
      %v783 = vsel %vm781, %v782, %v623
      %v784 = vshrl.u32 %v783, 4
      %v785 = vand.u32 %v783, 15
      %v786 = vsub.s32 0, %v785
      %v787 = vsel %vm781, %v786, %v785
      %vm788 = vcmp.lt.s32.totalorder %v624, 0
      %v789 = vsub.s32 0, %v624
      %v790 = vsel %vm788, %v789, %v624
      %v791 = vshrl.u32 %v790, 4
      %v792 = vand.u32 %v790, 15
      %v793 = vsub.s32 0, %v792
      %v794 = vsel %vm788, %v793, %v792
      %vm795 = vcmp.lt.s32.totalorder %v625, 0
      %v796 = vsub.s32 0, %v625
      %v797 = vsel %vm795, %v796, %v625
      %v798 = vshrl.u32 %v797, 4
      %v799 = vand.u32 %v797, 15
      %v800 = vsub.s32 0, %v799
      %v801 = vsel %vm795, %v800, %v799
      %vm802 = vcmp.lt.s32.totalorder %v626, 0
      %v803 = vsub.s32 0, %v626
      %v804 = vsel %vm802, %v803, %v626
      %v805 = vshrl.u32 %v804, 4
      %v806 = vand.u32 %v804, 15
      %v807 = vsub.s32 0, %v806
      %v808 = vsel %vm802, %v807, %v806
      %vm809 = vcmp.lt.s32.totalorder %v627, 0
      %v810 = vsub.s32 0, %v627
      %v811 = vsel %vm809, %v810, %v627
      %v812 = vshrl.u32 %v811, 4
      %v813 = vand.u32 %v811, 15
      %v814 = vsub.s32 0, %v813
      %v815 = vsel %vm809, %v814, %v813
      %vm816 = vcmp.lt.s32.totalorder %v628, 0
      %v817 = vsub.s32 0, %v628
      %v818 = vsel %vm816, %v817, %v628
      %v819 = vshrl.u32 %v818, 4
      %v820 = vand.u32 %v818, 15
      %v821 = vsub.s32 0, %v820
      %v822 = vsel %vm816, %v821, %v820
      %vm823 = vcmp.lt.s32.totalorder %v629, 0
      %v824 = vsub.s32 0, %v629
      %v825 = vsel %vm823, %v824, %v629
      %v826 = vshrl.u32 %v825, 4
      %v827 = vand.u32 %v825, 15
      %v828 = vsub.s32 0, %v827
      %v829 = vsel %vm823, %v828, %v827
      %vm830 = vcmp.lt.s32.totalorder %v630, 0
      %v831 = vsub.s32 0, %v630
      %v832 = vsel %vm830, %v831, %v630
      %v833 = vshrl.u32 %v832, 4
      %v834 = vand.u32 %v832, 15
      %v835 = vsub.s32 0, %v834
      %v836 = vsel %vm830, %v835, %v834
      %vm837 = vcmp.lt.s32.totalorder %v631, 0
      %v838 = vsub.s32 0, %v631
      %v839 = vsel %vm837, %v838, %v631
      %v840 = vshrl.u32 %v839, 4
      %v841 = vand.u32 %v839, 15
      %v842 = vsub.s32 0, %v841
      %v843 = vsel %vm837, %v842, %v841
      %vm844 = vcmp.lt.s32.totalorder %v632, 0
      %v845 = vsub.s32 0, %v632
      %v846 = vsel %vm844, %v845, %v632
      %v847 = vshrl.u32 %v846, 4
      %v848 = vand.u32 %v846, 15
      %v849 = vsub.s32 0, %v848
      %v850 = vsel %vm844, %v849, %v848
      %vm851 = vcmp.lt.s32.totalorder %v633, 0
      %v852 = vsub.s32 0, %v633
      %v853 = vsel %vm851, %v852, %v633
      %v854 = vshrl.u32 %v853, 4
      %v855 = vand.u32 %v853, 15
      %v856 = vsub.s32 0, %v855
      %v857 = vsel %vm851, %v856, %v855
      %vm858 = vcmp.ne.s32.totalorder %v640, 0
      %vm859 = vcmp.ne.s32.totalorder %v647, 0
      %vm860 = vcmp.ne.s32.totalorder %v654, 0
      %vm861 = vcmp.ne.s32.totalorder %v661, 0
      %vm862 = vcmp.ne.s32.totalorder %v668, 0
      %vm863 = vcmp.ne.s32.totalorder %v675, 0
      %vm864 = vcmp.ne.s32.totalorder %v682, 0
      %vm865 = vcmp.ne.s32.totalorder %v689, 0
      %vm866 = vcmp.ne.s32.totalorder %v696, 0
      %vm867 = vcmp.ne.s32.totalorder %v703, 0
      %vm868 = vcmp.ne.s32.totalorder %v710, 0
      %vm869 = vcmp.ne.s32.totalorder %v717, 0
      %vm870 = vcmp.ne.s32.totalorder %v724, 0
      %vm871 = vcmp.ne.s32.totalorder %v731, 0
      %vm872 = vcmp.ne.s32.totalorder %v738, 0
      %vm873 = vcmp.ne.s32.totalorder %v745, 0
      %vm874 = vcmp.ne.s32.totalorder %v752, 0
      %vm875 = vcmp.ne.s32.totalorder %v759, 0
      %vm876 = vcmp.ne.s32.totalorder %v766, 0
      %vm877 = vcmp.ne.s32.totalorder %v773, 0
      %vm878 = vcmp.ne.s32.totalorder %v780, 0
      %vm879 = vcmp.ne.s32.totalorder %v787, 0
      %vm880 = vcmp.ne.s32.totalorder %v794, 0
      %vm881 = vcmp.ne.s32.totalorder %v801, 0
      %vm882 = vcmp.ne.s32.totalorder %v808, 0
      %vm883 = vcmp.ne.s32.totalorder %v815, 0
      %vm884 = vcmp.ne.s32.totalorder %v822, 0
      %vm885 = vcmp.ne.s32.totalorder %v829, 0
      %vm886 = vcmp.ne.s32.totalorder %v836, 0
      %vm887 = vcmp.ne.s32.totalorder %v843, 0
      %vm888 = vcmp.ne.s32.totalorder %v850, 0
      %vm889 = vcmp.ne.s32.totalorder %v857, 0
      %vm890 = vcmp.lt.s32.totalorder %v640, 0
      %vm891 = vcmp.lt.s32.totalorder %v647, 0
      %vm892 = vcmp.lt.s32.totalorder %v654, 0
      %vm893 = vcmp.lt.s32.totalorder %v661, 0
      %vm894 = vcmp.lt.s32.totalorder %v668, 0
      %vm895 = vcmp.lt.s32.totalorder %v675, 0
      %vm896 = vcmp.lt.s32.totalorder %v682, 0
      %vm897 = vcmp.lt.s32.totalorder %v689, 0
      %vm898 = vcmp.lt.s32.totalorder %v696, 0
      %vm899 = vcmp.lt.s32.totalorder %v703, 0
      %vm900 = vcmp.lt.s32.totalorder %v710, 0
      %vm901 = vcmp.lt.s32.totalorder %v717, 0
      %vm902 = vcmp.lt.s32.totalorder %v724, 0
      %vm903 = vcmp.lt.s32.totalorder %v731, 0
      %vm904 = vcmp.lt.s32.totalorder %v738, 0
      %vm905 = vcmp.lt.s32.totalorder %v745, 0
      %vm906 = vcmp.lt.s32.totalorder %v752, 0
      %vm907 = vcmp.lt.s32.totalorder %v759, 0
      %vm908 = vcmp.lt.s32.totalorder %v766, 0
      %vm909 = vcmp.lt.s32.totalorder %v773, 0
      %vm910 = vcmp.lt.s32.totalorder %v780, 0
      %vm911 = vcmp.lt.s32.totalorder %v787, 0
      %vm912 = vcmp.lt.s32.totalorder %v794, 0
      %vm913 = vcmp.lt.s32.totalorder %v801, 0
      %vm914 = vcmp.lt.s32.totalorder %v808, 0
      %vm915 = vcmp.lt.s32.totalorder %v815, 0
      %vm916 = vcmp.lt.s32.totalorder %v822, 0
      %vm917 = vcmp.lt.s32.totalorder %v829, 0
      %vm918 = vcmp.lt.s32.totalorder %v836, 0
      %vm919 = vcmp.lt.s32.totalorder %v843, 0
      %vm920 = vcmp.lt.s32.totalorder %v850, 0
      %vm921 = vcmp.lt.s32.totalorder %v857, 0
      %vm922 = vmand %vm890, %vm858
      %vm923 = vmand %vm891, %vm859
      %vm924 = vmand %vm892, %vm860
      %vm925 = vmand %vm893, %vm861
      %vm926 = vmand %vm894, %vm862
      %vm927 = vmand %vm895, %vm863
      %vm928 = vmand %vm896, %vm864
      %vm929 = vmand %vm897, %vm865
      %vm930 = vmand %vm898, %vm866
      %vm931 = vmand %vm899, %vm867
      %vm932 = vmand %vm900, %vm868
      %vm933 = vmand %vm901, %vm869
      %vm934 = vmand %vm902, %vm870
      %vm935 = vmand %vm903, %vm871
      %vm936 = vmand %vm904, %vm872
      %vm937 = vmand %vm905, %vm873
      %vm938 = vmand %vm906, %vm874
      %vm939 = vmand %vm907, %vm875
      %vm940 = vmand %vm908, %vm876
      %vm941 = vmand %vm909, %vm877
      %vm942 = vmand %vm910, %vm878
      %vm943 = vmand %vm911, %vm879
      %vm944 = vmand %vm912, %vm880
      %vm945 = vmand %vm913, %vm881
      %vm946 = vmand %vm914, %vm882
      %vm947 = vmand %vm915, %vm883
      %vm948 = vmand %vm916, %vm884
      %vm949 = vmand %vm917, %vm885
      %vm950 = vmand %vm918, %vm886
      %vm951 = vmand %vm919, %vm887
      %vm952 = vmand %vm920, %vm888
      %vm953 = vmand %vm921, %vm889
      %v954 = vadd.s32 %v640, 16
      %v955 = vadd.s32 %v647, 16
      %v956 = vadd.s32 %v654, 16
      %v957 = vadd.s32 %v661, 16
      %v958 = vadd.s32 %v668, 16
      %v959 = vadd.s32 %v675, 16
      %v960 = vadd.s32 %v682, 16
      %v961 = vadd.s32 %v689, 16
      %v962 = vadd.s32 %v696, 16
      %v963 = vadd.s32 %v703, 16
      %v964 = vadd.s32 %v710, 16
      %v965 = vadd.s32 %v717, 16
      %v966 = vadd.s32 %v724, 16
      %v967 = vadd.s32 %v731, 16
      %v968 = vadd.s32 %v738, 16
      %v969 = vadd.s32 %v745, 16
      %v970 = vadd.s32 %v752, 16
      %v971 = vadd.s32 %v759, 16
      %v972 = vadd.s32 %v766, 16
      %v973 = vadd.s32 %v773, 16
      %v974 = vadd.s32 %v780, 16
      %v975 = vadd.s32 %v787, 16
      %v976 = vadd.s32 %v794, 16
      %v977 = vadd.s32 %v801, 16
      %v978 = vadd.s32 %v808, 16
      %v979 = vadd.s32 %v815, 16
      %v980 = vadd.s32 %v822, 16
      %v981 = vadd.s32 %v829, 16
      %v982 = vadd.s32 %v836, 16
      %v983 = vadd.s32 %v843, 16
      %v984 = vadd.s32 %v850, 16
      %v985 = vadd.s32 %v857, 16
      %v986 = vsel %vm922, %v954, %v640
      %v987 = vsel %vm923, %v955, %v647
      %v988 = vsel %vm924, %v956, %v654
      %v989 = vsel %vm925, %v957, %v661
      %v990 = vsel %vm926, %v958, %v668
      %v991 = vsel %vm927, %v959, %v675
      %v992 = vsel %vm928, %v960, %v682
      %v993 = vsel %vm929, %v961, %v689
      %v994 = vsel %vm930, %v962, %v696
      %v995 = vsel %vm931, %v963, %v703
      %v996 = vsel %vm932, %v964, %v710
      %v997 = vsel %vm933, %v965, %v717
      %v998 = vsel %vm934, %v966, %v724
      %v999 = vsel %vm935, %v967, %v731
      %v1000 = vsel %vm936, %v968, %v738
      %v1001 = vsel %vm937, %v969, %v745
      %v1002 = vsel %vm938, %v970, %v752
      %v1003 = vsel %vm939, %v971, %v759
      %v1004 = vsel %vm940, %v972, %v766
      %v1005 = vsel %vm941, %v973, %v773
      %v1006 = vsel %vm942, %v974, %v780
      %v1007 = vsel %vm943, %v975, %v787
      %v1008 = vsel %vm944, %v976, %v794
      %v1009 = vsel %vm945, %v977, %v801
      %v1010 = vsel %vm946, %v978, %v808
      %v1011 = vsel %vm947, %v979, %v815
      %v1012 = vsel %vm948, %v980, %v822
      %v1013 = vsel %vm949, %v981, %v829
      %v1014 = vsel %vm950, %v982, %v836
      %v1015 = vsel %vm951, %v983, %v843
      %v1016 = vsel %vm952, %v984, %v850
      %v1017 = vsel %vm953, %v985, %v857
      %vm1018 = vcmp.ge.s32.totalorder %v986, 1
      %vm1019 = vcmp.ge.s32.totalorder %v987, 1
      %vm1020 = vcmp.ge.s32.totalorder %v988, 1
      %vm1021 = vcmp.ge.s32.totalorder %v989, 1
      %vm1022 = vcmp.ge.s32.totalorder %v990, 1
      %vm1023 = vcmp.ge.s32.totalorder %v991, 1
      %vm1024 = vcmp.ge.s32.totalorder %v992, 1
      %vm1025 = vcmp.ge.s32.totalorder %v993, 1
      %vm1026 = vcmp.ge.s32.totalorder %v994, 1
      %vm1027 = vcmp.ge.s32.totalorder %v995, 1
      %vm1028 = vcmp.ge.s32.totalorder %v996, 1
      %vm1029 = vcmp.ge.s32.totalorder %v997, 1
      %vm1030 = vcmp.ge.s32.totalorder %v998, 1
      %vm1031 = vcmp.ge.s32.totalorder %v999, 1
      %vm1032 = vcmp.ge.s32.totalorder %v1000, 1
      %vm1033 = vcmp.ge.s32.totalorder %v1001, 1
      %vm1034 = vcmp.ge.s32.totalorder %v1002, 1
      %vm1035 = vcmp.ge.s32.totalorder %v1003, 1
      %vm1036 = vcmp.ge.s32.totalorder %v1004, 1
      %vm1037 = vcmp.ge.s32.totalorder %v1005, 1
      %vm1038 = vcmp.ge.s32.totalorder %v1006, 1
      %vm1039 = vcmp.ge.s32.totalorder %v1007, 1
      %vm1040 = vcmp.ge.s32.totalorder %v1008, 1
      %vm1041 = vcmp.ge.s32.totalorder %v1009, 1
      %vm1042 = vcmp.ge.s32.totalorder %v1010, 1
      %vm1043 = vcmp.ge.s32.totalorder %v1011, 1
      %vm1044 = vcmp.ge.s32.totalorder %v1012, 1
      %vm1045 = vcmp.ge.s32.totalorder %v1013, 1
      %vm1046 = vcmp.ge.s32.totalorder %v1014, 1
      %vm1047 = vcmp.ge.s32.totalorder %v1015, 1
      %vm1048 = vcmp.ge.s32.totalorder %v1016, 1
      %vm1049 = vcmp.ge.s32.totalorder %v1017, 1
      %vm1050 = vcmp.le.s32.totalorder %v986, 14
      %vm1051 = vcmp.le.s32.totalorder %v987, 14
      %vm1052 = vcmp.le.s32.totalorder %v988, 14
      %vm1053 = vcmp.le.s32.totalorder %v989, 14
      %vm1054 = vcmp.le.s32.totalorder %v990, 14
      %vm1055 = vcmp.le.s32.totalorder %v991, 14
      %vm1056 = vcmp.le.s32.totalorder %v992, 14
      %vm1057 = vcmp.le.s32.totalorder %v993, 14
      %vm1058 = vcmp.le.s32.totalorder %v994, 14
      %vm1059 = vcmp.le.s32.totalorder %v995, 14
      %vm1060 = vcmp.le.s32.totalorder %v996, 14
      %vm1061 = vcmp.le.s32.totalorder %v997, 14
      %vm1062 = vcmp.le.s32.totalorder %v998, 14
      %vm1063 = vcmp.le.s32.totalorder %v999, 14
      %vm1064 = vcmp.le.s32.totalorder %v1000, 14
      %vm1065 = vcmp.le.s32.totalorder %v1001, 14
      %vm1066 = vcmp.le.s32.totalorder %v1002, 14
      %vm1067 = vcmp.le.s32.totalorder %v1003, 14
      %vm1068 = vcmp.le.s32.totalorder %v1004, 14
      %vm1069 = vcmp.le.s32.totalorder %v1005, 14
      %vm1070 = vcmp.le.s32.totalorder %v1006, 14
      %vm1071 = vcmp.le.s32.totalorder %v1007, 14
      %vm1072 = vcmp.le.s32.totalorder %v1008, 14
      %vm1073 = vcmp.le.s32.totalorder %v1009, 14
      %vm1074 = vcmp.le.s32.totalorder %v1010, 14
      %vm1075 = vcmp.le.s32.totalorder %v1011, 14
      %vm1076 = vcmp.le.s32.totalorder %v1012, 14
      %vm1077 = vcmp.le.s32.totalorder %v1013, 14
      %vm1078 = vcmp.le.s32.totalorder %v1014, 14
      %vm1079 = vcmp.le.s32.totalorder %v1015, 14
      %vm1080 = vcmp.le.s32.totalorder %v1016, 14
      %vm1081 = vcmp.le.s32.totalorder %v1017, 14
      %v1082 = vld [vmem:[#allocation2 + $0x7] sm:$0xff]
      %v1083 = vld [vmem:[#allocation2 + $0xf] sm:$0xff]
      %v1084 = vld [vmem:[#allocation2 + $0x17] sm:$0xff]
      %v1085 = vld [vmem:[#allocation2 + $0x1f] sm:$0xff]
      %v1086 = vld [vmem:[#allocation2 + $0x27] sm:$0xff]
      %v1087 = vld [vmem:[#allocation2 + $0x2f] sm:$0xff]
      %v1088 = vld [vmem:[#allocation2 + $0x37] sm:$0xff]
      %v1089 = vld [vmem:[#allocation2 + $0x3f] sm:$0xff]
      %v1090 = vld [vmem:[#allocation2 + $0x47] sm:$0xff]
      %v1091 = vld [vmem:[#allocation2 + $0x4f] sm:$0xff]
      %v1092 = vld [vmem:[#allocation2 + $0x57] sm:$0xff]
      %v1093 = vld [vmem:[#allocation2 + $0x5f] sm:$0xff]
      %v1094 = vld [vmem:[#allocation2 + $0x67] sm:$0xff]
      %v1095 = vld [vmem:[#allocation2 + $0x6f] sm:$0xff]
      %v1096 = vld [vmem:[#allocation2 + $0x77] sm:$0xff]
      %v1097 = vld [vmem:[#allocation2 + $0x7f] sm:$0xff]
      %v1098 = vld [vmem:[#allocation2 + $0x87] sm:$0xff]
      %v1099 = vld [vmem:[#allocation2 + $0x8f] sm:$0xff]
      %v1100 = vld [vmem:[#allocation2 + $0x97] sm:$0xff]
      %v1101 = vld [vmem:[#allocation2 + $0x9f] sm:$0xff]
      %v1102 = vld [vmem:[#allocation2 + $0xa7] sm:$0xff]
      %v1103 = vld [vmem:[#allocation2 + $0xaf] sm:$0xff]
      %v1104 = vld [vmem:[#allocation2 + $0xb7] sm:$0xff]
      %v1105 = vld [vmem:[#allocation2 + $0xbf] sm:$0xff]
      %v1106 = vld [vmem:[#allocation2 + $0xc7] sm:$0xff]
      %v1107 = vld [vmem:[#allocation2 + $0xcf] sm:$0xff]
      %v1108 = vld [vmem:[#allocation2 + $0xd7] sm:$0xff]
      %v1109 = vld [vmem:[#allocation2 + $0xdf] sm:$0xff]
      %v1110 = vld [vmem:[#allocation2 + $0xe7] sm:$0xff]
      %v1111 = vld [vmem:[#allocation2 + $0xef] sm:$0xff]
      %v1112 = vld [vmem:[#allocation2 + $0xf7] sm:$0xff]
      %v1113 = vld [vmem:[#allocation2 + $0xff] sm:$0xff]
      %v1114 = vsel %vm1018, %v1082, 0.0
      %v1115 = vsel %vm1019, %v1083, 0.0
      %v1116 = vsel %vm1020, %v1084, 0.0
      %v1117 = vsel %vm1021, %v1085, 0.0
      %v1118 = vsel %vm1022, %v1086, 0.0
      %v1119 = vsel %vm1023, %v1087, 0.0
      %v1120 = vsel %vm1024, %v1088, 0.0
      %v1121 = vsel %vm1025, %v1089, 0.0
      %v1122 = vsel %vm1026, %v1090, 0.0
      %v1123 = vsel %vm1027, %v1091, 0.0
      %v1124 = vsel %vm1028, %v1092, 0.0
      %v1125 = vsel %vm1029, %v1093, 0.0
      %v1126 = vsel %vm1030, %v1094, 0.0
      %v1127 = vsel %vm1031, %v1095, 0.0
      %v1128 = vsel %vm1032, %v1096, 0.0
      %v1129 = vsel %vm1033, %v1097, 0.0
      %v1130 = vsel %vm1034, %v1098, 0.0
      %v1131 = vsel %vm1035, %v1099, 0.0
      %v1132 = vsel %vm1036, %v1100, 0.0
      %v1133 = vsel %vm1037, %v1101, 0.0
      %v1134 = vsel %vm1038, %v1102, 0.0
      %v1135 = vsel %vm1039, %v1103, 0.0
      %v1136 = vsel %vm1040, %v1104, 0.0
      %v1137 = vsel %vm1041, %v1105, 0.0
      %v1138 = vsel %vm1042, %v1106, 0.0
      %v1139 = vsel %vm1043, %v1107, 0.0
      %v1140 = vsel %vm1044, %v1108, 0.0
      %v1141 = vsel %vm1045, %v1109, 0.0
      %v1142 = vsel %vm1046, %v1110, 0.0
      %v1143 = vsel %vm1047, %v1111, 0.0
      %v1144 = vsel %vm1048, %v1112, 0.0
      %v1145 = vsel %vm1049, %v1113, 0.0
      %v1146 = vpack.c.bf16 %v1115, %v1114
      %v1147 = vpack.c.bf16 %v1117, %v1116
      %v1148 = vpack.c.bf16 %v1119, %v1118
      %v1149 = vpack.c.bf16 %v1121, %v1120
      %v1150 = vpack.c.bf16 %v1123, %v1122
      %v1151 = vpack.c.bf16 %v1125, %v1124
      %v1152 = vpack.c.bf16 %v1127, %v1126
      %v1153 = vpack.c.bf16 %v1129, %v1128
      %v1154 = vpack.c.bf16 %v1131, %v1130
      %v1155 = vpack.c.bf16 %v1133, %v1132
      %v1156 = vpack.c.bf16 %v1135, %v1134
      %v1157 = vpack.c.bf16 %v1137, %v1136
      %v1158 = vpack.c.bf16 %v1139, %v1138
      %v1159 = vpack.c.bf16 %v1141, %v1140
      %v1160 = vpack.c.bf16 %v1143, %v1142
      %v1161 = vpack.c.bf16 %v1145, %v1144
      %v1162 = vld [vmem:[%s4] sm:$0xf]
      %v1163 = vld [vmem:[%s4 + $0x4] sm:$0xf]
      %v1164 = vld [vmem:[%s4 + $0x8] sm:$0xf]
      %v1165 = vld [vmem:[%s4 + $0xc] sm:$0xf]
      %v1166 = vld [vmem:[%s4 + $0x10] sm:$0xf]
      %v1167 = vld [vmem:[%s4 + $0x14] sm:$0xf]
      %v1168 = vld [vmem:[%s4 + $0x18] sm:$0xf]
      %v1169 = vld [vmem:[%s4 + $0x1c] sm:$0xf]
      %v1170 = vld [vmem:[%s4 + $0x20] sm:$0xf]
      %v1171 = vld [vmem:[%s4 + $0x24] sm:$0xf]
      %v1172 = vld [vmem:[%s4 + $0x28] sm:$0xf]
      %v1173 = vld [vmem:[%s4 + $0x2c] sm:$0xf]
      %v1174 = vld [vmem:[%s4 + $0x30] sm:$0xf]
      %v1175 = vld [vmem:[%s4 + $0x34] sm:$0xf]
      %v1176 = vld [vmem:[%s4 + $0x38] sm:$0xf]
      %v1177 = vld [vmem:[%s4 + $0x3c] sm:$0xf]
      %v1178 = vld [vmem:[#allocation2 + $0x8] sm:$0xff]
      %v1179 = vld [vmem:[#allocation2 + $0x10] sm:$0xff]
      %v1180 = vld [vmem:[#allocation2 + $0x18] sm:$0xff]
      %v1181 = vld [vmem:[#allocation2 + $0x20] sm:$0xff]
      %v1182 = vld [vmem:[#allocation2 + $0x28] sm:$0xff]
      %v1183 = vld [vmem:[#allocation2 + $0x30] sm:$0xff]
      %v1184 = vld [vmem:[#allocation2 + $0x38] sm:$0xff]
      %v1185 = vld [vmem:[#allocation2 + $0x40] sm:$0xff]
      %v1186 = vld [vmem:[#allocation2 + $0x48] sm:$0xff]
      %v1187 = vld [vmem:[#allocation2 + $0x50] sm:$0xff]
      %v1188 = vld [vmem:[#allocation2 + $0x58] sm:$0xff]
      %v1189 = vld [vmem:[#allocation2 + $0x60] sm:$0xff]
      %v1190 = vld [vmem:[#allocation2 + $0x68] sm:$0xff]
      %v1191 = vld [vmem:[#allocation2 + $0x70] sm:$0xff]
      %v1192 = vld [vmem:[#allocation2 + $0x78] sm:$0xff]
      %v1193 = vld [vmem:[#allocation2 + $0x80] sm:$0xff]
      %v1194 = vld [vmem:[#allocation2 + $0x88] sm:$0xff]
      %v1195 = vld [vmem:[#allocation2 + $0x90] sm:$0xff]
      %v1196 = vld [vmem:[#allocation2 + $0x98] sm:$0xff]
      %v1197 = vld [vmem:[#allocation2 + $0xa0] sm:$0xff]
      %v1198 = vld [vmem:[#allocation2 + $0xa8] sm:$0xff]
      %v1199 = vld [vmem:[#allocation2 + $0xb0] sm:$0xff]
      %v1200 = vld [vmem:[#allocation2 + $0xb8] sm:$0xff]
      %v1201 = vld [vmem:[#allocation2 + $0xc0] sm:$0xff]
      %v1202 = vld [vmem:[#allocation2 + $0xc8] sm:$0xff]
      %v1203 = vld [vmem:[#allocation2 + $0xd0] sm:$0xff]
      %v1204 = vld [vmem:[#allocation2 + $0xd8] sm:$0xff]
      %v1205 = vld [vmem:[#allocation2 + $0xe0] sm:$0xff]
      %v1206 = vld [vmem:[#allocation2 + $0xe8] sm:$0xff]
      %v1207 = vld [vmem:[#allocation2 + $0xf0] sm:$0xff]
      %v1208 = vld [vmem:[#allocation2 + $0xf8] sm:$0xff]
      %v1209 = vld [vmem:[#allocation2 + $0x100] sm:$0xff]
      %v1210 = vpack.c.bf16 %v1179, %v1178
      %v1211 = vpack.c.bf16 %v1181, %v1180
      %v1212 = vpack.c.bf16 %v1183, %v1182
      %v1213 = vpack.c.bf16 %v1185, %v1184
      %v1214 = vpack.c.bf16 %v1187, %v1186
      %v1215 = vpack.c.bf16 %v1189, %v1188
      %v1216 = vpack.c.bf16 %v1191, %v1190
      %v1217 = vpack.c.bf16 %v1193, %v1192
      %v1218 = vpack.c.bf16 %v1195, %v1194
      %v1219 = vpack.c.bf16 %v1197, %v1196
      %v1220 = vpack.c.bf16 %v1199, %v1198
      %v1221 = vpack.c.bf16 %v1201, %v1200
      %v1222 = vpack.c.bf16 %v1203, %v1202
      %v1223 = vpack.c.bf16 %v1205, %v1204
      %v1224 = vpack.c.bf16 %v1207, %v1206
      %v1225 = vpack.c.bf16 %v1209, %v1208
      %s1226 = scalar_lea.vmem %s4, 64
      %v1227 = vld [vmem:[%s1226] sm:$0xf]
      %v1228 = vld [vmem:[%s1226 + $0x4] sm:$0xf]
      %v1229 = vld [vmem:[%s1226 + $0x8] sm:$0xf]
      %v1230 = vld [vmem:[%s1226 + $0xc] sm:$0xf]
      %v1231 = vld [vmem:[%s1226 + $0x10] sm:$0xf]
      %v1232 = vld [vmem:[%s1226 + $0x14] sm:$0xf]
      %v1233 = vld [vmem:[%s1226 + $0x18] sm:$0xf]
      %v1234 = vld [vmem:[%s1226 + $0x1c] sm:$0xf]
      %v1235 = vld [vmem:[%s1226 + $0x20] sm:$0xf]
      %v1236 = vld [vmem:[%s1226 + $0x24] sm:$0xf]
      %v1237 = vld [vmem:[%s1226 + $0x28] sm:$0xf]
      %v1238 = vld [vmem:[%s1226 + $0x2c] sm:$0xf]
      %v1239 = vld [vmem:[%s1226 + $0x30] sm:$0xf]
      %v1240 = vld [vmem:[%s1226 + $0x34] sm:$0xf]
      %v1241 = vld [vmem:[%s1226 + $0x38] sm:$0xf]
      %v1242 = vld [vmem:[%s1226 + $0x3c] sm:$0xf]
      %v1259 = vunpack.c.l.b16 %v1227
      %v1260 = vunpack.c.l.b16 %v1228
      %v1261 = vunpack.c.l.b16 %v1229
      %v1262 = vunpack.c.l.b16 %v1230
      %v1263 = vunpack.c.l.b16 %v1231
      %v1264 = vunpack.c.l.b16 %v1232
      %v1265 = vunpack.c.l.b16 %v1233
      %v1266 = vunpack.c.l.b16 %v1234
      %v1267 = vunpack.c.l.b16 %v1235
      %v1268 = vunpack.c.l.b16 %v1236
      %v1269 = vunpack.c.l.b16 %v1237
      %v1270 = vunpack.c.l.b16 %v1238
      %v1271 = vunpack.c.l.b16 %v1239
      %v1272 = vunpack.c.l.b16 %v1240
      %v1273 = vunpack.c.l.b16 %v1241
      %v1274 = vunpack.c.l.b16 %v1242
      %v1275 = vpack.c.b16 %v1260, %v1259
      %v1276 = vpack.c.b16 %v1262, %v1261
      %v1277 = vpack.c.b16 %v1264, %v1263
      %v1278 = vpack.c.b16 %v1266, %v1265
      %v1279 = vpack.c.b16 %v1268, %v1267
      %v1280 = vpack.c.b16 %v1270, %v1269
      %v1281 = vpack.c.b16 %v1272, %v1271
      %v1282 = vpack.c.b16 %v1274, %v1273
      %1291 = vmatprep.subr.bf16.mxu0 0
      %1292 = vmatpush1.bf16.msra.mxu0 %v1282
      %1293 = vmatprep.subr.bf16.mxu0 0
      %1294 = vmatpush1.bf16.msra.mxu0 %v1281
      %1295 = vmatprep.subr.bf16.mxu0 0
      %1296 = vmatpush1.bf16.msra.mxu0 %v1280
      %1297 = vmatprep.subr.bf16.mxu0 0
      %1298 = vmatpush1.bf16.msra.mxu0 %v1279
      %1299 = vmatprep.subr.bf16.mxu0 0
      %1300 = vmatpush1.bf16.msra.mxu0 %v1278
      %1301 = vmatprep.subr.bf16.mxu0 0
      %1302 = vmatpush1.bf16.msra.mxu0 %v1277
      %1303 = vmatprep.subr.bf16.mxu0 0
      %1304 = vmatpush1.bf16.msra.mxu0 %v1276
      %1305 = vmatprep.subr.bf16.mxu0 0
      %1306 = vmatpush1.bf16.msra.mxu0 %v1275
      %1307 = vmatprep.subr.bf16.mxu0 0
      %1308 = vmatpush2.bf16.msra.mxu0 0
      %1309 = vmatprep.subr.bf16.mxu0 0
      %1310 = vmatpush2.bf16.msra.mxu0 0
      %1311 = vmatprep.subr.bf16.mxu0 0
      %1312 = vmatpush2.bf16.msra.mxu0 0
      %1313 = vmatprep.subr.bf16.mxu0 0
      %1314 = vmatpush2.bf16.msra.mxu0 0
      %1315 = vmatprep.subr.bf16.mxu0 0
      %1316 = vmatpush2.bf16.msra.mxu0 0
      %1317 = vmatprep.subr.bf16.mxu0 0
      %1318 = vmatpush2.bf16.msra.mxu0 0
      %1319 = vmatprep.subr.bf16.mxu0 0
      %1320 = vmatpush2.bf16.msra.mxu0 0
      %1321 = vmatprep.subr.bf16.mxu0 0
      %1322 = vmatpush2.bf16.msra.mxu0 0
      %1323 = vmatprep.mubr.bf16.mxu0 0
      %1324 = vmatmul.mubr.bf16.gmra.mxu0 %v1210
      %v1325 = vpop.f32.mrf.mxu0
      %v1326 = vadd.f32 0.0, %v1325
      %v1327 = vpop.f32.mrf.mxu0
      %v1328 = vpop.f32.mrf.mxu0
      %v1329 = vadd.f32 0.0, %v1328
      %v1330 = vpop.f32.mrf.mxu0
      %1331 = vmatprep.mubr.bf16.mxu0 0
      %1332 = vmatmul.mubr.bf16.gmra.mxu0 %v1211
      %v1333 = vpop.f32.mrf.mxu0
      %v1334 = vadd.f32 0.0, %v1333
      %v1335 = vpop.f32.mrf.mxu0
      %v1336 = vpop.f32.mrf.mxu0
      %v1337 = vadd.f32 0.0, %v1336
      %v1338 = vpop.f32.mrf.mxu0
      %1339 = vmatprep.mubr.bf16.mxu0 0
      %1340 = vmatmul.mubr.bf16.gmra.mxu0 %v1212
      %v1341 = vpop.f32.mrf.mxu0
      %v1342 = vadd.f32 0.0, %v1341
      %v1343 = vpop.f32.mrf.mxu0
      %v1344 = vpop.f32.mrf.mxu0
      %v1345 = vadd.f32 0.0, %v1344
      %v1346 = vpop.f32.mrf.mxu0
      %1347 = vmatprep.mubr.bf16.mxu0 0
      %1348 = vmatmul.mubr.bf16.gmra.mxu0 %v1213
      %v1349 = vpop.f32.mrf.mxu0
      %v1350 = vadd.f32 0.0, %v1349
      %v1351 = vpop.f32.mrf.mxu0
      %v1352 = vpop.f32.mrf.mxu0
      %v1353 = vadd.f32 0.0, %v1352
      %v1354 = vpop.f32.mrf.mxu0
      %1355 = vmatprep.mubr.bf16.mxu0 0
      %1356 = vmatmul.mubr.bf16.gmra.mxu0 %v1214
      %v1357 = vpop.f32.mrf.mxu0
      %v1358 = vadd.f32 0.0, %v1357
      %v1359 = vpop.f32.mrf.mxu0
      %v1360 = vpop.f32.mrf.mxu0
      %v1361 = vadd.f32 0.0, %v1360
      %v1362 = vpop.f32.mrf.mxu0
      %1363 = vmatprep.mubr.bf16.mxu0 0
      %1364 = vmatmul.mubr.bf16.gmra.mxu0 %v1215
      %v1365 = vpop.f32.mrf.mxu0
      %v1366 = vadd.f32 0.0, %v1365
      %v1367 = vpop.f32.mrf.mxu0
      %v1368 = vpop.f32.mrf.mxu0
      %v1369 = vadd.f32 0.0, %v1368
      %v1370 = vpop.f32.mrf.mxu0
      %1371 = vmatprep.mubr.bf16.mxu0 0
      %1372 = vmatmul.mubr.bf16.gmra.mxu0 %v1216
      %v1373 = vpop.f32.mrf.mxu0
      %v1374 = vadd.f32 0.0, %v1373
      %v1375 = vpop.f32.mrf.mxu0
      %v1376 = vpop.f32.mrf.mxu0
      %v1377 = vadd.f32 0.0, %v1376
      %v1378 = vpop.f32.mrf.mxu0
      %1379 = vmatprep.mubr.bf16.mxu0 0
      %1380 = vmatmul.mubr.bf16.gmra.mxu0 %v1217
      %v1381 = vpop.f32.mrf.mxu0
      %v1382 = vadd.f32 0.0, %v1381
      %v1383 = vpop.f32.mrf.mxu0
      %v1384 = vpop.f32.mrf.mxu0
      %v1385 = vadd.f32 0.0, %v1384
      %v1386 = vpop.f32.mrf.mxu0
      %1387 = vmatprep.mubr.bf16.mxu0 0
      %1388 = vmatmul.mubr.bf16.gmra.mxu0 %v1218
      %v1389 = vpop.f32.mrf.mxu0
      %v1390 = vadd.f32 0.0, %v1389
      %v1391 = vpop.f32.mrf.mxu0
      %v1392 = vpop.f32.mrf.mxu0
      %v1393 = vadd.f32 0.0, %v1392
      %v1394 = vpop.f32.mrf.mxu0
      %1395 = vmatprep.mubr.bf16.mxu0 0
      %1396 = vmatmul.mubr.bf16.gmra.mxu0 %v1219
      %v1397 = vpop.f32.mrf.mxu0
      %v1398 = vadd.f32 0.0, %v1397
      %v1399 = vpop.f32.mrf.mxu0
      %v1400 = vpop.f32.mrf.mxu0
      %v1401 = vadd.f32 0.0, %v1400
      %v1402 = vpop.f32.mrf.mxu0
      %1403 = vmatprep.mubr.bf16.mxu0 0
      %1404 = vmatmul.mubr.bf16.gmra.mxu0 %v1220
      %v1405 = vpop.f32.mrf.mxu0
      %v1406 = vadd.f32 0.0, %v1405
      %v1407 = vpop.f32.mrf.mxu0
      %v1408 = vpop.f32.mrf.mxu0
      %v1409 = vadd.f32 0.0, %v1408
      %v1410 = vpop.f32.mrf.mxu0
      %1411 = vmatprep.mubr.bf16.mxu0 0
      %1412 = vmatmul.mubr.bf16.gmra.mxu0 %v1221
      %v1413 = vpop.f32.mrf.mxu0
      %v1414 = vadd.f32 0.0, %v1413
      %v1415 = vpop.f32.mrf.mxu0
      %v1416 = vpop.f32.mrf.mxu0
      %v1417 = vadd.f32 0.0, %v1416
      %v1418 = vpop.f32.mrf.mxu0
      %1419 = vmatprep.mubr.bf16.mxu0 0
      %1420 = vmatmul.mubr.bf16.gmra.mxu0 %v1222
      %v1421 = vpop.f32.mrf.mxu0
      %v1422 = vadd.f32 0.0, %v1421
      %v1423 = vpop.f32.mrf.mxu0
      %v1424 = vpop.f32.mrf.mxu0
      %v1425 = vadd.f32 0.0, %v1424
      %v1426 = vpop.f32.mrf.mxu0
      %1427 = vmatprep.mubr.bf16.mxu0 0
      %1428 = vmatmul.mubr.bf16.gmra.mxu0 %v1223
      %v1429 = vpop.f32.mrf.mxu0
      %v1430 = vadd.f32 0.0, %v1429
      %v1431 = vpop.f32.mrf.mxu0
      %v1432 = vpop.f32.mrf.mxu0
      %v1433 = vadd.f32 0.0, %v1432
      %v1434 = vpop.f32.mrf.mxu0
      %1435 = vmatprep.mubr.bf16.mxu0 0
      %1436 = vmatmul.mubr.bf16.gmra.mxu0 %v1224
      %v1437 = vpop.f32.mrf.mxu0
      %v1438 = vadd.f32 0.0, %v1437
      %v1439 = vpop.f32.mrf.mxu0
      %v1440 = vpop.f32.mrf.mxu0
      %v1441 = vadd.f32 0.0, %v1440
      %v1442 = vpop.f32.mrf.mxu0
      %1443 = vmatprep.mubr.bf16.mxu0 0
      %1444 = vmatmul.mubr.bf16.gmra.mxu0 %v1225
      %v1445 = vpop.f32.mrf.mxu0
      %v1446 = vadd.f32 0.0, %v1445
      %v1447 = vpop.f32.mrf.mxu0
      %v1448 = vpop.f32.mrf.mxu0
      %v1449 = vadd.f32 0.0, %v1448
      %v1450 = vpop.f32.mrf.mxu0
      %1451 = vdwg.mxu0
      %v1468 = vunpack.c.l.b16 %v1162
      %v1469 = vunpack.c.l.b16 %v1163
      %v1470 = vunpack.c.l.b16 %v1164
      %v1471 = vunpack.c.l.b16 %v1165
      %v1472 = vunpack.c.l.b16 %v1166
      %v1473 = vunpack.c.l.b16 %v1167
      %v1474 = vunpack.c.l.b16 %v1168
      %v1475 = vunpack.c.l.b16 %v1169
      %v1476 = vunpack.c.l.b16 %v1170
      %v1477 = vunpack.c.l.b16 %v1171
      %v1478 = vunpack.c.l.b16 %v1172
      %v1479 = vunpack.c.l.b16 %v1173
      %v1480 = vunpack.c.l.b16 %v1174
      %v1481 = vunpack.c.l.b16 %v1175
      %v1482 = vunpack.c.l.b16 %v1176
      %v1483 = vunpack.c.l.b16 %v1177
      %v1484 = vpack.c.b16 %v1469, %v1468
      %v1485 = vpack.c.b16 %v1471, %v1470
      %v1486 = vpack.c.b16 %v1473, %v1472
      %v1487 = vpack.c.b16 %v1475, %v1474
      %v1488 = vpack.c.b16 %v1477, %v1476
      %v1489 = vpack.c.b16 %v1479, %v1478
      %v1490 = vpack.c.b16 %v1481, %v1480
      %v1491 = vpack.c.b16 %v1483, %v1482
      %1500 = vmatprep.subr.bf16.mxu0 0
      %1501 = vmatpush1.bf16.msra.mxu0 %v1491
      %1502 = vmatprep.subr.bf16.mxu0 0
      %1503 = vmatpush1.bf16.msra.mxu0 %v1490
      %1504 = vmatprep.subr.bf16.mxu0 0
      %1505 = vmatpush1.bf16.msra.mxu0 %v1489
      %1506 = vmatprep.subr.bf16.mxu0 0
      %1507 = vmatpush1.bf16.msra.mxu0 %v1488
      %1508 = vmatprep.subr.bf16.mxu0 0
      %1509 = vmatpush1.bf16.msra.mxu0 %v1487
      %1510 = vmatprep.subr.bf16.mxu0 0
      %1511 = vmatpush1.bf16.msra.mxu0 %v1486
      %1512 = vmatprep.subr.bf16.mxu0 0
      %1513 = vmatpush1.bf16.msra.mxu0 %v1485
      %1514 = vmatprep.subr.bf16.mxu0 0
      %1515 = vmatpush1.bf16.msra.mxu0 %v1484
      %1516 = vmatprep.subr.bf16.mxu0 0
      %1517 = vmatpush2.bf16.msra.mxu0 0
      %1518 = vmatprep.subr.bf16.mxu0 0
      %1519 = vmatpush2.bf16.msra.mxu0 0
      %1520 = vmatprep.subr.bf16.mxu0 0
      %1521 = vmatpush2.bf16.msra.mxu0 0
      %1522 = vmatprep.subr.bf16.mxu0 0
      %1523 = vmatpush2.bf16.msra.mxu0 0
      %1524 = vmatprep.subr.bf16.mxu0 0
      %1525 = vmatpush2.bf16.msra.mxu0 0
      %1526 = vmatprep.subr.bf16.mxu0 0
      %1527 = vmatpush2.bf16.msra.mxu0 0
      %1528 = vmatprep.subr.bf16.mxu0 0
      %1529 = vmatpush2.bf16.msra.mxu0 0
      %1530 = vmatprep.subr.bf16.mxu0 0
      %1531 = vmatpush2.bf16.msra.mxu0 0
      %1532 = vmatprep.mubr.bf16.mxu0 0
      %1533 = vmatmul.mubr.bf16.gmra.mxu0 %v1146
      %v1534 = vpop.f32.mrf.mxu0
      %v1535 = vadd.f32 %v1326, %v1534
      %v1536 = vpop.f32.mrf.mxu0
      %v1537 = vpop.f32.mrf.mxu0
      %v1538 = vadd.f32 %v1329, %v1537
      %v1539 = vpop.f32.mrf.mxu0
      %1540 = vmatprep.mubr.bf16.mxu0 0
      %1541 = vmatmul.mubr.bf16.gmra.mxu0 %v1147
      %v1542 = vpop.f32.mrf.mxu0
      %v1543 = vadd.f32 %v1334, %v1542
      %v1544 = vpop.f32.mrf.mxu0
      %v1545 = vpop.f32.mrf.mxu0
      %v1546 = vadd.f32 %v1337, %v1545
      %v1547 = vpop.f32.mrf.mxu0
      %1548 = vmatprep.mubr.bf16.mxu0 0
      %1549 = vmatmul.mubr.bf16.gmra.mxu0 %v1148
      %v1550 = vpop.f32.mrf.mxu0
      %v1551 = vadd.f32 %v1342, %v1550
      %v1552 = vpop.f32.mrf.mxu0
      %v1553 = vpop.f32.mrf.mxu0
      %v1554 = vadd.f32 %v1345, %v1553
      %v1555 = vpop.f32.mrf.mxu0
      %1556 = vmatprep.mubr.bf16.mxu0 0
      %1557 = vmatmul.mubr.bf16.gmra.mxu0 %v1149
      %v1558 = vpop.f32.mrf.mxu0
      %v1559 = vadd.f32 %v1350, %v1558
      %v1560 = vpop.f32.mrf.mxu0
      %v1561 = vpop.f32.mrf.mxu0
      %v1562 = vadd.f32 %v1353, %v1561
      %v1563 = vpop.f32.mrf.mxu0
      %1564 = vmatprep.mubr.bf16.mxu0 0
      %1565 = vmatmul.mubr.bf16.gmra.mxu0 %v1150
      %v1566 = vpop.f32.mrf.mxu0
      %v1567 = vadd.f32 %v1358, %v1566
      %v1568 = vpop.f32.mrf.mxu0
      %v1569 = vpop.f32.mrf.mxu0
      %v1570 = vadd.f32 %v1361, %v1569
      %v1571 = vpop.f32.mrf.mxu0
      %1572 = vmatprep.mubr.bf16.mxu0 0
      %1573 = vmatmul.mubr.bf16.gmra.mxu0 %v1151
      %v1574 = vpop.f32.mrf.mxu0
      %v1575 = vadd.f32 %v1366, %v1574
      %v1576 = vpop.f32.mrf.mxu0
      %v1577 = vpop.f32.mrf.mxu0
      %v1578 = vadd.f32 %v1369, %v1577
      %v1579 = vpop.f32.mrf.mxu0
      %1580 = vmatprep.mubr.bf16.mxu0 0
      %1581 = vmatmul.mubr.bf16.gmra.mxu0 %v1152
      %v1582 = vpop.f32.mrf.mxu0
      %v1583 = vadd.f32 %v1374, %v1582
      %v1584 = vpop.f32.mrf.mxu0
      %v1585 = vpop.f32.mrf.mxu0
      %v1586 = vadd.f32 %v1377, %v1585
      %v1587 = vpop.f32.mrf.mxu0
      %1588 = vmatprep.mubr.bf16.mxu0 0
      %1589 = vmatmul.mubr.bf16.gmra.mxu0 %v1153
      %v1590 = vpop.f32.mrf.mxu0
      %v1591 = vadd.f32 %v1382, %v1590
      %v1592 = vpop.f32.mrf.mxu0
      %v1593 = vpop.f32.mrf.mxu0
      %v1594 = vadd.f32 %v1385, %v1593
      %v1595 = vpop.f32.mrf.mxu0
      %1596 = vmatprep.mubr.bf16.mxu0 0
      %1597 = vmatmul.mubr.bf16.gmra.mxu0 %v1154
      %v1598 = vpop.f32.mrf.mxu0
      %v1599 = vadd.f32 %v1390, %v1598
      %v1600 = vpop.f32.mrf.mxu0
      %v1601 = vpop.f32.mrf.mxu0
      %v1602 = vadd.f32 %v1393, %v1601
      %v1603 = vpop.f32.mrf.mxu0
      %1604 = vmatprep.mubr.bf16.mxu0 0
      %1605 = vmatmul.mubr.bf16.gmra.mxu0 %v1155
      %v1606 = vpop.f32.mrf.mxu0
      %v1607 = vadd.f32 %v1398, %v1606
      %v1608 = vpop.f32.mrf.mxu0
      %v1609 = vpop.f32.mrf.mxu0
      %v1610 = vadd.f32 %v1401, %v1609
      %v1611 = vpop.f32.mrf.mxu0
      %1612 = vmatprep.mubr.bf16.mxu0 0
      %1613 = vmatmul.mubr.bf16.gmra.mxu0 %v1156
      %v1614 = vpop.f32.mrf.mxu0
      %v1615 = vadd.f32 %v1406, %v1614
      %v1616 = vpop.f32.mrf.mxu0
      %v1617 = vpop.f32.mrf.mxu0
      %v1618 = vadd.f32 %v1409, %v1617
      %v1619 = vpop.f32.mrf.mxu0
      %1620 = vmatprep.mubr.bf16.mxu0 0
      %1621 = vmatmul.mubr.bf16.gmra.mxu0 %v1157
      %v1622 = vpop.f32.mrf.mxu0
      %v1623 = vadd.f32 %v1414, %v1622
      %v1624 = vpop.f32.mrf.mxu0
      %v1625 = vpop.f32.mrf.mxu0
      %v1626 = vadd.f32 %v1417, %v1625
      %v1627 = vpop.f32.mrf.mxu0
      %1628 = vmatprep.mubr.bf16.mxu0 0
      %1629 = vmatmul.mubr.bf16.gmra.mxu0 %v1158
      %v1630 = vpop.f32.mrf.mxu0
      %v1631 = vadd.f32 %v1422, %v1630
      %v1632 = vpop.f32.mrf.mxu0
      %v1633 = vpop.f32.mrf.mxu0
      %v1634 = vadd.f32 %v1425, %v1633
      %v1635 = vpop.f32.mrf.mxu0
      %1636 = vmatprep.mubr.bf16.mxu0 0
      %1637 = vmatmul.mubr.bf16.gmra.mxu0 %v1159
      %v1638 = vpop.f32.mrf.mxu0
      %v1639 = vadd.f32 %v1430, %v1638
      %v1640 = vpop.f32.mrf.mxu0
      %v1641 = vpop.f32.mrf.mxu0
      %v1642 = vadd.f32 %v1433, %v1641
      %v1643 = vpop.f32.mrf.mxu0
      %1644 = vmatprep.mubr.bf16.mxu0 0
      %1645 = vmatmul.mubr.bf16.gmra.mxu0 %v1160
      %v1646 = vpop.f32.mrf.mxu0
      %v1647 = vadd.f32 %v1438, %v1646
      %v1648 = vpop.f32.mrf.mxu0
      %v1649 = vpop.f32.mrf.mxu0
      %v1650 = vadd.f32 %v1441, %v1649
      %v1651 = vpop.f32.mrf.mxu0
      %1652 = vmatprep.mubr.bf16.mxu0 0
      %1653 = vmatmul.mubr.bf16.gmra.mxu0 %v1161
      %v1654 = vpop.f32.mrf.mxu0
      %v1655 = vadd.f32 %v1446, %v1654
      %v1656 = vpop.f32.mrf.mxu0
      %v1657 = vpop.f32.mrf.mxu0
      %v1658 = vadd.f32 %v1449, %v1657
      %v1659 = vpop.f32.mrf.mxu0
      %1660 = vdwg.mxu0
      %v1661 = vld [vmem:[#allocation2 + $0x9] sm:$0xff]
      %v1662 = vld [vmem:[#allocation2 + $0x11] sm:$0xff]
      %v1663 = vld [vmem:[#allocation2 + $0x19] sm:$0xff]
      %v1664 = vld [vmem:[#allocation2 + $0x21] sm:$0xff]
      %v1665 = vld [vmem:[#allocation2 + $0x29] sm:$0xff]
      %v1666 = vld [vmem:[#allocation2 + $0x31] sm:$0xff]
      %v1667 = vld [vmem:[#allocation2 + $0x39] sm:$0xff]
      %v1668 = vld [vmem:[#allocation2 + $0x41] sm:$0xff]
      %v1669 = vld [vmem:[#allocation2 + $0x49] sm:$0xff]
      %v1670 = vld [vmem:[#allocation2 + $0x51] sm:$0xff]
      %v1671 = vld [vmem:[#allocation2 + $0x59] sm:$0xff]
      %v1672 = vld [vmem:[#allocation2 + $0x61] sm:$0xff]
      %v1673 = vld [vmem:[#allocation2 + $0x69] sm:$0xff]
      %v1674 = vld [vmem:[#allocation2 + $0x71] sm:$0xff]
      %v1675 = vld [vmem:[#allocation2 + $0x79] sm:$0xff]
      %v1676 = vld [vmem:[#allocation2 + $0x81] sm:$0xff]
      %v1677 = vld [vmem:[#allocation2 + $0x89] sm:$0xff]
      %v1678 = vld [vmem:[#allocation2 + $0x91] sm:$0xff]
      %v1679 = vld [vmem:[#allocation2 + $0x99] sm:$0xff]
      %v1680 = vld [vmem:[#allocation2 + $0xa1] sm:$0xff]
      %v1681 = vld [vmem:[#allocation2 + $0xa9] sm:$0xff]
      %v1682 = vld [vmem:[#allocation2 + $0xb1] sm:$0xff]
      %v1683 = vld [vmem:[#allocation2 + $0xb9] sm:$0xff]
      %v1684 = vld [vmem:[#allocation2 + $0xc1] sm:$0xff]
      %v1685 = vld [vmem:[#allocation2 + $0xc9] sm:$0xff]
      %v1686 = vld [vmem:[#allocation2 + $0xd1] sm:$0xff]
      %v1687 = vld [vmem:[#allocation2 + $0xd9] sm:$0xff]
      %v1688 = vld [vmem:[#allocation2 + $0xe1] sm:$0xff]
      %v1689 = vld [vmem:[#allocation2 + $0xe9] sm:$0xff]
      %v1690 = vld [vmem:[#allocation2 + $0xf1] sm:$0xff]
      %v1691 = vld [vmem:[#allocation2 + $0xf9] sm:$0xff]
      %v1692 = vld [vmem:[#allocation2 + $0x101] sm:$0xff]
      %v1693 = vsel %vm1050, %v1661, 0.0
      %v1694 = vsel %vm1051, %v1662, 0.0
      %v1695 = vsel %vm1052, %v1663, 0.0
      %v1696 = vsel %vm1053, %v1664, 0.0
      %v1697 = vsel %vm1054, %v1665, 0.0
      %v1698 = vsel %vm1055, %v1666, 0.0
      %v1699 = vsel %vm1056, %v1667, 0.0
      %v1700 = vsel %vm1057, %v1668, 0.0
      %v1701 = vsel %vm1058, %v1669, 0.0
      %v1702 = vsel %vm1059, %v1670, 0.0
      %v1703 = vsel %vm1060, %v1671, 0.0
      %v1704 = vsel %vm1061, %v1672, 0.0
      %v1705 = vsel %vm1062, %v1673, 0.0
      %v1706 = vsel %vm1063, %v1674, 0.0
      %v1707 = vsel %vm1064, %v1675, 0.0
      %v1708 = vsel %vm1065, %v1676, 0.0
      %v1709 = vsel %vm1066, %v1677, 0.0
      %v1710 = vsel %vm1067, %v1678, 0.0
      %v1711 = vsel %vm1068, %v1679, 0.0
      %v1712 = vsel %vm1069, %v1680, 0.0
      %v1713 = vsel %vm1070, %v1681, 0.0
      %v1714 = vsel %vm1071, %v1682, 0.0
      %v1715 = vsel %vm1072, %v1683, 0.0
      %v1716 = vsel %vm1073, %v1684, 0.0
      %v1717 = vsel %vm1074, %v1685, 0.0
      %v1718 = vsel %vm1075, %v1686, 0.0
      %v1719 = vsel %vm1076, %v1687, 0.0
      %v1720 = vsel %vm1077, %v1688, 0.0
      %v1721 = vsel %vm1078, %v1689, 0.0
      %v1722 = vsel %vm1079, %v1690, 0.0
      %v1723 = vsel %vm1080, %v1691, 0.0
      %v1724 = vsel %vm1081, %v1692, 0.0
      %v1725 = vpack.c.bf16 %v1694, %v1693
      %v1726 = vpack.c.bf16 %v1696, %v1695
      %v1727 = vpack.c.bf16 %v1698, %v1697
      %v1728 = vpack.c.bf16 %v1700, %v1699
      %v1729 = vpack.c.bf16 %v1702, %v1701
      %v1730 = vpack.c.bf16 %v1704, %v1703
      %v1731 = vpack.c.bf16 %v1706, %v1705
      %v1732 = vpack.c.bf16 %v1708, %v1707
      %v1733 = vpack.c.bf16 %v1710, %v1709
      %v1734 = vpack.c.bf16 %v1712, %v1711
      %v1735 = vpack.c.bf16 %v1714, %v1713
      %v1736 = vpack.c.bf16 %v1716, %v1715
      %v1737 = vpack.c.bf16 %v1718, %v1717
      %v1738 = vpack.c.bf16 %v1720, %v1719
      %v1739 = vpack.c.bf16 %v1722, %v1721
      %v1740 = vpack.c.bf16 %v1724, %v1723
      %s1741 = scalar_lea.vmem %s4, 128
      %v1742 = vld [vmem:[%s1741] sm:$0xf]
      %v1743 = vld [vmem:[%s1741 + $0x4] sm:$0xf]
      %v1744 = vld [vmem:[%s1741 + $0x8] sm:$0xf]
      %v1745 = vld [vmem:[%s1741 + $0xc] sm:$0xf]
      %v1746 = vld [vmem:[%s1741 + $0x10] sm:$0xf]
      %v1747 = vld [vmem:[%s1741 + $0x14] sm:$0xf]
      %v1748 = vld [vmem:[%s1741 + $0x18] sm:$0xf]
      %v1749 = vld [vmem:[%s1741 + $0x1c] sm:$0xf]
      %v1750 = vld [vmem:[%s1741 + $0x20] sm:$0xf]
      %v1751 = vld [vmem:[%s1741 + $0x24] sm:$0xf]
      %v1752 = vld [vmem:[%s1741 + $0x28] sm:$0xf]
      %v1753 = vld [vmem:[%s1741 + $0x2c] sm:$0xf]
      %v1754 = vld [vmem:[%s1741 + $0x30] sm:$0xf]
      %v1755 = vld [vmem:[%s1741 + $0x34] sm:$0xf]
      %v1756 = vld [vmem:[%s1741 + $0x38] sm:$0xf]
      %v1757 = vld [vmem:[%s1741 + $0x3c] sm:$0xf]
      %v1774 = vunpack.c.l.b16 %v1742
      %v1775 = vunpack.c.l.b16 %v1743
      %v1776 = vunpack.c.l.b16 %v1744
      %v1777 = vunpack.c.l.b16 %v1745
      %v1778 = vunpack.c.l.b16 %v1746
      %v1779 = vunpack.c.l.b16 %v1747
      %v1780 = vunpack.c.l.b16 %v1748
      %v1781 = vunpack.c.l.b16 %v1749
      %v1782 = vunpack.c.l.b16 %v1750
      %v1783 = vunpack.c.l.b16 %v1751
      %v1784 = vunpack.c.l.b16 %v1752
      %v1785 = vunpack.c.l.b16 %v1753
      %v1786 = vunpack.c.l.b16 %v1754
      %v1787 = vunpack.c.l.b16 %v1755
      %v1788 = vunpack.c.l.b16 %v1756
      %v1789 = vunpack.c.l.b16 %v1757
      %v1790 = vpack.c.b16 %v1775, %v1774
      %v1791 = vpack.c.b16 %v1777, %v1776
      %v1792 = vpack.c.b16 %v1779, %v1778
      %v1793 = vpack.c.b16 %v1781, %v1780
      %v1794 = vpack.c.b16 %v1783, %v1782
      %v1795 = vpack.c.b16 %v1785, %v1784
      %v1796 = vpack.c.b16 %v1787, %v1786
      %v1797 = vpack.c.b16 %v1789, %v1788
      %1806 = vmatprep.subr.bf16.mxu0 0
      %1807 = vmatpush1.bf16.msra.mxu0 %v1797
      %1808 = vmatprep.subr.bf16.mxu0 0
      %1809 = vmatpush1.bf16.msra.mxu0 %v1796
      %1810 = vmatprep.subr.bf16.mxu0 0
      %1811 = vmatpush1.bf16.msra.mxu0 %v1795
      %1812 = vmatprep.subr.bf16.mxu0 0
      %1813 = vmatpush1.bf16.msra.mxu0 %v1794
      %1814 = vmatprep.subr.bf16.mxu0 0
      %1815 = vmatpush1.bf16.msra.mxu0 %v1793
      %1816 = vmatprep.subr.bf16.mxu0 0
      %1817 = vmatpush1.bf16.msra.mxu0 %v1792
      %1818 = vmatprep.subr.bf16.mxu0 0
      %1819 = vmatpush1.bf16.msra.mxu0 %v1791
      %1820 = vmatprep.subr.bf16.mxu0 0
      %1821 = vmatpush1.bf16.msra.mxu0 %v1790
      %1822 = vmatprep.subr.bf16.mxu0 0
      %1823 = vmatpush2.bf16.msra.mxu0 0
      %1824 = vmatprep.subr.bf16.mxu0 0
      %1825 = vmatpush2.bf16.msra.mxu0 0
      %1826 = vmatprep.subr.bf16.mxu0 0
      %1827 = vmatpush2.bf16.msra.mxu0 0
      %1828 = vmatprep.subr.bf16.mxu0 0
      %1829 = vmatpush2.bf16.msra.mxu0 0
      %1830 = vmatprep.subr.bf16.mxu0 0
      %1831 = vmatpush2.bf16.msra.mxu0 0
      %1832 = vmatprep.subr.bf16.mxu0 0
      %1833 = vmatpush2.bf16.msra.mxu0 0
      %1834 = vmatprep.subr.bf16.mxu0 0
      %1835 = vmatpush2.bf16.msra.mxu0 0
      %1836 = vmatprep.subr.bf16.mxu0 0
      %1837 = vmatpush2.bf16.msra.mxu0 0
      %1838 = vmatprep.mubr.bf16.mxu0 0
      %1839 = vmatmul.mubr.bf16.gmra.mxu0 %v1725
      %v1840 = vpop.f32.mrf.mxu0
      %v1841 = vadd.f32 0.0, %v1840
      %v1842 = vpop.f32.mrf.mxu0
      %v1843 = vpop.f32.mrf.mxu0
      %v1844 = vadd.f32 0.0, %v1843
      %v1845 = vpop.f32.mrf.mxu0
      %1846 = vmatprep.mubr.bf16.mxu0 0
      %1847 = vmatmul.mubr.bf16.gmra.mxu0 %v1726
      %v1848 = vpop.f32.mrf.mxu0
      %v1849 = vadd.f32 0.0, %v1848
      %v1850 = vpop.f32.mrf.mxu0
      %v1851 = vpop.f32.mrf.mxu0
      %v1852 = vadd.f32 0.0, %v1851
      %v1853 = vpop.f32.mrf.mxu0
      %1854 = vmatprep.mubr.bf16.mxu0 0
      %1855 = vmatmul.mubr.bf16.gmra.mxu0 %v1727
      %v1856 = vpop.f32.mrf.mxu0
      %v1857 = vadd.f32 0.0, %v1856
      %v1858 = vpop.f32.mrf.mxu0
      %v1859 = vpop.f32.mrf.mxu0
      %v1860 = vadd.f32 0.0, %v1859
      %v1861 = vpop.f32.mrf.mxu0
      %1862 = vmatprep.mubr.bf16.mxu0 0
      %1863 = vmatmul.mubr.bf16.gmra.mxu0 %v1728
      %v1864 = vpop.f32.mrf.mxu0
      %v1865 = vadd.f32 0.0, %v1864
      %v1866 = vpop.f32.mrf.mxu0
      %v1867 = vpop.f32.mrf.mxu0
      %v1868 = vadd.f32 0.0, %v1867
      %v1869 = vpop.f32.mrf.mxu0
      %1870 = vmatprep.mubr.bf16.mxu0 0
      %1871 = vmatmul.mubr.bf16.gmra.mxu0 %v1729
      %v1872 = vpop.f32.mrf.mxu0
      %v1873 = vadd.f32 0.0, %v1872
      %v1874 = vpop.f32.mrf.mxu0
      %v1875 = vpop.f32.mrf.mxu0
      %v1876 = vadd.f32 0.0, %v1875
      %v1877 = vpop.f32.mrf.mxu0
      %1878 = vmatprep.mubr.bf16.mxu0 0
      %1879 = vmatmul.mubr.bf16.gmra.mxu0 %v1730
      %v1880 = vpop.f32.mrf.mxu0
      %v1881 = vadd.f32 0.0, %v1880
      %v1882 = vpop.f32.mrf.mxu0
      %v1883 = vpop.f32.mrf.mxu0
      %v1884 = vadd.f32 0.0, %v1883
      %v1885 = vpop.f32.mrf.mxu0
      %1886 = vmatprep.mubr.bf16.mxu0 0
      %1887 = vmatmul.mubr.bf16.gmra.mxu0 %v1731
      %v1888 = vpop.f32.mrf.mxu0
      %v1889 = vadd.f32 0.0, %v1888
      %v1890 = vpop.f32.mrf.mxu0
      %v1891 = vpop.f32.mrf.mxu0
      %v1892 = vadd.f32 0.0, %v1891
      %v1893 = vpop.f32.mrf.mxu0
      %1894 = vmatprep.mubr.bf16.mxu0 0
      %1895 = vmatmul.mubr.bf16.gmra.mxu0 %v1732
      %v1896 = vpop.f32.mrf.mxu0
      %v1897 = vadd.f32 0.0, %v1896
      %v1898 = vpop.f32.mrf.mxu0
      %v1899 = vpop.f32.mrf.mxu0
      %v1900 = vadd.f32 0.0, %v1899
      %v1901 = vpop.f32.mrf.mxu0
      %1902 = vmatprep.mubr.bf16.mxu0 0
      %1903 = vmatmul.mubr.bf16.gmra.mxu0 %v1733
      %v1904 = vpop.f32.mrf.mxu0
      %v1905 = vadd.f32 0.0, %v1904
      %v1906 = vpop.f32.mrf.mxu0
      %v1907 = vpop.f32.mrf.mxu0
      %v1908 = vadd.f32 0.0, %v1907
      %v1909 = vpop.f32.mrf.mxu0
      %1910 = vmatprep.mubr.bf16.mxu0 0
      %1911 = vmatmul.mubr.bf16.gmra.mxu0 %v1734
      %v1912 = vpop.f32.mrf.mxu0
      %v1913 = vadd.f32 0.0, %v1912
      %v1914 = vpop.f32.mrf.mxu0
      %v1915 = vpop.f32.mrf.mxu0
      %v1916 = vadd.f32 0.0, %v1915
      %v1917 = vpop.f32.mrf.mxu0
      %1918 = vmatprep.mubr.bf16.mxu0 0
      %1919 = vmatmul.mubr.bf16.gmra.mxu0 %v1735
      %v1920 = vpop.f32.mrf.mxu0
      %v1921 = vadd.f32 0.0, %v1920
      %v1922 = vpop.f32.mrf.mxu0
      %v1923 = vpop.f32.mrf.mxu0
      %v1924 = vadd.f32 0.0, %v1923
      %v1925 = vpop.f32.mrf.mxu0
      %1926 = vmatprep.mubr.bf16.mxu0 0
      %1927 = vmatmul.mubr.bf16.gmra.mxu0 %v1736
      %v1928 = vpop.f32.mrf.mxu0
      %v1929 = vadd.f32 0.0, %v1928
      %v1930 = vpop.f32.mrf.mxu0
      %v1931 = vpop.f32.mrf.mxu0
      %v1932 = vadd.f32 0.0, %v1931
      %v1933 = vpop.f32.mrf.mxu0
      %1934 = vmatprep.mubr.bf16.mxu0 0
      %1935 = vmatmul.mubr.bf16.gmra.mxu0 %v1737
      %v1936 = vpop.f32.mrf.mxu0
      %v1937 = vadd.f32 0.0, %v1936
      %v1938 = vpop.f32.mrf.mxu0
      %v1939 = vpop.f32.mrf.mxu0
      %v1940 = vadd.f32 0.0, %v1939
      %v1941 = vpop.f32.mrf.mxu0
      %1942 = vmatprep.mubr.bf16.mxu0 0
      %1943 = vmatmul.mubr.bf16.gmra.mxu0 %v1738
      %v1944 = vpop.f32.mrf.mxu0
      %v1945 = vadd.f32 0.0, %v1944
      %v1946 = vpop.f32.mrf.mxu0
      %v1947 = vpop.f32.mrf.mxu0
      %v1948 = vadd.f32 0.0, %v1947
      %v1949 = vpop.f32.mrf.mxu0
      %1950 = vmatprep.mubr.bf16.mxu0 0
      %1951 = vmatmul.mubr.bf16.gmra.mxu0 %v1739
      %v1952 = vpop.f32.mrf.mxu0
      %v1953 = vadd.f32 0.0, %v1952
      %v1954 = vpop.f32.mrf.mxu0
      %v1955 = vpop.f32.mrf.mxu0
      %v1956 = vadd.f32 0.0, %v1955
      %v1957 = vpop.f32.mrf.mxu0
      %1958 = vmatprep.mubr.bf16.mxu0 0
      %1959 = vmatmul.mubr.bf16.gmra.mxu0 %v1740
      %v1960 = vpop.f32.mrf.mxu0
      %v1961 = vadd.f32 0.0, %v1960
      %v1962 = vpop.f32.mrf.mxu0
      %v1963 = vpop.f32.mrf.mxu0
      %v1964 = vadd.f32 0.0, %v1963
      %v1965 = vpop.f32.mrf.mxu0
      %1966 = vdwg.mxu0
      %v1967 = vadd.f32 %v1535, %v1841
      %v1968 = vadd.f32 %v1538, %v1844
      %v1969 = vadd.f32 %v1543, %v1849
      %v1970 = vadd.f32 %v1546, %v1852
      %v1971 = vadd.f32 %v1551, %v1857
      %v1972 = vadd.f32 %v1554, %v1860
      %v1973 = vadd.f32 %v1559, %v1865
      %v1974 = vadd.f32 %v1562, %v1868
      %v1975 = vadd.f32 %v1567, %v1873
      %v1976 = vadd.f32 %v1570, %v1876
      %v1977 = vadd.f32 %v1575, %v1881
      %v1978 = vadd.f32 %v1578, %v1884
      %v1979 = vadd.f32 %v1583, %v1889
      %v1980 = vadd.f32 %v1586, %v1892
      %v1981 = vadd.f32 %v1591, %v1897
      %v1982 = vadd.f32 %v1594, %v1900
      %v1983 = vadd.f32 %v1599, %v1905
      %v1984 = vadd.f32 %v1602, %v1908
      %v1985 = vadd.f32 %v1607, %v1913
      %v1986 = vadd.f32 %v1610, %v1916
      %v1987 = vadd.f32 %v1615, %v1921
      %v1988 = vadd.f32 %v1618, %v1924
      %v1989 = vadd.f32 %v1623, %v1929
      %v1990 = vadd.f32 %v1626, %v1932
      %v1991 = vadd.f32 %v1631, %v1937
      %v1992 = vadd.f32 %v1634, %v1940
      %v1993 = vadd.f32 %v1639, %v1945
      %v1994 = vadd.f32 %v1642, %v1948
      %v1995 = vadd.f32 %v1647, %v1953
      %v1996 = vadd.f32 %v1650, %v1956
      %v1997 = vadd.f32 %v1655, %v1961
      %v1998 = vadd.f32 %v1658, %v1964
      %v1999 = vld [vmem:[#allocation2 + $0x17] sm:$0xff]
      %v2000 = vld [vmem:[#allocation2 + $0x1f] sm:$0xff]
      %v2001 = vld [vmem:[#allocation2 + $0x27] sm:$0xff]
      %v2002 = vld [vmem:[#allocation2 + $0x2f] sm:$0xff]
      %v2003 = vld [vmem:[#allocation2 + $0x37] sm:$0xff]
      %v2004 = vld [vmem:[#allocation2 + $0x3f] sm:$0xff]
      %v2005 = vld [vmem:[#allocation2 + $0x47] sm:$0xff]
      %v2006 = vld [vmem:[#allocation2 + $0x4f] sm:$0xff]
      %v2007 = vld [vmem:[#allocation2 + $0x57] sm:$0xff]
      %v2008 = vld [vmem:[#allocation2 + $0x5f] sm:$0xff]
      %v2009 = vld [vmem:[#allocation2 + $0x67] sm:$0xff]
      %v2010 = vld [vmem:[#allocation2 + $0x6f] sm:$0xff]
      %v2011 = vld [vmem:[#allocation2 + $0x77] sm:$0xff]
      %v2012 = vld [vmem:[#allocation2 + $0x7f] sm:$0xff]
      %v2013 = vld [vmem:[#allocation2 + $0x87] sm:$0xff]
      %v2014 = vld [vmem:[#allocation2 + $0x8f] sm:$0xff]
      %v2015 = vld [vmem:[#allocation2 + $0x97] sm:$0xff]
      %v2016 = vld [vmem:[#allocation2 + $0x9f] sm:$0xff]
      %v2017 = vld [vmem:[#allocation2 + $0xa7] sm:$0xff]
      %v2018 = vld [vmem:[#allocation2 + $0xaf] sm:$0xff]
      %v2019 = vld [vmem:[#allocation2 + $0xb7] sm:$0xff]
      %v2020 = vld [vmem:[#allocation2 + $0xbf] sm:$0xff]
      %v2021 = vld [vmem:[#allocation2 + $0xc7] sm:$0xff]
      %v2022 = vld [vmem:[#allocation2 + $0xcf] sm:$0xff]
      %v2023 = vld [vmem:[#allocation2 + $0xd7] sm:$0xff]
      %v2024 = vld [vmem:[#allocation2 + $0xdf] sm:$0xff]
      %v2025 = vld [vmem:[#allocation2 + $0xe7] sm:$0xff]
      %v2026 = vld [vmem:[#allocation2 + $0xef] sm:$0xff]
      %v2027 = vld [vmem:[#allocation2 + $0xf7] sm:$0xff]
      %v2028 = vld [vmem:[#allocation2 + $0xff] sm:$0xff]
      %v2029 = vld [vmem:[#allocation2 + $0x107] sm:$0xff]
      %v2030 = vld [vmem:[#allocation2 + $0x10f] sm:$0xff]
      %v2031 = vsel %vm1018, %v1999, 0.0
      %v2032 = vsel %vm1019, %v2000, 0.0
      %v2033 = vsel %vm1020, %v2001, 0.0
      %v2034 = vsel %vm1021, %v2002, 0.0
      %v2035 = vsel %vm1022, %v2003, 0.0
      %v2036 = vsel %vm1023, %v2004, 0.0
      %v2037 = vsel %vm1024, %v2005, 0.0
      %v2038 = vsel %vm1025, %v2006, 0.0
      %v2039 = vsel %vm1026, %v2007, 0.0
      %v2040 = vsel %vm1027, %v2008, 0.0
      %v2041 = vsel %vm1028, %v2009, 0.0
      %v2042 = vsel %vm1029, %v2010, 0.0
      %v2043 = vsel %vm1030, %v2011, 0.0
      %v2044 = vsel %vm1031, %v2012, 0.0
      %v2045 = vsel %vm1032, %v2013, 0.0
      %v2046 = vsel %vm1033, %v2014, 0.0
      %v2047 = vsel %vm1034, %v2015, 0.0
      %v2048 = vsel %vm1035, %v2016, 0.0
      %v2049 = vsel %vm1036, %v2017, 0.0
      %v2050 = vsel %vm1037, %v2018, 0.0
      %v2051 = vsel %vm1038, %v2019, 0.0
      %v2052 = vsel %vm1039, %v2020, 0.0
      %v2053 = vsel %vm1040, %v2021, 0.0
      %v2054 = vsel %vm1041, %v2022, 0.0
      %v2055 = vsel %vm1042, %v2023, 0.0
      %v2056 = vsel %vm1043, %v2024, 0.0
      %v2057 = vsel %vm1044, %v2025, 0.0
      %v2058 = vsel %vm1045, %v2026, 0.0
      %v2059 = vsel %vm1046, %v2027, 0.0
      %v2060 = vsel %vm1047, %v2028, 0.0
      %v2061 = vsel %vm1048, %v2029, 0.0
      %v2062 = vsel %vm1049, %v2030, 0.0
      %v2063 = vpack.c.bf16 %v2032, %v2031
      %v2064 = vpack.c.bf16 %v2034, %v2033
      %v2065 = vpack.c.bf16 %v2036, %v2035
      %v2066 = vpack.c.bf16 %v2038, %v2037
      %v2067 = vpack.c.bf16 %v2040, %v2039
      %v2068 = vpack.c.bf16 %v2042, %v2041
      %v2069 = vpack.c.bf16 %v2044, %v2043
      %v2070 = vpack.c.bf16 %v2046, %v2045
      %v2071 = vpack.c.bf16 %v2048, %v2047
      %v2072 = vpack.c.bf16 %v2050, %v2049
      %v2073 = vpack.c.bf16 %v2052, %v2051
      %v2074 = vpack.c.bf16 %v2054, %v2053
      %v2075 = vpack.c.bf16 %v2056, %v2055
      %v2076 = vpack.c.bf16 %v2058, %v2057
      %v2077 = vpack.c.bf16 %v2060, %v2059
      %v2078 = vpack.c.bf16 %v2062, %v2061
      %s2079 = scalar_lea.vmem %s4, 192
      %v2080 = vld [vmem:[%s2079] sm:$0xf]
      %v2081 = vld [vmem:[%s2079 + $0x4] sm:$0xf]
      %v2082 = vld [vmem:[%s2079 + $0x8] sm:$0xf]
      %v2083 = vld [vmem:[%s2079 + $0xc] sm:$0xf]
      %v2084 = vld [vmem:[%s2079 + $0x10] sm:$0xf]
      %v2085 = vld [vmem:[%s2079 + $0x14] sm:$0xf]
      %v2086 = vld [vmem:[%s2079 + $0x18] sm:$0xf]
      %v2087 = vld [vmem:[%s2079 + $0x1c] sm:$0xf]
      %v2088 = vld [vmem:[%s2079 + $0x20] sm:$0xf]
      %v2089 = vld [vmem:[%s2079 + $0x24] sm:$0xf]
      %v2090 = vld [vmem:[%s2079 + $0x28] sm:$0xf]
      %v2091 = vld [vmem:[%s2079 + $0x2c] sm:$0xf]
      %v2092 = vld [vmem:[%s2079 + $0x30] sm:$0xf]
      %v2093 = vld [vmem:[%s2079 + $0x34] sm:$0xf]
      %v2094 = vld [vmem:[%s2079 + $0x38] sm:$0xf]
      %v2095 = vld [vmem:[%s2079 + $0x3c] sm:$0xf]
      %v2112 = vunpack.c.l.b16 %v2080
      %v2113 = vunpack.c.l.b16 %v2081
      %v2114 = vunpack.c.l.b16 %v2082
      %v2115 = vunpack.c.l.b16 %v2083
      %v2116 = vunpack.c.l.b16 %v2084
      %v2117 = vunpack.c.l.b16 %v2085
      %v2118 = vunpack.c.l.b16 %v2086
      %v2119 = vunpack.c.l.b16 %v2087
      %v2120 = vunpack.c.l.b16 %v2088
      %v2121 = vunpack.c.l.b16 %v2089
      %v2122 = vunpack.c.l.b16 %v2090
      %v2123 = vunpack.c.l.b16 %v2091
      %v2124 = vunpack.c.l.b16 %v2092
      %v2125 = vunpack.c.l.b16 %v2093
      %v2126 = vunpack.c.l.b16 %v2094
      %v2127 = vunpack.c.l.b16 %v2095
      %v2128 = vpack.c.b16 %v2113, %v2112
      %v2129 = vpack.c.b16 %v2115, %v2114
      %v2130 = vpack.c.b16 %v2117, %v2116
      %v2131 = vpack.c.b16 %v2119, %v2118
      %v2132 = vpack.c.b16 %v2121, %v2120
      %v2133 = vpack.c.b16 %v2123, %v2122
      %v2134 = vpack.c.b16 %v2125, %v2124
      %v2135 = vpack.c.b16 %v2127, %v2126
      %2144 = vmatprep.subr.bf16.mxu0 0
      %2145 = vmatpush1.bf16.msra.mxu0 %v2135
      %2146 = vmatprep.subr.bf16.mxu0 0
      %2147 = vmatpush1.bf16.msra.mxu0 %v2134
      %2148 = vmatprep.subr.bf16.mxu0 0
      %2149 = vmatpush1.bf16.msra.mxu0 %v2133
      %2150 = vmatprep.subr.bf16.mxu0 0
      %2151 = vmatpush1.bf16.msra.mxu0 %v2132
      %2152 = vmatprep.subr.bf16.mxu0 0
      %2153 = vmatpush1.bf16.msra.mxu0 %v2131
      %2154 = vmatprep.subr.bf16.mxu0 0
      %2155 = vmatpush1.bf16.msra.mxu0 %v2130
      %2156 = vmatprep.subr.bf16.mxu0 0
      %2157 = vmatpush1.bf16.msra.mxu0 %v2129
      %2158 = vmatprep.subr.bf16.mxu0 0
      %2159 = vmatpush1.bf16.msra.mxu0 %v2128
      %2160 = vmatprep.subr.bf16.mxu0 0
      %2161 = vmatpush2.bf16.msra.mxu0 0
      %2162 = vmatprep.subr.bf16.mxu0 0
      %2163 = vmatpush2.bf16.msra.mxu0 0
      %2164 = vmatprep.subr.bf16.mxu0 0
      %2165 = vmatpush2.bf16.msra.mxu0 0
      %2166 = vmatprep.subr.bf16.mxu0 0
      %2167 = vmatpush2.bf16.msra.mxu0 0
      %2168 = vmatprep.subr.bf16.mxu0 0
      %2169 = vmatpush2.bf16.msra.mxu0 0
      %2170 = vmatprep.subr.bf16.mxu0 0
      %2171 = vmatpush2.bf16.msra.mxu0 0
      %2172 = vmatprep.subr.bf16.mxu0 0
      %2173 = vmatpush2.bf16.msra.mxu0 0
      %2174 = vmatprep.subr.bf16.mxu0 0
      %2175 = vmatpush2.bf16.msra.mxu0 0
      %2176 = vmatprep.mubr.bf16.mxu0 0
      %2177 = vmatmul.mubr.bf16.gmra.mxu0 %v2063
      %v2178 = vpop.f32.mrf.mxu0
      %v2179 = vadd.f32 0.0, %v2178
      %v2180 = vpop.f32.mrf.mxu0
      %v2181 = vpop.f32.mrf.mxu0
      %v2182 = vadd.f32 0.0, %v2181
      %v2183 = vpop.f32.mrf.mxu0
      %2184 = vmatprep.mubr.bf16.mxu0 0
      %2185 = vmatmul.mubr.bf16.gmra.mxu0 %v2064
      %v2186 = vpop.f32.mrf.mxu0
      %v2187 = vadd.f32 0.0, %v2186
      %v2188 = vpop.f32.mrf.mxu0
      %v2189 = vpop.f32.mrf.mxu0
      %v2190 = vadd.f32 0.0, %v2189
      %v2191 = vpop.f32.mrf.mxu0
      %2192 = vmatprep.mubr.bf16.mxu0 0
      %2193 = vmatmul.mubr.bf16.gmra.mxu0 %v2065
      %v2194 = vpop.f32.mrf.mxu0
      %v2195 = vadd.f32 0.0, %v2194
      %v2196 = vpop.f32.mrf.mxu0
      %v2197 = vpop.f32.mrf.mxu0
      %v2198 = vadd.f32 0.0, %v2197
      %v2199 = vpop.f32.mrf.mxu0
      %2200 = vmatprep.mubr.bf16.mxu0 0
      %2201 = vmatmul.mubr.bf16.gmra.mxu0 %v2066
      %v2202 = vpop.f32.mrf.mxu0
      %v2203 = vadd.f32 0.0, %v2202
      %v2204 = vpop.f32.mrf.mxu0
      %v2205 = vpop.f32.mrf.mxu0
      %v2206 = vadd.f32 0.0, %v2205
      %v2207 = vpop.f32.mrf.mxu0
      %2208 = vmatprep.mubr.bf16.mxu0 0
      %2209 = vmatmul.mubr.bf16.gmra.mxu0 %v2067
      %v2210 = vpop.f32.mrf.mxu0
      %v2211 = vadd.f32 0.0, %v2210
      %v2212 = vpop.f32.mrf.mxu0
      %v2213 = vpop.f32.mrf.mxu0
      %v2214 = vadd.f32 0.0, %v2213
      %v2215 = vpop.f32.mrf.mxu0
      %2216 = vmatprep.mubr.bf16.mxu0 0
      %2217 = vmatmul.mubr.bf16.gmra.mxu0 %v2068
      %v2218 = vpop.f32.mrf.mxu0
      %v2219 = vadd.f32 0.0, %v2218
      %v2220 = vpop.f32.mrf.mxu0
      %v2221 = vpop.f32.mrf.mxu0
      %v2222 = vadd.f32 0.0, %v2221
      %v2223 = vpop.f32.mrf.mxu0
      %2224 = vmatprep.mubr.bf16.mxu0 0
      %2225 = vmatmul.mubr.bf16.gmra.mxu0 %v2069
      %v2226 = vpop.f32.mrf.mxu0
      %v2227 = vadd.f32 0.0, %v2226
      %v2228 = vpop.f32.mrf.mxu0
      %v2229 = vpop.f32.mrf.mxu0
      %v2230 = vadd.f32 0.0, %v2229
      %v2231 = vpop.f32.mrf.mxu0
      %2232 = vmatprep.mubr.bf16.mxu0 0
      %2233 = vmatmul.mubr.bf16.gmra.mxu0 %v2070
      %v2234 = vpop.f32.mrf.mxu0
      %v2235 = vadd.f32 0.0, %v2234
      %v2236 = vpop.f32.mrf.mxu0
      %v2237 = vpop.f32.mrf.mxu0
      %v2238 = vadd.f32 0.0, %v2237
      %v2239 = vpop.f32.mrf.mxu0
      %2240 = vmatprep.mubr.bf16.mxu0 0
      %2241 = vmatmul.mubr.bf16.gmra.mxu0 %v2071
      %v2242 = vpop.f32.mrf.mxu0
      %v2243 = vadd.f32 0.0, %v2242
      %v2244 = vpop.f32.mrf.mxu0
      %v2245 = vpop.f32.mrf.mxu0
      %v2246 = vadd.f32 0.0, %v2245
      %v2247 = vpop.f32.mrf.mxu0
      %2248 = vmatprep.mubr.bf16.mxu0 0
      %2249 = vmatmul.mubr.bf16.gmra.mxu0 %v2072
      %v2250 = vpop.f32.mrf.mxu0
      %v2251 = vadd.f32 0.0, %v2250
      %v2252 = vpop.f32.mrf.mxu0
      %v2253 = vpop.f32.mrf.mxu0
      %v2254 = vadd.f32 0.0, %v2253
      %v2255 = vpop.f32.mrf.mxu0
      %2256 = vmatprep.mubr.bf16.mxu0 0
      %2257 = vmatmul.mubr.bf16.gmra.mxu0 %v2073
      %v2258 = vpop.f32.mrf.mxu0
      %v2259 = vadd.f32 0.0, %v2258
      %v2260 = vpop.f32.mrf.mxu0
      %v2261 = vpop.f32.mrf.mxu0
      %v2262 = vadd.f32 0.0, %v2261
      %v2263 = vpop.f32.mrf.mxu0
      %2264 = vmatprep.mubr.bf16.mxu0 0
      %2265 = vmatmul.mubr.bf16.gmra.mxu0 %v2074
      %v2266 = vpop.f32.mrf.mxu0
      %v2267 = vadd.f32 0.0, %v2266
      %v2268 = vpop.f32.mrf.mxu0
      %v2269 = vpop.f32.mrf.mxu0
      %v2270 = vadd.f32 0.0, %v2269
      %v2271 = vpop.f32.mrf.mxu0
      %2272 = vmatprep.mubr.bf16.mxu0 0
      %2273 = vmatmul.mubr.bf16.gmra.mxu0 %v2075
      %v2274 = vpop.f32.mrf.mxu0
      %v2275 = vadd.f32 0.0, %v2274
      %v2276 = vpop.f32.mrf.mxu0
      %v2277 = vpop.f32.mrf.mxu0
      %v2278 = vadd.f32 0.0, %v2277
      %v2279 = vpop.f32.mrf.mxu0
      %2280 = vmatprep.mubr.bf16.mxu0 0
      %2281 = vmatmul.mubr.bf16.gmra.mxu0 %v2076
      %v2282 = vpop.f32.mrf.mxu0
      %v2283 = vadd.f32 0.0, %v2282
      %v2284 = vpop.f32.mrf.mxu0
      %v2285 = vpop.f32.mrf.mxu0
      %v2286 = vadd.f32 0.0, %v2285
      %v2287 = vpop.f32.mrf.mxu0
      %2288 = vmatprep.mubr.bf16.mxu0 0
      %2289 = vmatmul.mubr.bf16.gmra.mxu0 %v2077
      %v2290 = vpop.f32.mrf.mxu0
      %v2291 = vadd.f32 0.0, %v2290
      %v2292 = vpop.f32.mrf.mxu0
      %v2293 = vpop.f32.mrf.mxu0
      %v2294 = vadd.f32 0.0, %v2293
      %v2295 = vpop.f32.mrf.mxu0
      %2296 = vmatprep.mubr.bf16.mxu0 0
      %2297 = vmatmul.mubr.bf16.gmra.mxu0 %v2078
      %v2298 = vpop.f32.mrf.mxu0
      %v2299 = vadd.f32 0.0, %v2298
      %v2300 = vpop.f32.mrf.mxu0
      %v2301 = vpop.f32.mrf.mxu0
      %v2302 = vadd.f32 0.0, %v2301
      %v2303 = vpop.f32.mrf.mxu0
      %2304 = vdwg.mxu0
      %v2305 = vadd.f32 %v1967, %v2179
      %v2306 = vadd.f32 %v1968, %v2182
      %v2307 = vadd.f32 %v1969, %v2187
      %v2308 = vadd.f32 %v1970, %v2190
      %v2309 = vadd.f32 %v1971, %v2195
      %v2310 = vadd.f32 %v1972, %v2198
      %v2311 = vadd.f32 %v1973, %v2203
      %v2312 = vadd.f32 %v1974, %v2206
      %v2313 = vadd.f32 %v1975, %v2211
      %v2314 = vadd.f32 %v1976, %v2214
      %v2315 = vadd.f32 %v1977, %v2219
      %v2316 = vadd.f32 %v1978, %v2222
      %v2317 = vadd.f32 %v1979, %v2227
      %v2318 = vadd.f32 %v1980, %v2230
      %v2319 = vadd.f32 %v1981, %v2235
      %v2320 = vadd.f32 %v1982, %v2238
      %v2321 = vadd.f32 %v1983, %v2243
      %v2322 = vadd.f32 %v1984, %v2246
      %v2323 = vadd.f32 %v1985, %v2251
      %v2324 = vadd.f32 %v1986, %v2254
      %v2325 = vadd.f32 %v1987, %v2259
      %v2326 = vadd.f32 %v1988, %v2262
      %v2327 = vadd.f32 %v1989, %v2267
      %v2328 = vadd.f32 %v1990, %v2270
      %v2329 = vadd.f32 %v1991, %v2275
      %v2330 = vadd.f32 %v1992, %v2278
      %v2331 = vadd.f32 %v1993, %v2283
      %v2332 = vadd.f32 %v1994, %v2286
      %v2333 = vadd.f32 %v1995, %v2291
      %v2334 = vadd.f32 %v1996, %v2294
      %v2335 = vadd.f32 %v1997, %v2299
      %v2336 = vadd.f32 %v1998, %v2302
      %v2337 = vld [vmem:[#allocation2 + $0x18] sm:$0xff]
      %v2338 = vld [vmem:[#allocation2 + $0x20] sm:$0xff]
      %v2339 = vld [vmem:[#allocation2 + $0x28] sm:$0xff]
      %v2340 = vld [vmem:[#allocation2 + $0x30] sm:$0xff]
      %v2341 = vld [vmem:[#allocation2 + $0x38] sm:$0xff]
      %v2342 = vld [vmem:[#allocation2 + $0x40] sm:$0xff]
      %v2343 = vld [vmem:[#allocation2 + $0x48] sm:$0xff]
      %v2344 = vld [vmem:[#allocation2 + $0x50] sm:$0xff]
      %v2345 = vld [vmem:[#allocation2 + $0x58] sm:$0xff]
      %v2346 = vld [vmem:[#allocation2 + $0x60] sm:$0xff]
      %v2347 = vld [vmem:[#allocation2 + $0x68] sm:$0xff]
      %v2348 = vld [vmem:[#allocation2 + $0x70] sm:$0xff]
      %v2349 = vld [vmem:[#allocation2 + $0x78] sm:$0xff]
      %v2350 = vld [vmem:[#allocation2 + $0x80] sm:$0xff]
      %v2351 = vld [vmem:[#allocation2 + $0x88] sm:$0xff]
      %v2352 = vld [vmem:[#allocation2 + $0x90] sm:$0xff]
      %v2353 = vld [vmem:[#allocation2 + $0x98] sm:$0xff]
      %v2354 = vld [vmem:[#allocation2 + $0xa0] sm:$0xff]
      %v2355 = vld [vmem:[#allocation2 + $0xa8] sm:$0xff]
      %v2356 = vld [vmem:[#allocation2 + $0xb0] sm:$0xff]
      %v2357 = vld [vmem:[#allocation2 + $0xb8] sm:$0xff]
      %v2358 = vld [vmem:[#allocation2 + $0xc0] sm:$0xff]
      %v2359 = vld [vmem:[#allocation2 + $0xc8] sm:$0xff]
      %v2360 = vld [vmem:[#allocation2 + $0xd0] sm:$0xff]
      %v2361 = vld [vmem:[#allocation2 + $0xd8] sm:$0xff]
      %v2362 = vld [vmem:[#allocation2 + $0xe0] sm:$0xff]
      %v2363 = vld [vmem:[#allocation2 + $0xe8] sm:$0xff]
      %v2364 = vld [vmem:[#allocation2 + $0xf0] sm:$0xff]
      %v2365 = vld [vmem:[#allocation2 + $0xf8] sm:$0xff]
      %v2366 = vld [vmem:[#allocation2 + $0x100] sm:$0xff]
      %v2367 = vld [vmem:[#allocation2 + $0x108] sm:$0xff]
      %v2368 = vld [vmem:[#allocation2 + $0x110] sm:$0xff]
      %v2369 = vpack.c.bf16 %v2338, %v2337
      %v2370 = vpack.c.bf16 %v2340, %v2339
      %v2371 = vpack.c.bf16 %v2342, %v2341
      %v2372 = vpack.c.bf16 %v2344, %v2343
      %v2373 = vpack.c.bf16 %v2346, %v2345
      %v2374 = vpack.c.bf16 %v2348, %v2347
      %v2375 = vpack.c.bf16 %v2350, %v2349
      %v2376 = vpack.c.bf16 %v2352, %v2351
      %v2377 = vpack.c.bf16 %v2354, %v2353
      %v2378 = vpack.c.bf16 %v2356, %v2355
      %v2379 = vpack.c.bf16 %v2358, %v2357
      %v2380 = vpack.c.bf16 %v2360, %v2359
      %v2381 = vpack.c.bf16 %v2362, %v2361
      %v2382 = vpack.c.bf16 %v2364, %v2363
      %v2383 = vpack.c.bf16 %v2366, %v2365
      %v2384 = vpack.c.bf16 %v2368, %v2367
      %s2385 = scalar_lea.vmem %s4, 256
      %v2386 = vld [vmem:[%s2385] sm:$0xf]
      %v2387 = vld [vmem:[%s2385 + $0x4] sm:$0xf]
      %v2388 = vld [vmem:[%s2385 + $0x8] sm:$0xf]
      %v2389 = vld [vmem:[%s2385 + $0xc] sm:$0xf]
      %v2390 = vld [vmem:[%s2385 + $0x10] sm:$0xf]
      %v2391 = vld [vmem:[%s2385 + $0x14] sm:$0xf]
      %v2392 = vld [vmem:[%s2385 + $0x18] sm:$0xf]
      %v2393 = vld [vmem:[%s2385 + $0x1c] sm:$0xf]
      %v2394 = vld [vmem:[%s2385 + $0x20] sm:$0xf]
      %v2395 = vld [vmem:[%s2385 + $0x24] sm:$0xf]
      %v2396 = vld [vmem:[%s2385 + $0x28] sm:$0xf]
      %v2397 = vld [vmem:[%s2385 + $0x2c] sm:$0xf]
      %v2398 = vld [vmem:[%s2385 + $0x30] sm:$0xf]
      %v2399 = vld [vmem:[%s2385 + $0x34] sm:$0xf]
      %v2400 = vld [vmem:[%s2385 + $0x38] sm:$0xf]
      %v2401 = vld [vmem:[%s2385 + $0x3c] sm:$0xf]
      %v2418 = vunpack.c.l.b16 %v2386
      %v2419 = vunpack.c.l.b16 %v2387
      %v2420 = vunpack.c.l.b16 %v2388
      %v2421 = vunpack.c.l.b16 %v2389
      %v2422 = vunpack.c.l.b16 %v2390
      %v2423 = vunpack.c.l.b16 %v2391
      %v2424 = vunpack.c.l.b16 %v2392
      %v2425 = vunpack.c.l.b16 %v2393
      %v2426 = vunpack.c.l.b16 %v2394
      %v2427 = vunpack.c.l.b16 %v2395
      %v2428 = vunpack.c.l.b16 %v2396
      %v2429 = vunpack.c.l.b16 %v2397
      %v2430 = vunpack.c.l.b16 %v2398
      %v2431 = vunpack.c.l.b16 %v2399
      %v2432 = vunpack.c.l.b16 %v2400
      %v2433 = vunpack.c.l.b16 %v2401
      %v2434 = vpack.c.b16 %v2419, %v2418
      %v2435 = vpack.c.b16 %v2421, %v2420
      %v2436 = vpack.c.b16 %v2423, %v2422
      %v2437 = vpack.c.b16 %v2425, %v2424
      %v2438 = vpack.c.b16 %v2427, %v2426
      %v2439 = vpack.c.b16 %v2429, %v2428
      %v2440 = vpack.c.b16 %v2431, %v2430
      %v2441 = vpack.c.b16 %v2433, %v2432
      %2450 = vmatprep.subr.bf16.mxu0 0
      %2451 = vmatpush1.bf16.msra.mxu0 %v2441
      %2452 = vmatprep.subr.bf16.mxu0 0
      %2453 = vmatpush1.bf16.msra.mxu0 %v2440
      %2454 = vmatprep.subr.bf16.mxu0 0
      %2455 = vmatpush1.bf16.msra.mxu0 %v2439
      %2456 = vmatprep.subr.bf16.mxu0 0
      %2457 = vmatpush1.bf16.msra.mxu0 %v2438
      %2458 = vmatprep.subr.bf16.mxu0 0
      %2459 = vmatpush1.bf16.msra.mxu0 %v2437
      %2460 = vmatprep.subr.bf16.mxu0 0
      %2461 = vmatpush1.bf16.msra.mxu0 %v2436
      %2462 = vmatprep.subr.bf16.mxu0 0
      %2463 = vmatpush1.bf16.msra.mxu0 %v2435
      %2464 = vmatprep.subr.bf16.mxu0 0
      %2465 = vmatpush1.bf16.msra.mxu0 %v2434
      %2466 = vmatprep.subr.bf16.mxu0 0
      %2467 = vmatpush2.bf16.msra.mxu0 0
      %2468 = vmatprep.subr.bf16.mxu0 0
      %2469 = vmatpush2.bf16.msra.mxu0 0
      %2470 = vmatprep.subr.bf16.mxu0 0
      %2471 = vmatpush2.bf16.msra.mxu0 0
      %2472 = vmatprep.subr.bf16.mxu0 0
      %2473 = vmatpush2.bf16.msra.mxu0 0
      %2474 = vmatprep.subr.bf16.mxu0 0
      %2475 = vmatpush2.bf16.msra.mxu0 0
      %2476 = vmatprep.subr.bf16.mxu0 0
      %2477 = vmatpush2.bf16.msra.mxu0 0
      %2478 = vmatprep.subr.bf16.mxu0 0
      %2479 = vmatpush2.bf16.msra.mxu0 0
      %2480 = vmatprep.subr.bf16.mxu0 0
      %2481 = vmatpush2.bf16.msra.mxu0 0
      %2482 = vmatprep.mubr.bf16.mxu0 0
      %2483 = vmatmul.mubr.bf16.gmra.mxu0 %v2369
      %v2484 = vpop.f32.mrf.mxu0
      %v2485 = vadd.f32 0.0, %v2484
      %v2486 = vpop.f32.mrf.mxu0
      %v2487 = vpop.f32.mrf.mxu0
      %v2488 = vadd.f32 0.0, %v2487
      %v2489 = vpop.f32.mrf.mxu0
      %2490 = vmatprep.mubr.bf16.mxu0 0
      %2491 = vmatmul.mubr.bf16.gmra.mxu0 %v2370
      %v2492 = vpop.f32.mrf.mxu0
      %v2493 = vadd.f32 0.0, %v2492
      %v2494 = vpop.f32.mrf.mxu0
      %v2495 = vpop.f32.mrf.mxu0
      %v2496 = vadd.f32 0.0, %v2495
      %v2497 = vpop.f32.mrf.mxu0
      %2498 = vmatprep.mubr.bf16.mxu0 0
      %2499 = vmatmul.mubr.bf16.gmra.mxu0 %v2371
      %v2500 = vpop.f32.mrf.mxu0
      %v2501 = vadd.f32 0.0, %v2500
      %v2502 = vpop.f32.mrf.mxu0
      %v2503 = vpop.f32.mrf.mxu0
      %v2504 = vadd.f32 0.0, %v2503
      %v2505 = vpop.f32.mrf.mxu0
      %2506 = vmatprep.mubr.bf16.mxu0 0
      %2507 = vmatmul.mubr.bf16.gmra.mxu0 %v2372
      %v2508 = vpop.f32.mrf.mxu0
      %v2509 = vadd.f32 0.0, %v2508
      %v2510 = vpop.f32.mrf.mxu0
      %v2511 = vpop.f32.mrf.mxu0
      %v2512 = vadd.f32 0.0, %v2511
      %v2513 = vpop.f32.mrf.mxu0
      %2514 = vmatprep.mubr.bf16.mxu0 0
      %2515 = vmatmul.mubr.bf16.gmra.mxu0 %v2373
      %v2516 = vpop.f32.mrf.mxu0
      %v2517 = vadd.f32 0.0, %v2516
      %v2518 = vpop.f32.mrf.mxu0
      %v2519 = vpop.f32.mrf.mxu0
      %v2520 = vadd.f32 0.0, %v2519
      %v2521 = vpop.f32.mrf.mxu0
      %2522 = vmatprep.mubr.bf16.mxu0 0
      %2523 = vmatmul.mubr.bf16.gmra.mxu0 %v2374
      %v2524 = vpop.f32.mrf.mxu0
      %v2525 = vadd.f32 0.0, %v2524
      %v2526 = vpop.f32.mrf.mxu0
      %v2527 = vpop.f32.mrf.mxu0
      %v2528 = vadd.f32 0.0, %v2527
      %v2529 = vpop.f32.mrf.mxu0
      %2530 = vmatprep.mubr.bf16.mxu0 0
      %2531 = vmatmul.mubr.bf16.gmra.mxu0 %v2375
      %v2532 = vpop.f32.mrf.mxu0
      %v2533 = vadd.f32 0.0, %v2532
      %v2534 = vpop.f32.mrf.mxu0
      %v2535 = vpop.f32.mrf.mxu0
      %v2536 = vadd.f32 0.0, %v2535
      %v2537 = vpop.f32.mrf.mxu0
      %2538 = vmatprep.mubr.bf16.mxu0 0
      %2539 = vmatmul.mubr.bf16.gmra.mxu0 %v2376
      %v2540 = vpop.f32.mrf.mxu0
      %v2541 = vadd.f32 0.0, %v2540
      %v2542 = vpop.f32.mrf.mxu0
      %v2543 = vpop.f32.mrf.mxu0
      %v2544 = vadd.f32 0.0, %v2543
      %v2545 = vpop.f32.mrf.mxu0
      %2546 = vmatprep.mubr.bf16.mxu0 0
      %2547 = vmatmul.mubr.bf16.gmra.mxu0 %v2377
      %v2548 = vpop.f32.mrf.mxu0
      %v2549 = vadd.f32 0.0, %v2548
      %v2550 = vpop.f32.mrf.mxu0
      %v2551 = vpop.f32.mrf.mxu0
      %v2552 = vadd.f32 0.0, %v2551
      %v2553 = vpop.f32.mrf.mxu0
      %2554 = vmatprep.mubr.bf16.mxu0 0
      %2555 = vmatmul.mubr.bf16.gmra.mxu0 %v2378
      %v2556 = vpop.f32.mrf.mxu0
      %v2557 = vadd.f32 0.0, %v2556
      %v2558 = vpop.f32.mrf.mxu0
      %v2559 = vpop.f32.mrf.mxu0
      %v2560 = vadd.f32 0.0, %v2559
      %v2561 = vpop.f32.mrf.mxu0
      %2562 = vmatprep.mubr.bf16.mxu0 0
      %2563 = vmatmul.mubr.bf16.gmra.mxu0 %v2379
      %v2564 = vpop.f32.mrf.mxu0
      %v2565 = vadd.f32 0.0, %v2564
      %v2566 = vpop.f32.mrf.mxu0
      %v2567 = vpop.f32.mrf.mxu0
      %v2568 = vadd.f32 0.0, %v2567
      %v2569 = vpop.f32.mrf.mxu0
      %2570 = vmatprep.mubr.bf16.mxu0 0
      %2571 = vmatmul.mubr.bf16.gmra.mxu0 %v2380
      %v2572 = vpop.f32.mrf.mxu0
      %v2573 = vadd.f32 0.0, %v2572
      %v2574 = vpop.f32.mrf.mxu0
      %v2575 = vpop.f32.mrf.mxu0
      %v2576 = vadd.f32 0.0, %v2575
      %v2577 = vpop.f32.mrf.mxu0
      %2578 = vmatprep.mubr.bf16.mxu0 0
      %2579 = vmatmul.mubr.bf16.gmra.mxu0 %v2381
      %v2580 = vpop.f32.mrf.mxu0
      %v2581 = vadd.f32 0.0, %v2580
      %v2582 = vpop.f32.mrf.mxu0
      %v2583 = vpop.f32.mrf.mxu0
      %v2584 = vadd.f32 0.0, %v2583
      %v2585 = vpop.f32.mrf.mxu0
      %2586 = vmatprep.mubr.bf16.mxu0 0
      %2587 = vmatmul.mubr.bf16.gmra.mxu0 %v2382
      %v2588 = vpop.f32.mrf.mxu0
      %v2589 = vadd.f32 0.0, %v2588
      %v2590 = vpop.f32.mrf.mxu0
      %v2591 = vpop.f32.mrf.mxu0
      %v2592 = vadd.f32 0.0, %v2591
      %v2593 = vpop.f32.mrf.mxu0
      %2594 = vmatprep.mubr.bf16.mxu0 0
      %2595 = vmatmul.mubr.bf16.gmra.mxu0 %v2383
      %v2596 = vpop.f32.mrf.mxu0
      %v2597 = vadd.f32 0.0, %v2596
      %v2598 = vpop.f32.mrf.mxu0
      %v2599 = vpop.f32.mrf.mxu0
      %v2600 = vadd.f32 0.0, %v2599
      %v2601 = vpop.f32.mrf.mxu0
      %2602 = vmatprep.mubr.bf16.mxu0 0
      %2603 = vmatmul.mubr.bf16.gmra.mxu0 %v2384
      %v2604 = vpop.f32.mrf.mxu0
      %v2605 = vadd.f32 0.0, %v2604
      %v2606 = vpop.f32.mrf.mxu0
      %v2607 = vpop.f32.mrf.mxu0
      %v2608 = vadd.f32 0.0, %v2607
      %v2609 = vpop.f32.mrf.mxu0
      %2610 = vdwg.mxu0
      %v2611 = vadd.f32 %v2305, %v2485
      %v2612 = vadd.f32 %v2306, %v2488
      %v2613 = vadd.f32 %v2307, %v2493
      %v2614 = vadd.f32 %v2308, %v2496
      %v2615 = vadd.f32 %v2309, %v2501
      %v2616 = vadd.f32 %v2310, %v2504
      %v2617 = vadd.f32 %v2311, %v2509
      %v2618 = vadd.f32 %v2312, %v2512
      %v2619 = vadd.f32 %v2313, %v2517
      %v2620 = vadd.f32 %v2314, %v2520
      %v2621 = vadd.f32 %v2315, %v2525
      %v2622 = vadd.f32 %v2316, %v2528
      %v2623 = vadd.f32 %v2317, %v2533
      %v2624 = vadd.f32 %v2318, %v2536
      %v2625 = vadd.f32 %v2319, %v2541
      %v2626 = vadd.f32 %v2320, %v2544
      %v2627 = vadd.f32 %v2321, %v2549
      %v2628 = vadd.f32 %v2322, %v2552
      %v2629 = vadd.f32 %v2323, %v2557
      %v2630 = vadd.f32 %v2324, %v2560
      %v2631 = vadd.f32 %v2325, %v2565
      %v2632 = vadd.f32 %v2326, %v2568
      %v2633 = vadd.f32 %v2327, %v2573
      %v2634 = vadd.f32 %v2328, %v2576
      %v2635 = vadd.f32 %v2329, %v2581
      %v2636 = vadd.f32 %v2330, %v2584
      %v2637 = vadd.f32 %v2331, %v2589
      %v2638 = vadd.f32 %v2332, %v2592
      %v2639 = vadd.f32 %v2333, %v2597
      %v2640 = vadd.f32 %v2334, %v2600
      %v2641 = vadd.f32 %v2335, %v2605
      %v2642 = vadd.f32 %v2336, %v2608
      %v2643 = vld [vmem:[#allocation2 + $0x19] sm:$0xff]
      %v2644 = vld [vmem:[#allocation2 + $0x21] sm:$0xff]
      %v2645 = vld [vmem:[#allocation2 + $0x29] sm:$0xff]
      %v2646 = vld [vmem:[#allocation2 + $0x31] sm:$0xff]
      %v2647 = vld [vmem:[#allocation2 + $0x39] sm:$0xff]
      %v2648 = vld [vmem:[#allocation2 + $0x41] sm:$0xff]
      %v2649 = vld [vmem:[#allocation2 + $0x49] sm:$0xff]
      %v2650 = vld [vmem:[#allocation2 + $0x51] sm:$0xff]
      %v2651 = vld [vmem:[#allocation2 + $0x59] sm:$0xff]
      %v2652 = vld [vmem:[#allocation2 + $0x61] sm:$0xff]
      %v2653 = vld [vmem:[#allocation2 + $0x69] sm:$0xff]
      %v2654 = vld [vmem:[#allocation2 + $0x71] sm:$0xff]
      %v2655 = vld [vmem:[#allocation2 + $0x79] sm:$0xff]
      %v2656 = vld [vmem:[#allocation2 + $0x81] sm:$0xff]
      %v2657 = vld [vmem:[#allocation2 + $0x89] sm:$0xff]
      %v2658 = vld [vmem:[#allocation2 + $0x91] sm:$0xff]
      %v2659 = vld [vmem:[#allocation2 + $0x99] sm:$0xff]
      %v2660 = vld [vmem:[#allocation2 + $0xa1] sm:$0xff]
      %v2661 = vld [vmem:[#allocation2 + $0xa9] sm:$0xff]
      %v2662 = vld [vmem:[#allocation2 + $0xb1] sm:$0xff]
      %v2663 = vld [vmem:[#allocation2 + $0xb9] sm:$0xff]
      %v2664 = vld [vmem:[#allocation2 + $0xc1] sm:$0xff]
      %v2665 = vld [vmem:[#allocation2 + $0xc9] sm:$0xff]
      %v2666 = vld [vmem:[#allocation2 + $0xd1] sm:$0xff]
      %v2667 = vld [vmem:[#allocation2 + $0xd9] sm:$0xff]
      %v2668 = vld [vmem:[#allocation2 + $0xe1] sm:$0xff]
      %v2669 = vld [vmem:[#allocation2 + $0xe9] sm:$0xff]
      %v2670 = vld [vmem:[#allocation2 + $0xf1] sm:$0xff]
      %v2671 = vld [vmem:[#allocation2 + $0xf9] sm:$0xff]
      %v2672 = vld [vmem:[#allocation2 + $0x101] sm:$0xff]
      %v2673 = vld [vmem:[#allocation2 + $0x109] sm:$0xff]
      %v2674 = vld [vmem:[#allocation2 + $0x111] sm:$0xff]
      %v2675 = vsel %vm1050, %v2643, 0.0
      %v2676 = vsel %vm1051, %v2644, 0.0
      %v2677 = vsel %vm1052, %v2645, 0.0
      %v2678 = vsel %vm1053, %v2646, 0.0
      %v2679 = vsel %vm1054, %v2647, 0.0
      %v2680 = vsel %vm1055, %v2648, 0.0
      %v2681 = vsel %vm1056, %v2649, 0.0
      %v2682 = vsel %vm1057, %v2650, 0.0
      %v2683 = vsel %vm1058, %v2651, 0.0
      %v2684 = vsel %vm1059, %v2652, 0.0
      %v2685 = vsel %vm1060, %v2653, 0.0
      %v2686 = vsel %vm1061, %v2654, 0.0
      %v2687 = vsel %vm1062, %v2655, 0.0
      %v2688 = vsel %vm1063, %v2656, 0.0
      %v2689 = vsel %vm1064, %v2657, 0.0
      %v2690 = vsel %vm1065, %v2658, 0.0
      %v2691 = vsel %vm1066, %v2659, 0.0
      %v2692 = vsel %vm1067, %v2660, 0.0
      %v2693 = vsel %vm1068, %v2661, 0.0
      %v2694 = vsel %vm1069, %v2662, 0.0
      %v2695 = vsel %vm1070, %v2663, 0.0
      %v2696 = vsel %vm1071, %v2664, 0.0
      %v2697 = vsel %vm1072, %v2665, 0.0
      %v2698 = vsel %vm1073, %v2666, 0.0
      %v2699 = vsel %vm1074, %v2667, 0.0
      %v2700 = vsel %vm1075, %v2668, 0.0
      %v2701 = vsel %vm1076, %v2669, 0.0
      %v2702 = vsel %vm1077, %v2670, 0.0
      %v2703 = vsel %vm1078, %v2671, 0.0
      %v2704 = vsel %vm1079, %v2672, 0.0
      %v2705 = vsel %vm1080, %v2673, 0.0
      %v2706 = vsel %vm1081, %v2674, 0.0
      %v2707 = vpack.c.bf16 %v2676, %v2675
      %v2708 = vpack.c.bf16 %v2678, %v2677
      %v2709 = vpack.c.bf16 %v2680, %v2679
      %v2710 = vpack.c.bf16 %v2682, %v2681
      %v2711 = vpack.c.bf16 %v2684, %v2683
      %v2712 = vpack.c.bf16 %v2686, %v2685
      %v2713 = vpack.c.bf16 %v2688, %v2687
      %v2714 = vpack.c.bf16 %v2690, %v2689
      %v2715 = vpack.c.bf16 %v2692, %v2691
      %v2716 = vpack.c.bf16 %v2694, %v2693
      %v2717 = vpack.c.bf16 %v2696, %v2695
      %v2718 = vpack.c.bf16 %v2698, %v2697
      %v2719 = vpack.c.bf16 %v2700, %v2699
      %v2720 = vpack.c.bf16 %v2702, %v2701
      %v2721 = vpack.c.bf16 %v2704, %v2703
      %v2722 = vpack.c.bf16 %v2706, %v2705
      %s2723 = scalar_lea.vmem %s4, 320
      %v2724 = vld [vmem:[%s2723] sm:$0xf]
      %v2725 = vld [vmem:[%s2723 + $0x4] sm:$0xf]
      %v2726 = vld [vmem:[%s2723 + $0x8] sm:$0xf]
      %v2727 = vld [vmem:[%s2723 + $0xc] sm:$0xf]
      %v2728 = vld [vmem:[%s2723 + $0x10] sm:$0xf]
      %v2729 = vld [vmem:[%s2723 + $0x14] sm:$0xf]
      %v2730 = vld [vmem:[%s2723 + $0x18] sm:$0xf]
      %v2731 = vld [vmem:[%s2723 + $0x1c] sm:$0xf]
      %v2732 = vld [vmem:[%s2723 + $0x20] sm:$0xf]
      %v2733 = vld [vmem:[%s2723 + $0x24] sm:$0xf]
      %v2734 = vld [vmem:[%s2723 + $0x28] sm:$0xf]
      %v2735 = vld [vmem:[%s2723 + $0x2c] sm:$0xf]
      %v2736 = vld [vmem:[%s2723 + $0x30] sm:$0xf]
      %v2737 = vld [vmem:[%s2723 + $0x34] sm:$0xf]
      %v2738 = vld [vmem:[%s2723 + $0x38] sm:$0xf]
      %v2739 = vld [vmem:[%s2723 + $0x3c] sm:$0xf]
      %v2756 = vunpack.c.l.b16 %v2724
      %v2757 = vunpack.c.l.b16 %v2725
      %v2758 = vunpack.c.l.b16 %v2726
      %v2759 = vunpack.c.l.b16 %v2727
      %v2760 = vunpack.c.l.b16 %v2728
      %v2761 = vunpack.c.l.b16 %v2729
      %v2762 = vunpack.c.l.b16 %v2730
      %v2763 = vunpack.c.l.b16 %v2731
      %v2764 = vunpack.c.l.b16 %v2732
      %v2765 = vunpack.c.l.b16 %v2733
      %v2766 = vunpack.c.l.b16 %v2734
      %v2767 = vunpack.c.l.b16 %v2735
      %v2768 = vunpack.c.l.b16 %v2736
      %v2769 = vunpack.c.l.b16 %v2737
      %v2770 = vunpack.c.l.b16 %v2738
      %v2771 = vunpack.c.l.b16 %v2739
      %v2772 = vpack.c.b16 %v2757, %v2756
      %v2773 = vpack.c.b16 %v2759, %v2758
      %v2774 = vpack.c.b16 %v2761, %v2760
      %v2775 = vpack.c.b16 %v2763, %v2762
      %v2776 = vpack.c.b16 %v2765, %v2764
      %v2777 = vpack.c.b16 %v2767, %v2766
      %v2778 = vpack.c.b16 %v2769, %v2768
      %v2779 = vpack.c.b16 %v2771, %v2770
      %2788 = vmatprep.subr.bf16.mxu0 0
      %2789 = vmatpush1.bf16.msra.mxu0 %v2779
      %2790 = vmatprep.subr.bf16.mxu0 0
      %2791 = vmatpush1.bf16.msra.mxu0 %v2778
      %2792 = vmatprep.subr.bf16.mxu0 0
      %2793 = vmatpush1.bf16.msra.mxu0 %v2777
      %2794 = vmatprep.subr.bf16.mxu0 0
      %2795 = vmatpush1.bf16.msra.mxu0 %v2776
      %2796 = vmatprep.subr.bf16.mxu0 0
      %2797 = vmatpush1.bf16.msra.mxu0 %v2775
      %2798 = vmatprep.subr.bf16.mxu0 0
      %2799 = vmatpush1.bf16.msra.mxu0 %v2774
      %2800 = vmatprep.subr.bf16.mxu0 0
      %2801 = vmatpush1.bf16.msra.mxu0 %v2773
      %2802 = vmatprep.subr.bf16.mxu0 0
      %2803 = vmatpush1.bf16.msra.mxu0 %v2772
      %2804 = vmatprep.subr.bf16.mxu0 0
      %2805 = vmatpush2.bf16.msra.mxu0 0
      %2806 = vmatprep.subr.bf16.mxu0 0
      %2807 = vmatpush2.bf16.msra.mxu0 0
      %2808 = vmatprep.subr.bf16.mxu0 0
      %2809 = vmatpush2.bf16.msra.mxu0 0
      %2810 = vmatprep.subr.bf16.mxu0 0
      %2811 = vmatpush2.bf16.msra.mxu0 0
      %2812 = vmatprep.subr.bf16.mxu0 0
      %2813 = vmatpush2.bf16.msra.mxu0 0
      %2814 = vmatprep.subr.bf16.mxu0 0
      %2815 = vmatpush2.bf16.msra.mxu0 0
      %2816 = vmatprep.subr.bf16.mxu0 0
      %2817 = vmatpush2.bf16.msra.mxu0 0
      %2818 = vmatprep.subr.bf16.mxu0 0
      %2819 = vmatpush2.bf16.msra.mxu0 0
      %2820 = vmatprep.mubr.bf16.mxu0 0
      %2821 = vmatmul.mubr.bf16.gmra.mxu0 %v2707
      %v2822 = vpop.f32.mrf.mxu0
      %v2823 = vadd.f32 0.0, %v2822
      %v2824 = vpop.f32.mrf.mxu0
      %v2825 = vpop.f32.mrf.mxu0
      %v2826 = vadd.f32 0.0, %v2825
      %v2827 = vpop.f32.mrf.mxu0
      %2828 = vmatprep.mubr.bf16.mxu0 0
      %2829 = vmatmul.mubr.bf16.gmra.mxu0 %v2708
      %v2830 = vpop.f32.mrf.mxu0
      %v2831 = vadd.f32 0.0, %v2830
      %v2832 = vpop.f32.mrf.mxu0
      %v2833 = vpop.f32.mrf.mxu0
      %v2834 = vadd.f32 0.0, %v2833
      %v2835 = vpop.f32.mrf.mxu0
      %2836 = vmatprep.mubr.bf16.mxu0 0
      %2837 = vmatmul.mubr.bf16.gmra.mxu0 %v2709
      %v2838 = vpop.f32.mrf.mxu0
      %v2839 = vadd.f32 0.0, %v2838
      %v2840 = vpop.f32.mrf.mxu0
      %v2841 = vpop.f32.mrf.mxu0
      %v2842 = vadd.f32 0.0, %v2841
      %v2843 = vpop.f32.mrf.mxu0
      %2844 = vmatprep.mubr.bf16.mxu0 0
      %2845 = vmatmul.mubr.bf16.gmra.mxu0 %v2710
      %v2846 = vpop.f32.mrf.mxu0
      %v2847 = vadd.f32 0.0, %v2846
      %v2848 = vpop.f32.mrf.mxu0
      %v2849 = vpop.f32.mrf.mxu0
      %v2850 = vadd.f32 0.0, %v2849
      %v2851 = vpop.f32.mrf.mxu0
      %2852 = vmatprep.mubr.bf16.mxu0 0
      %2853 = vmatmul.mubr.bf16.gmra.mxu0 %v2711
      %v2854 = vpop.f32.mrf.mxu0
      %v2855 = vadd.f32 0.0, %v2854
      %v2856 = vpop.f32.mrf.mxu0
      %v2857 = vpop.f32.mrf.mxu0
      %v2858 = vadd.f32 0.0, %v2857
      %v2859 = vpop.f32.mrf.mxu0
      %2860 = vmatprep.mubr.bf16.mxu0 0
      %2861 = vmatmul.mubr.bf16.gmra.mxu0 %v2712
      %v2862 = vpop.f32.mrf.mxu0
      %v2863 = vadd.f32 0.0, %v2862
      %v2864 = vpop.f32.mrf.mxu0
      %v2865 = vpop.f32.mrf.mxu0
      %v2866 = vadd.f32 0.0, %v2865
      %v2867 = vpop.f32.mrf.mxu0
      %2868 = vmatprep.mubr.bf16.mxu0 0
      %2869 = vmatmul.mubr.bf16.gmra.mxu0 %v2713
      %v2870 = vpop.f32.mrf.mxu0
      %v2871 = vadd.f32 0.0, %v2870
      %v2872 = vpop.f32.mrf.mxu0
      %v2873 = vpop.f32.mrf.mxu0
      %v2874 = vadd.f32 0.0, %v2873
      %v2875 = vpop.f32.mrf.mxu0
      %2876 = vmatprep.mubr.bf16.mxu0 0
      %2877 = vmatmul.mubr.bf16.gmra.mxu0 %v2714
      %v2878 = vpop.f32.mrf.mxu0
      %v2879 = vadd.f32 0.0, %v2878
      %v2880 = vpop.f32.mrf.mxu0
      %v2881 = vpop.f32.mrf.mxu0
      %v2882 = vadd.f32 0.0, %v2881
      %v2883 = vpop.f32.mrf.mxu0
      %2884 = vmatprep.mubr.bf16.mxu0 0
      %2885 = vmatmul.mubr.bf16.gmra.mxu0 %v2715
      %v2886 = vpop.f32.mrf.mxu0
      %v2887 = vadd.f32 0.0, %v2886
      %v2888 = vpop.f32.mrf.mxu0
      %v2889 = vpop.f32.mrf.mxu0
      %v2890 = vadd.f32 0.0, %v2889
      %v2891 = vpop.f32.mrf.mxu0
      %2892 = vmatprep.mubr.bf16.mxu0 0
      %2893 = vmatmul.mubr.bf16.gmra.mxu0 %v2716
      %v2894 = vpop.f32.mrf.mxu0
      %v2895 = vadd.f32 0.0, %v2894
      %v2896 = vpop.f32.mrf.mxu0
      %v2897 = vpop.f32.mrf.mxu0
      %v2898 = vadd.f32 0.0, %v2897
      %v2899 = vpop.f32.mrf.mxu0
      %2900 = vmatprep.mubr.bf16.mxu0 0
      %2901 = vmatmul.mubr.bf16.gmra.mxu0 %v2717
      %v2902 = vpop.f32.mrf.mxu0
      %v2903 = vadd.f32 0.0, %v2902
      %v2904 = vpop.f32.mrf.mxu0
      %v2905 = vpop.f32.mrf.mxu0
      %v2906 = vadd.f32 0.0, %v2905
      %v2907 = vpop.f32.mrf.mxu0
      %2908 = vmatprep.mubr.bf16.mxu0 0
      %2909 = vmatmul.mubr.bf16.gmra.mxu0 %v2718
      %v2910 = vpop.f32.mrf.mxu0
      %v2911 = vadd.f32 0.0, %v2910
      %v2912 = vpop.f32.mrf.mxu0
      %v2913 = vpop.f32.mrf.mxu0
      %v2914 = vadd.f32 0.0, %v2913
      %v2915 = vpop.f32.mrf.mxu0
      %2916 = vmatprep.mubr.bf16.mxu0 0
      %2917 = vmatmul.mubr.bf16.gmra.mxu0 %v2719
      %v2918 = vpop.f32.mrf.mxu0
      %v2919 = vadd.f32 0.0, %v2918
      %v2920 = vpop.f32.mrf.mxu0
      %v2921 = vpop.f32.mrf.mxu0
      %v2922 = vadd.f32 0.0, %v2921
      %v2923 = vpop.f32.mrf.mxu0
      %2924 = vmatprep.mubr.bf16.mxu0 0
      %2925 = vmatmul.mubr.bf16.gmra.mxu0 %v2720
      %v2926 = vpop.f32.mrf.mxu0
      %v2927 = vadd.f32 0.0, %v2926
      %v2928 = vpop.f32.mrf.mxu0
      %v2929 = vpop.f32.mrf.mxu0
      %v2930 = vadd.f32 0.0, %v2929
      %v2931 = vpop.f32.mrf.mxu0
      %2932 = vmatprep.mubr.bf16.mxu0 0
      %2933 = vmatmul.mubr.bf16.gmra.mxu0 %v2721
      %v2934 = vpop.f32.mrf.mxu0
      %v2935 = vadd.f32 0.0, %v2934
      %v2936 = vpop.f32.mrf.mxu0
      %v2937 = vpop.f32.mrf.mxu0
      %v2938 = vadd.f32 0.0, %v2937
      %v2939 = vpop.f32.mrf.mxu0
      %2940 = vmatprep.mubr.bf16.mxu0 0
      %2941 = vmatmul.mubr.bf16.gmra.mxu0 %v2722
      %v2942 = vpop.f32.mrf.mxu0
      %v2943 = vadd.f32 0.0, %v2942
      %v2944 = vpop.f32.mrf.mxu0
      %v2945 = vpop.f32.mrf.mxu0
      %v2946 = vadd.f32 0.0, %v2945
      %v2947 = vpop.f32.mrf.mxu0
      %2948 = vdwg.mxu0
      %v2949 = vadd.f32 %v2611, %v2823
      %v2950 = vadd.f32 %v2612, %v2826
      %v2951 = vadd.f32 %v2613, %v2831
      %v2952 = vadd.f32 %v2614, %v2834
      %v2953 = vadd.f32 %v2615, %v2839
      %v2954 = vadd.f32 %v2616, %v2842
      %v2955 = vadd.f32 %v2617, %v2847
      %v2956 = vadd.f32 %v2618, %v2850
      %v2957 = vadd.f32 %v2619, %v2855
      %v2958 = vadd.f32 %v2620, %v2858
      %v2959 = vadd.f32 %v2621, %v2863
      %v2960 = vadd.f32 %v2622, %v2866
      %v2961 = vadd.f32 %v2623, %v2871
      %v2962 = vadd.f32 %v2624, %v2874
      %v2963 = vadd.f32 %v2625, %v2879
      %v2964 = vadd.f32 %v2626, %v2882
      %v2965 = vadd.f32 %v2627, %v2887
      %v2966 = vadd.f32 %v2628, %v2890
      %v2967 = vadd.f32 %v2629, %v2895
      %v2968 = vadd.f32 %v2630, %v2898
      %v2969 = vadd.f32 %v2631, %v2903
      %v2970 = vadd.f32 %v2632, %v2906
      %v2971 = vadd.f32 %v2633, %v2911
      %v2972 = vadd.f32 %v2634, %v2914
      %v2973 = vadd.f32 %v2635, %v2919
      %v2974 = vadd.f32 %v2636, %v2922
      %v2975 = vadd.f32 %v2637, %v2927
      %v2976 = vadd.f32 %v2638, %v2930
      %v2977 = vadd.f32 %v2639, %v2935
      %v2978 = vadd.f32 %v2640, %v2938
      %v2979 = vadd.f32 %v2641, %v2943
      %v2980 = vadd.f32 %v2642, %v2946
      %v2981 = vld [vmem:[#allocation2 + $0x27] sm:$0xff]
      %v2982 = vld [vmem:[#allocation2 + $0x2f] sm:$0xff]
      %v2983 = vld [vmem:[#allocation2 + $0x37] sm:$0xff]
      %v2984 = vld [vmem:[#allocation2 + $0x3f] sm:$0xff]
      %v2985 = vld [vmem:[#allocation2 + $0x47] sm:$0xff]
      %v2986 = vld [vmem:[#allocation2 + $0x4f] sm:$0xff]
      %v2987 = vld [vmem:[#allocation2 + $0x57] sm:$0xff]
      %v2988 = vld [vmem:[#allocation2 + $0x5f] sm:$0xff]
      %v2989 = vld [vmem:[#allocation2 + $0x67] sm:$0xff]
      %v2990 = vld [vmem:[#allocation2 + $0x6f] sm:$0xff]
      %v2991 = vld [vmem:[#allocation2 + $0x77] sm:$0xff]
      %v2992 = vld [vmem:[#allocation2 + $0x7f] sm:$0xff]
      %v2993 = vld [vmem:[#allocation2 + $0x87] sm:$0xff]
      %v2994 = vld [vmem:[#allocation2 + $0x8f] sm:$0xff]
      %v2995 = vld [vmem:[#allocation2 + $0x97] sm:$0xff]
      %v2996 = vld [vmem:[#allocation2 + $0x9f] sm:$0xff]
      %v2997 = vld [vmem:[#allocation2 + $0xa7] sm:$0xff]
      %v2998 = vld [vmem:[#allocation2 + $0xaf] sm:$0xff]
      %v2999 = vld [vmem:[#allocation2 + $0xb7] sm:$0xff]
      %v3000 = vld [vmem:[#allocation2 + $0xbf] sm:$0xff]
      %v3001 = vld [vmem:[#allocation2 + $0xc7] sm:$0xff]
      %v3002 = vld [vmem:[#allocation2 + $0xcf] sm:$0xff]
      %v3003 = vld [vmem:[#allocation2 + $0xd7] sm:$0xff]
      %v3004 = vld [vmem:[#allocation2 + $0xdf] sm:$0xff]
      %v3005 = vld [vmem:[#allocation2 + $0xe7] sm:$0xff]
      %v3006 = vld [vmem:[#allocation2 + $0xef] sm:$0xff]
      %v3007 = vld [vmem:[#allocation2 + $0xf7] sm:$0xff]
      %v3008 = vld [vmem:[#allocation2 + $0xff] sm:$0xff]
      %v3009 = vld [vmem:[#allocation2 + $0x107] sm:$0xff]
      %v3010 = vld [vmem:[#allocation2 + $0x10f] sm:$0xff]
      %v3011 = vld [vmem:[#allocation2 + $0x117] sm:$0xff]
      %v3012 = vld [vmem:[#allocation2 + $0x11f] sm:$0xff]
      %v3013 = vsel %vm1018, %v2981, 0.0
      %v3014 = vsel %vm1019, %v2982, 0.0
      %v3015 = vsel %vm1020, %v2983, 0.0
      %v3016 = vsel %vm1021, %v2984, 0.0
      %v3017 = vsel %vm1022, %v2985, 0.0
      %v3018 = vsel %vm1023, %v2986, 0.0
      %v3019 = vsel %vm1024, %v2987, 0.0
      %v3020 = vsel %vm1025, %v2988, 0.0
      %v3021 = vsel %vm1026, %v2989, 0.0
      %v3022 = vsel %vm1027, %v2990, 0.0
      %v3023 = vsel %vm1028, %v2991, 0.0
      %v3024 = vsel %vm1029, %v2992, 0.0
      %v3025 = vsel %vm1030, %v2993, 0.0
      %v3026 = vsel %vm1031, %v2994, 0.0
      %v3027 = vsel %vm1032, %v2995, 0.0
      %v3028 = vsel %vm1033, %v2996, 0.0
      %v3029 = vsel %vm1034, %v2997, 0.0
      %v3030 = vsel %vm1035, %v2998, 0.0
      %v3031 = vsel %vm1036, %v2999, 0.0
      %v3032 = vsel %vm1037, %v3000, 0.0
      %v3033 = vsel %vm1038, %v3001, 0.0
      %v3034 = vsel %vm1039, %v3002, 0.0
      %v3035 = vsel %vm1040, %v3003, 0.0
      %v3036 = vsel %vm1041, %v3004, 0.0
      %v3037 = vsel %vm1042, %v3005, 0.0
      %v3038 = vsel %vm1043, %v3006, 0.0
      %v3039 = vsel %vm1044, %v3007, 0.0
      %v3040 = vsel %vm1045, %v3008, 0.0
      %v3041 = vsel %vm1046, %v3009, 0.0
      %v3042 = vsel %vm1047, %v3010, 0.0
      %v3043 = vsel %vm1048, %v3011, 0.0
      %v3044 = vsel %vm1049, %v3012, 0.0
      %v3045 = vpack.c.bf16 %v3014, %v3013
      %v3046 = vpack.c.bf16 %v3016, %v3015
      %v3047 = vpack.c.bf16 %v3018, %v3017
      %v3048 = vpack.c.bf16 %v3020, %v3019
      %v3049 = vpack.c.bf16 %v3022, %v3021
      %v3050 = vpack.c.bf16 %v3024, %v3023
      %v3051 = vpack.c.bf16 %v3026, %v3025
      %v3052 = vpack.c.bf16 %v3028, %v3027
      %v3053 = vpack.c.bf16 %v3030, %v3029
      %v3054 = vpack.c.bf16 %v3032, %v3031
      %v3055 = vpack.c.bf16 %v3034, %v3033
      %v3056 = vpack.c.bf16 %v3036, %v3035
      %v3057 = vpack.c.bf16 %v3038, %v3037
      %v3058 = vpack.c.bf16 %v3040, %v3039
      %v3059 = vpack.c.bf16 %v3042, %v3041
      %v3060 = vpack.c.bf16 %v3044, %v3043
      %s3061 = scalar_lea.vmem %s4, 384
      %v3062 = vld [vmem:[%s3061] sm:$0xf]
      %v3063 = vld [vmem:[%s3061 + $0x4] sm:$0xf]
      %v3064 = vld [vmem:[%s3061 + $0x8] sm:$0xf]
      %v3065 = vld [vmem:[%s3061 + $0xc] sm:$0xf]
      %v3066 = vld [vmem:[%s3061 + $0x10] sm:$0xf]
      %v3067 = vld [vmem:[%s3061 + $0x14] sm:$0xf]
      %v3068 = vld [vmem:[%s3061 + $0x18] sm:$0xf]
      %v3069 = vld [vmem:[%s3061 + $0x1c] sm:$0xf]
      %v3070 = vld [vmem:[%s3061 + $0x20] sm:$0xf]
      %v3071 = vld [vmem:[%s3061 + $0x24] sm:$0xf]
      %v3072 = vld [vmem:[%s3061 + $0x28] sm:$0xf]
      %v3073 = vld [vmem:[%s3061 + $0x2c] sm:$0xf]
      %v3074 = vld [vmem:[%s3061 + $0x30] sm:$0xf]
      %v3075 = vld [vmem:[%s3061 + $0x34] sm:$0xf]
      %v3076 = vld [vmem:[%s3061 + $0x38] sm:$0xf]
      %v3077 = vld [vmem:[%s3061 + $0x3c] sm:$0xf]
      %v3094 = vunpack.c.l.b16 %v3062
      %v3095 = vunpack.c.l.b16 %v3063
      %v3096 = vunpack.c.l.b16 %v3064
      %v3097 = vunpack.c.l.b16 %v3065
      %v3098 = vunpack.c.l.b16 %v3066
      %v3099 = vunpack.c.l.b16 %v3067
      %v3100 = vunpack.c.l.b16 %v3068
      %v3101 = vunpack.c.l.b16 %v3069
      %v3102 = vunpack.c.l.b16 %v3070
      %v3103 = vunpack.c.l.b16 %v3071
      %v3104 = vunpack.c.l.b16 %v3072
      %v3105 = vunpack.c.l.b16 %v3073
      %v3106 = vunpack.c.l.b16 %v3074
      %v3107 = vunpack.c.l.b16 %v3075
      %v3108 = vunpack.c.l.b16 %v3076
      %v3109 = vunpack.c.l.b16 %v3077
      %v3110 = vpack.c.b16 %v3095, %v3094
      %v3111 = vpack.c.b16 %v3097, %v3096
      %v3112 = vpack.c.b16 %v3099, %v3098
      %v3113 = vpack.c.b16 %v3101, %v3100
      %v3114 = vpack.c.b16 %v3103, %v3102
      %v3115 = vpack.c.b16 %v3105, %v3104
      %v3116 = vpack.c.b16 %v3107, %v3106
      %v3117 = vpack.c.b16 %v3109, %v3108
      %3126 = vmatprep.subr.bf16.mxu0 0
      %3127 = vmatpush1.bf16.msra.mxu0 %v3117
      %3128 = vmatprep.subr.bf16.mxu0 0
      %3129 = vmatpush1.bf16.msra.mxu0 %v3116
      %3130 = vmatprep.subr.bf16.mxu0 0
      %3131 = vmatpush1.bf16.msra.mxu0 %v3115
      %3132 = vmatprep.subr.bf16.mxu0 0
      %3133 = vmatpush1.bf16.msra.mxu0 %v3114
      %3134 = vmatprep.subr.bf16.mxu0 0
      %3135 = vmatpush1.bf16.msra.mxu0 %v3113
      %3136 = vmatprep.subr.bf16.mxu0 0
      %3137 = vmatpush1.bf16.msra.mxu0 %v3112
      %3138 = vmatprep.subr.bf16.mxu0 0
      %3139 = vmatpush1.bf16.msra.mxu0 %v3111
      %3140 = vmatprep.subr.bf16.mxu0 0
      %3141 = vmatpush1.bf16.msra.mxu0 %v3110
      %3142 = vmatprep.subr.bf16.mxu0 0
      %3143 = vmatpush2.bf16.msra.mxu0 0
      %3144 = vmatprep.subr.bf16.mxu0 0
      %3145 = vmatpush2.bf16.msra.mxu0 0
      %3146 = vmatprep.subr.bf16.mxu0 0
      %3147 = vmatpush2.bf16.msra.mxu0 0
      %3148 = vmatprep.subr.bf16.mxu0 0
      %3149 = vmatpush2.bf16.msra.mxu0 0
      %3150 = vmatprep.subr.bf16.mxu0 0
      %3151 = vmatpush2.bf16.msra.mxu0 0
      %3152 = vmatprep.subr.bf16.mxu0 0
      %3153 = vmatpush2.bf16.msra.mxu0 0
      %3154 = vmatprep.subr.bf16.mxu0 0
      %3155 = vmatpush2.bf16.msra.mxu0 0
      %3156 = vmatprep.subr.bf16.mxu0 0
      %3157 = vmatpush2.bf16.msra.mxu0 0
      %3158 = vmatprep.mubr.bf16.mxu0 0
      %3159 = vmatmul.mubr.bf16.gmra.mxu0 %v3045
      %v3160 = vpop.f32.mrf.mxu0
      %v3161 = vadd.f32 0.0, %v3160
      %v3162 = vpop.f32.mrf.mxu0
      %v3163 = vpop.f32.mrf.mxu0
      %v3164 = vadd.f32 0.0, %v3163
      %v3165 = vpop.f32.mrf.mxu0
      %3166 = vmatprep.mubr.bf16.mxu0 0
      %3167 = vmatmul.mubr.bf16.gmra.mxu0 %v3046
      %v3168 = vpop.f32.mrf.mxu0
      %v3169 = vadd.f32 0.0, %v3168
      %v3170 = vpop.f32.mrf.mxu0
      %v3171 = vpop.f32.mrf.mxu0
      %v3172 = vadd.f32 0.0, %v3171
      %v3173 = vpop.f32.mrf.mxu0
      %3174 = vmatprep.mubr.bf16.mxu0 0
      %3175 = vmatmul.mubr.bf16.gmra.mxu0 %v3047
      %v3176 = vpop.f32.mrf.mxu0
      %v3177 = vadd.f32 0.0, %v3176
      %v3178 = vpop.f32.mrf.mxu0
      %v3179 = vpop.f32.mrf.mxu0
      %v3180 = vadd.f32 0.0, %v3179
      %v3181 = vpop.f32.mrf.mxu0
      %3182 = vmatprep.mubr.bf16.mxu0 0
      %3183 = vmatmul.mubr.bf16.gmra.mxu0 %v3048
      %v3184 = vpop.f32.mrf.mxu0
      %v3185 = vadd.f32 0.0, %v3184
      %v3186 = vpop.f32.mrf.mxu0
      %v3187 = vpop.f32.mrf.mxu0
      %v3188 = vadd.f32 0.0, %v3187
      %v3189 = vpop.f32.mrf.mxu0
      %3190 = vmatprep.mubr.bf16.mxu0 0
      %3191 = vmatmul.mubr.bf16.gmra.mxu0 %v3049
      %v3192 = vpop.f32.mrf.mxu0
      %v3193 = vadd.f32 0.0, %v3192
      %v3194 = vpop.f32.mrf.mxu0
      %v3195 = vpop.f32.mrf.mxu0
      %v3196 = vadd.f32 0.0, %v3195
      %v3197 = vpop.f32.mrf.mxu0
      %3198 = vmatprep.mubr.bf16.mxu0 0
      %3199 = vmatmul.mubr.bf16.gmra.mxu0 %v3050
      %v3200 = vpop.f32.mrf.mxu0
      %v3201 = vadd.f32 0.0, %v3200
      %v3202 = vpop.f32.mrf.mxu0
      %v3203 = vpop.f32.mrf.mxu0
      %v3204 = vadd.f32 0.0, %v3203
      %v3205 = vpop.f32.mrf.mxu0
      %3206 = vmatprep.mubr.bf16.mxu0 0
      %3207 = vmatmul.mubr.bf16.gmra.mxu0 %v3051
      %v3208 = vpop.f32.mrf.mxu0
      %v3209 = vadd.f32 0.0, %v3208
      %v3210 = vpop.f32.mrf.mxu0
      %v3211 = vpop.f32.mrf.mxu0
      %v3212 = vadd.f32 0.0, %v3211
      %v3213 = vpop.f32.mrf.mxu0
      %3214 = vmatprep.mubr.bf16.mxu0 0
      %3215 = vmatmul.mubr.bf16.gmra.mxu0 %v3052
      %v3216 = vpop.f32.mrf.mxu0
      %v3217 = vadd.f32 0.0, %v3216
      %v3218 = vpop.f32.mrf.mxu0
      %v3219 = vpop.f32.mrf.mxu0
      %v3220 = vadd.f32 0.0, %v3219
      %v3221 = vpop.f32.mrf.mxu0
      %3222 = vmatprep.mubr.bf16.mxu0 0
      %3223 = vmatmul.mubr.bf16.gmra.mxu0 %v3053
      %v3224 = vpop.f32.mrf.mxu0
      %v3225 = vadd.f32 0.0, %v3224
      %v3226 = vpop.f32.mrf.mxu0
      %v3227 = vpop.f32.mrf.mxu0
      %v3228 = vadd.f32 0.0, %v3227
      %v3229 = vpop.f32.mrf.mxu0
      %3230 = vmatprep.mubr.bf16.mxu0 0
      %3231 = vmatmul.mubr.bf16.gmra.mxu0 %v3054
      %v3232 = vpop.f32.mrf.mxu0
      %v3233 = vadd.f32 0.0, %v3232
      %v3234 = vpop.f32.mrf.mxu0
      %v3235 = vpop.f32.mrf.mxu0
      %v3236 = vadd.f32 0.0, %v3235
      %v3237 = vpop.f32.mrf.mxu0
      %3238 = vmatprep.mubr.bf16.mxu0 0
      %3239 = vmatmul.mubr.bf16.gmra.mxu0 %v3055
      %v3240 = vpop.f32.mrf.mxu0
      %v3241 = vadd.f32 0.0, %v3240
      %v3242 = vpop.f32.mrf.mxu0
      %v3243 = vpop.f32.mrf.mxu0
      %v3244 = vadd.f32 0.0, %v3243
      %v3245 = vpop.f32.mrf.mxu0
      %3246 = vmatprep.mubr.bf16.mxu0 0
      %3247 = vmatmul.mubr.bf16.gmra.mxu0 %v3056
      %v3248 = vpop.f32.mrf.mxu0
      %v3249 = vadd.f32 0.0, %v3248
      %v3250 = vpop.f32.mrf.mxu0
      %v3251 = vpop.f32.mrf.mxu0
      %v3252 = vadd.f32 0.0, %v3251
      %v3253 = vpop.f32.mrf.mxu0
      %3254 = vmatprep.mubr.bf16.mxu0 0
      %3255 = vmatmul.mubr.bf16.gmra.mxu0 %v3057
      %v3256 = vpop.f32.mrf.mxu0
      %v3257 = vadd.f32 0.0, %v3256
      %v3258 = vpop.f32.mrf.mxu0
      %v3259 = vpop.f32.mrf.mxu0
      %v3260 = vadd.f32 0.0, %v3259
      %v3261 = vpop.f32.mrf.mxu0
      %3262 = vmatprep.mubr.bf16.mxu0 0
      %3263 = vmatmul.mubr.bf16.gmra.mxu0 %v3058
      %v3264 = vpop.f32.mrf.mxu0
      %v3265 = vadd.f32 0.0, %v3264
      %v3266 = vpop.f32.mrf.mxu0
      %v3267 = vpop.f32.mrf.mxu0
      %v3268 = vadd.f32 0.0, %v3267
      %v3269 = vpop.f32.mrf.mxu0
      %3270 = vmatprep.mubr.bf16.mxu0 0
      %3271 = vmatmul.mubr.bf16.gmra.mxu0 %v3059
      %v3272 = vpop.f32.mrf.mxu0
      %v3273 = vadd.f32 0.0, %v3272
      %v3274 = vpop.f32.mrf.mxu0
      %v3275 = vpop.f32.mrf.mxu0
      %v3276 = vadd.f32 0.0, %v3275
      %v3277 = vpop.f32.mrf.mxu0
      %3278 = vmatprep.mubr.bf16.mxu0 0
      %3279 = vmatmul.mubr.bf16.gmra.mxu0 %v3060
      %v3280 = vpop.f32.mrf.mxu0
      %v3281 = vadd.f32 0.0, %v3280
      %v3282 = vpop.f32.mrf.mxu0
      %v3283 = vpop.f32.mrf.mxu0
      %v3284 = vadd.f32 0.0, %v3283
      %v3285 = vpop.f32.mrf.mxu0
      %3286 = vdwg.mxu0
      %v3287 = vadd.f32 %v2949, %v3161
      %v3288 = vadd.f32 %v2950, %v3164
      %v3289 = vadd.f32 %v2951, %v3169
      %v3290 = vadd.f32 %v2952, %v3172
      %v3291 = vadd.f32 %v2953, %v3177
      %v3292 = vadd.f32 %v2954, %v3180
      %v3293 = vadd.f32 %v2955, %v3185
      %v3294 = vadd.f32 %v2956, %v3188
      %v3295 = vadd.f32 %v2957, %v3193
      %v3296 = vadd.f32 %v2958, %v3196
      %v3297 = vadd.f32 %v2959, %v3201
      %v3298 = vadd.f32 %v2960, %v3204
      %v3299 = vadd.f32 %v2961, %v3209
      %v3300 = vadd.f32 %v2962, %v3212
      %v3301 = vadd.f32 %v2963, %v3217
      %v3302 = vadd.f32 %v2964, %v3220
      %v3303 = vadd.f32 %v2965, %v3225
      %v3304 = vadd.f32 %v2966, %v3228
      %v3305 = vadd.f32 %v2967, %v3233
      %v3306 = vadd.f32 %v2968, %v3236
      %v3307 = vadd.f32 %v2969, %v3241
      %v3308 = vadd.f32 %v2970, %v3244
      %v3309 = vadd.f32 %v2971, %v3249
      %v3310 = vadd.f32 %v2972, %v3252
      %v3311 = vadd.f32 %v2973, %v3257
      %v3312 = vadd.f32 %v2974, %v3260
      %v3313 = vadd.f32 %v2975, %v3265
      %v3314 = vadd.f32 %v2976, %v3268
      %v3315 = vadd.f32 %v2977, %v3273
      %v3316 = vadd.f32 %v2978, %v3276
      %v3317 = vadd.f32 %v2979, %v3281
      %v3318 = vadd.f32 %v2980, %v3284
      %v3319 = vld [vmem:[#allocation2 + $0x28] sm:$0xff]
      %v3320 = vld [vmem:[#allocation2 + $0x30] sm:$0xff]
      %v3321 = vld [vmem:[#allocation2 + $0x38] sm:$0xff]
      %v3322 = vld [vmem:[#allocation2 + $0x40] sm:$0xff]
      %v3323 = vld [vmem:[#allocation2 + $0x48] sm:$0xff]
      %v3324 = vld [vmem:[#allocation2 + $0x50] sm:$0xff]
      %v3325 = vld [vmem:[#allocation2 + $0x58] sm:$0xff]
      %v3326 = vld [vmem:[#allocation2 + $0x60] sm:$0xff]
      %v3327 = vld [vmem:[#allocation2 + $0x68] sm:$0xff]
      %v3328 = vld [vmem:[#allocation2 + $0x70] sm:$0xff]
      %v3329 = vld [vmem:[#allocation2 + $0x78] sm:$0xff]
      %v3330 = vld [vmem:[#allocation2 + $0x80] sm:$0xff]
      %v3331 = vld [vmem:[#allocation2 + $0x88] sm:$0xff]
      %v3332 = vld [vmem:[#allocation2 + $0x90] sm:$0xff]
      %v3333 = vld [vmem:[#allocation2 + $0x98] sm:$0xff]
      %v3334 = vld [vmem:[#allocation2 + $0xa0] sm:$0xff]
      %v3335 = vld [vmem:[#allocation2 + $0xa8] sm:$0xff]
      %v3336 = vld [vmem:[#allocation2 + $0xb0] sm:$0xff]
      %v3337 = vld [vmem:[#allocation2 + $0xb8] sm:$0xff]
      %v3338 = vld [vmem:[#allocation2 + $0xc0] sm:$0xff]
      %v3339 = vld [vmem:[#allocation2 + $0xc8] sm:$0xff]
      %v3340 = vld [vmem:[#allocation2 + $0xd0] sm:$0xff]
      %v3341 = vld [vmem:[#allocation2 + $0xd8] sm:$0xff]
      %v3342 = vld [vmem:[#allocation2 + $0xe0] sm:$0xff]
      %v3343 = vld [vmem:[#allocation2 + $0xe8] sm:$0xff]
      %v3344 = vld [vmem:[#allocation2 + $0xf0] sm:$0xff]
      %v3345 = vld [vmem:[#allocation2 + $0xf8] sm:$0xff]
      %v3346 = vld [vmem:[#allocation2 + $0x100] sm:$0xff]
      %v3347 = vld [vmem:[#allocation2 + $0x108] sm:$0xff]
      %v3348 = vld [vmem:[#allocation2 + $0x110] sm:$0xff]
      %v3349 = vld [vmem:[#allocation2 + $0x118] sm:$0xff]
      %v3350 = vld [vmem:[#allocation2 + $0x120] sm:$0xff]
      %v3351 = vpack.c.bf16 %v3320, %v3319
      %v3352 = vpack.c.bf16 %v3322, %v3321
      %v3353 = vpack.c.bf16 %v3324, %v3323
      %v3354 = vpack.c.bf16 %v3326, %v3325
      %v3355 = vpack.c.bf16 %v3328, %v3327
      %v3356 = vpack.c.bf16 %v3330, %v3329
      %v3357 = vpack.c.bf16 %v3332, %v3331
      %v3358 = vpack.c.bf16 %v3334, %v3333
      %v3359 = vpack.c.bf16 %v3336, %v3335
      %v3360 = vpack.c.bf16 %v3338, %v3337
      %v3361 = vpack.c.bf16 %v3340, %v3339
      %v3362 = vpack.c.bf16 %v3342, %v3341
      %v3363 = vpack.c.bf16 %v3344, %v3343
      %v3364 = vpack.c.bf16 %v3346, %v3345
      %v3365 = vpack.c.bf16 %v3348, %v3347
      %v3366 = vpack.c.bf16 %v3350, %v3349
      %s3367 = scalar_lea.vmem %s4, 448
      %v3368 = vld [vmem:[%s3367] sm:$0xf]
      %v3369 = vld [vmem:[%s3367 + $0x4] sm:$0xf]
      %v3370 = vld [vmem:[%s3367 + $0x8] sm:$0xf]
      %v3371 = vld [vmem:[%s3367 + $0xc] sm:$0xf]
      %v3372 = vld [vmem:[%s3367 + $0x10] sm:$0xf]
      %v3373 = vld [vmem:[%s3367 + $0x14] sm:$0xf]
      %v3374 = vld [vmem:[%s3367 + $0x18] sm:$0xf]
      %v3375 = vld [vmem:[%s3367 + $0x1c] sm:$0xf]
      %v3376 = vld [vmem:[%s3367 + $0x20] sm:$0xf]
      %v3377 = vld [vmem:[%s3367 + $0x24] sm:$0xf]
      %v3378 = vld [vmem:[%s3367 + $0x28] sm:$0xf]
      %v3379 = vld [vmem:[%s3367 + $0x2c] sm:$0xf]
      %v3380 = vld [vmem:[%s3367 + $0x30] sm:$0xf]
      %v3381 = vld [vmem:[%s3367 + $0x34] sm:$0xf]
      %v3382 = vld [vmem:[%s3367 + $0x38] sm:$0xf]
      %v3383 = vld [vmem:[%s3367 + $0x3c] sm:$0xf]
      %v3400 = vunpack.c.l.b16 %v3368
      %v3401 = vunpack.c.l.b16 %v3369
      %v3402 = vunpack.c.l.b16 %v3370
      %v3403 = vunpack.c.l.b16 %v3371
      %v3404 = vunpack.c.l.b16 %v3372
      %v3405 = vunpack.c.l.b16 %v3373
      %v3406 = vunpack.c.l.b16 %v3374
      %v3407 = vunpack.c.l.b16 %v3375
      %v3408 = vunpack.c.l.b16 %v3376
      %v3409 = vunpack.c.l.b16 %v3377
      %v3410 = vunpack.c.l.b16 %v3378
      %v3411 = vunpack.c.l.b16 %v3379
      %v3412 = vunpack.c.l.b16 %v3380
      %v3413 = vunpack.c.l.b16 %v3381
      %v3414 = vunpack.c.l.b16 %v3382
      %v3415 = vunpack.c.l.b16 %v3383
      %v3416 = vpack.c.b16 %v3401, %v3400
      %v3417 = vpack.c.b16 %v3403, %v3402
      %v3418 = vpack.c.b16 %v3405, %v3404
      %v3419 = vpack.c.b16 %v3407, %v3406
      %v3420 = vpack.c.b16 %v3409, %v3408
      %v3421 = vpack.c.b16 %v3411, %v3410
      %v3422 = vpack.c.b16 %v3413, %v3412
      %v3423 = vpack.c.b16 %v3415, %v3414
      %3432 = vmatprep.subr.bf16.mxu0 0
      %3433 = vmatpush1.bf16.msra.mxu0 %v3423
      %3434 = vmatprep.subr.bf16.mxu0 0
      %3435 = vmatpush1.bf16.msra.mxu0 %v3422
      %3436 = vmatprep.subr.bf16.mxu0 0
      %3437 = vmatpush1.bf16.msra.mxu0 %v3421
      %3438 = vmatprep.subr.bf16.mxu0 0
      %3439 = vmatpush1.bf16.msra.mxu0 %v3420
      %3440 = vmatprep.subr.bf16.mxu0 0
      %3441 = vmatpush1.bf16.msra.mxu0 %v3419
      %3442 = vmatprep.subr.bf16.mxu0 0
      %3443 = vmatpush1.bf16.msra.mxu0 %v3418
      %3444 = vmatprep.subr.bf16.mxu0 0
      %3445 = vmatpush1.bf16.msra.mxu0 %v3417
      %3446 = vmatprep.subr.bf16.mxu0 0
      %3447 = vmatpush1.bf16.msra.mxu0 %v3416
      %3448 = vmatprep.subr.bf16.mxu0 0
      %3449 = vmatpush2.bf16.msra.mxu0 0
      %3450 = vmatprep.subr.bf16.mxu0 0
      %3451 = vmatpush2.bf16.msra.mxu0 0
      %3452 = vmatprep.subr.bf16.mxu0 0
      %3453 = vmatpush2.bf16.msra.mxu0 0
      %3454 = vmatprep.subr.bf16.mxu0 0
      %3455 = vmatpush2.bf16.msra.mxu0 0
      %3456 = vmatprep.subr.bf16.mxu0 0
      %3457 = vmatpush2.bf16.msra.mxu0 0
      %3458 = vmatprep.subr.bf16.mxu0 0
      %3459 = vmatpush2.bf16.msra.mxu0 0
      %3460 = vmatprep.subr.bf16.mxu0 0
      %3461 = vmatpush2.bf16.msra.mxu0 0
      %3462 = vmatprep.subr.bf16.mxu0 0
      %3463 = vmatpush2.bf16.msra.mxu0 0
      %3464 = vmatprep.mubr.bf16.mxu0 0
      %3465 = vmatmul.mubr.bf16.gmra.mxu0 %v3351
      %v3466 = vpop.f32.mrf.mxu0
      %v3467 = vadd.f32 0.0, %v3466
      %v3468 = vpop.f32.mrf.mxu0
      %v3469 = vpop.f32.mrf.mxu0
      %v3470 = vadd.f32 0.0, %v3469
      %v3471 = vpop.f32.mrf.mxu0
      %3472 = vmatprep.mubr.bf16.mxu0 0
      %3473 = vmatmul.mubr.bf16.gmra.mxu0 %v3352
      %v3474 = vpop.f32.mrf.mxu0
      %v3475 = vadd.f32 0.0, %v3474
      %v3476 = vpop.f32.mrf.mxu0
      %v3477 = vpop.f32.mrf.mxu0
      %v3478 = vadd.f32 0.0, %v3477
      %v3479 = vpop.f32.mrf.mxu0
      %3480 = vmatprep.mubr.bf16.mxu0 0
      %3481 = vmatmul.mubr.bf16.gmra.mxu0 %v3353
      %v3482 = vpop.f32.mrf.mxu0
      %v3483 = vadd.f32 0.0, %v3482
      %v3484 = vpop.f32.mrf.mxu0
      %v3485 = vpop.f32.mrf.mxu0
      %v3486 = vadd.f32 0.0, %v3485
      %v3487 = vpop.f32.mrf.mxu0
      %3488 = vmatprep.mubr.bf16.mxu0 0
      %3489 = vmatmul.mubr.bf16.gmra.mxu0 %v3354
      %v3490 = vpop.f32.mrf.mxu0
      %v3491 = vadd.f32 0.0, %v3490
      %v3492 = vpop.f32.mrf.mxu0
      %v3493 = vpop.f32.mrf.mxu0
      %v3494 = vadd.f32 0.0, %v3493
      %v3495 = vpop.f32.mrf.mxu0
      %3496 = vmatprep.mubr.bf16.mxu0 0
      %3497 = vmatmul.mubr.bf16.gmra.mxu0 %v3355
      %v3498 = vpop.f32.mrf.mxu0
      %v3499 = vadd.f32 0.0, %v3498
      %v3500 = vpop.f32.mrf.mxu0
      %v3501 = vpop.f32.mrf.mxu0
      %v3502 = vadd.f32 0.0, %v3501
      %v3503 = vpop.f32.mrf.mxu0
      %3504 = vmatprep.mubr.bf16.mxu0 0
      %3505 = vmatmul.mubr.bf16.gmra.mxu0 %v3356
      %v3506 = vpop.f32.mrf.mxu0
      %v3507 = vadd.f32 0.0, %v3506
      %v3508 = vpop.f32.mrf.mxu0
      %v3509 = vpop.f32.mrf.mxu0
      %v3510 = vadd.f32 0.0, %v3509
      %v3511 = vpop.f32.mrf.mxu0
      %3512 = vmatprep.mubr.bf16.mxu0 0
      %3513 = vmatmul.mubr.bf16.gmra.mxu0 %v3357
      %v3514 = vpop.f32.mrf.mxu0
      %v3515 = vadd.f32 0.0, %v3514
      %v3516 = vpop.f32.mrf.mxu0
      %v3517 = vpop.f32.mrf.mxu0
      %v3518 = vadd.f32 0.0, %v3517
      %v3519 = vpop.f32.mrf.mxu0
      %3520 = vmatprep.mubr.bf16.mxu0 0
      %3521 = vmatmul.mubr.bf16.gmra.mxu0 %v3358
      %v3522 = vpop.f32.mrf.mxu0
      %v3523 = vadd.f32 0.0, %v3522
      %v3524 = vpop.f32.mrf.mxu0
      %v3525 = vpop.f32.mrf.mxu0
      %v3526 = vadd.f32 0.0, %v3525
      %v3527 = vpop.f32.mrf.mxu0
      %3528 = vmatprep.mubr.bf16.mxu0 0
      %3529 = vmatmul.mubr.bf16.gmra.mxu0 %v3359
      %v3530 = vpop.f32.mrf.mxu0
      %v3531 = vadd.f32 0.0, %v3530
      %v3532 = vpop.f32.mrf.mxu0
      %v3533 = vpop.f32.mrf.mxu0
      %v3534 = vadd.f32 0.0, %v3533
      %v3535 = vpop.f32.mrf.mxu0
      %3536 = vmatprep.mubr.bf16.mxu0 0
      %3537 = vmatmul.mubr.bf16.gmra.mxu0 %v3360
      %v3538 = vpop.f32.mrf.mxu0
      %v3539 = vadd.f32 0.0, %v3538
      %v3540 = vpop.f32.mrf.mxu0
      %v3541 = vpop.f32.mrf.mxu0
      %v3542 = vadd.f32 0.0, %v3541
      %v3543 = vpop.f32.mrf.mxu0
      %3544 = vmatprep.mubr.bf16.mxu0 0
      %3545 = vmatmul.mubr.bf16.gmra.mxu0 %v3361
      %v3546 = vpop.f32.mrf.mxu0
      %v3547 = vadd.f32 0.0, %v3546
      %v3548 = vpop.f32.mrf.mxu0
      %v3549 = vpop.f32.mrf.mxu0
      %v3550 = vadd.f32 0.0, %v3549
      %v3551 = vpop.f32.mrf.mxu0
      %3552 = vmatprep.mubr.bf16.mxu0 0
      %3553 = vmatmul.mubr.bf16.gmra.mxu0 %v3362
      %v3554 = vpop.f32.mrf.mxu0
      %v3555 = vadd.f32 0.0, %v3554
      %v3556 = vpop.f32.mrf.mxu0
      %v3557 = vpop.f32.mrf.mxu0
      %v3558 = vadd.f32 0.0, %v3557
      %v3559 = vpop.f32.mrf.mxu0
      %3560 = vmatprep.mubr.bf16.mxu0 0
      %3561 = vmatmul.mubr.bf16.gmra.mxu0 %v3363
      %v3562 = vpop.f32.mrf.mxu0
      %v3563 = vadd.f32 0.0, %v3562
      %v3564 = vpop.f32.mrf.mxu0
      %v3565 = vpop.f32.mrf.mxu0
      %v3566 = vadd.f32 0.0, %v3565
      %v3567 = vpop.f32.mrf.mxu0
      %3568 = vmatprep.mubr.bf16.mxu0 0
      %3569 = vmatmul.mubr.bf16.gmra.mxu0 %v3364
      %v3570 = vpop.f32.mrf.mxu0
      %v3571 = vadd.f32 0.0, %v3570
      %v3572 = vpop.f32.mrf.mxu0
      %v3573 = vpop.f32.mrf.mxu0
      %v3574 = vadd.f32 0.0, %v3573
      %v3575 = vpop.f32.mrf.mxu0
      %3576 = vmatprep.mubr.bf16.mxu0 0
      %3577 = vmatmul.mubr.bf16.gmra.mxu0 %v3365
      %v3578 = vpop.f32.mrf.mxu0
      %v3579 = vadd.f32 0.0, %v3578
      %v3580 = vpop.f32.mrf.mxu0
      %v3581 = vpop.f32.mrf.mxu0
      %v3582 = vadd.f32 0.0, %v3581
      %v3583 = vpop.f32.mrf.mxu0
      %3584 = vmatprep.mubr.bf16.mxu0 0
      %3585 = vmatmul.mubr.bf16.gmra.mxu0 %v3366
      %v3586 = vpop.f32.mrf.mxu0
      %v3587 = vadd.f32 0.0, %v3586
      %v3588 = vpop.f32.mrf.mxu0
      %v3589 = vpop.f32.mrf.mxu0
      %v3590 = vadd.f32 0.0, %v3589
      %v3591 = vpop.f32.mrf.mxu0
      %3592 = vdwg.mxu0
      %v3593 = vadd.f32 %v3287, %v3467
      %v3594 = vadd.f32 %v3288, %v3470
      %v3595 = vadd.f32 %v3289, %v3475
      %v3596 = vadd.f32 %v3290, %v3478
      %v3597 = vadd.f32 %v3291, %v3483
      %v3598 = vadd.f32 %v3292, %v3486
      %v3599 = vadd.f32 %v3293, %v3491
      %v3600 = vadd.f32 %v3294, %v3494
      %v3601 = vadd.f32 %v3295, %v3499
      %v3602 = vadd.f32 %v3296, %v3502
      %v3603 = vadd.f32 %v3297, %v3507
      %v3604 = vadd.f32 %v3298, %v3510
      %v3605 = vadd.f32 %v3299, %v3515
      %v3606 = vadd.f32 %v3300, %v3518
      %v3607 = vadd.f32 %v3301, %v3523
      %v3608 = vadd.f32 %v3302, %v3526
      %v3609 = vadd.f32 %v3303, %v3531
      %v3610 = vadd.f32 %v3304, %v3534
      %v3611 = vadd.f32 %v3305, %v3539
      %v3612 = vadd.f32 %v3306, %v3542
      %v3613 = vadd.f32 %v3307, %v3547
      %v3614 = vadd.f32 %v3308, %v3550
      %v3615 = vadd.f32 %v3309, %v3555
      %v3616 = vadd.f32 %v3310, %v3558
      %v3617 = vadd.f32 %v3311, %v3563
      %v3618 = vadd.f32 %v3312, %v3566
      %v3619 = vadd.f32 %v3313, %v3571
      %v3620 = vadd.f32 %v3314, %v3574
      %v3621 = vadd.f32 %v3315, %v3579
      %v3622 = vadd.f32 %v3316, %v3582
      %v3623 = vadd.f32 %v3317, %v3587
      %v3624 = vadd.f32 %v3318, %v3590
      %v3625 = vld [vmem:[#allocation2 + $0x29] sm:$0xff]
      %v3626 = vld [vmem:[#allocation2 + $0x31] sm:$0xff]
      %v3627 = vld [vmem:[#allocation2 + $0x39] sm:$0xff]
      %v3628 = vld [vmem:[#allocation2 + $0x41] sm:$0xff]
      %v3629 = vld [vmem:[#allocation2 + $0x49] sm:$0xff]
      %v3630 = vld [vmem:[#allocation2 + $0x51] sm:$0xff]
      %v3631 = vld [vmem:[#allocation2 + $0x59] sm:$0xff]
      %v3632 = vld [vmem:[#allocation2 + $0x61] sm:$0xff]
      %v3633 = vld [vmem:[#allocation2 + $0x69] sm:$0xff]
      %v3634 = vld [vmem:[#allocation2 + $0x71] sm:$0xff]
      %v3635 = vld [vmem:[#allocation2 + $0x79] sm:$0xff]
      %v3636 = vld [vmem:[#allocation2 + $0x81] sm:$0xff]
      %v3637 = vld [vmem:[#allocation2 + $0x89] sm:$0xff]
      %v3638 = vld [vmem:[#allocation2 + $0x91] sm:$0xff]
      %v3639 = vld [vmem:[#allocation2 + $0x99] sm:$0xff]
      %v3640 = vld [vmem:[#allocation2 + $0xa1] sm:$0xff]
      %v3641 = vld [vmem:[#allocation2 + $0xa9] sm:$0xff]
      %v3642 = vld [vmem:[#allocation2 + $0xb1] sm:$0xff]
      %v3643 = vld [vmem:[#allocation2 + $0xb9] sm:$0xff]
      %v3644 = vld [vmem:[#allocation2 + $0xc1] sm:$0xff]
      %v3645 = vld [vmem:[#allocation2 + $0xc9] sm:$0xff]
      %v3646 = vld [vmem:[#allocation2 + $0xd1] sm:$0xff]
      %v3647 = vld [vmem:[#allocation2 + $0xd9] sm:$0xff]
      %v3648 = vld [vmem:[#allocation2 + $0xe1] sm:$0xff]
      %v3649 = vld [vmem:[#allocation2 + $0xe9] sm:$0xff]
      %v3650 = vld [vmem:[#allocation2 + $0xf1] sm:$0xff]
      %v3651 = vld [vmem:[#allocation2 + $0xf9] sm:$0xff]
      %v3652 = vld [vmem:[#allocation2 + $0x101] sm:$0xff]
      %v3653 = vld [vmem:[#allocation2 + $0x109] sm:$0xff]
      %v3654 = vld [vmem:[#allocation2 + $0x111] sm:$0xff]
      %v3655 = vld [vmem:[#allocation2 + $0x119] sm:$0xff]
      %v3656 = vld [vmem:[#allocation2 + $0x121] sm:$0xff]
      %v3657 = vsel %vm1050, %v3625, 0.0
      %v3658 = vsel %vm1051, %v3626, 0.0
      %v3659 = vsel %vm1052, %v3627, 0.0
      %v3660 = vsel %vm1053, %v3628, 0.0
      %v3661 = vsel %vm1054, %v3629, 0.0
      %v3662 = vsel %vm1055, %v3630, 0.0
      %v3663 = vsel %vm1056, %v3631, 0.0
      %v3664 = vsel %vm1057, %v3632, 0.0
      %v3665 = vsel %vm1058, %v3633, 0.0
      %v3666 = vsel %vm1059, %v3634, 0.0
      %v3667 = vsel %vm1060, %v3635, 0.0
      %v3668 = vsel %vm1061, %v3636, 0.0
      %v3669 = vsel %vm1062, %v3637, 0.0
      %v3670 = vsel %vm1063, %v3638, 0.0
      %v3671 = vsel %vm1064, %v3639, 0.0
      %v3672 = vsel %vm1065, %v3640, 0.0
      %v3673 = vsel %vm1066, %v3641, 0.0
      %v3674 = vsel %vm1067, %v3642, 0.0
      %v3675 = vsel %vm1068, %v3643, 0.0
      %v3676 = vsel %vm1069, %v3644, 0.0
      %v3677 = vsel %vm1070, %v3645, 0.0
      %v3678 = vsel %vm1071, %v3646, 0.0
      %v3679 = vsel %vm1072, %v3647, 0.0
      %v3680 = vsel %vm1073, %v3648, 0.0
      %v3681 = vsel %vm1074, %v3649, 0.0
      %v3682 = vsel %vm1075, %v3650, 0.0
      %v3683 = vsel %vm1076, %v3651, 0.0
      %v3684 = vsel %vm1077, %v3652, 0.0
      %v3685 = vsel %vm1078, %v3653, 0.0
      %v3686 = vsel %vm1079, %v3654, 0.0
      %v3687 = vsel %vm1080, %v3655, 0.0
      %v3688 = vsel %vm1081, %v3656, 0.0
      %v3689 = vpack.c.bf16 %v3658, %v3657
      %v3690 = vpack.c.bf16 %v3660, %v3659
      %v3691 = vpack.c.bf16 %v3662, %v3661
      %v3692 = vpack.c.bf16 %v3664, %v3663
      %v3693 = vpack.c.bf16 %v3666, %v3665
      %v3694 = vpack.c.bf16 %v3668, %v3667
      %v3695 = vpack.c.bf16 %v3670, %v3669
      %v3696 = vpack.c.bf16 %v3672, %v3671
      %v3697 = vpack.c.bf16 %v3674, %v3673
      %v3698 = vpack.c.bf16 %v3676, %v3675
      %v3699 = vpack.c.bf16 %v3678, %v3677
      %v3700 = vpack.c.bf16 %v3680, %v3679
      %v3701 = vpack.c.bf16 %v3682, %v3681
      %v3702 = vpack.c.bf16 %v3684, %v3683
      %v3703 = vpack.c.bf16 %v3686, %v3685
      %v3704 = vpack.c.bf16 %v3688, %v3687
      %s3705 = scalar_lea.vmem %s4, 512
      %v3706 = vld [vmem:[%s3705] sm:$0xf]
      %v3707 = vld [vmem:[%s3705 + $0x4] sm:$0xf]
      %v3708 = vld [vmem:[%s3705 + $0x8] sm:$0xf]
      %v3709 = vld [vmem:[%s3705 + $0xc] sm:$0xf]
      %v3710 = vld [vmem:[%s3705 + $0x10] sm:$0xf]
      %v3711 = vld [vmem:[%s3705 + $0x14] sm:$0xf]
      %v3712 = vld [vmem:[%s3705 + $0x18] sm:$0xf]
      %v3713 = vld [vmem:[%s3705 + $0x1c] sm:$0xf]
      %v3714 = vld [vmem:[%s3705 + $0x20] sm:$0xf]
      %v3715 = vld [vmem:[%s3705 + $0x24] sm:$0xf]
      %v3716 = vld [vmem:[%s3705 + $0x28] sm:$0xf]
      %v3717 = vld [vmem:[%s3705 + $0x2c] sm:$0xf]
      %v3718 = vld [vmem:[%s3705 + $0x30] sm:$0xf]
      %v3719 = vld [vmem:[%s3705 + $0x34] sm:$0xf]
      %v3720 = vld [vmem:[%s3705 + $0x38] sm:$0xf]
      %v3721 = vld [vmem:[%s3705 + $0x3c] sm:$0xf]
      %v3738 = vunpack.c.l.b16 %v3706
      %v3739 = vunpack.c.l.b16 %v3707
      %v3740 = vunpack.c.l.b16 %v3708
      %v3741 = vunpack.c.l.b16 %v3709
      %v3742 = vunpack.c.l.b16 %v3710
      %v3743 = vunpack.c.l.b16 %v3711
      %v3744 = vunpack.c.l.b16 %v3712
      %v3745 = vunpack.c.l.b16 %v3713
      %v3746 = vunpack.c.l.b16 %v3714
      %v3747 = vunpack.c.l.b16 %v3715
      %v3748 = vunpack.c.l.b16 %v3716
      %v3749 = vunpack.c.l.b16 %v3717
      %v3750 = vunpack.c.l.b16 %v3718
      %v3751 = vunpack.c.l.b16 %v3719
      %v3752 = vunpack.c.l.b16 %v3720
      %v3753 = vunpack.c.l.b16 %v3721
      %v3754 = vpack.c.b16 %v3739, %v3738
      %v3755 = vpack.c.b16 %v3741, %v3740
      %v3756 = vpack.c.b16 %v3743, %v3742
      %v3757 = vpack.c.b16 %v3745, %v3744
      %v3758 = vpack.c.b16 %v3747, %v3746
      %v3759 = vpack.c.b16 %v3749, %v3748
      %v3760 = vpack.c.b16 %v3751, %v3750
      %v3761 = vpack.c.b16 %v3753, %v3752
      %3770 = vmatprep.subr.bf16.mxu0 0
      %3771 = vmatpush1.bf16.msra.mxu0 %v3761
      %3772 = vmatprep.subr.bf16.mxu0 0
      %3773 = vmatpush1.bf16.msra.mxu0 %v3760
      %3774 = vmatprep.subr.bf16.mxu0 0
      %3775 = vmatpush1.bf16.msra.mxu0 %v3759
      %3776 = vmatprep.subr.bf16.mxu0 0
      %3777 = vmatpush1.bf16.msra.mxu0 %v3758
      %3778 = vmatprep.subr.bf16.mxu0 0
      %3779 = vmatpush1.bf16.msra.mxu0 %v3757
      %3780 = vmatprep.subr.bf16.mxu0 0
      %3781 = vmatpush1.bf16.msra.mxu0 %v3756
      %3782 = vmatprep.subr.bf16.mxu0 0
      %3783 = vmatpush1.bf16.msra.mxu0 %v3755
      %3784 = vmatprep.subr.bf16.mxu0 0
      %3785 = vmatpush1.bf16.msra.mxu0 %v3754
      %3786 = vmatprep.subr.bf16.mxu0 0
      %3787 = vmatpush2.bf16.msra.mxu0 0
      %3788 = vmatprep.subr.bf16.mxu0 0
      %3789 = vmatpush2.bf16.msra.mxu0 0
      %3790 = vmatprep.subr.bf16.mxu0 0
      %3791 = vmatpush2.bf16.msra.mxu0 0
      %3792 = vmatprep.subr.bf16.mxu0 0
      %3793 = vmatpush2.bf16.msra.mxu0 0
      %3794 = vmatprep.subr.bf16.mxu0 0
      %3795 = vmatpush2.bf16.msra.mxu0 0
      %3796 = vmatprep.subr.bf16.mxu0 0
      %3797 = vmatpush2.bf16.msra.mxu0 0
      %3798 = vmatprep.subr.bf16.mxu0 0
      %3799 = vmatpush2.bf16.msra.mxu0 0
      %3800 = vmatprep.subr.bf16.mxu0 0
      %3801 = vmatpush2.bf16.msra.mxu0 0
      %3802 = vmatprep.mubr.bf16.mxu0 0
      %3803 = vmatmul.mubr.bf16.gmra.mxu0 %v3689
      %v3804 = vpop.f32.mrf.mxu0
      %v3805 = vadd.f32 0.0, %v3804
      %v3806 = vpop.f32.mrf.mxu0
      %v3807 = vpop.f32.mrf.mxu0
      %v3808 = vadd.f32 0.0, %v3807
      %v3809 = vpop.f32.mrf.mxu0
      %3810 = vmatprep.mubr.bf16.mxu0 0
      %3811 = vmatmul.mubr.bf16.gmra.mxu0 %v3690
      %v3812 = vpop.f32.mrf.mxu0
      %v3813 = vadd.f32 0.0, %v3812
      %v3814 = vpop.f32.mrf.mxu0
      %v3815 = vpop.f32.mrf.mxu0
      %v3816 = vadd.f32 0.0, %v3815
      %v3817 = vpop.f32.mrf.mxu0
      %3818 = vmatprep.mubr.bf16.mxu0 0
      %3819 = vmatmul.mubr.bf16.gmra.mxu0 %v3691
      %v3820 = vpop.f32.mrf.mxu0
      %v3821 = vadd.f32 0.0, %v3820
      %v3822 = vpop.f32.mrf.mxu0
      %v3823 = vpop.f32.mrf.mxu0
      %v3824 = vadd.f32 0.0, %v3823
      %v3825 = vpop.f32.mrf.mxu0
      %3826 = vmatprep.mubr.bf16.mxu0 0
      %3827 = vmatmul.mubr.bf16.gmra.mxu0 %v3692
      %v3828 = vpop.f32.mrf.mxu0
      %v3829 = vadd.f32 0.0, %v3828
      %v3830 = vpop.f32.mrf.mxu0
      %v3831 = vpop.f32.mrf.mxu0
      %v3832 = vadd.f32 0.0, %v3831
      %v3833 = vpop.f32.mrf.mxu0
      %3834 = vmatprep.mubr.bf16.mxu0 0
      %3835 = vmatmul.mubr.bf16.gmra.mxu0 %v3693
      %v3836 = vpop.f32.mrf.mxu0
      %v3837 = vadd.f32 0.0, %v3836
      %v3838 = vpop.f32.mrf.mxu0
      %v3839 = vpop.f32.mrf.mxu0
      %v3840 = vadd.f32 0.0, %v3839
      %v3841 = vpop.f32.mrf.mxu0
      %3842 = vmatprep.mubr.bf16.mxu0 0
      %3843 = vmatmul.mubr.bf16.gmra.mxu0 %v3694
      %v3844 = vpop.f32.mrf.mxu0
      %v3845 = vadd.f32 0.0, %v3844
      %v3846 = vpop.f32.mrf.mxu0
      %v3847 = vpop.f32.mrf.mxu0
      %v3848 = vadd.f32 0.0, %v3847
      %v3849 = vpop.f32.mrf.mxu0
      %3850 = vmatprep.mubr.bf16.mxu0 0
      %3851 = vmatmul.mubr.bf16.gmra.mxu0 %v3695
      %v3852 = vpop.f32.mrf.mxu0
      %v3853 = vadd.f32 0.0, %v3852
      %v3854 = vpop.f32.mrf.mxu0
      %v3855 = vpop.f32.mrf.mxu0
      %v3856 = vadd.f32 0.0, %v3855
      %v3857 = vpop.f32.mrf.mxu0
      %3858 = vmatprep.mubr.bf16.mxu0 0
      %3859 = vmatmul.mubr.bf16.gmra.mxu0 %v3696
      %v3860 = vpop.f32.mrf.mxu0
      %v3861 = vadd.f32 0.0, %v3860
      %v3862 = vpop.f32.mrf.mxu0
      %v3863 = vpop.f32.mrf.mxu0
      %v3864 = vadd.f32 0.0, %v3863
      %v3865 = vpop.f32.mrf.mxu0
      %3866 = vmatprep.mubr.bf16.mxu0 0
      %3867 = vmatmul.mubr.bf16.gmra.mxu0 %v3697
      %v3868 = vpop.f32.mrf.mxu0
      %v3869 = vadd.f32 0.0, %v3868
      %v3870 = vpop.f32.mrf.mxu0
      %v3871 = vpop.f32.mrf.mxu0
      %v3872 = vadd.f32 0.0, %v3871
      %v3873 = vpop.f32.mrf.mxu0
      %3874 = vmatprep.mubr.bf16.mxu0 0
      %3875 = vmatmul.mubr.bf16.gmra.mxu0 %v3698
      %v3876 = vpop.f32.mrf.mxu0
      %v3877 = vadd.f32 0.0, %v3876
      %v3878 = vpop.f32.mrf.mxu0
      %v3879 = vpop.f32.mrf.mxu0
      %v3880 = vadd.f32 0.0, %v3879
      %v3881 = vpop.f32.mrf.mxu0
      %3882 = vmatprep.mubr.bf16.mxu0 0
      %3883 = vmatmul.mubr.bf16.gmra.mxu0 %v3699
      %v3884 = vpop.f32.mrf.mxu0
      %v3885 = vadd.f32 0.0, %v3884
      %v3886 = vpop.f32.mrf.mxu0
      %v3887 = vpop.f32.mrf.mxu0
      %v3888 = vadd.f32 0.0, %v3887
      %v3889 = vpop.f32.mrf.mxu0
      %3890 = vmatprep.mubr.bf16.mxu0 0
      %3891 = vmatmul.mubr.bf16.gmra.mxu0 %v3700
      %v3892 = vpop.f32.mrf.mxu0
      %v3893 = vadd.f32 0.0, %v3892
      %v3894 = vpop.f32.mrf.mxu0
      %v3895 = vpop.f32.mrf.mxu0
      %v3896 = vadd.f32 0.0, %v3895
      %v3897 = vpop.f32.mrf.mxu0
      %3898 = vmatprep.mubr.bf16.mxu0 0
      %3899 = vmatmul.mubr.bf16.gmra.mxu0 %v3701
      %v3900 = vpop.f32.mrf.mxu0
      %v3901 = vadd.f32 0.0, %v3900
      %v3902 = vpop.f32.mrf.mxu0
      %v3903 = vpop.f32.mrf.mxu0
      %v3904 = vadd.f32 0.0, %v3903
      %v3905 = vpop.f32.mrf.mxu0
      %3906 = vmatprep.mubr.bf16.mxu0 0
      %3907 = vmatmul.mubr.bf16.gmra.mxu0 %v3702
      %v3908 = vpop.f32.mrf.mxu0
      %v3909 = vadd.f32 0.0, %v3908
      %v3910 = vpop.f32.mrf.mxu0
      %v3911 = vpop.f32.mrf.mxu0
      %v3912 = vadd.f32 0.0, %v3911
      %v3913 = vpop.f32.mrf.mxu0
      %3914 = vmatprep.mubr.bf16.mxu0 0
      %3915 = vmatmul.mubr.bf16.gmra.mxu0 %v3703
      %v3916 = vpop.f32.mrf.mxu0
      %v3917 = vadd.f32 0.0, %v3916
      %v3918 = vpop.f32.mrf.mxu0
      %v3919 = vpop.f32.mrf.mxu0
      %v3920 = vadd.f32 0.0, %v3919
      %v3921 = vpop.f32.mrf.mxu0
      %3922 = vmatprep.mubr.bf16.mxu0 0
      %3923 = vmatmul.mubr.bf16.gmra.mxu0 %v3704
      %v3924 = vpop.f32.mrf.mxu0
      %v3925 = vadd.f32 0.0, %v3924
      %v3926 = vpop.f32.mrf.mxu0
      %v3927 = vpop.f32.mrf.mxu0
      %v3928 = vadd.f32 0.0, %v3927
      %v3929 = vpop.f32.mrf.mxu0
      %3930 = vdwg.mxu0
      %v3931 = vadd.f32 %v3593, %v3805
      %v3932 = vadd.f32 %v3594, %v3808
      %v3933 = vadd.f32 %v3595, %v3813
      %v3934 = vadd.f32 %v3596, %v3816
      %v3935 = vadd.f32 %v3597, %v3821
      %v3936 = vadd.f32 %v3598, %v3824
      %v3937 = vadd.f32 %v3599, %v3829
      %v3938 = vadd.f32 %v3600, %v3832
      %v3939 = vadd.f32 %v3601, %v3837
      %v3940 = vadd.f32 %v3602, %v3840
      %v3941 = vadd.f32 %v3603, %v3845
      %v3942 = vadd.f32 %v3604, %v3848
      %v3943 = vadd.f32 %v3605, %v3853
      %v3944 = vadd.f32 %v3606, %v3856
      %v3945 = vadd.f32 %v3607, %v3861
      %v3946 = vadd.f32 %v3608, %v3864
      %v3947 = vadd.f32 %v3609, %v3869
      %v3948 = vadd.f32 %v3610, %v3872
      %v3949 = vadd.f32 %v3611, %v3877
      %v3950 = vadd.f32 %v3612, %v3880
      %v3951 = vadd.f32 %v3613, %v3885
      %v3952 = vadd.f32 %v3614, %v3888
      %v3953 = vadd.f32 %v3615, %v3893
      %v3954 = vadd.f32 %v3616, %v3896
      %v3955 = vadd.f32 %v3617, %v3901
      %v3956 = vadd.f32 %v3618, %v3904
      %v3957 = vadd.f32 %v3619, %v3909
      %v3958 = vadd.f32 %v3620, %v3912
      %v3959 = vadd.f32 %v3621, %v3917
      %v3960 = vadd.f32 %v3622, %v3920
      %v3961 = vadd.f32 %v3623, %v3925
      %v3962 = vadd.f32 %v3624, %v3928
      %v3963 = vld [vmem:[%s5] sm:$0x1]
      %v3965 = vlaneseq
      %v3966 = vshrl.u32 %v3965, 7
      %v3967 = vsub.s32 0, %v3966
      %v3968 = vrot.slane %v3963, %v3967
      %v3970 = vadd.f32 %v3931, %v3968
      %v3971 = vadd.f32 %v3932, %v3968
      %v3972 = vadd.f32 %v3933, %v3968
      %v3973 = vadd.f32 %v3934, %v3968
      %v3974 = vadd.f32 %v3935, %v3968
      %v3975 = vadd.f32 %v3936, %v3968
      %v3976 = vadd.f32 %v3937, %v3968
      %v3977 = vadd.f32 %v3938, %v3968
      %v3978 = vadd.f32 %v3939, %v3968
      %v3979 = vadd.f32 %v3940, %v3968
      %v3980 = vadd.f32 %v3941, %v3968
      %v3981 = vadd.f32 %v3942, %v3968
      %v3982 = vadd.f32 %v3943, %v3968
      %v3983 = vadd.f32 %v3944, %v3968
      %v3984 = vadd.f32 %v3945, %v3968
      %v3985 = vadd.f32 %v3946, %v3968
      %v3986 = vadd.f32 %v3947, %v3968
      %v3987 = vadd.f32 %v3948, %v3968
      %v3988 = vadd.f32 %v3949, %v3968
      %v3989 = vadd.f32 %v3950, %v3968
      %v3990 = vadd.f32 %v3951, %v3968
      %v3991 = vadd.f32 %v3952, %v3968
      %v3992 = vadd.f32 %v3953, %v3968
      %v3993 = vadd.f32 %v3954, %v3968
      %v3994 = vadd.f32 %v3955, %v3968
      %v3995 = vadd.f32 %v3956, %v3968
      %v3996 = vadd.f32 %v3957, %v3968
      %v3997 = vadd.f32 %v3958, %v3968
      %v3998 = vadd.f32 %v3959, %v3968
      %v3999 = vadd.f32 %v3960, %v3968
      %v4000 = vadd.f32 %v3961, %v3968
      %v4001 = vadd.f32 %v3962, %v3968
      %v4002 = vld [vmem:[%s404] sm:$0xff]
      %v4003 = vld [vmem:[%s404 + $0x8] sm:$0xff]
      %v4004 = vld [vmem:[%s404 + $0x10] sm:$0xff]
      %v4005 = vld [vmem:[%s404 + $0x18] sm:$0xff]
      %v4006 = vld [vmem:[%s404 + $0x20] sm:$0xff]
      %v4007 = vld [vmem:[%s404 + $0x28] sm:$0xff]
      %v4008 = vld [vmem:[%s404 + $0x30] sm:$0xff]
      %v4009 = vld [vmem:[%s404 + $0x38] sm:$0xff]
      %v4010 = vld [vmem:[%s404 + $0x40] sm:$0xff]
      %v4011 = vld [vmem:[%s404 + $0x48] sm:$0xff]
      %v4012 = vld [vmem:[%s404 + $0x50] sm:$0xff]
      %v4013 = vld [vmem:[%s404 + $0x58] sm:$0xff]
      %v4014 = vld [vmem:[%s404 + $0x60] sm:$0xff]
      %v4015 = vld [vmem:[%s404 + $0x68] sm:$0xff]
      %v4016 = vld [vmem:[%s404 + $0x70] sm:$0xff]
      %v4017 = vld [vmem:[%s404 + $0x78] sm:$0xff]
      %v4018 = vld [vmem:[%s404 + $0x80] sm:$0xff]
      %v4019 = vld [vmem:[%s404 + $0x88] sm:$0xff]
      %v4020 = vld [vmem:[%s404 + $0x90] sm:$0xff]
      %v4021 = vld [vmem:[%s404 + $0x98] sm:$0xff]
      %v4022 = vld [vmem:[%s404 + $0xa0] sm:$0xff]
      %v4023 = vld [vmem:[%s404 + $0xa8] sm:$0xff]
      %v4024 = vld [vmem:[%s404 + $0xb0] sm:$0xff]
      %v4025 = vld [vmem:[%s404 + $0xb8] sm:$0xff]
      %v4026 = vld [vmem:[%s404 + $0xc0] sm:$0xff]
      %v4027 = vld [vmem:[%s404 + $0xc8] sm:$0xff]
      %v4028 = vld [vmem:[%s404 + $0xd0] sm:$0xff]
      %v4029 = vld [vmem:[%s404 + $0xd8] sm:$0xff]
      %v4030 = vld [vmem:[%s404 + $0xe0] sm:$0xff]
      %v4031 = vld [vmem:[%s404 + $0xe8] sm:$0xff]
      %v4032 = vld [vmem:[%s404 + $0xf0] sm:$0xff]
      %v4033 = vld [vmem:[%s404 + $0xf8] sm:$0xff]
      %v4034 = vpack.c.bf16 %v4003, %v4002
      %v4035 = vpack.c.bf16 %v4005, %v4004
      %v4036 = vpack.c.bf16 %v4007, %v4006
      %v4037 = vpack.c.bf16 %v4009, %v4008
      %v4038 = vpack.c.bf16 %v4011, %v4010
      %v4039 = vpack.c.bf16 %v4013, %v4012
      %v4040 = vpack.c.bf16 %v4015, %v4014
      %v4041 = vpack.c.bf16 %v4017, %v4016
      %v4042 = vpack.c.bf16 %v4019, %v4018
      %v4043 = vpack.c.bf16 %v4021, %v4020
      %v4044 = vpack.c.bf16 %v4023, %v4022
      %v4045 = vpack.c.bf16 %v4025, %v4024
      %v4046 = vpack.c.bf16 %v4027, %v4026
      %v4047 = vpack.c.bf16 %v4029, %v4028
      %v4048 = vpack.c.bf16 %v4031, %v4030
      %v4049 = vpack.c.bf16 %v4033, %v4032
      %v4050 = vld [vmem:[%s6] sm:$0xf]
      %v4051 = vld [vmem:[%s6 + $0x4] sm:$0xf]
      %v4052 = vld [vmem:[%s6 + $0x8] sm:$0xf]
      %v4053 = vld [vmem:[%s6 + $0xc] sm:$0xf]
      %v4054 = vld [vmem:[%s6 + $0x10] sm:$0xf]
      %v4055 = vld [vmem:[%s6 + $0x14] sm:$0xf]
      %v4056 = vld [vmem:[%s6 + $0x18] sm:$0xf]
      %v4057 = vld [vmem:[%s6 + $0x1c] sm:$0xf]
      %v4058 = vld [vmem:[%s6 + $0x20] sm:$0xf]
      %v4059 = vld [vmem:[%s6 + $0x24] sm:$0xf]
      %v4060 = vld [vmem:[%s6 + $0x28] sm:$0xf]
      %v4061 = vld [vmem:[%s6 + $0x2c] sm:$0xf]
      %v4062 = vld [vmem:[%s6 + $0x30] sm:$0xf]
      %v4063 = vld [vmem:[%s6 + $0x34] sm:$0xf]
      %v4064 = vld [vmem:[%s6 + $0x38] sm:$0xf]
      %v4065 = vld [vmem:[%s6 + $0x3c] sm:$0xf]
      %v4066 = vld [vmem:[%s7] sm:$0x1]
      %v4068 = vlaneseq
      %v4069 = vshrl.u32 %v4068, 7
      %v4070 = vsub.s32 0, %v4069
      %v4071 = vrot.slane %v4066, %v4070
      %v4089 = vunpack.c.l.b16 %v4050
      %v4090 = vunpack.c.l.b16 %v4051
      %v4091 = vunpack.c.l.b16 %v4052
      %v4092 = vunpack.c.l.b16 %v4053
      %v4093 = vunpack.c.l.b16 %v4054
      %v4094 = vunpack.c.l.b16 %v4055
      %v4095 = vunpack.c.l.b16 %v4056
      %v4096 = vunpack.c.l.b16 %v4057
      %v4097 = vunpack.c.l.b16 %v4058
      %v4098 = vunpack.c.l.b16 %v4059
      %v4099 = vunpack.c.l.b16 %v4060
      %v4100 = vunpack.c.l.b16 %v4061
      %v4101 = vunpack.c.l.b16 %v4062
      %v4102 = vunpack.c.l.b16 %v4063
      %v4103 = vunpack.c.l.b16 %v4064
      %v4104 = vunpack.c.l.b16 %v4065
      %v4105 = vpack.c.b16 %v4090, %v4089
      %v4106 = vpack.c.b16 %v4092, %v4091
      %v4107 = vpack.c.b16 %v4094, %v4093
      %v4108 = vpack.c.b16 %v4096, %v4095
      %v4109 = vpack.c.b16 %v4098, %v4097
      %v4110 = vpack.c.b16 %v4100, %v4099
      %v4111 = vpack.c.b16 %v4102, %v4101
      %v4112 = vpack.c.b16 %v4104, %v4103
      %4121 = vmatprep.subr.bf16.mxu0 0
      %4122 = vmatpush1.bf16.msra.mxu0 %v4112
      %4123 = vmatprep.subr.bf16.mxu0 0
      %4124 = vmatpush1.bf16.msra.mxu0 %v4111
      %4125 = vmatprep.subr.bf16.mxu0 0
      %4126 = vmatpush1.bf16.msra.mxu0 %v4110
      %4127 = vmatprep.subr.bf16.mxu0 0
      %4128 = vmatpush1.bf16.msra.mxu0 %v4109
      %4129 = vmatprep.subr.bf16.mxu0 0
      %4130 = vmatpush1.bf16.msra.mxu0 %v4108
      %4131 = vmatprep.subr.bf16.mxu0 0
      %4132 = vmatpush1.bf16.msra.mxu0 %v4107
      %4133 = vmatprep.subr.bf16.mxu0 0
      %4134 = vmatpush1.bf16.msra.mxu0 %v4106
      %4135 = vmatprep.subr.bf16.mxu0 0
      %4136 = vmatpush1.bf16.msra.mxu0 %v4105
      %4137 = vmatprep.subr.bf16.mxu0 0
      %4138 = vmatpush2.bf16.msra.mxu0 0
      %4139 = vmatprep.subr.bf16.mxu0 0
      %4140 = vmatpush2.bf16.msra.mxu0 0
      %4141 = vmatprep.subr.bf16.mxu0 0
      %4142 = vmatpush2.bf16.msra.mxu0 0
      %4143 = vmatprep.subr.bf16.mxu0 0
      %4144 = vmatpush2.bf16.msra.mxu0 0
      %4145 = vmatprep.subr.bf16.mxu0 0
      %4146 = vmatpush2.bf16.msra.mxu0 0
      %4147 = vmatprep.subr.bf16.mxu0 0
      %4148 = vmatpush2.bf16.msra.mxu0 0
      %4149 = vmatprep.subr.bf16.mxu0 0
      %4150 = vmatpush2.bf16.msra.mxu0 0
      %4151 = vmatprep.subr.bf16.mxu0 0
      %4152 = vmatpush2.bf16.msra.mxu0 0
      %4153 = vmatprep.mubr.bf16.mxu0 0
      %4154 = vmatmul.mubr.bf16.gmra.mxu0 %v4034
      %v4155 = vpop.f32.mrf.mxu0
      %v4156 = vadd.f32 %v4071, %v4155
      %v4157 = vpop.f32.mrf.mxu0
      %v4158 = vpop.f32.mrf.mxu0
      %v4159 = vadd.f32 %v4071, %v4158
      %v4160 = vpop.f32.mrf.mxu0
      %4161 = vmatprep.mubr.bf16.mxu0 0
      %4162 = vmatmul.mubr.bf16.gmra.mxu0 %v4035
      %v4163 = vpop.f32.mrf.mxu0
      %v4164 = vadd.f32 %v4071, %v4163
      %v4165 = vpop.f32.mrf.mxu0
      %v4166 = vpop.f32.mrf.mxu0
      %v4167 = vadd.f32 %v4071, %v4166
      %v4168 = vpop.f32.mrf.mxu0
      %4169 = vmatprep.mubr.bf16.mxu0 0
      %4170 = vmatmul.mubr.bf16.gmra.mxu0 %v4036
      %v4171 = vpop.f32.mrf.mxu0
      %v4172 = vadd.f32 %v4071, %v4171
      %v4173 = vpop.f32.mrf.mxu0
      %v4174 = vpop.f32.mrf.mxu0
      %v4175 = vadd.f32 %v4071, %v4174
      %v4176 = vpop.f32.mrf.mxu0
      %4177 = vmatprep.mubr.bf16.mxu0 0
      %4178 = vmatmul.mubr.bf16.gmra.mxu0 %v4037
      %v4179 = vpop.f32.mrf.mxu0
      %v4180 = vadd.f32 %v4071, %v4179
      %v4181 = vpop.f32.mrf.mxu0
      %v4182 = vpop.f32.mrf.mxu0
      %v4183 = vadd.f32 %v4071, %v4182
      %v4184 = vpop.f32.mrf.mxu0
      %4185 = vmatprep.mubr.bf16.mxu0 0
      %4186 = vmatmul.mubr.bf16.gmra.mxu0 %v4038
      %v4187 = vpop.f32.mrf.mxu0
      %v4188 = vadd.f32 %v4071, %v4187
      %v4189 = vpop.f32.mrf.mxu0
      %v4190 = vpop.f32.mrf.mxu0
      %v4191 = vadd.f32 %v4071, %v4190
      %v4192 = vpop.f32.mrf.mxu0
      %4193 = vmatprep.mubr.bf16.mxu0 0
      %4194 = vmatmul.mubr.bf16.gmra.mxu0 %v4039
      %v4195 = vpop.f32.mrf.mxu0
      %v4196 = vadd.f32 %v4071, %v4195
      %v4197 = vpop.f32.mrf.mxu0
      %v4198 = vpop.f32.mrf.mxu0
      %v4199 = vadd.f32 %v4071, %v4198
      %v4200 = vpop.f32.mrf.mxu0
      %4201 = vmatprep.mubr.bf16.mxu0 0
      %4202 = vmatmul.mubr.bf16.gmra.mxu0 %v4040
      %v4203 = vpop.f32.mrf.mxu0
      %v4204 = vadd.f32 %v4071, %v4203
      %v4205 = vpop.f32.mrf.mxu0
      %v4206 = vpop.f32.mrf.mxu0
      %v4207 = vadd.f32 %v4071, %v4206
      %v4208 = vpop.f32.mrf.mxu0
      %4209 = vmatprep.mubr.bf16.mxu0 0
      %4210 = vmatmul.mubr.bf16.gmra.mxu0 %v4041
      %v4211 = vpop.f32.mrf.mxu0
      %v4212 = vadd.f32 %v4071, %v4211
      %v4213 = vpop.f32.mrf.mxu0
      %v4214 = vpop.f32.mrf.mxu0
      %v4215 = vadd.f32 %v4071, %v4214
      %v4216 = vpop.f32.mrf.mxu0
      %4217 = vmatprep.mubr.bf16.mxu0 0
      %4218 = vmatmul.mubr.bf16.gmra.mxu0 %v4042
      %v4219 = vpop.f32.mrf.mxu0
      %v4220 = vadd.f32 %v4071, %v4219
      %v4221 = vpop.f32.mrf.mxu0
      %v4222 = vpop.f32.mrf.mxu0
      %v4223 = vadd.f32 %v4071, %v4222
      %v4224 = vpop.f32.mrf.mxu0
      %4225 = vmatprep.mubr.bf16.mxu0 0
      %4226 = vmatmul.mubr.bf16.gmra.mxu0 %v4043
      %v4227 = vpop.f32.mrf.mxu0
      %v4228 = vadd.f32 %v4071, %v4227
      %v4229 = vpop.f32.mrf.mxu0
      %v4230 = vpop.f32.mrf.mxu0
      %v4231 = vadd.f32 %v4071, %v4230
      %v4232 = vpop.f32.mrf.mxu0
      %4233 = vmatprep.mubr.bf16.mxu0 0
      %4234 = vmatmul.mubr.bf16.gmra.mxu0 %v4044
      %v4235 = vpop.f32.mrf.mxu0
      %v4236 = vadd.f32 %v4071, %v4235
      %v4237 = vpop.f32.mrf.mxu0
      %v4238 = vpop.f32.mrf.mxu0
      %v4239 = vadd.f32 %v4071, %v4238
      %v4240 = vpop.f32.mrf.mxu0
      %4241 = vmatprep.mubr.bf16.mxu0 0
      %4242 = vmatmul.mubr.bf16.gmra.mxu0 %v4045
      %v4243 = vpop.f32.mrf.mxu0
      %v4244 = vadd.f32 %v4071, %v4243
      %v4245 = vpop.f32.mrf.mxu0
      %v4246 = vpop.f32.mrf.mxu0
      %v4247 = vadd.f32 %v4071, %v4246
      %v4248 = vpop.f32.mrf.mxu0
      %4249 = vmatprep.mubr.bf16.mxu0 0
      %4250 = vmatmul.mubr.bf16.gmra.mxu0 %v4046
      %v4251 = vpop.f32.mrf.mxu0
      %v4252 = vadd.f32 %v4071, %v4251
      %v4253 = vpop.f32.mrf.mxu0
      %v4254 = vpop.f32.mrf.mxu0
      %v4255 = vadd.f32 %v4071, %v4254
      %v4256 = vpop.f32.mrf.mxu0
      %4257 = vmatprep.mubr.bf16.mxu0 0
      %4258 = vmatmul.mubr.bf16.gmra.mxu0 %v4047
      %v4259 = vpop.f32.mrf.mxu0
      %v4260 = vadd.f32 %v4071, %v4259
      %v4261 = vpop.f32.mrf.mxu0
      %v4262 = vpop.f32.mrf.mxu0
      %v4263 = vadd.f32 %v4071, %v4262
      %v4264 = vpop.f32.mrf.mxu0
      %4265 = vmatprep.mubr.bf16.mxu0 0
      %4266 = vmatmul.mubr.bf16.gmra.mxu0 %v4048
      %v4267 = vpop.f32.mrf.mxu0
      %v4268 = vadd.f32 %v4071, %v4267
      %v4269 = vpop.f32.mrf.mxu0
      %v4270 = vpop.f32.mrf.mxu0
      %v4271 = vadd.f32 %v4071, %v4270
      %v4272 = vpop.f32.mrf.mxu0
      %4273 = vmatprep.mubr.bf16.mxu0 0
      %4274 = vmatmul.mubr.bf16.gmra.mxu0 %v4049
      %v4275 = vpop.f32.mrf.mxu0
      %v4276 = vadd.f32 %v4071, %v4275
      %v4277 = vpop.f32.mrf.mxu0
      %v4278 = vpop.f32.mrf.mxu0
      %v4279 = vadd.f32 %v4071, %v4278
      %v4280 = vpop.f32.mrf.mxu0
      %4281 = vdwg.mxu0
      %v4282 = vadd.f32 %v3970, %v4156
      %v4283 = vadd.f32 %v3971, %v4159
      %v4284 = vadd.f32 %v3972, %v4164
      %v4285 = vadd.f32 %v3973, %v4167
      %v4286 = vadd.f32 %v3974, %v4172
      %v4287 = vadd.f32 %v3975, %v4175
      %v4288 = vadd.f32 %v3976, %v4180
      %v4289 = vadd.f32 %v3977, %v4183
      %v4290 = vadd.f32 %v3978, %v4188
      %v4291 = vadd.f32 %v3979, %v4191
      %v4292 = vadd.f32 %v3980, %v4196
      %v4293 = vadd.f32 %v3981, %v4199
      %v4294 = vadd.f32 %v3982, %v4204
      %v4295 = vadd.f32 %v3983, %v4207
      %v4296 = vadd.f32 %v3984, %v4212
      %v4297 = vadd.f32 %v3985, %v4215
      %v4298 = vadd.f32 %v3986, %v4220
      %v4299 = vadd.f32 %v3987, %v4223
      %v4300 = vadd.f32 %v3988, %v4228
      %v4301 = vadd.f32 %v3989, %v4231
      %v4302 = vadd.f32 %v3990, %v4236
      %v4303 = vadd.f32 %v3991, %v4239
      %v4304 = vadd.f32 %v3992, %v4244
      %v4305 = vadd.f32 %v3993, %v4247
      %v4306 = vadd.f32 %v3994, %v4252
      %v4307 = vadd.f32 %v3995, %v4255
      %v4308 = vadd.f32 %v3996, %v4260
      %v4309 = vadd.f32 %v3997, %v4263
      %v4310 = vadd.f32 %v3998, %v4268
      %v4311 = vadd.f32 %v3999, %v4271
      %v4312 = vadd.f32 %v4000, %v4276
      %v4313 = vadd.f32 %v4001, %v4279
      %4314 = vadd.xlane.f32.xlu0 %v4282
      %v4315 = vpop.xlane.xlu0 %4314
      %4316 = vadd.xlane.f32.xlu0 %v4283
      %v4317 = vpop.xlane.xlu0 %4316
      %4318 = vadd.xlane.f32.xlu0 %v4284
      %v4319 = vpop.xlane.xlu0 %4318
      %4320 = vadd.xlane.f32.xlu0 %v4285
      %v4321 = vpop.xlane.xlu0 %4320
      %4322 = vadd.xlane.f32.xlu0 %v4286
      %v4323 = vpop.xlane.xlu0 %4322
      %4324 = vadd.xlane.f32.xlu0 %v4287
      %v4325 = vpop.xlane.xlu0 %4324
      %4326 = vadd.xlane.f32.xlu0 %v4288
      %v4327 = vpop.xlane.xlu0 %4326
      %4328 = vadd.xlane.f32.xlu0 %v4289
      %v4329 = vpop.xlane.xlu0 %4328
      %4330 = vadd.xlane.f32.xlu0 %v4290
      %v4331 = vpop.xlane.xlu0 %4330
      %4332 = vadd.xlane.f32.xlu0 %v4291
      %v4333 = vpop.xlane.xlu0 %4332
      %4334 = vadd.xlane.f32.xlu0 %v4292
      %v4335 = vpop.xlane.xlu0 %4334
      %4336 = vadd.xlane.f32.xlu0 %v4293
      %v4337 = vpop.xlane.xlu0 %4336
      %4338 = vadd.xlane.f32.xlu0 %v4294
      %v4339 = vpop.xlane.xlu0 %4338
      %4340 = vadd.xlane.f32.xlu0 %v4295
      %v4341 = vpop.xlane.xlu0 %4340
      %4342 = vadd.xlane.f32.xlu0 %v4296
      %v4343 = vpop.xlane.xlu0 %4342
      %4344 = vadd.xlane.f32.xlu0 %v4297
      %v4345 = vpop.xlane.xlu0 %4344
      %4346 = vadd.xlane.f32.xlu0 %v4298
      %v4347 = vpop.xlane.xlu0 %4346
      %4348 = vadd.xlane.f32.xlu0 %v4299
      %v4349 = vpop.xlane.xlu0 %4348
      %4350 = vadd.xlane.f32.xlu0 %v4300
      %v4351 = vpop.xlane.xlu0 %4350
      %4352 = vadd.xlane.f32.xlu0 %v4301
      %v4353 = vpop.xlane.xlu0 %4352
      %4354 = vadd.xlane.f32.xlu0 %v4302
      %v4355 = vpop.xlane.xlu0 %4354
      %4356 = vadd.xlane.f32.xlu0 %v4303
      %v4357 = vpop.xlane.xlu0 %4356
      %4358 = vadd.xlane.f32.xlu0 %v4304
      %v4359 = vpop.xlane.xlu0 %4358
      %4360 = vadd.xlane.f32.xlu0 %v4305
      %v4361 = vpop.xlane.xlu0 %4360
      %4362 = vadd.xlane.f32.xlu0 %v4306
      %v4363 = vpop.xlane.xlu0 %4362
      %4364 = vadd.xlane.f32.xlu0 %v4307
      %v4365 = vpop.xlane.xlu0 %4364
      %4366 = vadd.xlane.f32.xlu0 %v4308
      %v4367 = vpop.xlane.xlu0 %4366
      %4368 = vadd.xlane.f32.xlu0 %v4309
      %v4369 = vpop.xlane.xlu0 %4368
      %4370 = vadd.xlane.f32.xlu0 %v4310
      %v4371 = vpop.xlane.xlu0 %4370
      %4372 = vadd.xlane.f32.xlu0 %v4311
      %v4373 = vpop.xlane.xlu0 %4372
      %4374 = vadd.xlane.f32.xlu0 %v4312
      %v4375 = vpop.xlane.xlu0 %4374
      %4376 = vadd.xlane.f32.xlu0 %v4313
      %v4377 = vpop.xlane.xlu0 %4376
      %v4378 = vadd.f32 %v4315, %v4317
      %v4379 = vadd.f32 %v4378, %v4319
      %v4380 = vadd.f32 %v4379, %v4321
      %v4381 = vadd.f32 %v4380, %v4323
      %v4382 = vadd.f32 %v4381, %v4325
      %v4383 = vadd.f32 %v4382, %v4327
      %v4384 = vadd.f32 %v4383, %v4329
      %v4385 = vadd.f32 %v4384, %v4331
      %v4386 = vadd.f32 %v4385, %v4333
      %v4387 = vadd.f32 %v4386, %v4335
      %v4388 = vadd.f32 %v4387, %v4337
      %v4389 = vadd.f32 %v4388, %v4339
      %v4390 = vadd.f32 %v4389, %v4341
      %v4391 = vadd.f32 %v4390, %v4343
      %v4392 = vadd.f32 %v4391, %v4345
      %v4393 = vadd.f32 %v4392, %v4347
      %v4394 = vadd.f32 %v4393, %v4349
      %v4395 = vadd.f32 %v4394, %v4351
      %v4396 = vadd.f32 %v4395, %v4353
      %v4397 = vadd.f32 %v4396, %v4355
      %v4398 = vadd.f32 %v4397, %v4357
      %v4399 = vadd.f32 %v4398, %v4359
      %v4400 = vadd.f32 %v4399, %v4361
      %v4401 = vadd.f32 %v4400, %v4363
      %v4402 = vadd.f32 %v4401, %v4365
      %v4403 = vadd.f32 %v4402, %v4367
      %v4404 = vadd.f32 %v4403, %v4369
      %v4405 = vadd.f32 %v4404, %v4371
      %v4406 = vadd.f32 %v4405, %v4373
      %v4407 = vadd.f32 %v4406, %v4375
      %v4408 = vadd.f32 %v4407, %v4377
      %v4409 = vrot.slane %v4408, 4
      %v4410 = vadd.f32 %v4408, %v4409
      %v4411 = vrot.slane %v4410, 2
      %v4412 = vadd.f32 %v4410, %v4411
      %v4413 = vrot.slane %v4412, 1
      %v4414 = vadd.f32 %v4412, %v4413
      %v4415 = vrcp.pop 2048.0
      %v4416 = vmul.f32 %v4414, %v4415
      %v4417 = vlaneseq
      %v4418 = vand.u32 %v4417, 127
      %vm4419 = vcmp.lt.s32.totalorder %v4418, 8
      %v4420 = vsub.f32 %v4282, %v4416
      %v4421 = vsub.f32 %v4283, %v4416
      %v4422 = vsub.f32 %v4284, %v4416
      %v4423 = vsub.f32 %v4285, %v4416
      %v4424 = vsub.f32 %v4286, %v4416
      %v4425 = vsub.f32 %v4287, %v4416
      %v4426 = vsub.f32 %v4288, %v4416
      %v4427 = vsub.f32 %v4289, %v4416
      %v4428 = vsub.f32 %v4290, %v4416
      %v4429 = vsub.f32 %v4291, %v4416
      %v4430 = vsub.f32 %v4292, %v4416
      %v4431 = vsub.f32 %v4293, %v4416
      %v4432 = vsub.f32 %v4294, %v4416
      %v4433 = vsub.f32 %v4295, %v4416
      %v4434 = vsub.f32 %v4296, %v4416
      %v4435 = vsub.f32 %v4297, %v4416
      %v4436 = vsub.f32 %v4298, %v4416
      %v4437 = vsub.f32 %v4299, %v4416
      %v4438 = vsub.f32 %v4300, %v4416
      %v4439 = vsub.f32 %v4301, %v4416
      %v4440 = vsub.f32 %v4302, %v4416
      %v4441 = vsub.f32 %v4303, %v4416
      %v4442 = vsub.f32 %v4304, %v4416
      %v4443 = vsub.f32 %v4305, %v4416
      %v4444 = vsub.f32 %v4306, %v4416
      %v4445 = vsub.f32 %v4307, %v4416
      %v4446 = vsub.f32 %v4308, %v4416
      %v4447 = vsub.f32 %v4309, %v4416
      %v4448 = vsub.f32 %v4310, %v4416
      %v4449 = vsub.f32 %v4311, %v4416
      %v4450 = vsub.f32 %v4312, %v4416
      %v4451 = vsub.f32 %v4313, %v4416
      %v4452 = vsel %vm4419, %v4420, 0.0
      %v4453 = vsel %vm4419, %v4421, 0.0
      %v4454 = vsel %vm4419, %v4422, 0.0
      %v4455 = vsel %vm4419, %v4423, 0.0
      %v4456 = vsel %vm4419, %v4424, 0.0
      %v4457 = vsel %vm4419, %v4425, 0.0
      %v4458 = vsel %vm4419, %v4426, 0.0
      %v4459 = vsel %vm4419, %v4427, 0.0
      %v4460 = vsel %vm4419, %v4428, 0.0
      %v4461 = vsel %vm4419, %v4429, 0.0
      %v4462 = vsel %vm4419, %v4430, 0.0
      %v4463 = vsel %vm4419, %v4431, 0.0
      %v4464 = vsel %vm4419, %v4432, 0.0
      %v4465 = vsel %vm4419, %v4433, 0.0
      %v4466 = vsel %vm4419, %v4434, 0.0
      %v4467 = vsel %vm4419, %v4435, 0.0
      %v4468 = vsel %vm4419, %v4436, 0.0
      %v4469 = vsel %vm4419, %v4437, 0.0
      %v4470 = vsel %vm4419, %v4438, 0.0
      %v4471 = vsel %vm4419, %v4439, 0.0
      %v4472 = vsel %vm4419, %v4440, 0.0
      %v4473 = vsel %vm4419, %v4441, 0.0
      %v4474 = vsel %vm4419, %v4442, 0.0
      %v4475 = vsel %vm4419, %v4443, 0.0
      %v4476 = vsel %vm4419, %v4444, 0.0
      %v4477 = vsel %vm4419, %v4445, 0.0
      %v4478 = vsel %vm4419, %v4446, 0.0
      %v4479 = vsel %vm4419, %v4447, 0.0
      %v4480 = vsel %vm4419, %v4448, 0.0
      %v4481 = vsel %vm4419, %v4449, 0.0
      %v4482 = vsel %vm4419, %v4450, 0.0
      %v4483 = vsel %vm4419, %v4451, 0.0
      %v4484 = vmul.f32 %v4452, %v4452
      %v4485 = vmul.f32 %v4453, %v4453
      %v4486 = vmul.f32 %v4454, %v4454
      %v4487 = vmul.f32 %v4455, %v4455
      %v4488 = vmul.f32 %v4456, %v4456
      %v4489 = vmul.f32 %v4457, %v4457
      %v4490 = vmul.f32 %v4458, %v4458
      %v4491 = vmul.f32 %v4459, %v4459
      %v4492 = vmul.f32 %v4460, %v4460
      %v4493 = vmul.f32 %v4461, %v4461
      %v4494 = vmul.f32 %v4462, %v4462
      %v4495 = vmul.f32 %v4463, %v4463
      %v4496 = vmul.f32 %v4464, %v4464
      %v4497 = vmul.f32 %v4465, %v4465
      %v4498 = vmul.f32 %v4466, %v4466
      %v4499 = vmul.f32 %v4467, %v4467
      %v4500 = vmul.f32 %v4468, %v4468
      %v4501 = vmul.f32 %v4469, %v4469
      %v4502 = vmul.f32 %v4470, %v4470
      %v4503 = vmul.f32 %v4471, %v4471
      %v4504 = vmul.f32 %v4472, %v4472
      %v4505 = vmul.f32 %v4473, %v4473
      %v4506 = vmul.f32 %v4474, %v4474
      %v4507 = vmul.f32 %v4475, %v4475
      %v4508 = vmul.f32 %v4476, %v4476
      %v4509 = vmul.f32 %v4477, %v4477
      %v4510 = vmul.f32 %v4478, %v4478
      %v4511 = vmul.f32 %v4479, %v4479
      %v4512 = vmul.f32 %v4480, %v4480
      %v4513 = vmul.f32 %v4481, %v4481
      %v4514 = vmul.f32 %v4482, %v4482
      %v4515 = vmul.f32 %v4483, %v4483
      %4516 = vadd.xlane.f32.xlu0 %v4484
      %v4517 = vpop.xlane.xlu0 %4516
      %4518 = vadd.xlane.f32.xlu0 %v4485
      %v4519 = vpop.xlane.xlu0 %4518
      %4520 = vadd.xlane.f32.xlu0 %v4486
      %v4521 = vpop.xlane.xlu0 %4520
      %4522 = vadd.xlane.f32.xlu0 %v4487
      %v4523 = vpop.xlane.xlu0 %4522
      %4524 = vadd.xlane.f32.xlu0 %v4488
      %v4525 = vpop.xlane.xlu0 %4524
      %4526 = vadd.xlane.f32.xlu0 %v4489
      %v4527 = vpop.xlane.xlu0 %4526
      %4528 = vadd.xlane.f32.xlu0 %v4490
      %v4529 = vpop.xlane.xlu0 %4528
      %4530 = vadd.xlane.f32.xlu0 %v4491
      %v4531 = vpop.xlane.xlu0 %4530
      %4532 = vadd.xlane.f32.xlu0 %v4492
      %v4533 = vpop.xlane.xlu0 %4532
      %4534 = vadd.xlane.f32.xlu0 %v4493
      %v4535 = vpop.xlane.xlu0 %4534
      %4536 = vadd.xlane.f32.xlu0 %v4494
      %v4537 = vpop.xlane.xlu0 %4536
      %4538 = vadd.xlane.f32.xlu0 %v4495
      %v4539 = vpop.xlane.xlu0 %4538
      %4540 = vadd.xlane.f32.xlu0 %v4496
      %v4541 = vpop.xlane.xlu0 %4540
      %4542 = vadd.xlane.f32.xlu0 %v4497
      %v4543 = vpop.xlane.xlu0 %4542
      %4544 = vadd.xlane.f32.xlu0 %v4498
      %v4545 = vpop.xlane.xlu0 %4544
      %4546 = vadd.xlane.f32.xlu0 %v4499
      %v4547 = vpop.xlane.xlu0 %4546
      %4548 = vadd.xlane.f32.xlu0 %v4500
      %v4549 = vpop.xlane.xlu0 %4548
      %4550 = vadd.xlane.f32.xlu0 %v4501
      %v4551 = vpop.xlane.xlu0 %4550
      %4552 = vadd.xlane.f32.xlu0 %v4502
      %v4553 = vpop.xlane.xlu0 %4552
      %4554 = vadd.xlane.f32.xlu0 %v4503
      %v4555 = vpop.xlane.xlu0 %4554
      %4556 = vadd.xlane.f32.xlu0 %v4504
      %v4557 = vpop.xlane.xlu0 %4556
      %4558 = vadd.xlane.f32.xlu0 %v4505
      %v4559 = vpop.xlane.xlu0 %4558
      %4560 = vadd.xlane.f32.xlu0 %v4506
      %v4561 = vpop.xlane.xlu0 %4560
      %4562 = vadd.xlane.f32.xlu0 %v4507
      %v4563 = vpop.xlane.xlu0 %4562
      %4564 = vadd.xlane.f32.xlu0 %v4508
      %v4565 = vpop.xlane.xlu0 %4564
      %4566 = vadd.xlane.f32.xlu0 %v4509
      %v4567 = vpop.xlane.xlu0 %4566
      %4568 = vadd.xlane.f32.xlu0 %v4510
      %v4569 = vpop.xlane.xlu0 %4568
      %4570 = vadd.xlane.f32.xlu0 %v4511
      %v4571 = vpop.xlane.xlu0 %4570
      %4572 = vadd.xlane.f32.xlu0 %v4512
      %v4573 = vpop.xlane.xlu0 %4572
      %4574 = vadd.xlane.f32.xlu0 %v4513
      %v4575 = vpop.xlane.xlu0 %4574
      %4576 = vadd.xlane.f32.xlu0 %v4514
      %v4577 = vpop.xlane.xlu0 %4576
      %4578 = vadd.xlane.f32.xlu0 %v4515
      %v4579 = vpop.xlane.xlu0 %4578
      %v4580 = vadd.f32 %v4517, %v4519
      %v4581 = vadd.f32 %v4580, %v4521
      %v4582 = vadd.f32 %v4581, %v4523
      %v4583 = vadd.f32 %v4582, %v4525
      %v4584 = vadd.f32 %v4583, %v4527
      %v4585 = vadd.f32 %v4584, %v4529
      %v4586 = vadd.f32 %v4585, %v4531
      %v4587 = vadd.f32 %v4586, %v4533
      %v4588 = vadd.f32 %v4587, %v4535
      %v4589 = vadd.f32 %v4588, %v4537
      %v4590 = vadd.f32 %v4589, %v4539
      %v4591 = vadd.f32 %v4590, %v4541
      %v4592 = vadd.f32 %v4591, %v4543
      %v4593 = vadd.f32 %v4592, %v4545
      %v4594 = vadd.f32 %v4593, %v4547
      %v4595 = vadd.f32 %v4594, %v4549
      %v4596 = vadd.f32 %v4595, %v4551
      %v4597 = vadd.f32 %v4596, %v4553
      %v4598 = vadd.f32 %v4597, %v4555
      %v4599 = vadd.f32 %v4598, %v4557
      %v4600 = vadd.f32 %v4599, %v4559
      %v4601 = vadd.f32 %v4600, %v4561
      %v4602 = vadd.f32 %v4601, %v4563
      %v4603 = vadd.f32 %v4602, %v4565
      %v4604 = vadd.f32 %v4603, %v4567
      %v4605 = vadd.f32 %v4604, %v4569
      %v4606 = vadd.f32 %v4605, %v4571
      %v4607 = vadd.f32 %v4606, %v4573
      %v4608 = vadd.f32 %v4607, %v4575
      %v4609 = vadd.f32 %v4608, %v4577
      %v4610 = vadd.f32 %v4609, %v4579
      %v4611 = vrot.slane %v4610, 4
      %v4612 = vadd.f32 %v4610, %v4611
      %v4613 = vrot.slane %v4612, 2
      %v4614 = vadd.f32 %v4612, %v4613
      %v4615 = vrot.slane %v4614, 1
      %v4616 = vadd.f32 %v4614, %v4615
      %v4617 = vrcp.pop 2047.0
      %v4618 = vmul.f32 %v4616, %v4617
      %v4619 = vrsqrt.pop %v4618
      %v4620 = vmul.f32 %v4452, %v4619
      %v4621 = vmul.f32 %v4453, %v4619
      %v4622 = vmul.f32 %v4454, %v4619
      %v4623 = vmul.f32 %v4455, %v4619
      %v4624 = vmul.f32 %v4456, %v4619
      %v4625 = vmul.f32 %v4457, %v4619
      %v4626 = vmul.f32 %v4458, %v4619
      %v4627 = vmul.f32 %v4459, %v4619
      %v4628 = vmul.f32 %v4460, %v4619
      %v4629 = vmul.f32 %v4461, %v4619
      %v4630 = vmul.f32 %v4462, %v4619
      %v4631 = vmul.f32 %v4463, %v4619
      %v4632 = vmul.f32 %v4464, %v4619
      %v4633 = vmul.f32 %v4465, %v4619
      %v4634 = vmul.f32 %v4466, %v4619
      %v4635 = vmul.f32 %v4467, %v4619
      %v4636 = vmul.f32 %v4468, %v4619
      %v4637 = vmul.f32 %v4469, %v4619
      %v4638 = vmul.f32 %v4470, %v4619
      %v4639 = vmul.f32 %v4471, %v4619
      %v4640 = vmul.f32 %v4472, %v4619
      %v4641 = vmul.f32 %v4473, %v4619
      %v4642 = vmul.f32 %v4474, %v4619
      %v4643 = vmul.f32 %v4475, %v4619
      %v4644 = vmul.f32 %v4476, %v4619
      %v4645 = vmul.f32 %v4477, %v4619
      %v4646 = vmul.f32 %v4478, %v4619
      %v4647 = vmul.f32 %v4479, %v4619
      %v4648 = vmul.f32 %v4480, %v4619
      %v4649 = vmul.f32 %v4481, %v4619
      %v4650 = vmul.f32 %v4482, %v4619
      %v4651 = vmul.f32 %v4483, %v4619
      %v4652 = vld [vmem:[%s409] sm:$0xff]
      %v4653 = vld [vmem:[%s409 + $0x8] sm:$0xff]
      %v4654 = vld [vmem:[%s409 + $0x10] sm:$0xff]
      %v4655 = vld [vmem:[%s409 + $0x18] sm:$0xff]
      %v4656 = vld [vmem:[%s409 + $0x20] sm:$0xff]
      %v4657 = vld [vmem:[%s409 + $0x28] sm:$0xff]
      %v4658 = vld [vmem:[%s409 + $0x30] sm:$0xff]
      %v4659 = vld [vmem:[%s409 + $0x38] sm:$0xff]
      %v4660 = vld [vmem:[%s409 + $0x40] sm:$0xff]
      %v4661 = vld [vmem:[%s409 + $0x48] sm:$0xff]
      %v4662 = vld [vmem:[%s409 + $0x50] sm:$0xff]
      %v4663 = vld [vmem:[%s409 + $0x58] sm:$0xff]
      %v4664 = vld [vmem:[%s409 + $0x60] sm:$0xff]
      %v4665 = vld [vmem:[%s409 + $0x68] sm:$0xff]
      %v4666 = vld [vmem:[%s409 + $0x70] sm:$0xff]
      %v4667 = vld [vmem:[%s409 + $0x78] sm:$0xff]
      %v4668 = vld [vmem:[%s409 + $0x80] sm:$0xff]
      %v4669 = vld [vmem:[%s409 + $0x88] sm:$0xff]
      %v4670 = vld [vmem:[%s409 + $0x90] sm:$0xff]
      %v4671 = vld [vmem:[%s409 + $0x98] sm:$0xff]
      %v4672 = vld [vmem:[%s409 + $0xa0] sm:$0xff]
      %v4673 = vld [vmem:[%s409 + $0xa8] sm:$0xff]
      %v4674 = vld [vmem:[%s409 + $0xb0] sm:$0xff]
      %v4675 = vld [vmem:[%s409 + $0xb8] sm:$0xff]
      %v4676 = vld [vmem:[%s409 + $0xc0] sm:$0xff]
      %v4677 = vld [vmem:[%s409 + $0xc8] sm:$0xff]
      %v4678 = vld [vmem:[%s409 + $0xd0] sm:$0xff]
      %v4679 = vld [vmem:[%s409 + $0xd8] sm:$0xff]
      %v4680 = vld [vmem:[%s409 + $0xe0] sm:$0xff]
      %v4681 = vld [vmem:[%s409 + $0xe8] sm:$0xff]
      %v4682 = vld [vmem:[%s409 + $0xf0] sm:$0xff]
      %v4683 = vld [vmem:[%s409 + $0xf8] sm:$0xff]
      %v4684 = vadd.f32 %v4652, 1.0
      %v4685 = vadd.f32 %v4653, 1.0
      %v4686 = vadd.f32 %v4654, 1.0
      %v4687 = vadd.f32 %v4655, 1.0
      %v4688 = vadd.f32 %v4656, 1.0
      %v4689 = vadd.f32 %v4657, 1.0
      %v4690 = vadd.f32 %v4658, 1.0
      %v4691 = vadd.f32 %v4659, 1.0
      %v4692 = vadd.f32 %v4660, 1.0
      %v4693 = vadd.f32 %v4661, 1.0
      %v4694 = vadd.f32 %v4662, 1.0
      %v4695 = vadd.f32 %v4663, 1.0
      %v4696 = vadd.f32 %v4664, 1.0
      %v4697 = vadd.f32 %v4665, 1.0
      %v4698 = vadd.f32 %v4666, 1.0
      %v4699 = vadd.f32 %v4667, 1.0
      %v4700 = vadd.f32 %v4668, 1.0
      %v4701 = vadd.f32 %v4669, 1.0
      %v4702 = vadd.f32 %v4670, 1.0
      %v4703 = vadd.f32 %v4671, 1.0
      %v4704 = vadd.f32 %v4672, 1.0
      %v4705 = vadd.f32 %v4673, 1.0
      %v4706 = vadd.f32 %v4674, 1.0
      %v4707 = vadd.f32 %v4675, 1.0
      %v4708 = vadd.f32 %v4676, 1.0
      %v4709 = vadd.f32 %v4677, 1.0
      %v4710 = vadd.f32 %v4678, 1.0
      %v4711 = vadd.f32 %v4679, 1.0
      %v4712 = vadd.f32 %v4680, 1.0
      %v4713 = vadd.f32 %v4681, 1.0
      %v4714 = vadd.f32 %v4682, 1.0
      %v4715 = vadd.f32 %v4683, 1.0
      %v4716 = vmul.f32 %v4620, %v4684
      %v4717 = vmul.f32 %v4621, %v4685
      %v4718 = vmul.f32 %v4622, %v4686
      %v4719 = vmul.f32 %v4623, %v4687
      %v4720 = vmul.f32 %v4624, %v4688
      %v4721 = vmul.f32 %v4625, %v4689
      %v4722 = vmul.f32 %v4626, %v4690
      %v4723 = vmul.f32 %v4627, %v4691
      %v4724 = vmul.f32 %v4628, %v4692
      %v4725 = vmul.f32 %v4629, %v4693
      %v4726 = vmul.f32 %v4630, %v4694
      %v4727 = vmul.f32 %v4631, %v4695
      %v4728 = vmul.f32 %v4632, %v4696
      %v4729 = vmul.f32 %v4633, %v4697
      %v4730 = vmul.f32 %v4634, %v4698
      %v4731 = vmul.f32 %v4635, %v4699
      %v4732 = vmul.f32 %v4636, %v4700
      %v4733 = vmul.f32 %v4637, %v4701
      %v4734 = vmul.f32 %v4638, %v4702
      %v4735 = vmul.f32 %v4639, %v4703
      %v4736 = vmul.f32 %v4640, %v4704
      %v4737 = vmul.f32 %v4641, %v4705
      %v4738 = vmul.f32 %v4642, %v4706
      %v4739 = vmul.f32 %v4643, %v4707
      %v4740 = vmul.f32 %v4644, %v4708
      %v4741 = vmul.f32 %v4645, %v4709
      %v4742 = vmul.f32 %v4646, %v4710
      %v4743 = vmul.f32 %v4647, %v4711
      %v4744 = vmul.f32 %v4648, %v4712
      %v4745 = vmul.f32 %v4649, %v4713
      %v4746 = vmul.f32 %v4650, %v4714
      %v4747 = vmul.f32 %v4651, %v4715
      %v4748 = vld [vmem:[%s414] sm:$0xff]
      %v4749 = vld [vmem:[%s414 + $0x8] sm:$0xff]
      %v4750 = vld [vmem:[%s414 + $0x10] sm:$0xff]
      %v4751 = vld [vmem:[%s414 + $0x18] sm:$0xff]
      %v4752 = vld [vmem:[%s414 + $0x20] sm:$0xff]
      %v4753 = vld [vmem:[%s414 + $0x28] sm:$0xff]
      %v4754 = vld [vmem:[%s414 + $0x30] sm:$0xff]
      %v4755 = vld [vmem:[%s414 + $0x38] sm:$0xff]
      %v4756 = vld [vmem:[%s414 + $0x40] sm:$0xff]
      %v4757 = vld [vmem:[%s414 + $0x48] sm:$0xff]
      %v4758 = vld [vmem:[%s414 + $0x50] sm:$0xff]
      %v4759 = vld [vmem:[%s414 + $0x58] sm:$0xff]
      %v4760 = vld [vmem:[%s414 + $0x60] sm:$0xff]
      %v4761 = vld [vmem:[%s414 + $0x68] sm:$0xff]
      %v4762 = vld [vmem:[%s414 + $0x70] sm:$0xff]
      %v4763 = vld [vmem:[%s414 + $0x78] sm:$0xff]
      %v4764 = vld [vmem:[%s414 + $0x80] sm:$0xff]
      %v4765 = vld [vmem:[%s414 + $0x88] sm:$0xff]
      %v4766 = vld [vmem:[%s414 + $0x90] sm:$0xff]
      %v4767 = vld [vmem:[%s414 + $0x98] sm:$0xff]
      %v4768 = vld [vmem:[%s414 + $0xa0] sm:$0xff]
      %v4769 = vld [vmem:[%s414 + $0xa8] sm:$0xff]
      %v4770 = vld [vmem:[%s414 + $0xb0] sm:$0xff]
      %v4771 = vld [vmem:[%s414 + $0xb8] sm:$0xff]
      %v4772 = vld [vmem:[%s414 + $0xc0] sm:$0xff]
      %v4773 = vld [vmem:[%s414 + $0xc8] sm:$0xff]
      %v4774 = vld [vmem:[%s414 + $0xd0] sm:$0xff]
      %v4775 = vld [vmem:[%s414 + $0xd8] sm:$0xff]
      %v4776 = vld [vmem:[%s414 + $0xe0] sm:$0xff]
      %v4777 = vld [vmem:[%s414 + $0xe8] sm:$0xff]
      %v4778 = vld [vmem:[%s414 + $0xf0] sm:$0xff]
      %v4779 = vld [vmem:[%s414 + $0xf8] sm:$0xff]
      %v4780 = vadd.f32 %v4716, %v4748
      %v4781 = vadd.f32 %v4717, %v4749
      %v4782 = vadd.f32 %v4718, %v4750
      %v4783 = vadd.f32 %v4719, %v4751
      %v4784 = vadd.f32 %v4720, %v4752
      %v4785 = vadd.f32 %v4721, %v4753
      %v4786 = vadd.f32 %v4722, %v4754
      %v4787 = vadd.f32 %v4723, %v4755
      %v4788 = vadd.f32 %v4724, %v4756
      %v4789 = vadd.f32 %v4725, %v4757
      %v4790 = vadd.f32 %v4726, %v4758
      %v4791 = vadd.f32 %v4727, %v4759
      %v4792 = vadd.f32 %v4728, %v4760
      %v4793 = vadd.f32 %v4729, %v4761
      %v4794 = vadd.f32 %v4730, %v4762
      %v4795 = vadd.f32 %v4731, %v4763
      %v4796 = vadd.f32 %v4732, %v4764
      %v4797 = vadd.f32 %v4733, %v4765
      %v4798 = vadd.f32 %v4734, %v4766
      %v4799 = vadd.f32 %v4735, %v4767
      %v4800 = vadd.f32 %v4736, %v4768
      %v4801 = vadd.f32 %v4737, %v4769
      %v4802 = vadd.f32 %v4738, %v4770
      %v4803 = vadd.f32 %v4739, %v4771
      %v4804 = vadd.f32 %v4740, %v4772
      %v4805 = vadd.f32 %v4741, %v4773
      %v4806 = vadd.f32 %v4742, %v4774
      %v4807 = vadd.f32 %v4743, %v4775
      %v4808 = vadd.f32 %v4744, %v4776
      %v4809 = vadd.f32 %v4745, %v4777
      %v4810 = vadd.f32 %v4746, %v4778
      %v4811 = vadd.f32 %v4747, %v4779
      %4812 = vst [vmem:[%s419] sm:$0xff] %v4780
      %4813 = vst [vmem:[%s419 + $0x8] sm:$0xff] %v4781
      %4814 = vst [vmem:[%s419 + $0x10] sm:$0xff] %v4782
      %4815 = vst [vmem:[%s419 + $0x18] sm:$0xff] %v4783
      %4816 = vst [vmem:[%s419 + $0x20] sm:$0xff] %v4784
      %4817 = vst [vmem:[%s419 + $0x28] sm:$0xff] %v4785
      %4818 = vst [vmem:[%s419 + $0x30] sm:$0xff] %v4786
      %4819 = vst [vmem:[%s419 + $0x38] sm:$0xff] %v4787
      %4820 = vst [vmem:[%s419 + $0x40] sm:$0xff] %v4788
      %4821 = vst [vmem:[%s419 + $0x48] sm:$0xff] %v4789
      %4822 = vst [vmem:[%s419 + $0x50] sm:$0xff] %v4790
      %4823 = vst [vmem:[%s419 + $0x58] sm:$0xff] %v4791
      %4824 = vst [vmem:[%s419 + $0x60] sm:$0xff] %v4792
      %4825 = vst [vmem:[%s419 + $0x68] sm:$0xff] %v4793
      %4826 = vst [vmem:[%s419 + $0x70] sm:$0xff] %v4794
      %4827 = vst [vmem:[%s419 + $0x78] sm:$0xff] %v4795
      %4828 = vst [vmem:[%s419 + $0x80] sm:$0xff] %v4796
      %4829 = vst [vmem:[%s419 + $0x88] sm:$0xff] %v4797
      %4830 = vst [vmem:[%s419 + $0x90] sm:$0xff] %v4798
      %4831 = vst [vmem:[%s419 + $0x98] sm:$0xff] %v4799
      %4832 = vst [vmem:[%s419 + $0xa0] sm:$0xff] %v4800
      %4833 = vst [vmem:[%s419 + $0xa8] sm:$0xff] %v4801
      %4834 = vst [vmem:[%s419 + $0xb0] sm:$0xff] %v4802
      %4835 = vst [vmem:[%s419 + $0xb8] sm:$0xff] %v4803
      %4836 = vst [vmem:[%s419 + $0xc0] sm:$0xff] %v4804
      %4837 = vst [vmem:[%s419 + $0xc8] sm:$0xff] %v4805
      %4838 = vst [vmem:[%s419 + $0xd0] sm:$0xff] %v4806
      %4839 = vst [vmem:[%s419 + $0xd8] sm:$0xff] %v4807
      %4840 = vst [vmem:[%s419 + $0xe0] sm:$0xff] %v4808
      %4841 = vst [vmem:[%s419 + $0xe8] sm:$0xff] %v4809
      %4842 = vst [vmem:[%s419 + $0xf0] sm:$0xff] %v4810
      %4843 = vst [vmem:[%s419 + $0xf8] sm:$0xff] %v4811
      %p4844 = scmp.lt.s32.totalorder %s21, 1
      %s4845 = scalar_select %p4844, %s21, 1
      %s4846 = smul.addr %s4845, 32
      %s4847 = smul.addr %s4846, 8
      %s4848 = scalar_lea.vmem %s10, %s4847
      // Predicated region
      $region61: #{gblock_forward.5} parent=59 // pred_check
        %p4849 = pneg %p269
      $region62: #{gblock_forward.5} parent=59 // pred_check_branch
        %4851 = sbr.rel (%p4849) target = $region64
      $region63: #{gblock_forward.5} parent=59 // pred_region
        _
      $region64: #{gblock_forward.5} parent=59 // pred_fallthru
        _
    $region60: #{gblock_forward.5} parent=5 // pred_fallthru
      _
    %p4852 = scmp.le.s32.totalorder 2, %s16
    // Predicated region
    $region65: #{gblock_forward.5} parent=5 // pred_check
      %p4853 = pneg %p4852
    $region66: #{gblock_forward.5} parent=5 // pred_check_branch
      %4855 = sbr.rel (%p4853) target = $region68
    $region67: #{gblock_forward.5} parent=5 // pred_region
      %s4856 = ssub.s32 %s16, 2
      // Predicated region
      $region69: #{gblock_forward.5} parent=67 // pred_check
        %p4857 = pneg %p275
      $region70: #{gblock_forward.5} parent=67 // pred_check_branch
        %4859 = sbr.rel (%p4857) target = $region72
      $region71: #{gblock_forward.5} parent=67 // pred_region
        %p4860 = scmp.lt.s32.totalorder %s22, 1
        %s4861 = scalar_select %p4860, %s22, 1
        %s4862 = smul.addr %s4861, 32
        %s4863 = smul.addr %s4862, 8
        %s4864 = scalar_lea.vmem %s10, %s4863
      $region72: #{gblock_forward.5} parent=67 // pred_fallthru
        _
    $region68: #{gblock_forward.5} parent=5 // pred_fallthru
      _
  $region6: #{gblock_forward.5} parent=0 // loop_footer
    %s20 = sadd.s32 1, %s16
  $region7: #{gblock_forward.5} parent=0 // loop_footer_branch
    %15 = sbr.rel target = $region3
  $region8: #{gblock_forward.5} parent=0 // loop_exit
    _

</llo_original>
